<compile_context>
chip_gen: v7x
topology: tpu7x:2x2x1
jax: 0.10.0
libtpu: 0.0.40
codegen_flags: <defaults>
</compile_context>

<pallas_src>
import math

import jax
import jax.numpy as jnp
from jax.experimental import pallas as pl
from jax.experimental.pallas import tpu as pltpu

# ---------------- config constants ----------------
B, S, HIDDEN, HEADS, INTER = 2, 8, 32, 4, 64
HEAD_DIM = HIDDEN // HEADS
NUM_DP = 4
LN_EPS = 1e-12


def _layernorm(y, gamma, beta):
    """torch-style LayerNorm over the last dim (biased variance, eps inside sqrt)."""
    mu = jnp.mean(y, axis=-1, keepdims=True)
    var = jnp.mean(jnp.square(y - mu), axis=-1, keepdims=True)
    return (y - mu) * jax.lax.rsqrt(var + LN_EPS) * gamma + beta


# ---------------- fused whole-layer kernel ----------------
def _fused_layer_kernel(
    # inputs
    x_ref, mask_ref, oh_ref, oht_ref,
    wqkv_ref, bqkv_ref, dpk_tab_ref, dpv_tab_ref,
    gkw_ref, gkb_ref, gvw_ref, gvb_ref,
    aow_ref, aob_ref, ln1g_ref, ln1b_ref,
    iw_ref, ib_ref, ow_ref, ob_ref, ln2g_ref, ln2b_ref,
    # output
    o_ref,
    # scratch
    qkv_s, ctx_s,
):
    f32 = jnp.float32
    inv_sqrt_d = 1.0 / math.sqrt(HEAD_DIM)

    x = x_ref[...]                                            # (B*S, HIDDEN)

    # ---- fused QKV projection: one lane-dense (16,32)@(32,96) MXU pass ----
    qkv = jnp.dot(x, wqkv_ref[...], preferred_element_type=f32) + bqkv_ref[...]
    qkv_s[...] = qkv                                          # stage in VMEM for per-head slicing

    dpk_tab = dpk_tab_ref[...]                                # (NUM_DP, Dh)
    dpv_tab = dpv_tab_ref[...]                                # (NUM_DP, Dh)

    for b in range(B):
        # in-kernel relation-embedding "lookup": one_hot @ table on the MXU
        oh_b = oh_ref[b]                                      # (S*S, NUM_DP), rows ordered (q, k)
        oht_b = oht_ref[b]                                    # (S*S, NUM_DP), rows ordered (k, q)
        dpk_b = jnp.dot(oh_b, dpk_tab,
                        preferred_element_type=f32).reshape(S, S, HEAD_DIM)   # dp_keys[b,q,k,:]
        dpv_b = jnp.dot(oh_b, dpv_tab,
                        preferred_element_type=f32).reshape(S, S, HEAD_DIM)   # dp_values[b,q,k,:]
        dpvT_b = jnp.dot(oht_b, dpv_tab,
                         preferred_element_type=f32).reshape(S, S, HEAD_DIM)  # dp_values[b,q,j,:] indexed [j,q,:]
        mask_b = mask_ref[b:b + 1, :]                         # (1, S) additive mask

        for h in range(HEADS):
            r0 = b * S
            c0 = h * HEAD_DIM
            q_bh = qkv_s[r0:r0 + S, c0:c0 + HEAD_DIM]                         # (S, Dh)
            k_bh = qkv_s[r0:r0 + S, HIDDEN + c0:HIDDEN + c0 + HEAD_DIM]       # (S, Dh)
            v_bh = qkv_s[r0:r0 + S, 2 * HIDDEN + c0:2 * HIDDEN + c0 + HEAD_DIM]

            # scores = q @ k^T / sqrt(d)   (NT matmul on the MXU)
            scores = jax.lax.dot_general(
                q_bh, k_bh, (((1,), (1,)), ((), ())),
                preferred_element_type=f32) * inv_sqrt_d                      # (S, S)

            # gate_key: sigmoid(Linear_{Dh->H}(dp_keys)) then torch .transpose(1,3):
            #   gate[b,h,q,k] = sigmoid( sum_d dp_keys[b,k,q,d]*Wgk[h,d] + bgk[h] )
            gkw_row = gkw_ref[h:h + 1, :]                     # (1, Dh)
            gkb_hh = gkb_ref[h:h + 1, :]                      # (1, 1)
            gpre = jnp.sum(dpk_b * gkw_row[None], axis=-1) + gkb_hh           # (S, S) over (i, j)
            gate_k = jax.nn.sigmoid(gpre).T                   # [q, k] <- sig[k, q]

            # relative_matmul_dp: rel_k[q,k] = sum_d q[q,d] * dp_keys[b,q,k,d]
            rel_k = jnp.sum(q_bh[:, None, :] * dpk_b, axis=-1)                # (S, S)

            scores = scores + gate_k * rel_k + mask_b

            # softmax over keys (attention dropout / head_mask are identity here)
            m = jnp.max(scores, axis=-1, keepdims=True)
            p = jnp.exp(scores - m)
            probs = p * pl.reciprocal(jnp.sum(p, axis=-1, keepdims=True), approx=False)

            ctx = jnp.dot(probs, v_bh, preferred_element_type=f32)            # (S, Dh)

            # relative_matmul_dpv: rel_v[q,d] = sum_k probs[q,k] * dp_values[b,q,k,d]
            rel_v = jnp.sum(probs[:, :, None] * dpv_b, axis=1)                # (S, Dh)

            # gate_value: sigmoid(Linear_{S->H}(dp_values.permute(0,1,3,2))).permute(0,3,1,2):
            #   gate_v[b,h,q,d] = sigmoid( sum_j dp_values[b,q,j,d]*Wgv[h,j] + bgv[h] )
            acc = jnp.zeros((S, HEAD_DIM), f32)
            for j in range(S):
                w_hj = gvw_ref[h, j:j + 1, :]                 # (1, 1) scalar weight Wgv[h, j]
                acc = acc + w_hj * dpvT_b[j]                  # dpvT_b[j][q,d] = dp_values[b,q,j,d]
            gate_v = jax.nn.sigmoid(acc + gvb_ref[h:h + 1, :])

            ctx = ctx + gate_v * rel_v

            # merge heads directly into the (B*S, HIDDEN) context buffer
            ctx_s[r0:r0 + S, c0:c0 + HEAD_DIM] = ctx

    ctx2d = ctx_s[...]                                        # (B*S, HIDDEN)

    # BertSelfOutput: dense + (dropout=id) + LayerNorm(residual = hidden_states)
    ao = jnp.dot(ctx2d, aow_ref[...], preferred_element_type=f32) + aob_ref[...]
    y1 = _layernorm(ao + x, ln1g_ref[...], ln1b_ref[...])

    # BertIntermediate: dense + gelu_new (tanh approximation)
    inter = jax.nn.gelu(
        jnp.dot(y1, iw_ref[...], preferred_element_type=f32) + ib_ref[...],
        approximate=True)

    # BertOutput: dense + (dropout=id) + LayerNorm(residual = attention_output)
    outp = jnp.dot(inter, ow_ref[...], preferred_element_type=f32) + ob_ref[...]
    y2 = _layernorm(outp + y1, ln2g_ref[...], ln2b_ref[...])

    o_ref[...] = y2.astype(o_ref.dtype)


# ---------------- parameter init (deterministic, synthetic) ----------------
def init_params(key):
    ks = jax.random.split(key, 16)

    def w(k, shape):
        return jax.random.normal(k, shape, jnp.float32) * 0.02

    return {
        # fused Q/K/V projection, stored (in, out) = torch W^T, columns = [Q | K | V]
        "qkv_w": w(ks[0], (HIDDEN, 3 * HIDDEN)),
        "qkv_b": w(ks[1], (1, 3 * HIDDEN)),
        # dependency-relation embedding tables
        "dp_rel_k": w(ks[2], (NUM_DP, HEAD_DIM)),
        "dp_rel_v": w(ks[3], (NUM_DP, HEAD_DIM)),
        # gate layers (torch Linear weight layout (out, in))
        "gate_k_w": w(ks[4], (HEADS, HEAD_DIM)),
        "gate_k_b": w(ks[5], (HEADS, 1)),
        "gate_v_w": w(ks[6], (HEADS, S, 1)),
        "gate_v_b": w(ks[7], (HEADS, 1)),
        # BertSelfOutput
        "ao_w": w(ks[8], (HIDDEN, HIDDEN)), "ao_b": w(ks[9], (1, HIDDEN)),
        "ln1_g": jnp.ones((1, HIDDEN), jnp.float32), "ln1_b": jnp.zeros((1, HIDDEN), jnp.float32),
        # BertIntermediate
        "inter_w": w(ks[10], (HIDDEN, INTER)), "inter_b": w(ks[11], (1, INTER)),
        # BertOutput
        "out_w": w(ks[12], (INTER, HIDDEN)), "out_b": w(ks[13], (1, HIDDEN)),
        "ln2_g": jnp.ones((1, HIDDEN), jnp.float32), "ln2_b": jnp.zeros((1, HIDDEN), jnp.float32),
    }


# ---------------- full BertGraphLayer forward (one pallas_call) ----------------
def bert_graph_layer(params, hidden_states, attention_mask, graph):
    x2d = hidden_states.reshape(B * S, HIDDEN)
    mask2d = attention_mask.reshape(B, S)
    # one-hot encodings of the relation ids (rows ordered (q,k) and (k,q));
    # the embedding lookup itself happens in-kernel as one_hot @ table.
    oh = jax.nn.one_hot(graph.reshape(B, S * S), NUM_DP, dtype=jnp.float32)
    oht = jax.nn.one_hot(jnp.swapaxes(graph, 1, 2).reshape(B, S * S), NUM_DP,
                         dtype=jnp.float32)

    out2d = pl.pallas_call(
        _fused_layer_kernel,
        out_shape=jax.ShapeDtypeStruct((B * S, HIDDEN), jnp.float32),
        scratch_shapes=[
            pltpu.VMEM((B * S, 3 * HIDDEN), jnp.float32),   # staged QKV for per-head slicing
            pltpu.VMEM((B * S, HIDDEN), jnp.float32),       # merged per-head context
        ],
    )(x2d, mask2d, oh, oht,
      params["qkv_w"], params["qkv_b"], params["dp_rel_k"], params["dp_rel_v"],
      params["gate_k_w"], params["gate_k_b"], params["gate_v_w"], params["gate_v_b"],
      params["ao_w"], params["ao_b"], params["ln1_g"], params["ln1_b"],
      params["inter_w"], params["inter_b"], params["out_w"], params["out_b"],
      params["ln2_g"], params["ln2_b"])

    return out2d.reshape(B, S, HIDDEN)


if __name__ == "__main__":
    key = jax.random.PRNGKey(0)
    pkey, hkey, gkey = jax.random.split(key, 3)

    params = init_params(pkey)
    hidden_states = jax.random.normal(hkey, (B, S, HIDDEN), jnp.float32)
    graph = jax.random.randint(gkey, (B, S, S), 0, NUM_DP, dtype=jnp.int32)

    # additive attention mask: mask out last 2 key positions of batch 1
    mask_1d = jnp.ones((B, S), jnp.float32).at[1, S - 2:].set(0.0)
    attention_mask = (1.0 - mask_1d)[:, None, None, :] * -10000.0

    fwd = jax.jit(bert_graph_layer)
    out = fwd(params, hidden_states, attention_mask, graph)
    out = jax.block_until_ready(out)
    assert out.shape == (B, S, HIDDEN) and bool(jnp.all(jnp.isfinite(out)))
    print("KERNEL_OK")
</pallas_src>

<mosaic_0001>
module attributes {stable_mosaic.version = 11 : i64} {
  func.func @_fused_layer_kernel(%arg0: memref<16x32xf32, #tpu.memory_space<vmem>>, %arg1: memref<2x8xf32, #tpu.memory_space<vmem>>, %arg2: memref<2x64x4xf32, #tpu.memory_space<vmem>>, %arg3: memref<2x64x4xf32, #tpu.memory_space<vmem>>, %arg4: memref<32x96xf32, #tpu.memory_space<vmem>>, %arg5: memref<1x96xf32, #tpu.memory_space<vmem>>, %arg6: memref<4x8xf32, #tpu.memory_space<vmem>>, %arg7: memref<4x8xf32, #tpu.memory_space<vmem>>, %arg8: memref<4x8xf32, #tpu.memory_space<vmem>>, %arg9: memref<4x1xf32, #tpu.memory_space<vmem>>, %arg10: memref<4x8x1xf32, #tpu.memory_space<vmem>>, %arg11: memref<4x1xf32, #tpu.memory_space<vmem>>, %arg12: memref<32x32xf32, #tpu.memory_space<vmem>>, %arg13: memref<1x32xf32, #tpu.memory_space<vmem>>, %arg14: memref<1x32xf32, #tpu.memory_space<vmem>>, %arg15: memref<1x32xf32, #tpu.memory_space<vmem>>, %arg16: memref<32x64xf32, #tpu.memory_space<vmem>>, %arg17: memref<1x64xf32, #tpu.memory_space<vmem>>, %arg18: memref<64x32xf32, #tpu.memory_space<vmem>>, %arg19: memref<1x32xf32, #tpu.memory_space<vmem>>, %arg20: memref<1x32xf32, #tpu.memory_space<vmem>>, %arg21: memref<1x32xf32, #tpu.memory_space<vmem>>, %arg22: memref<16x32xf32, #tpu.memory_space<vmem>>, %arg23: memref<16x96xf32, #tpu.memory_space<vmem>>, %arg24: memref<16x32xf32, #tpu.memory_space<vmem>>) attributes {dimension_semantics = [], scalar_prefetch = 0 : i64, scratch_operands = 2 : i64, tpu.core_type = #tpu.core_type<tc>} {
    %c0 = arith.constant 0 : index
    %c0_0 = arith.constant 0 : index
    %0 = vector.load %arg0[%c0, %c0_0] : memref<16x32xf32, #tpu.memory_space<vmem>>, vector<16x32xf32>
    %c0_1 = arith.constant 0 : index
    %c0_2 = arith.constant 0 : index
    %1 = vector.load %arg4[%c0_1, %c0_2] : memref<32x96xf32, #tpu.memory_space<vmem>>, vector<32x96xf32>
    %cst = arith.constant dense<0.000000e+00> : vector<16x96xf32>
    %2 = tpu.matmul %0, %1, %cst {dimension_numbers = #tpu.dot_dimension_numbers<[1], [0], [0], [1], [0, 0, 1, 1], [], []>} : vector<16x32xf32>, vector<32x96xf32>, vector<16x96xf32> -> vector<16x96xf32>
    %c0_3 = arith.constant 0 : index
    %c0_4 = arith.constant 0 : index
    %3 = vector.load %arg5[%c0_3, %c0_4] : memref<1x96xf32, #tpu.memory_space<vmem>>, vector<1x96xf32>
    %4 = vector.broadcast %3 : vector<1x96xf32> to vector<16x96xf32>
    %5 = arith.addf %2, %4 : vector<16x96xf32>
    %c0_5 = arith.constant 0 : index
    %c0_6 = arith.constant 0 : index
    %6 = vector.load %arg23[%c0_5, %c0_6] : memref<16x96xf32, #tpu.memory_space<vmem>>, vector<16x96xf32>
    tpu.vector_store %arg23[%c0_5, %c0_6], %5 {strides = array<i32>} : memref<16x96xf32, #tpu.memory_space<vmem>>, vector<16x96xf32>,
    %c0_7 = arith.constant 0 : index
    %c0_8 = arith.constant 0 : index
    %7 = vector.load %arg6[%c0_7, %c0_8] : memref<4x8xf32, #tpu.memory_space<vmem>>, vector<4x8xf32>
    %c0_9 = arith.constant 0 : index
    %c0_10 = arith.constant 0 : index
    %8 = vector.load %arg7[%c0_9, %c0_10] : memref<4x8xf32, #tpu.memory_space<vmem>>, vector<4x8xf32>
    %c0_11 = arith.constant 0 : index
    %c0_12 = arith.constant 0 : index
    %c0_13 = arith.constant 0 : index
    %9 = vector.load %arg2[%c0_11, %c0_12, %c0_13] : memref<2x64x4xf32, #tpu.memory_space<vmem>>, vector<1x64x4xf32>
    %10 = vector.shape_cast %9 : vector<1x64x4xf32> to vector<64x4xf32>
    %c0_14 = arith.constant 0 : index
    %c0_15 = arith.constant 0 : index
    %c0_16 = arith.constant 0 : index
    %11 = vector.load %arg3[%c0_14, %c0_15, %c0_16] : memref<2x64x4xf32, #tpu.memory_space<vmem>>, vector<1x64x4xf32>
    %12 = vector.shape_cast %11 : vector<1x64x4xf32> to vector<64x4xf32>
    %cst_17 = arith.constant dense<0.000000e+00> : vector<64x8xf32>
    %13 = tpu.matmul %10, %7, %cst_17 {dimension_numbers = #tpu.dot_dimension_numbers<[1], [0], [0], [1], [0, 0, 1, 1], [], []>} : vector<64x4xf32>, vector<4x8xf32>, vector<64x8xf32> -> vector<64x8xf32>
    %14 = vector.shape_cast %13 : vector<64x8xf32> to vector<8x8x8xf32>
    %cst_18 = arith.constant dense<0.000000e+00> : vector<64x8xf32>
    %15 = tpu.matmul %10, %8, %cst_18 {dimension_numbers = #tpu.dot_dimension_numbers<[1], [0], [0], [1], [0, 0, 1, 1], [], []>} : vector<64x4xf32>, vector<4x8xf32>, vector<64x8xf32> -> vector<64x8xf32>
    %16 = vector.shape_cast %15 : vector<64x8xf32> to vector<8x8x8xf32>
    %cst_19 = arith.constant dense<0.000000e+00> : vector<64x8xf32>
    %17 = tpu.matmul %12, %8, %cst_19 {dimension_numbers = #tpu.dot_dimension_numbers<[1], [0], [0], [1], [0, 0, 1, 1], [], []>} : vector<64x4xf32>, vector<4x8xf32>, vector<64x8xf32> -> vector<64x8xf32>
    %18 = vector.shape_cast %17 : vector<64x8xf32> to vector<8x8x8xf32>
    %c0_20 = arith.constant 0 : index
    %c0_21 = arith.constant 0 : index
    %19 = vector.load %arg1[%c0_20, %c0_21] : memref<2x8xf32, #tpu.memory_space<vmem>>, vector<1x8xf32>
    %c0_22 = arith.constant 0 : index
    %c0_23 = arith.constant 0 : index
    %20 = vector.load %arg23[%c0_22, %c0_23] : memref<16x96xf32, #tpu.memory_space<vmem>>, vector<8x8xf32>
    %c0_24 = arith.constant 0 : index
    %c32 = arith.constant 32 : index
    %21 = vector.load %arg23[%c0_24, %c32] : memref<16x96xf32, #tpu.memory_space<vmem>>, vector<8x8xf32>
    %c0_25 = arith.constant 0 : index
    %c64 = arith.constant 64 : index
    %22 = vector.load %arg23[%c0_25, %c64] : memref<16x96xf32, #tpu.memory_space<vmem>>, vector<8x8xf32>
    %cst_26 = arith.constant dense<0.000000e+00> : vector<8x8xf32>
    %23 = tpu.matmul %20, %21, %cst_26 {dimension_numbers = #tpu.dot_dimension_numbers<[1], [1], [0], [0], [0, 0, 1, 0], [], []>} : vector<8x8xf32>, vector<8x8xf32>, vector<8x8xf32> -> vector<8x8xf32>
    %cst_27 = arith.constant 0.353553385 : f32
    %24 = vector.broadcast %cst_27 : f32 to vector<8x8xf32>
    %25 = arith.mulf %23, %24 : vector<8x8xf32>
    %c0_28 = arith.constant 0 : index
    %c0_29 = arith.constant 0 : index
    %26 = vector.load %arg8[%c0_28, %c0_29] : memref<4x8xf32, #tpu.memory_space<vmem>>, vector<1x8xf32>
    %c0_30 = arith.constant 0 : index
    %c0_31 = arith.constant 0 : index
    %27 = vector.load %arg9[%c0_30, %c0_31] : memref<4x1xf32, #tpu.memory_space<vmem>>, vector<1x1xf32>
    %28 = vector.shape_cast %26 : vector<1x8xf32> to vector<1x1x8xf32>
    %29 = vector.broadcast %28 : vector<1x1x8xf32> to vector<8x8x8xf32>
    %30 = arith.mulf %14, %29 : vector<8x8x8xf32>
    %cst_32 = arith.constant dense<0.000000e+00> : vector<8x8xf32>
    %31 = vector.multi_reduction <add>, %30, %cst_32 [2] : vector<8x8x8xf32> to vector<8x8xf32>
    %32 = vector.broadcast %27 : vector<1x1xf32> to vector<8x8xf32>
    %33 = arith.addf %31, %32 : vector<8x8xf32>
    %34 = arith.negf %33 : vector<8x8xf32>
    %35 = math.exp %34 : vector<8x8xf32>
    %cst_33 = arith.constant 1.000000e+00 : f32
    %36 = vector.broadcast %cst_33 : f32 to vector<8x8xf32>
    %37 = arith.addf %36, %35 : vector<8x8xf32>
    %38 = arith.divf %36, %37 : vector<8x8xf32>
    %39 = tpu.transpose %38, [1, 0] : vector<8x8xf32> -> vector<8x8xf32>
    %40 = vector.shape_cast %20 : vector<8x8xf32> to vector<8x1x8xf32>
    %41 = vector.broadcast %40 : vector<8x1x8xf32> to vector<8x8x8xf32>
    %42 = arith.mulf %41, %14 : vector<8x8x8xf32>
    %cst_34 = arith.constant dense<0.000000e+00> : vector<8x8xf32>
    %43 = vector.multi_reduction <add>, %42, %cst_34 [2] : vector<8x8x8xf32> to vector<8x8xf32>
    %44 = arith.mulf %39, %43 : vector<8x8xf32>
    %45 = arith.addf %25, %44 : vector<8x8xf32>
    %46 = vector.broadcast %19 : vector<1x8xf32> to vector<8x8xf32>
    %47 = arith.addf %45, %46 : vector<8x8xf32>
    %cst_35 = arith.constant dense<0xFF800000> : vector<8xf32>
    %48 = vector.multi_reduction <maximumf>, %47, %cst_35 [1] : vector<8x8xf32> to vector<8xf32>
    %49 = vector.shape_cast %48 : vector<8xf32> to vector<8x1xf32>
    %50 = vector.broadcast %49 : vector<8x1xf32> to vector<8x8xf32>
    %51 = arith.subf %47, %50 : vector<8x8xf32>
    %52 = math.exp %51 : vector<8x8xf32>
    %cst_36 = arith.constant dense<0.000000e+00> : vector<8xf32>
    %53 = vector.multi_reduction <add>, %52, %cst_36 [1] : vector<8x8xf32> to vector<8xf32>
    %54 = vector.shape_cast %53 : vector<8xf32> to vector<8x1xf32>
    %55 = tpu.reciprocal %54 : vector<8x1xf32> -> vector<8x1xf32>
    %56 = vector.broadcast %55 : vector<8x1xf32> to vector<8x8xf32>
    %57 = arith.mulf %52, %56 : vector<8x8xf32>
    %cst_37 = arith.constant dense<0.000000e+00> : vector<8x8xf32>
    %58 = tpu.matmul %57, %22, %cst_37 {dimension_numbers = #tpu.dot_dimension_numbers<[1], [0], [0], [1], [0, 0, 1, 1], [], []>} : vector<8x8xf32>, vector<8x8xf32>, vector<8x8xf32> -> vector<8x8xf32>
    %59 = vector.shape_cast %57 : vector<8x8xf32> to vector<8x8x1xf32>
    %60 = vector.broadcast %59 : vector<8x8x1xf32> to vector<8x8x8xf32>
    %61 = arith.mulf %60, %16 : vector<8x8x8xf32>
    %cst_38 = arith.constant dense<0.000000e+00> : vector<8x8xf32>
    %62 = vector.multi_reduction <add>, %61, %cst_38 [1] : vector<8x8x8xf32> to vector<8x8xf32>
    %cst_39 = arith.constant 0.000000e+00 : f32
    %63 = vector.broadcast %cst_39 : f32 to vector<8x8xf32>
    %c0_40 = arith.constant 0 : index
    %c0_41 = arith.constant 0 : index
    %c0_42 = arith.constant 0 : index
    %64 = vector.load %arg10[%c0_40, %c0_41, %c0_42] : memref<4x8x1xf32, #tpu.memory_space<vmem>>, vector<1x1x1xf32>
    %65 = vector.shape_cast %64 : vector<1x1x1xf32> to vector<1x1xf32>
    %66 = vector.extract_strided_slice %18 {offsets = [0, 0, 0], sizes = [1, 8, 8], strides = [1, 1, 1]} : vector<8x8x8xf32> to vector<1x8x8xf32>
    %67 = vector.shape_cast %66 : vector<1x8x8xf32> to vector<8x8xf32>
    %68 = vector.broadcast %65 : vector<1x1xf32> to vector<8x8xf32>
    %69 = arith.mulf %68, %67 : vector<8x8xf32>
    %70 = arith.addf %63, %69 : vector<8x8xf32>
    %c0_43 = arith.constant 0 : index
    %c1 = arith.constant 1 : index
    %c0_44 = arith.constant 0 : index
    %71 = vector.load %arg10[%c0_43, %c1, %c0_44] : memref<4x8x1xf32, #tpu.memory_space<vmem>>, vector<1x1x1xf32>
    %72 = vector.shape_cast %71 : vector<1x1x1xf32> to vector<1x1xf32>
    %73 = vector.extract_strided_slice %18 {offsets = [1, 0, 0], sizes = [1, 8, 8], strides = [1, 1, 1]} : vector<8x8x8xf32> to vector<1x8x8xf32>
    %74 = vector.shape_cast %73 : vector<1x8x8xf32> to vector<8x8xf32>
    %75 = vector.broadcast %72 : vector<1x1xf32> to vector<8x8xf32>
    %76 = arith.mulf %75, %74 : vector<8x8xf32>
    %77 = arith.addf %70, %76 : vector<8x8xf32>
    %c0_45 = arith.constant 0 : index
    %c2 = arith.constant 2 : index
    %c0_46 = arith.constant 0 : index
    %78 = vector.load %arg10[%c0_45, %c2, %c0_46] : memref<4x8x1xf32, #tpu.memory_space<vmem>>, vector<1x1x1xf32>
    %79 = vector.shape_cast %78 : vector<1x1x1xf32> to vector<1x1xf32>
    %80 = vector.extract_strided_slice %18 {offsets = [2, 0, 0], sizes = [1, 8, 8], strides = [1, 1, 1]} : vector<8x8x8xf32> to vector<1x8x8xf32>
    %81 = vector.shape_cast %80 : vector<1x8x8xf32> to vector<8x8xf32>
    %82 = vector.broadcast %79 : vector<1x1xf32> to vector<8x8xf32>
    %83 = arith.mulf %82, %81 : vector<8x8xf32>
    %84 = arith.addf %77, %83 : vector<8x8xf32>
    %c0_47 = arith.constant 0 : index
    %c3 = arith.constant 3 : index
    %c0_48 = arith.constant 0 : index
    %85 = vector.load %arg10[%c0_47, %c3, %c0_48] : memref<4x8x1xf32, #tpu.memory_space<vmem>>, vector<1x1x1xf32>
    %86 = vector.shape_cast %85 : vector<1x1x1xf32> to vector<1x1xf32>
    %87 = vector.extract_strided_slice %18 {offsets = [3, 0, 0], sizes = [1, 8, 8], strides = [1, 1, 1]} : vector<8x8x8xf32> to vector<1x8x8xf32>
    %88 = vector.shape_cast %87 : vector<1x8x8xf32> to vector<8x8xf32>
    %89 = vector.broadcast %86 : vector<1x1xf32> to vector<8x8xf32>
    %90 = arith.mulf %89, %88 : vector<8x8xf32>
    %91 = arith.addf %84, %90 : vector<8x8xf32>
    %c0_49 = arith.constant 0 : index
    %c4 = arith.constant 4 : index
    %c0_50 = arith.constant 0 : index
    %92 = vector.load %arg10[%c0_49, %c4, %c0_50] : memref<4x8x1xf32, #tpu.memory_space<vmem>>, vector<1x1x1xf32>
    %93 = vector.shape_cast %92 : vector<1x1x1xf32> to vector<1x1xf32>
    %94 = vector.extract_strided_slice %18 {offsets = [4, 0, 0], sizes = [1, 8, 8], strides = [1, 1, 1]} : vector<8x8x8xf32> to vector<1x8x8xf32>
    %95 = vector.shape_cast %94 : vector<1x8x8xf32> to vector<8x8xf32>
    %96 = vector.broadcast %93 : vector<1x1xf32> to vector<8x8xf32>
    %97 = arith.mulf %96, %95 : vector<8x8xf32>
    %98 = arith.addf %91, %97 : vector<8x8xf32>
    %c0_51 = arith.constant 0 : index
    %c5 = arith.constant 5 : index
    %c0_52 = arith.constant 0 : index
    %99 = vector.load %arg10[%c0_51, %c5, %c0_52] : memref<4x8x1xf32, #tpu.memory_space<vmem>>, vector<1x1x1xf32>
    %100 = vector.shape_cast %99 : vector<1x1x1xf32> to vector<1x1xf32>
    %101 = vector.extract_strided_slice %18 {offsets = [5, 0, 0], sizes = [1, 8, 8], strides = [1, 1, 1]} : vector<8x8x8xf32> to vector<1x8x8xf32>
    %102 = vector.shape_cast %101 : vector<1x8x8xf32> to vector<8x8xf32>
    %103 = vector.broadcast %100 : vector<1x1xf32> to vector<8x8xf32>
    %104 = arith.mulf %103, %102 : vector<8x8xf32>
    %105 = arith.addf %98, %104 : vector<8x8xf32>
    %c0_53 = arith.constant 0 : index
    %c6 = arith.constant 6 : index
    %c0_54 = arith.constant 0 : index
    %106 = vector.load %arg10[%c0_53, %c6, %c0_54] : memref<4x8x1xf32, #tpu.memory_space<vmem>>, vector<1x1x1xf32>
    %107 = vector.shape_cast %106 : vector<1x1x1xf32> to vector<1x1xf32>
    %108 = vector.extract_strided_slice %18 {offsets = [6, 0, 0], sizes = [1, 8, 8], strides = [1, 1, 1]} : vector<8x8x8xf32> to vector<1x8x8xf32>
    %109 = vector.shape_cast %108 : vector<1x8x8xf32> to vector<8x8xf32>
    %110 = vector.broadcast %107 : vector<1x1xf32> to vector<8x8xf32>
    %111 = arith.mulf %110, %109 : vector<8x8xf32>
    %112 = arith.addf %105, %111 : vector<8x8xf32>
    %c0_55 = arith.constant 0 : index
    %c7 = arith.constant 7 : index
    %c0_56 = arith.constant 0 : index
    %113 = vector.load %arg10[%c0_55, %c7, %c0_56] : memref<4x8x1xf32, #tpu.memory_space<vmem>>, vector<1x1x1xf32>
    %114 = vector.shape_cast %113 : vector<1x1x1xf32> to vector<1x1xf32>
    %115 = vector.extract_strided_slice %18 {offsets = [7, 0, 0], sizes = [1, 8, 8], strides = [1, 1, 1]} : vector<8x8x8xf32> to vector<1x8x8xf32>
    %116 = vector.shape_cast %115 : vector<1x8x8xf32> to vector<8x8xf32>
    %117 = vector.broadcast %114 : vector<1x1xf32> to vector<8x8xf32>
    %118 = arith.mulf %117, %116 : vector<8x8xf32>
    %119 = arith.addf %112, %118 : vector<8x8xf32>
    %c0_57 = arith.constant 0 : index
    %c0_58 = arith.constant 0 : index
    %120 = vector.load %arg11[%c0_57, %c0_58] : memref<4x1xf32, #tpu.memory_space<vmem>>, vector<1x1xf32>
    %121 = vector.broadcast %120 : vector<1x1xf32> to vector<8x8xf32>
    %122 = arith.addf %119, %121 : vector<8x8xf32>
    %123 = arith.negf %122 : vector<8x8xf32>
    %124 = math.exp %123 : vector<8x8xf32>
    %cst_59 = arith.constant 1.000000e+00 : f32
    %125 = vector.broadcast %cst_59 : f32 to vector<8x8xf32>
    %126 = arith.addf %125, %124 : vector<8x8xf32>
    %127 = arith.divf %125, %126 : vector<8x8xf32>
    %128 = arith.mulf %127, %62 : vector<8x8xf32>
    %129 = arith.addf %58, %128 : vector<8x8xf32>
    %c0_60 = arith.constant 0 : index
    %c0_61 = arith.constant 0 : index
    %130 = vector.load %arg24[%c0_60, %c0_61] : memref<16x32xf32, #tpu.memory_space<vmem>>, vector<8x8xf32>
    tpu.vector_store %arg24[%c0_60, %c0_61], %129 {strides = array<i32>} : memref<16x32xf32, #tpu.memory_space<vmem>>, vector<8x8xf32>,
    %c0_62 = arith.constant 0 : index
    %c8 = arith.constant 8 : index
    %131 = vector.load %arg23[%c0_62, %c8] : memref<16x96xf32, #tpu.memory_space<vmem>>, vector<8x8xf32>
    %c0_63 = arith.constant 0 : index
    %c40 = arith.constant 40 : index
    %132 = vector.load %arg23[%c0_63, %c40] : memref<16x96xf32, #tpu.memory_space<vmem>>, vector<8x8xf32>
    %c0_64 = arith.constant 0 : index
    %c72 = arith.constant 72 : index
    %133 = vector.load %arg23[%c0_64, %c72] : memref<16x96xf32, #tpu.memory_space<vmem>>, vector<8x8xf32>
    %cst_65 = arith.constant dense<0.000000e+00> : vector<8x8xf32>
    %134 = tpu.matmul %131, %132, %cst_65 {dimension_numbers = #tpu.dot_dimension_numbers<[1], [1], [0], [0], [0, 0, 1, 0], [], []>} : vector<8x8xf32>, vector<8x8xf32>, vector<8x8xf32> -> vector<8x8xf32>
    %cst_66 = arith.constant 0.353553385 : f32
    %135 = vector.broadcast %cst_66 : f32 to vector<8x8xf32>
    %136 = arith.mulf %134, %135 : vector<8x8xf32>
    %c1_67 = arith.constant 1 : index
    %c0_68 = arith.constant 0 : index
    %137 = vector.load %arg8[%c1_67, %c0_68] : memref<4x8xf32, #tpu.memory_space<vmem>>, vector<1x8xf32>
    %c1_69 = arith.constant 1 : index
    %c0_70 = arith.constant 0 : index
    %138 = vector.load %arg9[%c1_69, %c0_70] : memref<4x1xf32, #tpu.memory_space<vmem>>, vector<1x1xf32>
    %139 = vector.shape_cast %137 : vector<1x8xf32> to vector<1x1x8xf32>
    %140 = vector.broadcast %139 : vector<1x1x8xf32> to vector<8x8x8xf32>
    %141 = arith.mulf %14, %140 : vector<8x8x8xf32>
    %cst_71 = arith.constant dense<0.000000e+00> : vector<8x8xf32>
    %142 = vector.multi_reduction <add>, %141, %cst_71 [2] : vector<8x8x8xf32> to vector<8x8xf32>
    %143 = vector.broadcast %138 : vector<1x1xf32> to vector<8x8xf32>
    %144 = arith.addf %142, %143 : vector<8x8xf32>
    %145 = arith.negf %144 : vector<8x8xf32>
    %146 = math.exp %145 : vector<8x8xf32>
    %cst_72 = arith.constant 1.000000e+00 : f32
    %147 = vector.broadcast %cst_72 : f32 to vector<8x8xf32>
    %148 = arith.addf %147, %146 : vector<8x8xf32>
    %149 = arith.divf %147, %148 : vector<8x8xf32>
    %150 = tpu.transpose %149, [1, 0] : vector<8x8xf32> -> vector<8x8xf32>
    %151 = vector.shape_cast %131 : vector<8x8xf32> to vector<8x1x8xf32>
    %152 = vector.broadcast %151 : vector<8x1x8xf32> to vector<8x8x8xf32>
    %153 = arith.mulf %152, %14 : vector<8x8x8xf32>
    %cst_73 = arith.constant dense<0.000000e+00> : vector<8x8xf32>
    %154 = vector.multi_reduction <add>, %153, %cst_73 [2] : vector<8x8x8xf32> to vector<8x8xf32>
    %155 = arith.mulf %150, %154 : vector<8x8xf32>
    %156 = arith.addf %136, %155 : vector<8x8xf32>
    %157 = vector.broadcast %19 : vector<1x8xf32> to vector<8x8xf32>
    %158 = arith.addf %156, %157 : vector<8x8xf32>
    %cst_74 = arith.constant dense<0xFF800000> : vector<8xf32>
    %159 = vector.multi_reduction <maximumf>, %158, %cst_74 [1] : vector<8x8xf32> to vector<8xf32>
    %160 = vector.shape_cast %159 : vector<8xf32> to vector<8x1xf32>
    %161 = vector.broadcast %160 : vector<8x1xf32> to vector<8x8xf32>
    %162 = arith.subf %158, %161 : vector<8x8xf32>
    %163 = math.exp %162 : vector<8x8xf32>
    %cst_75 = arith.constant dense<0.000000e+00> : vector<8xf32>
    %164 = vector.multi_reduction <add>, %163, %cst_75 [1] : vector<8x8xf32> to vector<8xf32>
    %165 = vector.shape_cast %164 : vector<8xf32> to vector<8x1xf32>
    %166 = tpu.reciprocal %165 : vector<8x1xf32> -> vector<8x1xf32>
    %167 = vector.broadcast %166 : vector<8x1xf32> to vector<8x8xf32>
    %168 = arith.mulf %163, %167 : vector<8x8xf32>
    %cst_76 = arith.constant dense<0.000000e+00> : vector<8x8xf32>
    %169 = tpu.matmul %168, %133, %cst_76 {dimension_numbers = #tpu.dot_dimension_numbers<[1], [0], [0], [1], [0, 0, 1, 1], [], []>} : vector<8x8xf32>, vector<8x8xf32>, vector<8x8xf32> -> vector<8x8xf32>
    %170 = vector.shape_cast %168 : vector<8x8xf32> to vector<8x8x1xf32>
    %171 = vector.broadcast %170 : vector<8x8x1xf32> to vector<8x8x8xf32>
    %172 = arith.mulf %171, %16 : vector<8x8x8xf32>
    %cst_77 = arith.constant dense<0.000000e+00> : vector<8x8xf32>
    %173 = vector.multi_reduction <add>, %172, %cst_77 [1] : vector<8x8x8xf32> to vector<8x8xf32>
    %cst_78 = arith.constant 0.000000e+00 : f32
    %174 = vector.broadcast %cst_78 : f32 to vector<8x8xf32>
    %c1_79 = arith.constant 1 : index
    %c0_80 = arith.constant 0 : index
    %c0_81 = arith.constant 0 : index
    %175 = vector.load %arg10[%c1_79, %c0_80, %c0_81] : memref<4x8x1xf32, #tpu.memory_space<vmem>>, vector<1x1x1xf32>
    %176 = vector.shape_cast %175 : vector<1x1x1xf32> to vector<1x1xf32>
    %177 = vector.extract_strided_slice %18 {offsets = [0, 0, 0], sizes = [1, 8, 8], strides = [1, 1, 1]} : vector<8x8x8xf32> to vector<1x8x8xf32>
    %178 = vector.shape_cast %177 : vector<1x8x8xf32> to vector<8x8xf32>
    %179 = vector.broadcast %176 : vector<1x1xf32> to vector<8x8xf32>
    %180 = arith.mulf %179, %178 : vector<8x8xf32>
    %181 = arith.addf %174, %180 : vector<8x8xf32>
    %c1_82 = arith.constant 1 : index
    %c1_83 = arith.constant 1 : index
    %c0_84 = arith.constant 0 : index
    %182 = vector.load %arg10[%c1_82, %c1_83, %c0_84] : memref<4x8x1xf32, #tpu.memory_space<vmem>>, vector<1x1x1xf32>
    %183 = vector.shape_cast %182 : vector<1x1x1xf32> to vector<1x1xf32>
    %184 = vector.extract_strided_slice %18 {offsets = [1, 0, 0], sizes = [1, 8, 8], strides = [1, 1, 1]} : vector<8x8x8xf32> to vector<1x8x8xf32>
    %185 = vector.shape_cast %184 : vector<1x8x8xf32> to vector<8x8xf32>
    %186 = vector.broadcast %183 : vector<1x1xf32> to vector<8x8xf32>
    %187 = arith.mulf %186, %185 : vector<8x8xf32>
    %188 = arith.addf %181, %187 : vector<8x8xf32>
    %c1_85 = arith.constant 1 : index
    %c2_86 = arith.constant 2 : index
    %c0_87 = arith.constant 0 : index
    %189 = vector.load %arg10[%c1_85, %c2_86, %c0_87] : memref<4x8x1xf32, #tpu.memory_space<vmem>>, vector<1x1x1xf32>
    %190 = vector.shape_cast %189 : vector<1x1x1xf32> to vector<1x1xf32>
    %191 = vector.extract_strided_slice %18 {offsets = [2, 0, 0], sizes = [1, 8, 8], strides = [1, 1, 1]} : vector<8x8x8xf32> to vector<1x8x8xf32>
    %192 = vector.shape_cast %191 : vector<1x8x8xf32> to vector<8x8xf32>
    %193 = vector.broadcast %190 : vector<1x1xf32> to vector<8x8xf32>
    %194 = arith.mulf %193, %192 : vector<8x8xf32>
    %195 = arith.addf %188, %194 : vector<8x8xf32>
    %c1_88 = arith.constant 1 : index
    %c3_89 = arith.constant 3 : index
    %c0_90 = arith.constant 0 : index
    %196 = vector.load %arg10[%c1_88, %c3_89, %c0_90] : memref<4x8x1xf32, #tpu.memory_space<vmem>>, vector<1x1x1xf32>
    %197 = vector.shape_cast %196 : vector<1x1x1xf32> to vector<1x1xf32>
    %198 = vector.extract_strided_slice %18 {offsets = [3, 0, 0], sizes = [1, 8, 8], strides = [1, 1, 1]} : vector<8x8x8xf32> to vector<1x8x8xf32>
    %199 = vector.shape_cast %198 : vector<1x8x8xf32> to vector<8x8xf32>
    %200 = vector.broadcast %197 : vector<1x1xf32> to vector<8x8xf32>
    %201 = arith.mulf %200, %199 : vector<8x8xf32>
    %202 = arith.addf %195, %201 : vector<8x8xf32>
    %c1_91 = arith.constant 1 : index
    %c4_92 = arith.constant 4 : index
    %c0_93 = arith.constant 0 : index
    %203 = vector.load %arg10[%c1_91, %c4_92, %c0_93] : memref<4x8x1xf32, #tpu.memory_space<vmem>>, vector<1x1x1xf32>
    %204 = vector.shape_cast %203 : vector<1x1x1xf32> to vector<1x1xf32>
    %205 = vector.extract_strided_slice %18 {offsets = [4, 0, 0], sizes = [1, 8, 8], strides = [1, 1, 1]} : vector<8x8x8xf32> to vector<1x8x8xf32>
    %206 = vector.shape_cast %205 : vector<1x8x8xf32> to vector<8x8xf32>
    %207 = vector.broadcast %204 : vector<1x1xf32> to vector<8x8xf32>
    %208 = arith.mulf %207, %206 : vector<8x8xf32>
    %209 = arith.addf %202, %208 : vector<8x8xf32>
    %c1_94 = arith.constant 1 : index
    %c5_95 = arith.constant 5 : index
    %c0_96 = arith.constant 0 : index
    %210 = vector.load %arg10[%c1_94, %c5_95, %c0_96] : memref<4x8x1xf32, #tpu.memory_space<vmem>>, vector<1x1x1xf32>
    %211 = vector.shape_cast %210 : vector<1x1x1xf32> to vector<1x1xf32>
    %212 = vector.extract_strided_slice %18 {offsets = [5, 0, 0], sizes = [1, 8, 8], strides = [1, 1, 1]} : vector<8x8x8xf32> to vector<1x8x8xf32>
    %213 = vector.shape_cast %212 : vector<1x8x8xf32> to vector<8x8xf32>
    %214 = vector.broadcast %211 : vector<1x1xf32> to vector<8x8xf32>
    %215 = arith.mulf %214, %213 : vector<8x8xf32>
    %216 = arith.addf %209, %215 : vector<8x8xf32>
    %c1_97 = arith.constant 1 : index
    %c6_98 = arith.constant 6 : index
    %c0_99 = arith.constant 0 : index
    %217 = vector.load %arg10[%c1_97, %c6_98, %c0_99] : memref<4x8x1xf32, #tpu.memory_space<vmem>>, vector<1x1x1xf32>
    %218 = vector.shape_cast %217 : vector<1x1x1xf32> to vector<1x1xf32>
    %219 = vector.extract_strided_slice %18 {offsets = [6, 0, 0], sizes = [1, 8, 8], strides = [1, 1, 1]} : vector<8x8x8xf32> to vector<1x8x8xf32>
    %220 = vector.shape_cast %219 : vector<1x8x8xf32> to vector<8x8xf32>
    %221 = vector.broadcast %218 : vector<1x1xf32> to vector<8x8xf32>
    %222 = arith.mulf %221, %220 : vector<8x8xf32>
    %223 = arith.addf %216, %222 : vector<8x8xf32>
    %c1_100 = arith.constant 1 : index
    %c7_101 = arith.constant 7 : index
    %c0_102 = arith.constant 0 : index
    %224 = vector.load %arg10[%c1_100, %c7_101, %c0_102] : memref<4x8x1xf32, #tpu.memory_space<vmem>>, vector<1x1x1xf32>
    %225 = vector.shape_cast %224 : vector<1x1x1xf32> to vector<1x1xf32>
    %226 = vector.extract_strided_slice %18 {offsets = [7, 0, 0], sizes = [1, 8, 8], strides = [1, 1, 1]} : vector<8x8x8xf32> to vector<1x8x8xf32>
    %227 = vector.shape_cast %226 : vector<1x8x8xf32> to vector<8x8xf32>
    %228 = vector.broadcast %225 : vector<1x1xf32> to vector<8x8xf32>
    %229 = arith.mulf %228, %227 : vector<8x8xf32>
    %230 = arith.addf %223, %229 : vector<8x8xf32>
    %c1_103 = arith.constant 1 : index
    %c0_104 = arith.constant 0 : index
    %231 = vector.load %arg11[%c1_103, %c0_104] : memref<4x1xf32, #tpu.memory_space<vmem>>, vector<1x1xf32>
    %232 = vector.broadcast %231 : vector<1x1xf32> to vector<8x8xf32>
    %233 = arith.addf %230, %232 : vector<8x8xf32>
    %234 = arith.negf %233 : vector<8x8xf32>
    %235 = math.exp %234 : vector<8x8xf32>
    %cst_105 = arith.constant 1.000000e+00 : f32
    %236 = vector.broadcast %cst_105 : f32 to vector<8x8xf32>
    %237 = arith.addf %236, %235 : vector<8x8xf32>
    %238 = arith.divf %236, %237 : vector<8x8xf32>
    %239 = arith.mulf %238, %173 : vector<8x8xf32>
    %240 = arith.addf %169, %239 : vector<8x8xf32>
    %c0_106 = arith.constant 0 : index
    %c8_107 = arith.constant 8 : index
    %241 = vector.load %arg24[%c0_106, %c8_107] : memref<16x32xf32, #tpu.memory_space<vmem>>, vector<8x8xf32>
    tpu.vector_store %arg24[%c0_106, %c8_107], %240 {strides = array<i32>} : memref<16x32xf32, #tpu.memory_space<vmem>>, vector<8x8xf32>,
    %c0_108 = arith.constant 0 : index
    %c16 = arith.constant 16 : index
    %242 = vector.load %arg23[%c0_108, %c16] : memref<16x96xf32, #tpu.memory_space<vmem>>, vector<8x8xf32>
    %c0_109 = arith.constant 0 : index
    %c48 = arith.constant 48 : index
    %243 = vector.load %arg23[%c0_109, %c48] : memref<16x96xf32, #tpu.memory_space<vmem>>, vector<8x8xf32>
    %c0_110 = arith.constant 0 : index
    %c80 = arith.constant 80 : index
    %244 = vector.load %arg23[%c0_110, %c80] : memref<16x96xf32, #tpu.memory_space<vmem>>, vector<8x8xf32>
    %cst_111 = arith.constant dense<0.000000e+00> : vector<8x8xf32>
    %245 = tpu.matmul %242, %243, %cst_111 {dimension_numbers = #tpu.dot_dimension_numbers<[1], [1], [0], [0], [0, 0, 1, 0], [], []>} : vector<8x8xf32>, vector<8x8xf32>, vector<8x8xf32> -> vector<8x8xf32>
    %cst_112 = arith.constant 0.353553385 : f32
    %246 = vector.broadcast %cst_112 : f32 to vector<8x8xf32>
    %247 = arith.mulf %245, %246 : vector<8x8xf32>
    %c2_113 = arith.constant 2 : index
    %c0_114 = arith.constant 0 : index
    %248 = vector.load %arg8[%c2_113, %c0_114] : memref<4x8xf32, #tpu.memory_space<vmem>>, vector<1x8xf32>
    %c2_115 = arith.constant 2 : index
    %c0_116 = arith.constant 0 : index
    %249 = vector.load %arg9[%c2_115, %c0_116] : memref<4x1xf32, #tpu.memory_space<vmem>>, vector<1x1xf32>
    %250 = vector.shape_cast %248 : vector<1x8xf32> to vector<1x1x8xf32>
    %251 = vector.broadcast %250 : vector<1x1x8xf32> to vector<8x8x8xf32>
    %252 = arith.mulf %14, %251 : vector<8x8x8xf32>
    %cst_117 = arith.constant dense<0.000000e+00> : vector<8x8xf32>
    %253 = vector.multi_reduction <add>, %252, %cst_117 [2] : vector<8x8x8xf32> to vector<8x8xf32>
    %254 = vector.broadcast %249 : vector<1x1xf32> to vector<8x8xf32>
    %255 = arith.addf %253, %254 : vector<8x8xf32>
    %256 = arith.negf %255 : vector<8x8xf32>
    %257 = math.exp %256 : vector<8x8xf32>
    %cst_118 = arith.constant 1.000000e+00 : f32
    %258 = vector.broadcast %cst_118 : f32 to vector<8x8xf32>
    %259 = arith.addf %258, %257 : vector<8x8xf32>
    %260 = arith.divf %258, %259 : vector<8x8xf32>
    %261 = tpu.transpose %260, [1, 0] : vector<8x8xf32> -> vector<8x8xf32>
    %262 = vector.shape_cast %242 : vector<8x8xf32> to vector<8x1x8xf32>
    %263 = vector.broadcast %262 : vector<8x1x8xf32> to vector<8x8x8xf32>
    %264 = arith.mulf %263, %14 : vector<8x8x8xf32>
    %cst_119 = arith.constant dense<0.000000e+00> : vector<8x8xf32>
    %265 = vector.multi_reduction <add>, %264, %cst_119 [2] : vector<8x8x8xf32> to vector<8x8xf32>
    %266 = arith.mulf %261, %265 : vector<8x8xf32>
    %267 = arith.addf %247, %266 : vector<8x8xf32>
    %268 = vector.broadcast %19 : vector<1x8xf32> to vector<8x8xf32>
    %269 = arith.addf %267, %268 : vector<8x8xf32>
    %cst_120 = arith.constant dense<0xFF800000> : vector<8xf32>
    %270 = vector.multi_reduction <maximumf>, %269, %cst_120 [1] : vector<8x8xf32> to vector<8xf32>
    %271 = vector.shape_cast %270 : vector<8xf32> to vector<8x1xf32>
    %272 = vector.broadcast %271 : vector<8x1xf32> to vector<8x8xf32>
    %273 = arith.subf %269, %272 : vector<8x8xf32>
    %274 = math.exp %273 : vector<8x8xf32>
    %cst_121 = arith.constant dense<0.000000e+00> : vector<8xf32>
    %275 = vector.multi_reduction <add>, %274, %cst_121 [1] : vector<8x8xf32> to vector<8xf32>
    %276 = vector.shape_cast %275 : vector<8xf32> to vector<8x1xf32>
    %277 = tpu.reciprocal %276 : vector<8x1xf32> -> vector<8x1xf32>
    %278 = vector.broadcast %277 : vector<8x1xf32> to vector<8x8xf32>
    %279 = arith.mulf %274, %278 : vector<8x8xf32>
    %cst_122 = arith.constant dense<0.000000e+00> : vector<8x8xf32>
    %280 = tpu.matmul %279, %244, %cst_122 {dimension_numbers = #tpu.dot_dimension_numbers<[1], [0], [0], [1], [0, 0, 1, 1], [], []>} : vector<8x8xf32>, vector<8x8xf32>, vector<8x8xf32> -> vector<8x8xf32>
    %281 = vector.shape_cast %279 : vector<8x8xf32> to vector<8x8x1xf32>
    %282 = vector.broadcast %281 : vector<8x8x1xf32> to vector<8x8x8xf32>
    %283 = arith.mulf %282, %16 : vector<8x8x8xf32>
    %cst_123 = arith.constant dense<0.000000e+00> : vector<8x8xf32>
    %284 = vector.multi_reduction <add>, %283, %cst_123 [1] : vector<8x8x8xf32> to vector<8x8xf32>
    %cst_124 = arith.constant 0.000000e+00 : f32
    %285 = vector.broadcast %cst_124 : f32 to vector<8x8xf32>
    %c2_125 = arith.constant 2 : index
    %c0_126 = arith.constant 0 : index
    %c0_127 = arith.constant 0 : index
    %286 = vector.load %arg10[%c2_125, %c0_126, %c0_127] : memref<4x8x1xf32, #tpu.memory_space<vmem>>, vector<1x1x1xf32>
    %287 = vector.shape_cast %286 : vector<1x1x1xf32> to vector<1x1xf32>
    %288 = vector.extract_strided_slice %18 {offsets = [0, 0, 0], sizes = [1, 8, 8], strides = [1, 1, 1]} : vector<8x8x8xf32> to vector<1x8x8xf32>
    %289 = vector.shape_cast %288 : vector<1x8x8xf32> to vector<8x8xf32>
    %290 = vector.broadcast %287 : vector<1x1xf32> to vector<8x8xf32>
    %291 = arith.mulf %290, %289 : vector<8x8xf32>
    %292 = arith.addf %285, %291 : vector<8x8xf32>
    %c2_128 = arith.constant 2 : index
    %c1_129 = arith.constant 1 : index
    %c0_130 = arith.constant 0 : index
    %293 = vector.load %arg10[%c2_128, %c1_129, %c0_130] : memref<4x8x1xf32, #tpu.memory_space<vmem>>, vector<1x1x1xf32>
    %294 = vector.shape_cast %293 : vector<1x1x1xf32> to vector<1x1xf32>
    %295 = vector.extract_strided_slice %18 {offsets = [1, 0, 0], sizes = [1, 8, 8], strides = [1, 1, 1]} : vector<8x8x8xf32> to vector<1x8x8xf32>
    %296 = vector.shape_cast %295 : vector<1x8x8xf32> to vector<8x8xf32>
    %297 = vector.broadcast %294 : vector<1x1xf32> to vector<8x8xf32>
    %298 = arith.mulf %297, %296 : vector<8x8xf32>
    %299 = arith.addf %292, %298 : vector<8x8xf32>
    %c2_131 = arith.constant 2 : index
    %c2_132 = arith.constant 2 : index
    %c0_133 = arith.constant 0 : index
    %300 = vector.load %arg10[%c2_131, %c2_132, %c0_133] : memref<4x8x1xf32, #tpu.memory_space<vmem>>, vector<1x1x1xf32>
    %301 = vector.shape_cast %300 : vector<1x1x1xf32> to vector<1x1xf32>
    %302 = vector.extract_strided_slice %18 {offsets = [2, 0, 0], sizes = [1, 8, 8], strides = [1, 1, 1]} : vector<8x8x8xf32> to vector<1x8x8xf32>
    %303 = vector.shape_cast %302 : vector<1x8x8xf32> to vector<8x8xf32>
    %304 = vector.broadcast %301 : vector<1x1xf32> to vector<8x8xf32>
    %305 = arith.mulf %304, %303 : vector<8x8xf32>
    %306 = arith.addf %299, %305 : vector<8x8xf32>
    %c2_134 = arith.constant 2 : index
    %c3_135 = arith.constant 3 : index
    %c0_136 = arith.constant 0 : index
    %307 = vector.load %arg10[%c2_134, %c3_135, %c0_136] : memref<4x8x1xf32, #tpu.memory_space<vmem>>, vector<1x1x1xf32>
    %308 = vector.shape_cast %307 : vector<1x1x1xf32> to vector<1x1xf32>
    %309 = vector.extract_strided_slice %18 {offsets = [3, 0, 0], sizes = [1, 8, 8], strides = [1, 1, 1]} : vector<8x8x8xf32> to vector<1x8x8xf32>
    %310 = vector.shape_cast %309 : vector<1x8x8xf32> to vector<8x8xf32>
    %311 = vector.broadcast %308 : vector<1x1xf32> to vector<8x8xf32>
    %312 = arith.mulf %311, %310 : vector<8x8xf32>
    %313 = arith.addf %306, %312 : vector<8x8xf32>
    %c2_137 = arith.constant 2 : index
    %c4_138 = arith.constant 4 : index
    %c0_139 = arith.constant 0 : index
    %314 = vector.load %arg10[%c2_137, %c4_138, %c0_139] : memref<4x8x1xf32, #tpu.memory_space<vmem>>, vector<1x1x1xf32>
    %315 = vector.shape_cast %314 : vector<1x1x1xf32> to vector<1x1xf32>
    %316 = vector.extract_strided_slice %18 {offsets = [4, 0, 0], sizes = [1, 8, 8], strides = [1, 1, 1]} : vector<8x8x8xf32> to vector<1x8x8xf32>
    %317 = vector.shape_cast %316 : vector<1x8x8xf32> to vector<8x8xf32>
    %318 = vector.broadcast %315 : vector<1x1xf32> to vector<8x8xf32>
    %319 = arith.mulf %318, %317 : vector<8x8xf32>
    %320 = arith.addf %313, %319 : vector<8x8xf32>
    %c2_140 = arith.constant 2 : index
    %c5_141 = arith.constant 5 : index
    %c0_142 = arith.constant 0 : index
    %321 = vector.load %arg10[%c2_140, %c5_141, %c0_142] : memref<4x8x1xf32, #tpu.memory_space<vmem>>, vector<1x1x1xf32>
    %322 = vector.shape_cast %321 : vector<1x1x1xf32> to vector<1x1xf32>
    %323 = vector.extract_strided_slice %18 {offsets = [5, 0, 0], sizes = [1, 8, 8], strides = [1, 1, 1]} : vector<8x8x8xf32> to vector<1x8x8xf32>
    %324 = vector.shape_cast %323 : vector<1x8x8xf32> to vector<8x8xf32>
    %325 = vector.broadcast %322 : vector<1x1xf32> to vector<8x8xf32>
    %326 = arith.mulf %325, %324 : vector<8x8xf32>
    %327 = arith.addf %320, %326 : vector<8x8xf32>
    %c2_143 = arith.constant 2 : index
    %c6_144 = arith.constant 6 : index
    %c0_145 = arith.constant 0 : index
    %328 = vector.load %arg10[%c2_143, %c6_144, %c0_145] : memref<4x8x1xf32, #tpu.memory_space<vmem>>, vector<1x1x1xf32>
    %329 = vector.shape_cast %328 : vector<1x1x1xf32> to vector<1x1xf32>
    %330 = vector.extract_strided_slice %18 {offsets = [6, 0, 0], sizes = [1, 8, 8], strides = [1, 1, 1]} : vector<8x8x8xf32> to vector<1x8x8xf32>
    %331 = vector.shape_cast %330 : vector<1x8x8xf32> to vector<8x8xf32>
    %332 = vector.broadcast %329 : vector<1x1xf32> to vector<8x8xf32>
    %333 = arith.mulf %332, %331 : vector<8x8xf32>
    %334 = arith.addf %327, %333 : vector<8x8xf32>
    %c2_146 = arith.constant 2 : index
    %c7_147 = arith.constant 7 : index
    %c0_148 = arith.constant 0 : index
    %335 = vector.load %arg10[%c2_146, %c7_147, %c0_148] : memref<4x8x1xf32, #tpu.memory_space<vmem>>, vector<1x1x1xf32>
    %336 = vector.shape_cast %335 : vector<1x1x1xf32> to vector<1x1xf32>
    %337 = vector.extract_strided_slice %18 {offsets = [7, 0, 0], sizes = [1, 8, 8], strides = [1, 1, 1]} : vector<8x8x8xf32> to vector<1x8x8xf32>
    %338 = vector.shape_cast %337 : vector<1x8x8xf32> to vector<8x8xf32>
    %339 = vector.broadcast %336 : vector<1x1xf32> to vector<8x8xf32>
    %340 = arith.mulf %339, %338 : vector<8x8xf32>
    %341 = arith.addf %334, %340 : vector<8x8xf32>
    %c2_149 = arith.constant 2 : index
    %c0_150 = arith.constant 0 : index
    %342 = vector.load %arg11[%c2_149, %c0_150] : memref<4x1xf32, #tpu.memory_space<vmem>>, vector<1x1xf32>
    %343 = vector.broadcast %342 : vector<1x1xf32> to vector<8x8xf32>
    %344 = arith.addf %341, %343 : vector<8x8xf32>
    %345 = arith.negf %344 : vector<8x8xf32>
    %346 = math.exp %345 : vector<8x8xf32>
    %cst_151 = arith.constant 1.000000e+00 : f32
    %347 = vector.broadcast %cst_151 : f32 to vector<8x8xf32>
    %348 = arith.addf %347, %346 : vector<8x8xf32>
    %349 = arith.divf %347, %348 : vector<8x8xf32>
    %350 = arith.mulf %349, %284 : vector<8x8xf32>
    %351 = arith.addf %280, %350 : vector<8x8xf32>
    %c0_152 = arith.constant 0 : index
    %c16_153 = arith.constant 16 : index
    %352 = vector.load %arg24[%c0_152, %c16_153] : memref<16x32xf32, #tpu.memory_space<vmem>>, vector<8x8xf32>
    tpu.vector_store %arg24[%c0_152, %c16_153], %351 {strides = array<i32>} : memref<16x32xf32, #tpu.memory_space<vmem>>, vector<8x8xf32>,
    %c0_154 = arith.constant 0 : index
    %c24 = arith.constant 24 : index
    %353 = vector.load %arg23[%c0_154, %c24] : memref<16x96xf32, #tpu.memory_space<vmem>>, vector<8x8xf32>
    %c0_155 = arith.constant 0 : index
    %c56 = arith.constant 56 : index
    %354 = vector.load %arg23[%c0_155, %c56] : memref<16x96xf32, #tpu.memory_space<vmem>>, vector<8x8xf32>
    %c0_156 = arith.constant 0 : index
    %c88 = arith.constant 88 : index
    %355 = vector.load %arg23[%c0_156, %c88] : memref<16x96xf32, #tpu.memory_space<vmem>>, vector<8x8xf32>
    %cst_157 = arith.constant dense<0.000000e+00> : vector<8x8xf32>
    %356 = tpu.matmul %353, %354, %cst_157 {dimension_numbers = #tpu.dot_dimension_numbers<[1], [1], [0], [0], [0, 0, 1, 0], [], []>} : vector<8x8xf32>, vector<8x8xf32>, vector<8x8xf32> -> vector<8x8xf32>
    %cst_158 = arith.constant 0.353553385 : f32
    %357 = vector.broadcast %cst_158 : f32 to vector<8x8xf32>
    %358 = arith.mulf %356, %357 : vector<8x8xf32>
    %c3_159 = arith.constant 3 : index
    %c0_160 = arith.constant 0 : index
    %359 = vector.load %arg8[%c3_159, %c0_160] : memref<4x8xf32, #tpu.memory_space<vmem>>, vector<1x8xf32>
    %c3_161 = arith.constant 3 : index
    %c0_162 = arith.constant 0 : index
    %360 = vector.load %arg9[%c3_161, %c0_162] : memref<4x1xf32, #tpu.memory_space<vmem>>, vector<1x1xf32>
    %361 = vector.shape_cast %359 : vector<1x8xf32> to vector<1x1x8xf32>
    %362 = vector.broadcast %361 : vector<1x1x8xf32> to vector<8x8x8xf32>
    %363 = arith.mulf %14, %362 : vector<8x8x8xf32>
    %cst_163 = arith.constant dense<0.000000e+00> : vector<8x8xf32>
    %364 = vector.multi_reduction <add>, %363, %cst_163 [2] : vector<8x8x8xf32> to vector<8x8xf32>
    %365 = vector.broadcast %360 : vector<1x1xf32> to vector<8x8xf32>
    %366 = arith.addf %364, %365 : vector<8x8xf32>
    %367 = arith.negf %366 : vector<8x8xf32>
    %368 = math.exp %367 : vector<8x8xf32>
    %cst_164 = arith.constant 1.000000e+00 : f32
    %369 = vector.broadcast %cst_164 : f32 to vector<8x8xf32>
    %370 = arith.addf %369, %368 : vector<8x8xf32>
    %371 = arith.divf %369, %370 : vector<8x8xf32>
    %372 = tpu.transpose %371, [1, 0] : vector<8x8xf32> -> vector<8x8xf32>
    %373 = vector.shape_cast %353 : vector<8x8xf32> to vector<8x1x8xf32>
    %374 = vector.broadcast %373 : vector<8x1x8xf32> to vector<8x8x8xf32>
    %375 = arith.mulf %374, %14 : vector<8x8x8xf32>
    %cst_165 = arith.constant dense<0.000000e+00> : vector<8x8xf32>
    %376 = vector.multi_reduction <add>, %375, %cst_165 [2] : vector<8x8x8xf32> to vector<8x8xf32>
    %377 = arith.mulf %372, %376 : vector<8x8xf32>
    %378 = arith.addf %358, %377 : vector<8x8xf32>
    %379 = vector.broadcast %19 : vector<1x8xf32> to vector<8x8xf32>
    %380 = arith.addf %378, %379 : vector<8x8xf32>
    %cst_166 = arith.constant dense<0xFF800000> : vector<8xf32>
    %381 = vector.multi_reduction <maximumf>, %380, %cst_166 [1] : vector<8x8xf32> to vector<8xf32>
    %382 = vector.shape_cast %381 : vector<8xf32> to vector<8x1xf32>
    %383 = vector.broadcast %382 : vector<8x1xf32> to vector<8x8xf32>
    %384 = arith.subf %380, %383 : vector<8x8xf32>
    %385 = math.exp %384 : vector<8x8xf32>
    %cst_167 = arith.constant dense<0.000000e+00> : vector<8xf32>
    %386 = vector.multi_reduction <add>, %385, %cst_167 [1] : vector<8x8xf32> to vector<8xf32>
    %387 = vector.shape_cast %386 : vector<8xf32> to vector<8x1xf32>
    %388 = tpu.reciprocal %387 : vector<8x1xf32> -> vector<8x1xf32>
    %389 = vector.broadcast %388 : vector<8x1xf32> to vector<8x8xf32>
    %390 = arith.mulf %385, %389 : vector<8x8xf32>
    %cst_168 = arith.constant dense<0.000000e+00> : vector<8x8xf32>
    %391 = tpu.matmul %390, %355, %cst_168 {dimension_numbers = #tpu.dot_dimension_numbers<[1], [0], [0], [1], [0, 0, 1, 1], [], []>} : vector<8x8xf32>, vector<8x8xf32>, vector<8x8xf32> -> vector<8x8xf32>
    %392 = vector.shape_cast %390 : vector<8x8xf32> to vector<8x8x1xf32>
    %393 = vector.broadcast %392 : vector<8x8x1xf32> to vector<8x8x8xf32>
    %394 = arith.mulf %393, %16 : vector<8x8x8xf32>
    %cst_169 = arith.constant dense<0.000000e+00> : vector<8x8xf32>
    %395 = vector.multi_reduction <add>, %394, %cst_169 [1] : vector<8x8x8xf32> to vector<8x8xf32>
    %cst_170 = arith.constant 0.000000e+00 : f32
    %396 = vector.broadcast %cst_170 : f32 to vector<8x8xf32>
    %c3_171 = arith.constant 3 : index
    %c0_172 = arith.constant 0 : index
    %c0_173 = arith.constant 0 : index
    %397 = vector.load %arg10[%c3_171, %c0_172, %c0_173] : memref<4x8x1xf32, #tpu.memory_space<vmem>>, vector<1x1x1xf32>
    %398 = vector.shape_cast %397 : vector<1x1x1xf32> to vector<1x1xf32>
    %399 = vector.extract_strided_slice %18 {offsets = [0, 0, 0], sizes = [1, 8, 8], strides = [1, 1, 1]} : vector<8x8x8xf32> to vector<1x8x8xf32>
    %400 = vector.shape_cast %399 : vector<1x8x8xf32> to vector<8x8xf32>
    %401 = vector.broadcast %398 : vector<1x1xf32> to vector<8x8xf32>
    %402 = arith.mulf %401, %400 : vector<8x8xf32>
    %403 = arith.addf %396, %402 : vector<8x8xf32>
    %c3_174 = arith.constant 3 : index
    %c1_175 = arith.constant 1 : index
    %c0_176 = arith.constant 0 : index
    %404 = vector.load %arg10[%c3_174, %c1_175, %c0_176] : memref<4x8x1xf32, #tpu.memory_space<vmem>>, vector<1x1x1xf32>
    %405 = vector.shape_cast %404 : vector<1x1x1xf32> to vector<1x1xf32>
    %406 = vector.extract_strided_slice %18 {offsets = [1, 0, 0], sizes = [1, 8, 8], strides = [1, 1, 1]} : vector<8x8x8xf32> to vector<1x8x8xf32>
    %407 = vector.shape_cast %406 : vector<1x8x8xf32> to vector<8x8xf32>
    %408 = vector.broadcast %405 : vector<1x1xf32> to vector<8x8xf32>
    %409 = arith.mulf %408, %407 : vector<8x8xf32>
    %410 = arith.addf %403, %409 : vector<8x8xf32>
    %c3_177 = arith.constant 3 : index
    %c2_178 = arith.constant 2 : index
    %c0_179 = arith.constant 0 : index
    %411 = vector.load %arg10[%c3_177, %c2_178, %c0_179] : memref<4x8x1xf32, #tpu.memory_space<vmem>>, vector<1x1x1xf32>
    %412 = vector.shape_cast %411 : vector<1x1x1xf32> to vector<1x1xf32>
    %413 = vector.extract_strided_slice %18 {offsets = [2, 0, 0], sizes = [1, 8, 8], strides = [1, 1, 1]} : vector<8x8x8xf32> to vector<1x8x8xf32>
    %414 = vector.shape_cast %413 : vector<1x8x8xf32> to vector<8x8xf32>
    %415 = vector.broadcast %412 : vector<1x1xf32> to vector<8x8xf32>
    %416 = arith.mulf %415, %414 : vector<8x8xf32>
    %417 = arith.addf %410, %416 : vector<8x8xf32>
    %c3_180 = arith.constant 3 : index
    %c3_181 = arith.constant 3 : index
    %c0_182 = arith.constant 0 : index
    %418 = vector.load %arg10[%c3_180, %c3_181, %c0_182] : memref<4x8x1xf32, #tpu.memory_space<vmem>>, vector<1x1x1xf32>
    %419 = vector.shape_cast %418 : vector<1x1x1xf32> to vector<1x1xf32>
    %420 = vector.extract_strided_slice %18 {offsets = [3, 0, 0], sizes = [1, 8, 8], strides = [1, 1, 1]} : vector<8x8x8xf32> to vector<1x8x8xf32>
    %421 = vector.shape_cast %420 : vector<1x8x8xf32> to vector<8x8xf32>
    %422 = vector.broadcast %419 : vector<1x1xf32> to vector<8x8xf32>
    %423 = arith.mulf %422, %421 : vector<8x8xf32>
    %424 = arith.addf %417, %423 : vector<8x8xf32>
    %c3_183 = arith.constant 3 : index
    %c4_184 = arith.constant 4 : index
    %c0_185 = arith.constant 0 : index
    %425 = vector.load %arg10[%c3_183, %c4_184, %c0_185] : memref<4x8x1xf32, #tpu.memory_space<vmem>>, vector<1x1x1xf32>
    %426 = vector.shape_cast %425 : vector<1x1x1xf32> to vector<1x1xf32>
    %427 = vector.extract_strided_slice %18 {offsets = [4, 0, 0], sizes = [1, 8, 8], strides = [1, 1, 1]} : vector<8x8x8xf32> to vector<1x8x8xf32>
    %428 = vector.shape_cast %427 : vector<1x8x8xf32> to vector<8x8xf32>
    %429 = vector.broadcast %426 : vector<1x1xf32> to vector<8x8xf32>
    %430 = arith.mulf %429, %428 : vector<8x8xf32>
    %431 = arith.addf %424, %430 : vector<8x8xf32>
    %c3_186 = arith.constant 3 : index
    %c5_187 = arith.constant 5 : index
    %c0_188 = arith.constant 0 : index
    %432 = vector.load %arg10[%c3_186, %c5_187, %c0_188] : memref<4x8x1xf32, #tpu.memory_space<vmem>>, vector<1x1x1xf32>
    %433 = vector.shape_cast %432 : vector<1x1x1xf32> to vector<1x1xf32>
    %434 = vector.extract_strided_slice %18 {offsets = [5, 0, 0], sizes = [1, 8, 8], strides = [1, 1, 1]} : vector<8x8x8xf32> to vector<1x8x8xf32>
    %435 = vector.shape_cast %434 : vector<1x8x8xf32> to vector<8x8xf32>
    %436 = vector.broadcast %433 : vector<1x1xf32> to vector<8x8xf32>
    %437 = arith.mulf %436, %435 : vector<8x8xf32>
    %438 = arith.addf %431, %437 : vector<8x8xf32>
    %c3_189 = arith.constant 3 : index
    %c6_190 = arith.constant 6 : index
    %c0_191 = arith.constant 0 : index
    %439 = vector.load %arg10[%c3_189, %c6_190, %c0_191] : memref<4x8x1xf32, #tpu.memory_space<vmem>>, vector<1x1x1xf32>
    %440 = vector.shape_cast %439 : vector<1x1x1xf32> to vector<1x1xf32>
    %441 = vector.extract_strided_slice %18 {offsets = [6, 0, 0], sizes = [1, 8, 8], strides = [1, 1, 1]} : vector<8x8x8xf32> to vector<1x8x8xf32>
    %442 = vector.shape_cast %441 : vector<1x8x8xf32> to vector<8x8xf32>
    %443 = vector.broadcast %440 : vector<1x1xf32> to vector<8x8xf32>
    %444 = arith.mulf %443, %442 : vector<8x8xf32>
    %445 = arith.addf %438, %444 : vector<8x8xf32>
    %c3_192 = arith.constant 3 : index
    %c7_193 = arith.constant 7 : index
    %c0_194 = arith.constant 0 : index
    %446 = vector.load %arg10[%c3_192, %c7_193, %c0_194] : memref<4x8x1xf32, #tpu.memory_space<vmem>>, vector<1x1x1xf32>
    %447 = vector.shape_cast %446 : vector<1x1x1xf32> to vector<1x1xf32>
    %448 = vector.extract_strided_slice %18 {offsets = [7, 0, 0], sizes = [1, 8, 8], strides = [1, 1, 1]} : vector<8x8x8xf32> to vector<1x8x8xf32>
    %449 = vector.shape_cast %448 : vector<1x8x8xf32> to vector<8x8xf32>
    %450 = vector.broadcast %447 : vector<1x1xf32> to vector<8x8xf32>
    %451 = arith.mulf %450, %449 : vector<8x8xf32>
    %452 = arith.addf %445, %451 : vector<8x8xf32>
    %c3_195 = arith.constant 3 : index
    %c0_196 = arith.constant 0 : index
    %453 = vector.load %arg11[%c3_195, %c0_196] : memref<4x1xf32, #tpu.memory_space<vmem>>, vector<1x1xf32>
    %454 = vector.broadcast %453 : vector<1x1xf32> to vector<8x8xf32>
    %455 = arith.addf %452, %454 : vector<8x8xf32>
    %456 = arith.negf %455 : vector<8x8xf32>
    %457 = math.exp %456 : vector<8x8xf32>
    %cst_197 = arith.constant 1.000000e+00 : f32
    %458 = vector.broadcast %cst_197 : f32 to vector<8x8xf32>
    %459 = arith.addf %458, %457 : vector<8x8xf32>
    %460 = arith.divf %458, %459 : vector<8x8xf32>
    %461 = arith.mulf %460, %395 : vector<8x8xf32>
    %462 = arith.addf %391, %461 : vector<8x8xf32>
    %c0_198 = arith.constant 0 : index
    %c24_199 = arith.constant 24 : index
    %463 = vector.load %arg24[%c0_198, %c24_199] : memref<16x32xf32, #tpu.memory_space<vmem>>, vector<8x8xf32>
    tpu.vector_store %arg24[%c0_198, %c24_199], %462 {strides = array<i32>} : memref<16x32xf32, #tpu.memory_space<vmem>>, vector<8x8xf32>,
    %c1_200 = arith.constant 1 : index
    %c0_201 = arith.constant 0 : index
    %c0_202 = arith.constant 0 : index
    %464 = vector.load %arg2[%c1_200, %c0_201, %c0_202] : memref<2x64x4xf32, #tpu.memory_space<vmem>>, vector<1x64x4xf32>
    %465 = vector.shape_cast %464 : vector<1x64x4xf32> to vector<64x4xf32>
    %c1_203 = arith.constant 1 : index
    %c0_204 = arith.constant 0 : index
    %c0_205 = arith.constant 0 : index
    %466 = vector.load %arg3[%c1_203, %c0_204, %c0_205] : memref<2x64x4xf32, #tpu.memory_space<vmem>>, vector<1x64x4xf32>
    %467 = vector.shape_cast %466 : vector<1x64x4xf32> to vector<64x4xf32>
    %cst_206 = arith.constant dense<0.000000e+00> : vector<64x8xf32>
    %468 = tpu.matmul %465, %7, %cst_206 {dimension_numbers = #tpu.dot_dimension_numbers<[1], [0], [0], [1], [0, 0, 1, 1], [], []>} : vector<64x4xf32>, vector<4x8xf32>, vector<64x8xf32> -> vector<64x8xf32>
    %469 = vector.shape_cast %468 : vector<64x8xf32> to vector<8x8x8xf32>
    %cst_207 = arith.constant dense<0.000000e+00> : vector<64x8xf32>
    %470 = tpu.matmul %465, %8, %cst_207 {dimension_numbers = #tpu.dot_dimension_numbers<[1], [0], [0], [1], [0, 0, 1, 1], [], []>} : vector<64x4xf32>, vector<4x8xf32>, vector<64x8xf32> -> vector<64x8xf32>
    %471 = vector.shape_cast %470 : vector<64x8xf32> to vector<8x8x8xf32>
    %cst_208 = arith.constant dense<0.000000e+00> : vector<64x8xf32>
    %472 = tpu.matmul %467, %8, %cst_208 {dimension_numbers = #tpu.dot_dimension_numbers<[1], [0], [0], [1], [0, 0, 1, 1], [], []>} : vector<64x4xf32>, vector<4x8xf32>, vector<64x8xf32> -> vector<64x8xf32>
    %473 = vector.shape_cast %472 : vector<64x8xf32> to vector<8x8x8xf32>
    %c1_209 = arith.constant 1 : index
    %c0_210 = arith.constant 0 : index
    %474 = vector.load %arg1[%c1_209, %c0_210] : memref<2x8xf32, #tpu.memory_space<vmem>>, vector<1x8xf32>
    %c8_211 = arith.constant 8 : index
    %c0_212 = arith.constant 0 : index
    %475 = vector.load %arg23[%c8_211, %c0_212] : memref<16x96xf32, #tpu.memory_space<vmem>>, vector<8x8xf32>
    %c8_213 = arith.constant 8 : index
    %c32_214 = arith.constant 32 : index
    %476 = vector.load %arg23[%c8_213, %c32_214] : memref<16x96xf32, #tpu.memory_space<vmem>>, vector<8x8xf32>
    %c8_215 = arith.constant 8 : index
    %c64_216 = arith.constant 64 : index
    %477 = vector.load %arg23[%c8_215, %c64_216] : memref<16x96xf32, #tpu.memory_space<vmem>>, vector<8x8xf32>
    %cst_217 = arith.constant dense<0.000000e+00> : vector<8x8xf32>
    %478 = tpu.matmul %475, %476, %cst_217 {dimension_numbers = #tpu.dot_dimension_numbers<[1], [1], [0], [0], [0, 0, 1, 0], [], []>} : vector<8x8xf32>, vector<8x8xf32>, vector<8x8xf32> -> vector<8x8xf32>
    %cst_218 = arith.constant 0.353553385 : f32
    %479 = vector.broadcast %cst_218 : f32 to vector<8x8xf32>
    %480 = arith.mulf %478, %479 : vector<8x8xf32>
    %c0_219 = arith.constant 0 : index
    %c0_220 = arith.constant 0 : index
    %481 = vector.load %arg8[%c0_219, %c0_220] : memref<4x8xf32, #tpu.memory_space<vmem>>, vector<1x8xf32>
    %c0_221 = arith.constant 0 : index
    %c0_222 = arith.constant 0 : index
    %482 = vector.load %arg9[%c0_221, %c0_222] : memref<4x1xf32, #tpu.memory_space<vmem>>, vector<1x1xf32>
    %483 = vector.shape_cast %481 : vector<1x8xf32> to vector<1x1x8xf32>
    %484 = vector.broadcast %483 : vector<1x1x8xf32> to vector<8x8x8xf32>
    %485 = arith.mulf %469, %484 : vector<8x8x8xf32>
    %cst_223 = arith.constant dense<0.000000e+00> : vector<8x8xf32>
    %486 = vector.multi_reduction <add>, %485, %cst_223 [2] : vector<8x8x8xf32> to vector<8x8xf32>
    %487 = vector.broadcast %482 : vector<1x1xf32> to vector<8x8xf32>
    %488 = arith.addf %486, %487 : vector<8x8xf32>
    %489 = arith.negf %488 : vector<8x8xf32>
    %490 = math.exp %489 : vector<8x8xf32>
    %cst_224 = arith.constant 1.000000e+00 : f32
    %491 = vector.broadcast %cst_224 : f32 to vector<8x8xf32>
    %492 = arith.addf %491, %490 : vector<8x8xf32>
    %493 = arith.divf %491, %492 : vector<8x8xf32>
    %494 = tpu.transpose %493, [1, 0] : vector<8x8xf32> -> vector<8x8xf32>
    %495 = vector.shape_cast %475 : vector<8x8xf32> to vector<8x1x8xf32>
    %496 = vector.broadcast %495 : vector<8x1x8xf32> to vector<8x8x8xf32>
    %497 = arith.mulf %496, %469 : vector<8x8x8xf32>
    %cst_225 = arith.constant dense<0.000000e+00> : vector<8x8xf32>
    %498 = vector.multi_reduction <add>, %497, %cst_225 [2] : vector<8x8x8xf32> to vector<8x8xf32>
    %499 = arith.mulf %494, %498 : vector<8x8xf32>
    %500 = arith.addf %480, %499 : vector<8x8xf32>
    %501 = vector.broadcast %474 : vector<1x8xf32> to vector<8x8xf32>
    %502 = arith.addf %500, %501 : vector<8x8xf32>
    %cst_226 = arith.constant dense<0xFF800000> : vector<8xf32>
    %503 = vector.multi_reduction <maximumf>, %502, %cst_226 [1] : vector<8x8xf32> to vector<8xf32>
    %504 = vector.shape_cast %503 : vector<8xf32> to vector<8x1xf32>
    %505 = vector.broadcast %504 : vector<8x1xf32> to vector<8x8xf32>
    %506 = arith.subf %502, %505 : vector<8x8xf32>
    %507 = math.exp %506 : vector<8x8xf32>
    %cst_227 = arith.constant dense<0.000000e+00> : vector<8xf32>
    %508 = vector.multi_reduction <add>, %507, %cst_227 [1] : vector<8x8xf32> to vector<8xf32>
    %509 = vector.shape_cast %508 : vector<8xf32> to vector<8x1xf32>
    %510 = tpu.reciprocal %509 : vector<8x1xf32> -> vector<8x1xf32>
    %511 = vector.broadcast %510 : vector<8x1xf32> to vector<8x8xf32>
    %512 = arith.mulf %507, %511 : vector<8x8xf32>
    %cst_228 = arith.constant dense<0.000000e+00> : vector<8x8xf32>
    %513 = tpu.matmul %512, %477, %cst_228 {dimension_numbers = #tpu.dot_dimension_numbers<[1], [0], [0], [1], [0, 0, 1, 1], [], []>} : vector<8x8xf32>, vector<8x8xf32>, vector<8x8xf32> -> vector<8x8xf32>
    %514 = vector.shape_cast %512 : vector<8x8xf32> to vector<8x8x1xf32>
    %515 = vector.broadcast %514 : vector<8x8x1xf32> to vector<8x8x8xf32>
    %516 = arith.mulf %515, %471 : vector<8x8x8xf32>
    %cst_229 = arith.constant dense<0.000000e+00> : vector<8x8xf32>
    %517 = vector.multi_reduction <add>, %516, %cst_229 [1] : vector<8x8x8xf32> to vector<8x8xf32>
    %cst_230 = arith.constant 0.000000e+00 : f32
    %518 = vector.broadcast %cst_230 : f32 to vector<8x8xf32>
    %c0_231 = arith.constant 0 : index
    %c0_232 = arith.constant 0 : index
    %c0_233 = arith.constant 0 : index
    %519 = vector.load %arg10[%c0_231, %c0_232, %c0_233] : memref<4x8x1xf32, #tpu.memory_space<vmem>>, vector<1x1x1xf32>
    %520 = vector.shape_cast %519 : vector<1x1x1xf32> to vector<1x1xf32>
    %521 = vector.extract_strided_slice %473 {offsets = [0, 0, 0], sizes = [1, 8, 8], strides = [1, 1, 1]} : vector<8x8x8xf32> to vector<1x8x8xf32>
    %522 = vector.shape_cast %521 : vector<1x8x8xf32> to vector<8x8xf32>
    %523 = vector.broadcast %520 : vector<1x1xf32> to vector<8x8xf32>
    %524 = arith.mulf %523, %522 : vector<8x8xf32>
    %525 = arith.addf %518, %524 : vector<8x8xf32>
    %c0_234 = arith.constant 0 : index
    %c1_235 = arith.constant 1 : index
    %c0_236 = arith.constant 0 : index
    %526 = vector.load %arg10[%c0_234, %c1_235, %c0_236] : memref<4x8x1xf32, #tpu.memory_space<vmem>>, vector<1x1x1xf32>
    %527 = vector.shape_cast %526 : vector<1x1x1xf32> to vector<1x1xf32>
    %528 = vector.extract_strided_slice %473 {offsets = [1, 0, 0], sizes = [1, 8, 8], strides = [1, 1, 1]} : vector<8x8x8xf32> to vector<1x8x8xf32>
    %529 = vector.shape_cast %528 : vector<1x8x8xf32> to vector<8x8xf32>
    %530 = vector.broadcast %527 : vector<1x1xf32> to vector<8x8xf32>
    %531 = arith.mulf %530, %529 : vector<8x8xf32>
    %532 = arith.addf %525, %531 : vector<8x8xf32>
    %c0_237 = arith.constant 0 : index
    %c2_238 = arith.constant 2 : index
    %c0_239 = arith.constant 0 : index
    %533 = vector.load %arg10[%c0_237, %c2_238, %c0_239] : memref<4x8x1xf32, #tpu.memory_space<vmem>>, vector<1x1x1xf32>
    %534 = vector.shape_cast %533 : vector<1x1x1xf32> to vector<1x1xf32>
    %535 = vector.extract_strided_slice %473 {offsets = [2, 0, 0], sizes = [1, 8, 8], strides = [1, 1, 1]} : vector<8x8x8xf32> to vector<1x8x8xf32>
    %536 = vector.shape_cast %535 : vector<1x8x8xf32> to vector<8x8xf32>
    %537 = vector.broadcast %534 : vector<1x1xf32> to vector<8x8xf32>
    %538 = arith.mulf %537, %536 : vector<8x8xf32>
    %539 = arith.addf %532, %538 : vector<8x8xf32>
    %c0_240 = arith.constant 0 : index
    %c3_241 = arith.constant 3 : index
    %c0_242 = arith.constant 0 : index
    %540 = vector.load %arg10[%c0_240, %c3_241, %c0_242] : memref<4x8x1xf32, #tpu.memory_space<vmem>>, vector<1x1x1xf32>
    %541 = vector.shape_cast %540 : vector<1x1x1xf32> to vector<1x1xf32>
    %542 = vector.extract_strided_slice %473 {offsets = [3, 0, 0], sizes = [1, 8, 8], strides = [1, 1, 1]} : vector<8x8x8xf32> to vector<1x8x8xf32>
    %543 = vector.shape_cast %542 : vector<1x8x8xf32> to vector<8x8xf32>
    %544 = vector.broadcast %541 : vector<1x1xf32> to vector<8x8xf32>
    %545 = arith.mulf %544, %543 : vector<8x8xf32>
    %546 = arith.addf %539, %545 : vector<8x8xf32>
    %c0_243 = arith.constant 0 : index
    %c4_244 = arith.constant 4 : index
    %c0_245 = arith.constant 0 : index
    %547 = vector.load %arg10[%c0_243, %c4_244, %c0_245] : memref<4x8x1xf32, #tpu.memory_space<vmem>>, vector<1x1x1xf32>
    %548 = vector.shape_cast %547 : vector<1x1x1xf32> to vector<1x1xf32>
    %549 = vector.extract_strided_slice %473 {offsets = [4, 0, 0], sizes = [1, 8, 8], strides = [1, 1, 1]} : vector<8x8x8xf32> to vector<1x8x8xf32>
    %550 = vector.shape_cast %549 : vector<1x8x8xf32> to vector<8x8xf32>
    %551 = vector.broadcast %548 : vector<1x1xf32> to vector<8x8xf32>
    %552 = arith.mulf %551, %550 : vector<8x8xf32>
    %553 = arith.addf %546, %552 : vector<8x8xf32>
    %c0_246 = arith.constant 0 : index
    %c5_247 = arith.constant 5 : index
    %c0_248 = arith.constant 0 : index
    %554 = vector.load %arg10[%c0_246, %c5_247, %c0_248] : memref<4x8x1xf32, #tpu.memory_space<vmem>>, vector<1x1x1xf32>
    %555 = vector.shape_cast %554 : vector<1x1x1xf32> to vector<1x1xf32>
    %556 = vector.extract_strided_slice %473 {offsets = [5, 0, 0], sizes = [1, 8, 8], strides = [1, 1, 1]} : vector<8x8x8xf32> to vector<1x8x8xf32>
    %557 = vector.shape_cast %556 : vector<1x8x8xf32> to vector<8x8xf32>
    %558 = vector.broadcast %555 : vector<1x1xf32> to vector<8x8xf32>
    %559 = arith.mulf %558, %557 : vector<8x8xf32>
    %560 = arith.addf %553, %559 : vector<8x8xf32>
    %c0_249 = arith.constant 0 : index
    %c6_250 = arith.constant 6 : index
    %c0_251 = arith.constant 0 : index
    %561 = vector.load %arg10[%c0_249, %c6_250, %c0_251] : memref<4x8x1xf32, #tpu.memory_space<vmem>>, vector<1x1x1xf32>
    %562 = vector.shape_cast %561 : vector<1x1x1xf32> to vector<1x1xf32>
    %563 = vector.extract_strided_slice %473 {offsets = [6, 0, 0], sizes = [1, 8, 8], strides = [1, 1, 1]} : vector<8x8x8xf32> to vector<1x8x8xf32>
    %564 = vector.shape_cast %563 : vector<1x8x8xf32> to vector<8x8xf32>
    %565 = vector.broadcast %562 : vector<1x1xf32> to vector<8x8xf32>
    %566 = arith.mulf %565, %564 : vector<8x8xf32>
    %567 = arith.addf %560, %566 : vector<8x8xf32>
    %c0_252 = arith.constant 0 : index
    %c7_253 = arith.constant 7 : index
    %c0_254 = arith.constant 0 : index
    %568 = vector.load %arg10[%c0_252, %c7_253, %c0_254] : memref<4x8x1xf32, #tpu.memory_space<vmem>>, vector<1x1x1xf32>
    %569 = vector.shape_cast %568 : vector<1x1x1xf32> to vector<1x1xf32>
    %570 = vector.extract_strided_slice %473 {offsets = [7, 0, 0], sizes = [1, 8, 8], strides = [1, 1, 1]} : vector<8x8x8xf32> to vector<1x8x8xf32>
    %571 = vector.shape_cast %570 : vector<1x8x8xf32> to vector<8x8xf32>
    %572 = vector.broadcast %569 : vector<1x1xf32> to vector<8x8xf32>
    %573 = arith.mulf %572, %571 : vector<8x8xf32>
    %574 = arith.addf %567, %573 : vector<8x8xf32>
    %c0_255 = arith.constant 0 : index
    %c0_256 = arith.constant 0 : index
    %575 = vector.load %arg11[%c0_255, %c0_256] : memref<4x1xf32, #tpu.memory_space<vmem>>, vector<1x1xf32>
    %576 = vector.broadcast %575 : vector<1x1xf32> to vector<8x8xf32>
    %577 = arith.addf %574, %576 : vector<8x8xf32>
    %578 = arith.negf %577 : vector<8x8xf32>
    %579 = math.exp %578 : vector<8x8xf32>
    %cst_257 = arith.constant 1.000000e+00 : f32
    %580 = vector.broadcast %cst_257 : f32 to vector<8x8xf32>
    %581 = arith.addf %580, %579 : vector<8x8xf32>
    %582 = arith.divf %580, %581 : vector<8x8xf32>
    %583 = arith.mulf %582, %517 : vector<8x8xf32>
    %584 = arith.addf %513, %583 : vector<8x8xf32>
    %c8_258 = arith.constant 8 : index
    %c0_259 = arith.constant 0 : index
    %585 = vector.load %arg24[%c8_258, %c0_259] : memref<16x32xf32, #tpu.memory_space<vmem>>, vector<8x8xf32>
    tpu.vector_store %arg24[%c8_258, %c0_259], %584 {strides = array<i32>} : memref<16x32xf32, #tpu.memory_space<vmem>>, vector<8x8xf32>,
    %c8_260 = arith.constant 8 : index
    %c8_261 = arith.constant 8 : index
    %586 = vector.load %arg23[%c8_260, %c8_261] : memref<16x96xf32, #tpu.memory_space<vmem>>, vector<8x8xf32>
    %c8_262 = arith.constant 8 : index
    %c40_263 = arith.constant 40 : index
    %587 = vector.load %arg23[%c8_262, %c40_263] : memref<16x96xf32, #tpu.memory_space<vmem>>, vector<8x8xf32>
    %c8_264 = arith.constant 8 : index
    %c72_265 = arith.constant 72 : index
    %588 = vector.load %arg23[%c8_264, %c72_265] : memref<16x96xf32, #tpu.memory_space<vmem>>, vector<8x8xf32>
    %cst_266 = arith.constant dense<0.000000e+00> : vector<8x8xf32>
    %589 = tpu.matmul %586, %587, %cst_266 {dimension_numbers = #tpu.dot_dimension_numbers<[1], [1], [0], [0], [0, 0, 1, 0], [], []>} : vector<8x8xf32>, vector<8x8xf32>, vector<8x8xf32> -> vector<8x8xf32>
    %cst_267 = arith.constant 0.353553385 : f32
    %590 = vector.broadcast %cst_267 : f32 to vector<8x8xf32>
    %591 = arith.mulf %589, %590 : vector<8x8xf32>
    %c1_268 = arith.constant 1 : index
    %c0_269 = arith.constant 0 : index
    %592 = vector.load %arg8[%c1_268, %c0_269] : memref<4x8xf32, #tpu.memory_space<vmem>>, vector<1x8xf32>
    %c1_270 = arith.constant 1 : index
    %c0_271 = arith.constant 0 : index
    %593 = vector.load %arg9[%c1_270, %c0_271] : memref<4x1xf32, #tpu.memory_space<vmem>>, vector<1x1xf32>
    %594 = vector.shape_cast %592 : vector<1x8xf32> to vector<1x1x8xf32>
    %595 = vector.broadcast %594 : vector<1x1x8xf32> to vector<8x8x8xf32>
    %596 = arith.mulf %469, %595 : vector<8x8x8xf32>
    %cst_272 = arith.constant dense<0.000000e+00> : vector<8x8xf32>
    %597 = vector.multi_reduction <add>, %596, %cst_272 [2] : vector<8x8x8xf32> to vector<8x8xf32>
    %598 = vector.broadcast %593 : vector<1x1xf32> to vector<8x8xf32>
    %599 = arith.addf %597, %598 : vector<8x8xf32>
    %600 = arith.negf %599 : vector<8x8xf32>
    %601 = math.exp %600 : vector<8x8xf32>
    %cst_273 = arith.constant 1.000000e+00 : f32
    %602 = vector.broadcast %cst_273 : f32 to vector<8x8xf32>
    %603 = arith.addf %602, %601 : vector<8x8xf32>
    %604 = arith.divf %602, %603 : vector<8x8xf32>
    %605 = tpu.transpose %604, [1, 0] : vector<8x8xf32> -> vector<8x8xf32>
    %606 = vector.shape_cast %586 : vector<8x8xf32> to vector<8x1x8xf32>
    %607 = vector.broadcast %606 : vector<8x1x8xf32> to vector<8x8x8xf32>
    %608 = arith.mulf %607, %469 : vector<8x8x8xf32>
    %cst_274 = arith.constant dense<0.000000e+00> : vector<8x8xf32>
    %609 = vector.multi_reduction <add>, %608, %cst_274 [2] : vector<8x8x8xf32> to vector<8x8xf32>
    %610 = arith.mulf %605, %609 : vector<8x8xf32>
    %611 = arith.addf %591, %610 : vector<8x8xf32>
    %612 = vector.broadcast %474 : vector<1x8xf32> to vector<8x8xf32>
    %613 = arith.addf %611, %612 : vector<8x8xf32>
    %cst_275 = arith.constant dense<0xFF800000> : vector<8xf32>
    %614 = vector.multi_reduction <maximumf>, %613, %cst_275 [1] : vector<8x8xf32> to vector<8xf32>
    %615 = vector.shape_cast %614 : vector<8xf32> to vector<8x1xf32>
    %616 = vector.broadcast %615 : vector<8x1xf32> to vector<8x8xf32>
    %617 = arith.subf %613, %616 : vector<8x8xf32>
    %618 = math.exp %617 : vector<8x8xf32>
    %cst_276 = arith.constant dense<0.000000e+00> : vector<8xf32>
    %619 = vector.multi_reduction <add>, %618, %cst_276 [1] : vector<8x8xf32> to vector<8xf32>
    %620 = vector.shape_cast %619 : vector<8xf32> to vector<8x1xf32>
    %621 = tpu.reciprocal %620 : vector<8x1xf32> -> vector<8x1xf32>
    %622 = vector.broadcast %621 : vector<8x1xf32> to vector<8x8xf32>
    %623 = arith.mulf %618, %622 : vector<8x8xf32>
    %cst_277 = arith.constant dense<0.000000e+00> : vector<8x8xf32>
    %624 = tpu.matmul %623, %588, %cst_277 {dimension_numbers = #tpu.dot_dimension_numbers<[1], [0], [0], [1], [0, 0, 1, 1], [], []>} : vector<8x8xf32>, vector<8x8xf32>, vector<8x8xf32> -> vector<8x8xf32>
    %625 = vector.shape_cast %623 : vector<8x8xf32> to vector<8x8x1xf32>
    %626 = vector.broadcast %625 : vector<8x8x1xf32> to vector<8x8x8xf32>
    %627 = arith.mulf %626, %471 : vector<8x8x8xf32>
    %cst_278 = arith.constant dense<0.000000e+00> : vector<8x8xf32>
    %628 = vector.multi_reduction <add>, %627, %cst_278 [1] : vector<8x8x8xf32> to vector<8x8xf32>
    %cst_279 = arith.constant 0.000000e+00 : f32
    %629 = vector.broadcast %cst_279 : f32 to vector<8x8xf32>
    %c1_280 = arith.constant 1 : index
    %c0_281 = arith.constant 0 : index
    %c0_282 = arith.constant 0 : index
    %630 = vector.load %arg10[%c1_280, %c0_281, %c0_282] : memref<4x8x1xf32, #tpu.memory_space<vmem>>, vector<1x1x1xf32>
    %631 = vector.shape_cast %630 : vector<1x1x1xf32> to vector<1x1xf32>
    %632 = vector.extract_strided_slice %473 {offsets = [0, 0, 0], sizes = [1, 8, 8], strides = [1, 1, 1]} : vector<8x8x8xf32> to vector<1x8x8xf32>
    %633 = vector.shape_cast %632 : vector<1x8x8xf32> to vector<8x8xf32>
    %634 = vector.broadcast %631 : vector<1x1xf32> to vector<8x8xf32>
    %635 = arith.mulf %634, %633 : vector<8x8xf32>
    %636 = arith.addf %629, %635 : vector<8x8xf32>
    %c1_283 = arith.constant 1 : index
    %c1_284 = arith.constant 1 : index
    %c0_285 = arith.constant 0 : index
    %637 = vector.load %arg10[%c1_283, %c1_284, %c0_285] : memref<4x8x1xf32, #tpu.memory_space<vmem>>, vector<1x1x1xf32>
    %638 = vector.shape_cast %637 : vector<1x1x1xf32> to vector<1x1xf32>
    %639 = vector.extract_strided_slice %473 {offsets = [1, 0, 0], sizes = [1, 8, 8], strides = [1, 1, 1]} : vector<8x8x8xf32> to vector<1x8x8xf32>
    %640 = vector.shape_cast %639 : vector<1x8x8xf32> to vector<8x8xf32>
    %641 = vector.broadcast %638 : vector<1x1xf32> to vector<8x8xf32>
    %642 = arith.mulf %641, %640 : vector<8x8xf32>
    %643 = arith.addf %636, %642 : vector<8x8xf32>
    %c1_286 = arith.constant 1 : index
    %c2_287 = arith.constant 2 : index
    %c0_288 = arith.constant 0 : index
    %644 = vector.load %arg10[%c1_286, %c2_287, %c0_288] : memref<4x8x1xf32, #tpu.memory_space<vmem>>, vector<1x1x1xf32>
    %645 = vector.shape_cast %644 : vector<1x1x1xf32> to vector<1x1xf32>
    %646 = vector.extract_strided_slice %473 {offsets = [2, 0, 0], sizes = [1, 8, 8], strides = [1, 1, 1]} : vector<8x8x8xf32> to vector<1x8x8xf32>
    %647 = vector.shape_cast %646 : vector<1x8x8xf32> to vector<8x8xf32>
    %648 = vector.broadcast %645 : vector<1x1xf32> to vector<8x8xf32>
    %649 = arith.mulf %648, %647 : vector<8x8xf32>
    %650 = arith.addf %643, %649 : vector<8x8xf32>
    %c1_289 = arith.constant 1 : index
    %c3_290 = arith.constant 3 : index
    %c0_291 = arith.constant 0 : index
    %651 = vector.load %arg10[%c1_289, %c3_290, %c0_291] : memref<4x8x1xf32, #tpu.memory_space<vmem>>, vector<1x1x1xf32>
    %652 = vector.shape_cast %651 : vector<1x1x1xf32> to vector<1x1xf32>
    %653 = vector.extract_strided_slice %473 {offsets = [3, 0, 0], sizes = [1, 8, 8], strides = [1, 1, 1]} : vector<8x8x8xf32> to vector<1x8x8xf32>
    %654 = vector.shape_cast %653 : vector<1x8x8xf32> to vector<8x8xf32>
    %655 = vector.broadcast %652 : vector<1x1xf32> to vector<8x8xf32>
    %656 = arith.mulf %655, %654 : vector<8x8xf32>
    %657 = arith.addf %650, %656 : vector<8x8xf32>
    %c1_292 = arith.constant 1 : index
    %c4_293 = arith.constant 4 : index
    %c0_294 = arith.constant 0 : index
    %658 = vector.load %arg10[%c1_292, %c4_293, %c0_294] : memref<4x8x1xf32, #tpu.memory_space<vmem>>, vector<1x1x1xf32>
    %659 = vector.shape_cast %658 : vector<1x1x1xf32> to vector<1x1xf32>
    %660 = vector.extract_strided_slice %473 {offsets = [4, 0, 0], sizes = [1, 8, 8], strides = [1, 1, 1]} : vector<8x8x8xf32> to vector<1x8x8xf32>
    %661 = vector.shape_cast %660 : vector<1x8x8xf32> to vector<8x8xf32>
    %662 = vector.broadcast %659 : vector<1x1xf32> to vector<8x8xf32>
    %663 = arith.mulf %662, %661 : vector<8x8xf32>
    %664 = arith.addf %657, %663 : vector<8x8xf32>
    %c1_295 = arith.constant 1 : index
    %c5_296 = arith.constant 5 : index
    %c0_297 = arith.constant 0 : index
    %665 = vector.load %arg10[%c1_295, %c5_296, %c0_297] : memref<4x8x1xf32, #tpu.memory_space<vmem>>, vector<1x1x1xf32>
    %666 = vector.shape_cast %665 : vector<1x1x1xf32> to vector<1x1xf32>
    %667 = vector.extract_strided_slice %473 {offsets = [5, 0, 0], sizes = [1, 8, 8], strides = [1, 1, 1]} : vector<8x8x8xf32> to vector<1x8x8xf32>
    %668 = vector.shape_cast %667 : vector<1x8x8xf32> to vector<8x8xf32>
    %669 = vector.broadcast %666 : vector<1x1xf32> to vector<8x8xf32>
    %670 = arith.mulf %669, %668 : vector<8x8xf32>
    %671 = arith.addf %664, %670 : vector<8x8xf32>
    %c1_298 = arith.constant 1 : index
    %c6_299 = arith.constant 6 : index
    %c0_300 = arith.constant 0 : index
    %672 = vector.load %arg10[%c1_298, %c6_299, %c0_300] : memref<4x8x1xf32, #tpu.memory_space<vmem>>, vector<1x1x1xf32>
    %673 = vector.shape_cast %672 : vector<1x1x1xf32> to vector<1x1xf32>
    %674 = vector.extract_strided_slice %473 {offsets = [6, 0, 0], sizes = [1, 8, 8], strides = [1, 1, 1]} : vector<8x8x8xf32> to vector<1x8x8xf32>
    %675 = vector.shape_cast %674 : vector<1x8x8xf32> to vector<8x8xf32>
    %676 = vector.broadcast %673 : vector<1x1xf32> to vector<8x8xf32>
    %677 = arith.mulf %676, %675 : vector<8x8xf32>
    %678 = arith.addf %671, %677 : vector<8x8xf32>
    %c1_301 = arith.constant 1 : index
    %c7_302 = arith.constant 7 : index
    %c0_303 = arith.constant 0 : index
    %679 = vector.load %arg10[%c1_301, %c7_302, %c0_303] : memref<4x8x1xf32, #tpu.memory_space<vmem>>, vector<1x1x1xf32>
    %680 = vector.shape_cast %679 : vector<1x1x1xf32> to vector<1x1xf32>
    %681 = vector.extract_strided_slice %473 {offsets = [7, 0, 0], sizes = [1, 8, 8], strides = [1, 1, 1]} : vector<8x8x8xf32> to vector<1x8x8xf32>
    %682 = vector.shape_cast %681 : vector<1x8x8xf32> to vector<8x8xf32>
    %683 = vector.broadcast %680 : vector<1x1xf32> to vector<8x8xf32>
    %684 = arith.mulf %683, %682 : vector<8x8xf32>
    %685 = arith.addf %678, %684 : vector<8x8xf32>
    %c1_304 = arith.constant 1 : index
    %c0_305 = arith.constant 0 : index
    %686 = vector.load %arg11[%c1_304, %c0_305] : memref<4x1xf32, #tpu.memory_space<vmem>>, vector<1x1xf32>
    %687 = vector.broadcast %686 : vector<1x1xf32> to vector<8x8xf32>
    %688 = arith.addf %685, %687 : vector<8x8xf32>
    %689 = arith.negf %688 : vector<8x8xf32>
    %690 = math.exp %689 : vector<8x8xf32>
    %cst_306 = arith.constant 1.000000e+00 : f32
    %691 = vector.broadcast %cst_306 : f32 to vector<8x8xf32>
    %692 = arith.addf %691, %690 : vector<8x8xf32>
    %693 = arith.divf %691, %692 : vector<8x8xf32>
    %694 = arith.mulf %693, %628 : vector<8x8xf32>
    %695 = arith.addf %624, %694 : vector<8x8xf32>
    %c8_307 = arith.constant 8 : index
    %c8_308 = arith.constant 8 : index
    %696 = vector.load %arg24[%c8_307, %c8_308] : memref<16x32xf32, #tpu.memory_space<vmem>>, vector<8x8xf32>
    tpu.vector_store %arg24[%c8_307, %c8_308], %695 {strides = array<i32>} : memref<16x32xf32, #tpu.memory_space<vmem>>, vector<8x8xf32>,
    %c8_309 = arith.constant 8 : index
    %c16_310 = arith.constant 16 : index
    %697 = vector.load %arg23[%c8_309, %c16_310] : memref<16x96xf32, #tpu.memory_space<vmem>>, vector<8x8xf32>
    %c8_311 = arith.constant 8 : index
    %c48_312 = arith.constant 48 : index
    %698 = vector.load %arg23[%c8_311, %c48_312] : memref<16x96xf32, #tpu.memory_space<vmem>>, vector<8x8xf32>
    %c8_313 = arith.constant 8 : index
    %c80_314 = arith.constant 80 : index
    %699 = vector.load %arg23[%c8_313, %c80_314] : memref<16x96xf32, #tpu.memory_space<vmem>>, vector<8x8xf32>
    %cst_315 = arith.constant dense<0.000000e+00> : vector<8x8xf32>
    %700 = tpu.matmul %697, %698, %cst_315 {dimension_numbers = #tpu.dot_dimension_numbers<[1], [1], [0], [0], [0, 0, 1, 0], [], []>} : vector<8x8xf32>, vector<8x8xf32>, vector<8x8xf32> -> vector<8x8xf32>
    %cst_316 = arith.constant 0.353553385 : f32
    %701 = vector.broadcast %cst_316 : f32 to vector<8x8xf32>
    %702 = arith.mulf %700, %701 : vector<8x8xf32>
    %c2_317 = arith.constant 2 : index
    %c0_318 = arith.constant 0 : index
    %703 = vector.load %arg8[%c2_317, %c0_318] : memref<4x8xf32, #tpu.memory_space<vmem>>, vector<1x8xf32>
    %c2_319 = arith.constant 2 : index
    %c0_320 = arith.constant 0 : index
    %704 = vector.load %arg9[%c2_319, %c0_320] : memref<4x1xf32, #tpu.memory_space<vmem>>, vector<1x1xf32>
    %705 = vector.shape_cast %703 : vector<1x8xf32> to vector<1x1x8xf32>
    %706 = vector.broadcast %705 : vector<1x1x8xf32> to vector<8x8x8xf32>
    %707 = arith.mulf %469, %706 : vector<8x8x8xf32>
    %cst_321 = arith.constant dense<0.000000e+00> : vector<8x8xf32>
    %708 = vector.multi_reduction <add>, %707, %cst_321 [2] : vector<8x8x8xf32> to vector<8x8xf32>
    %709 = vector.broadcast %704 : vector<1x1xf32> to vector<8x8xf32>
    %710 = arith.addf %708, %709 : vector<8x8xf32>
    %711 = arith.negf %710 : vector<8x8xf32>
    %712 = math.exp %711 : vector<8x8xf32>
    %cst_322 = arith.constant 1.000000e+00 : f32
    %713 = vector.broadcast %cst_322 : f32 to vector<8x8xf32>
    %714 = arith.addf %713, %712 : vector<8x8xf32>
    %715 = arith.divf %713, %714 : vector<8x8xf32>
    %716 = tpu.transpose %715, [1, 0] : vector<8x8xf32> -> vector<8x8xf32>
    %717 = vector.shape_cast %697 : vector<8x8xf32> to vector<8x1x8xf32>
    %718 = vector.broadcast %717 : vector<8x1x8xf32> to vector<8x8x8xf32>
    %719 = arith.mulf %718, %469 : vector<8x8x8xf32>
    %cst_323 = arith.constant dense<0.000000e+00> : vector<8x8xf32>
    %720 = vector.multi_reduction <add>, %719, %cst_323 [2] : vector<8x8x8xf32> to vector<8x8xf32>
    %721 = arith.mulf %716, %720 : vector<8x8xf32>
    %722 = arith.addf %702, %721 : vector<8x8xf32>
    %723 = vector.broadcast %474 : vector<1x8xf32> to vector<8x8xf32>
    %724 = arith.addf %722, %723 : vector<8x8xf32>
    %cst_324 = arith.constant dense<0xFF800000> : vector<8xf32>
    %725 = vector.multi_reduction <maximumf>, %724, %cst_324 [1] : vector<8x8xf32> to vector<8xf32>
    %726 = vector.shape_cast %725 : vector<8xf32> to vector<8x1xf32>
    %727 = vector.broadcast %726 : vector<8x1xf32> to vector<8x8xf32>
    %728 = arith.subf %724, %727 : vector<8x8xf32>
    %729 = math.exp %728 : vector<8x8xf32>
    %cst_325 = arith.constant dense<0.000000e+00> : vector<8xf32>
    %730 = vector.multi_reduction <add>, %729, %cst_325 [1] : vector<8x8xf32> to vector<8xf32>
    %731 = vector.shape_cast %730 : vector<8xf32> to vector<8x1xf32>
    %732 = tpu.reciprocal %731 : vector<8x1xf32> -> vector<8x1xf32>
    %733 = vector.broadcast %732 : vector<8x1xf32> to vector<8x8xf32>
    %734 = arith.mulf %729, %733 : vector<8x8xf32>
    %cst_326 = arith.constant dense<0.000000e+00> : vector<8x8xf32>
    %735 = tpu.matmul %734, %699, %cst_326 {dimension_numbers = #tpu.dot_dimension_numbers<[1], [0], [0], [1], [0, 0, 1, 1], [], []>} : vector<8x8xf32>, vector<8x8xf32>, vector<8x8xf32> -> vector<8x8xf32>
    %736 = vector.shape_cast %734 : vector<8x8xf32> to vector<8x8x1xf32>
    %737 = vector.broadcast %736 : vector<8x8x1xf32> to vector<8x8x8xf32>
    %738 = arith.mulf %737, %471 : vector<8x8x8xf32>
    %cst_327 = arith.constant dense<0.000000e+00> : vector<8x8xf32>
    %739 = vector.multi_reduction <add>, %738, %cst_327 [1] : vector<8x8x8xf32> to vector<8x8xf32>
    %cst_328 = arith.constant 0.000000e+00 : f32
    %740 = vector.broadcast %cst_328 : f32 to vector<8x8xf32>
    %c2_329 = arith.constant 2 : index
    %c0_330 = arith.constant 0 : index
    %c0_331 = arith.constant 0 : index
    %741 = vector.load %arg10[%c2_329, %c0_330, %c0_331] : memref<4x8x1xf32, #tpu.memory_space<vmem>>, vector<1x1x1xf32>
    %742 = vector.shape_cast %741 : vector<1x1x1xf32> to vector<1x1xf32>
    %743 = vector.extract_strided_slice %473 {offsets = [0, 0, 0], sizes = [1, 8, 8], strides = [1, 1, 1]} : vector<8x8x8xf32> to vector<1x8x8xf32>
    %744 = vector.shape_cast %743 : vector<1x8x8xf32> to vector<8x8xf32>
    %745 = vector.broadcast %742 : vector<1x1xf32> to vector<8x8xf32>
    %746 = arith.mulf %745, %744 : vector<8x8xf32>
    %747 = arith.addf %740, %746 : vector<8x8xf32>
    %c2_332 = arith.constant 2 : index
    %c1_333 = arith.constant 1 : index
    %c0_334 = arith.constant 0 : index
    %748 = vector.load %arg10[%c2_332, %c1_333, %c0_334] : memref<4x8x1xf32, #tpu.memory_space<vmem>>, vector<1x1x1xf32>
    %749 = vector.shape_cast %748 : vector<1x1x1xf32> to vector<1x1xf32>
    %750 = vector.extract_strided_slice %473 {offsets = [1, 0, 0], sizes = [1, 8, 8], strides = [1, 1, 1]} : vector<8x8x8xf32> to vector<1x8x8xf32>
    %751 = vector.shape_cast %750 : vector<1x8x8xf32> to vector<8x8xf32>
    %752 = vector.broadcast %749 : vector<1x1xf32> to vector<8x8xf32>
    %753 = arith.mulf %752, %751 : vector<8x8xf32>
    %754 = arith.addf %747, %753 : vector<8x8xf32>
    %c2_335 = arith.constant 2 : index
    %c2_336 = arith.constant 2 : index
    %c0_337 = arith.constant 0 : index
    %755 = vector.load %arg10[%c2_335, %c2_336, %c0_337] : memref<4x8x1xf32, #tpu.memory_space<vmem>>, vector<1x1x1xf32>
    %756 = vector.shape_cast %755 : vector<1x1x1xf32> to vector<1x1xf32>
    %757 = vector.extract_strided_slice %473 {offsets = [2, 0, 0], sizes = [1, 8, 8], strides = [1, 1, 1]} : vector<8x8x8xf32> to vector<1x8x8xf32>
    %758 = vector.shape_cast %757 : vector<1x8x8xf32> to vector<8x8xf32>
    %759 = vector.broadcast %756 : vector<1x1xf32> to vector<8x8xf32>
    %760 = arith.mulf %759, %758 : vector<8x8xf32>
    %761 = arith.addf %754, %760 : vector<8x8xf32>
    %c2_338 = arith.constant 2 : index
    %c3_339 = arith.constant 3 : index
    %c0_340 = arith.constant 0 : index
    %762 = vector.load %arg10[%c2_338, %c3_339, %c0_340] : memref<4x8x1xf32, #tpu.memory_space<vmem>>, vector<1x1x1xf32>
    %763 = vector.shape_cast %762 : vector<1x1x1xf32> to vector<1x1xf32>
    %764 = vector.extract_strided_slice %473 {offsets = [3, 0, 0], sizes = [1, 8, 8], strides = [1, 1, 1]} : vector<8x8x8xf32> to vector<1x8x8xf32>
    %765 = vector.shape_cast %764 : vector<1x8x8xf32> to vector<8x8xf32>
    %766 = vector.broadcast %763 : vector<1x1xf32> to vector<8x8xf32>
    %767 = arith.mulf %766, %765 : vector<8x8xf32>
    %768 = arith.addf %761, %767 : vector<8x8xf32>
    %c2_341 = arith.constant 2 : index
    %c4_342 = arith.constant 4 : index
    %c0_343 = arith.constant 0 : index
    %769 = vector.load %arg10[%c2_341, %c4_342, %c0_343] : memref<4x8x1xf32, #tpu.memory_space<vmem>>, vector<1x1x1xf32>
    %770 = vector.shape_cast %769 : vector<1x1x1xf32> to vector<1x1xf32>
    %771 = vector.extract_strided_slice %473 {offsets = [4, 0, 0], sizes = [1, 8, 8], strides = [1, 1, 1]} : vector<8x8x8xf32> to vector<1x8x8xf32>
    %772 = vector.shape_cast %771 : vector<1x8x8xf32> to vector<8x8xf32>
    %773 = vector.broadcast %770 : vector<1x1xf32> to vector<8x8xf32>
    %774 = arith.mulf %773, %772 : vector<8x8xf32>
    %775 = arith.addf %768, %774 : vector<8x8xf32>
    %c2_344 = arith.constant 2 : index
    %c5_345 = arith.constant 5 : index
    %c0_346 = arith.constant 0 : index
    %776 = vector.load %arg10[%c2_344, %c5_345, %c0_346] : memref<4x8x1xf32, #tpu.memory_space<vmem>>, vector<1x1x1xf32>
    %777 = vector.shape_cast %776 : vector<1x1x1xf32> to vector<1x1xf32>
    %778 = vector.extract_strided_slice %473 {offsets = [5, 0, 0], sizes = [1, 8, 8], strides = [1, 1, 1]} : vector<8x8x8xf32> to vector<1x8x8xf32>
    %779 = vector.shape_cast %778 : vector<1x8x8xf32> to vector<8x8xf32>
    %780 = vector.broadcast %777 : vector<1x1xf32> to vector<8x8xf32>
    %781 = arith.mulf %780, %779 : vector<8x8xf32>
    %782 = arith.addf %775, %781 : vector<8x8xf32>
    %c2_347 = arith.constant 2 : index
    %c6_348 = arith.constant 6 : index
    %c0_349 = arith.constant 0 : index
    %783 = vector.load %arg10[%c2_347, %c6_348, %c0_349] : memref<4x8x1xf32, #tpu.memory_space<vmem>>, vector<1x1x1xf32>
    %784 = vector.shape_cast %783 : vector<1x1x1xf32> to vector<1x1xf32>
    %785 = vector.extract_strided_slice %473 {offsets = [6, 0, 0], sizes = [1, 8, 8], strides = [1, 1, 1]} : vector<8x8x8xf32> to vector<1x8x8xf32>
    %786 = vector.shape_cast %785 : vector<1x8x8xf32> to vector<8x8xf32>
    %787 = vector.broadcast %784 : vector<1x1xf32> to vector<8x8xf32>
    %788 = arith.mulf %787, %786 : vector<8x8xf32>
    %789 = arith.addf %782, %788 : vector<8x8xf32>
    %c2_350 = arith.constant 2 : index
    %c7_351 = arith.constant 7 : index
    %c0_352 = arith.constant 0 : index
    %790 = vector.load %arg10[%c2_350, %c7_351, %c0_352] : memref<4x8x1xf32, #tpu.memory_space<vmem>>, vector<1x1x1xf32>
    %791 = vector.shape_cast %790 : vector<1x1x1xf32> to vector<1x1xf32>
    %792 = vector.extract_strided_slice %473 {offsets = [7, 0, 0], sizes = [1, 8, 8], strides = [1, 1, 1]} : vector<8x8x8xf32> to vector<1x8x8xf32>
    %793 = vector.shape_cast %792 : vector<1x8x8xf32> to vector<8x8xf32>
    %794 = vector.broadcast %791 : vector<1x1xf32> to vector<8x8xf32>
    %795 = arith.mulf %794, %793 : vector<8x8xf32>
    %796 = arith.addf %789, %795 : vector<8x8xf32>
    %c2_353 = arith.constant 2 : index
    %c0_354 = arith.constant 0 : index
    %797 = vector.load %arg11[%c2_353, %c0_354] : memref<4x1xf32, #tpu.memory_space<vmem>>, vector<1x1xf32>
    %798 = vector.broadcast %797 : vector<1x1xf32> to vector<8x8xf32>
    %799 = arith.addf %796, %798 : vector<8x8xf32>
    %800 = arith.negf %799 : vector<8x8xf32>
    %801 = math.exp %800 : vector<8x8xf32>
    %cst_355 = arith.constant 1.000000e+00 : f32
    %802 = vector.broadcast %cst_355 : f32 to vector<8x8xf32>
    %803 = arith.addf %802, %801 : vector<8x8xf32>
    %804 = arith.divf %802, %803 : vector<8x8xf32>
    %805 = arith.mulf %804, %739 : vector<8x8xf32>
    %806 = arith.addf %735, %805 : vector<8x8xf32>
    %c8_356 = arith.constant 8 : index
    %c16_357 = arith.constant 16 : index
    %807 = vector.load %arg24[%c8_356, %c16_357] : memref<16x32xf32, #tpu.memory_space<vmem>>, vector<8x8xf32>
    tpu.vector_store %arg24[%c8_356, %c16_357], %806 {strides = array<i32>} : memref<16x32xf32, #tpu.memory_space<vmem>>, vector<8x8xf32>,
    %c8_358 = arith.constant 8 : index
    %c24_359 = arith.constant 24 : index
    %808 = vector.load %arg23[%c8_358, %c24_359] : memref<16x96xf32, #tpu.memory_space<vmem>>, vector<8x8xf32>
    %c8_360 = arith.constant 8 : index
    %c56_361 = arith.constant 56 : index
    %809 = vector.load %arg23[%c8_360, %c56_361] : memref<16x96xf32, #tpu.memory_space<vmem>>, vector<8x8xf32>
    %c8_362 = arith.constant 8 : index
    %c88_363 = arith.constant 88 : index
    %810 = vector.load %arg23[%c8_362, %c88_363] : memref<16x96xf32, #tpu.memory_space<vmem>>, vector<8x8xf32>
    %cst_364 = arith.constant dense<0.000000e+00> : vector<8x8xf32>
    %811 = tpu.matmul %808, %809, %cst_364 {dimension_numbers = #tpu.dot_dimension_numbers<[1], [1], [0], [0], [0, 0, 1, 0], [], []>} : vector<8x8xf32>, vector<8x8xf32>, vector<8x8xf32> -> vector<8x8xf32>
    %cst_365 = arith.constant 0.353553385 : f32
    %812 = vector.broadcast %cst_365 : f32 to vector<8x8xf32>
    %813 = arith.mulf %811, %812 : vector<8x8xf32>
    %c3_366 = arith.constant 3 : index
    %c0_367 = arith.constant 0 : index
    %814 = vector.load %arg8[%c3_366, %c0_367] : memref<4x8xf32, #tpu.memory_space<vmem>>, vector<1x8xf32>
    %c3_368 = arith.constant 3 : index
    %c0_369 = arith.constant 0 : index
    %815 = vector.load %arg9[%c3_368, %c0_369] : memref<4x1xf32, #tpu.memory_space<vmem>>, vector<1x1xf32>
    %816 = vector.shape_cast %814 : vector<1x8xf32> to vector<1x1x8xf32>
    %817 = vector.broadcast %816 : vector<1x1x8xf32> to vector<8x8x8xf32>
    %818 = arith.mulf %469, %817 : vector<8x8x8xf32>
    %cst_370 = arith.constant dense<0.000000e+00> : vector<8x8xf32>
    %819 = vector.multi_reduction <add>, %818, %cst_370 [2] : vector<8x8x8xf32> to vector<8x8xf32>
    %820 = vector.broadcast %815 : vector<1x1xf32> to vector<8x8xf32>
    %821 = arith.addf %819, %820 : vector<8x8xf32>
    %822 = arith.negf %821 : vector<8x8xf32>
    %823 = math.exp %822 : vector<8x8xf32>
    %cst_371 = arith.constant 1.000000e+00 : f32
    %824 = vector.broadcast %cst_371 : f32 to vector<8x8xf32>
    %825 = arith.addf %824, %823 : vector<8x8xf32>
    %826 = arith.divf %824, %825 : vector<8x8xf32>
    %827 = tpu.transpose %826, [1, 0] : vector<8x8xf32> -> vector<8x8xf32>
    %828 = vector.shape_cast %808 : vector<8x8xf32> to vector<8x1x8xf32>
    %829 = vector.broadcast %828 : vector<8x1x8xf32> to vector<8x8x8xf32>
    %830 = arith.mulf %829, %469 : vector<8x8x8xf32>
    %cst_372 = arith.constant dense<0.000000e+00> : vector<8x8xf32>
    %831 = vector.multi_reduction <add>, %830, %cst_372 [2] : vector<8x8x8xf32> to vector<8x8xf32>
    %832 = arith.mulf %827, %831 : vector<8x8xf32>
    %833 = arith.addf %813, %832 : vector<8x8xf32>
    %834 = vector.broadcast %474 : vector<1x8xf32> to vector<8x8xf32>
    %835 = arith.addf %833, %834 : vector<8x8xf32>
    %cst_373 = arith.constant dense<0xFF800000> : vector<8xf32>
    %836 = vector.multi_reduction <maximumf>, %835, %cst_373 [1] : vector<8x8xf32> to vector<8xf32>
    %837 = vector.shape_cast %836 : vector<8xf32> to vector<8x1xf32>
    %838 = vector.broadcast %837 : vector<8x1xf32> to vector<8x8xf32>
    %839 = arith.subf %835, %838 : vector<8x8xf32>
    %840 = math.exp %839 : vector<8x8xf32>
    %cst_374 = arith.constant dense<0.000000e+00> : vector<8xf32>
    %841 = vector.multi_reduction <add>, %840, %cst_374 [1] : vector<8x8xf32> to vector<8xf32>
    %842 = vector.shape_cast %841 : vector<8xf32> to vector<8x1xf32>
    %843 = tpu.reciprocal %842 : vector<8x1xf32> -> vector<8x1xf32>
    %844 = vector.broadcast %843 : vector<8x1xf32> to vector<8x8xf32>
    %845 = arith.mulf %840, %844 : vector<8x8xf32>
    %cst_375 = arith.constant dense<0.000000e+00> : vector<8x8xf32>
    %846 = tpu.matmul %845, %810, %cst_375 {dimension_numbers = #tpu.dot_dimension_numbers<[1], [0], [0], [1], [0, 0, 1, 1], [], []>} : vector<8x8xf32>, vector<8x8xf32>, vector<8x8xf32> -> vector<8x8xf32>
    %847 = vector.shape_cast %845 : vector<8x8xf32> to vector<8x8x1xf32>
    %848 = vector.broadcast %847 : vector<8x8x1xf32> to vector<8x8x8xf32>
    %849 = arith.mulf %848, %471 : vector<8x8x8xf32>
    %cst_376 = arith.constant dense<0.000000e+00> : vector<8x8xf32>
    %850 = vector.multi_reduction <add>, %849, %cst_376 [1] : vector<8x8x8xf32> to vector<8x8xf32>
    %cst_377 = arith.constant 0.000000e+00 : f32
    %851 = vector.broadcast %cst_377 : f32 to vector<8x8xf32>
    %c3_378 = arith.constant 3 : index
    %c0_379 = arith.constant 0 : index
    %c0_380 = arith.constant 0 : index
    %852 = vector.load %arg10[%c3_378, %c0_379, %c0_380] : memref<4x8x1xf32, #tpu.memory_space<vmem>>, vector<1x1x1xf32>
    %853 = vector.shape_cast %852 : vector<1x1x1xf32> to vector<1x1xf32>
    %854 = vector.extract_strided_slice %473 {offsets = [0, 0, 0], sizes = [1, 8, 8], strides = [1, 1, 1]} : vector<8x8x8xf32> to vector<1x8x8xf32>
    %855 = vector.shape_cast %854 : vector<1x8x8xf32> to vector<8x8xf32>
    %856 = vector.broadcast %853 : vector<1x1xf32> to vector<8x8xf32>
    %857 = arith.mulf %856, %855 : vector<8x8xf32>
    %858 = arith.addf %851, %857 : vector<8x8xf32>
    %c3_381 = arith.constant 3 : index
    %c1_382 = arith.constant 1 : index
    %c0_383 = arith.constant 0 : index
    %859 = vector.load %arg10[%c3_381, %c1_382, %c0_383] : memref<4x8x1xf32, #tpu.memory_space<vmem>>, vector<1x1x1xf32>
    %860 = vector.shape_cast %859 : vector<1x1x1xf32> to vector<1x1xf32>
    %861 = vector.extract_strided_slice %473 {offsets = [1, 0, 0], sizes = [1, 8, 8], strides = [1, 1, 1]} : vector<8x8x8xf32> to vector<1x8x8xf32>
    %862 = vector.shape_cast %861 : vector<1x8x8xf32> to vector<8x8xf32>
    %863 = vector.broadcast %860 : vector<1x1xf32> to vector<8x8xf32>
    %864 = arith.mulf %863, %862 : vector<8x8xf32>
    %865 = arith.addf %858, %864 : vector<8x8xf32>
    %c3_384 = arith.constant 3 : index
    %c2_385 = arith.constant 2 : index
    %c0_386 = arith.constant 0 : index
    %866 = vector.load %arg10[%c3_384, %c2_385, %c0_386] : memref<4x8x1xf32, #tpu.memory_space<vmem>>, vector<1x1x1xf32>
    %867 = vector.shape_cast %866 : vector<1x1x1xf32> to vector<1x1xf32>
    %868 = vector.extract_strided_slice %473 {offsets = [2, 0, 0], sizes = [1, 8, 8], strides = [1, 1, 1]} : vector<8x8x8xf32> to vector<1x8x8xf32>
    %869 = vector.shape_cast %868 : vector<1x8x8xf32> to vector<8x8xf32>
    %870 = vector.broadcast %867 : vector<1x1xf32> to vector<8x8xf32>
    %871 = arith.mulf %870, %869 : vector<8x8xf32>
    %872 = arith.addf %865, %871 : vector<8x8xf32>
    %c3_387 = arith.constant 3 : index
    %c3_388 = arith.constant 3 : index
    %c0_389 = arith.constant 0 : index
    %873 = vector.load %arg10[%c3_387, %c3_388, %c0_389] : memref<4x8x1xf32, #tpu.memory_space<vmem>>, vector<1x1x1xf32>
    %874 = vector.shape_cast %873 : vector<1x1x1xf32> to vector<1x1xf32>
    %875 = vector.extract_strided_slice %473 {offsets = [3, 0, 0], sizes = [1, 8, 8], strides = [1, 1, 1]} : vector<8x8x8xf32> to vector<1x8x8xf32>
    %876 = vector.shape_cast %875 : vector<1x8x8xf32> to vector<8x8xf32>
    %877 = vector.broadcast %874 : vector<1x1xf32> to vector<8x8xf32>
    %878 = arith.mulf %877, %876 : vector<8x8xf32>
    %879 = arith.addf %872, %878 : vector<8x8xf32>
    %c3_390 = arith.constant 3 : index
    %c4_391 = arith.constant 4 : index
    %c0_392 = arith.constant 0 : index
    %880 = vector.load %arg10[%c3_390, %c4_391, %c0_392] : memref<4x8x1xf32, #tpu.memory_space<vmem>>, vector<1x1x1xf32>
    %881 = vector.shape_cast %880 : vector<1x1x1xf32> to vector<1x1xf32>
    %882 = vector.extract_strided_slice %473 {offsets = [4, 0, 0], sizes = [1, 8, 8], strides = [1, 1, 1]} : vector<8x8x8xf32> to vector<1x8x8xf32>
    %883 = vector.shape_cast %882 : vector<1x8x8xf32> to vector<8x8xf32>
    %884 = vector.broadcast %881 : vector<1x1xf32> to vector<8x8xf32>
    %885 = arith.mulf %884, %883 : vector<8x8xf32>
    %886 = arith.addf %879, %885 : vector<8x8xf32>
    %c3_393 = arith.constant 3 : index
    %c5_394 = arith.constant 5 : index
    %c0_395 = arith.constant 0 : index
    %887 = vector.load %arg10[%c3_393, %c5_394, %c0_395] : memref<4x8x1xf32, #tpu.memory_space<vmem>>, vector<1x1x1xf32>
    %888 = vector.shape_cast %887 : vector<1x1x1xf32> to vector<1x1xf32>
    %889 = vector.extract_strided_slice %473 {offsets = [5, 0, 0], sizes = [1, 8, 8], strides = [1, 1, 1]} : vector<8x8x8xf32> to vector<1x8x8xf32>
    %890 = vector.shape_cast %889 : vector<1x8x8xf32> to vector<8x8xf32>
    %891 = vector.broadcast %888 : vector<1x1xf32> to vector<8x8xf32>
    %892 = arith.mulf %891, %890 : vector<8x8xf32>
    %893 = arith.addf %886, %892 : vector<8x8xf32>
    %c3_396 = arith.constant 3 : index
    %c6_397 = arith.constant 6 : index
    %c0_398 = arith.constant 0 : index
    %894 = vector.load %arg10[%c3_396, %c6_397, %c0_398] : memref<4x8x1xf32, #tpu.memory_space<vmem>>, vector<1x1x1xf32>
    %895 = vector.shape_cast %894 : vector<1x1x1xf32> to vector<1x1xf32>
    %896 = vector.extract_strided_slice %473 {offsets = [6, 0, 0], sizes = [1, 8, 8], strides = [1, 1, 1]} : vector<8x8x8xf32> to vector<1x8x8xf32>
    %897 = vector.shape_cast %896 : vector<1x8x8xf32> to vector<8x8xf32>
    %898 = vector.broadcast %895 : vector<1x1xf32> to vector<8x8xf32>
    %899 = arith.mulf %898, %897 : vector<8x8xf32>
    %900 = arith.addf %893, %899 : vector<8x8xf32>
    %c3_399 = arith.constant 3 : index
    %c7_400 = arith.constant 7 : index
    %c0_401 = arith.constant 0 : index
    %901 = vector.load %arg10[%c3_399, %c7_400, %c0_401] : memref<4x8x1xf32, #tpu.memory_space<vmem>>, vector<1x1x1xf32>
    %902 = vector.shape_cast %901 : vector<1x1x1xf32> to vector<1x1xf32>
    %903 = vector.extract_strided_slice %473 {offsets = [7, 0, 0], sizes = [1, 8, 8], strides = [1, 1, 1]} : vector<8x8x8xf32> to vector<1x8x8xf32>
    %904 = vector.shape_cast %903 : vector<1x8x8xf32> to vector<8x8xf32>
    %905 = vector.broadcast %902 : vector<1x1xf32> to vector<8x8xf32>
    %906 = arith.mulf %905, %904 : vector<8x8xf32>
    %907 = arith.addf %900, %906 : vector<8x8xf32>
    %c3_402 = arith.constant 3 : index
    %c0_403 = arith.constant 0 : index
    %908 = vector.load %arg11[%c3_402, %c0_403] : memref<4x1xf32, #tpu.memory_space<vmem>>, vector<1x1xf32>
    %909 = vector.broadcast %908 : vector<1x1xf32> to vector<8x8xf32>
    %910 = arith.addf %907, %909 : vector<8x8xf32>
    %911 = arith.negf %910 : vector<8x8xf32>
    %912 = math.exp %911 : vector<8x8xf32>
    %cst_404 = arith.constant 1.000000e+00 : f32
    %913 = vector.broadcast %cst_404 : f32 to vector<8x8xf32>
    %914 = arith.addf %913, %912 : vector<8x8xf32>
    %915 = arith.divf %913, %914 : vector<8x8xf32>
    %916 = arith.mulf %915, %850 : vector<8x8xf32>
    %917 = arith.addf %846, %916 : vector<8x8xf32>
    %c8_405 = arith.constant 8 : index
    %c24_406 = arith.constant 24 : index
    %918 = vector.load %arg24[%c8_405, %c24_406] : memref<16x32xf32, #tpu.memory_space<vmem>>, vector<8x8xf32>
    tpu.vector_store %arg24[%c8_405, %c24_406], %917 {strides = array<i32>} : memref<16x32xf32, #tpu.memory_space<vmem>>, vector<8x8xf32>,
    %c0_407 = arith.constant 0 : index
    %c0_408 = arith.constant 0 : index
    %919 = vector.load %arg24[%c0_407, %c0_408] : memref<16x32xf32, #tpu.memory_space<vmem>>, vector<16x32xf32>
    %c0_409 = arith.constant 0 : index
    %c0_410 = arith.constant 0 : index
    %920 = vector.load %arg12[%c0_409, %c0_410] : memref<32x32xf32, #tpu.memory_space<vmem>>, vector<32x32xf32>
    %cst_411 = arith.constant dense<0.000000e+00> : vector<16x32xf32>
    %921 = tpu.matmul %919, %920, %cst_411 {dimension_numbers = #tpu.dot_dimension_numbers<[1], [0], [0], [1], [0, 0, 1, 1], [], []>} : vector<16x32xf32>, vector<32x32xf32>, vector<16x32xf32> -> vector<16x32xf32>
    %c0_412 = arith.constant 0 : index
    %c0_413 = arith.constant 0 : index
    %922 = vector.load %arg13[%c0_412, %c0_413] : memref<1x32xf32, #tpu.memory_space<vmem>>, vector<1x32xf32>
    %923 = vector.broadcast %922 : vector<1x32xf32> to vector<16x32xf32>
    %924 = arith.addf %921, %923 : vector<16x32xf32>
    %925 = arith.addf %924, %0 : vector<16x32xf32>
    %c0_414 = arith.constant 0 : index
    %c0_415 = arith.constant 0 : index
    %926 = vector.load %arg14[%c0_414, %c0_415] : memref<1x32xf32, #tpu.memory_space<vmem>>, vector<1x32xf32>
    %c0_416 = arith.constant 0 : index
    %c0_417 = arith.constant 0 : index
    %927 = vector.load %arg15[%c0_416, %c0_417] : memref<1x32xf32, #tpu.memory_space<vmem>>, vector<1x32xf32>
    %cst_418 = arith.constant dense<0.000000e+00> : vector<16xf32>
    %928 = vector.multi_reduction <add>, %925, %cst_418 [1] : vector<16x32xf32> to vector<16xf32>
    %929 = vector.shape_cast %928 : vector<16xf32> to vector<16x1xf32>
    %cst_419 = arith.constant 3.200000e+01 : f32
    %930 = vector.broadcast %cst_419 : f32 to vector<16x1xf32>
    %931 = arith.divf %929, %930 : vector<16x1xf32>
    %932 = vector.broadcast %931 : vector<16x1xf32> to vector<16x32xf32>
    %933 = arith.subf %925, %932 : vector<16x32xf32>
    %934 = arith.mulf %933, %933 : vector<16x32xf32>
    %cst_420 = arith.constant dense<0.000000e+00> : vector<16xf32>
    %935 = vector.multi_reduction <add>, %934, %cst_420 [1] : vector<16x32xf32> to vector<16xf32>
    %936 = vector.shape_cast %935 : vector<16xf32> to vector<16x1xf32>
    %cst_421 = arith.constant 3.200000e+01 : f32
    %937 = vector.broadcast %cst_421 : f32 to vector<16x1xf32>
    %938 = arith.divf %936, %937 : vector<16x1xf32>
    %939 = vector.broadcast %931 : vector<16x1xf32> to vector<16x32xf32>
    %940 = arith.subf %925, %939 : vector<16x32xf32>
    %cst_422 = arith.constant 9.99999996E-13 : f32
    %941 = vector.broadcast %cst_422 : f32 to vector<16x1xf32>
    %942 = arith.addf %938, %941 : vector<16x1xf32>
    %943 = math.rsqrt %942 : vector<16x1xf32>
    %944 = vector.broadcast %943 : vector<16x1xf32> to vector<16x32xf32>
    %945 = arith.mulf %940, %944 : vector<16x32xf32>
    %946 = vector.broadcast %926 : vector<1x32xf32> to vector<16x32xf32>
    %947 = arith.mulf %945, %946 : vector<16x32xf32>
    %948 = vector.broadcast %927 : vector<1x32xf32> to vector<16x32xf32>
    %949 = arith.addf %947, %948 : vector<16x32xf32>
    %c0_423 = arith.constant 0 : index
    %c0_424 = arith.constant 0 : index
    %950 = vector.load %arg16[%c0_423, %c0_424] : memref<32x64xf32, #tpu.memory_space<vmem>>, vector<32x64xf32>
    %cst_425 = arith.constant dense<0.000000e+00> : vector<16x64xf32>
    %951 = tpu.matmul %949, %950, %cst_425 {dimension_numbers = #tpu.dot_dimension_numbers<[1], [0], [0], [1], [0, 0, 1, 1], [], []>} : vector<16x32xf32>, vector<32x64xf32>, vector<16x64xf32> -> vector<16x64xf32>
    %c0_426 = arith.constant 0 : index
    %c0_427 = arith.constant 0 : index
    %952 = vector.load %arg17[%c0_426, %c0_427] : memref<1x64xf32, #tpu.memory_space<vmem>>, vector<1x64xf32>
    %953 = vector.broadcast %952 : vector<1x64xf32> to vector<16x64xf32>
    %954 = arith.addf %951, %953 : vector<16x64xf32>
    %955 = arith.mulf %954, %954 : vector<16x64xf32>
    %956 = arith.mulf %954, %955 : vector<16x64xf32>
    %cst_428 = arith.constant 4.471500e-02 : f32
    %957 = vector.broadcast %cst_428 : f32 to vector<16x64xf32>
    %958 = arith.mulf %957, %956 : vector<16x64xf32>
    %959 = arith.addf %954, %958 : vector<16x64xf32>
    %cst_429 = arith.constant 0.797884583 : f32
    %960 = vector.broadcast %cst_429 : f32 to vector<16x64xf32>
    %961 = arith.mulf %960, %959 : vector<16x64xf32>
    %962 = math.tanh %961 : vector<16x64xf32>
    %cst_430 = arith.constant 1.000000e+00 : f32
    %963 = vector.broadcast %cst_430 : f32 to vector<16x64xf32>
    %964 = arith.addf %963, %962 : vector<16x64xf32>
    %cst_431 = arith.constant 5.000000e-01 : f32
    %965 = vector.broadcast %cst_431 : f32 to vector<16x64xf32>
    %966 = arith.mulf %965, %964 : vector<16x64xf32>
    %967 = arith.mulf %954, %966 : vector<16x64xf32>
    %c0_432 = arith.constant 0 : index
    %c0_433 = arith.constant 0 : index
    %968 = vector.load %arg18[%c0_432, %c0_433] : memref<64x32xf32, #tpu.memory_space<vmem>>, vector<64x32xf32>
    %cst_434 = arith.constant dense<0.000000e+00> : vector<16x32xf32>
    %969 = tpu.matmul %967, %968, %cst_434 {dimension_numbers = #tpu.dot_dimension_numbers<[1], [0], [0], [1], [0, 0, 1, 1], [], []>} : vector<16x64xf32>, vector<64x32xf32>, vector<16x32xf32> -> vector<16x32xf32>
    %c0_435 = arith.constant 0 : index
    %c0_436 = arith.constant 0 : index
    %970 = vector.load %arg19[%c0_435, %c0_436] : memref<1x32xf32, #tpu.memory_space<vmem>>, vector<1x32xf32>
    %971 = vector.broadcast %970 : vector<1x32xf32> to vector<16x32xf32>
    %972 = arith.addf %969, %971 : vector<16x32xf32>
    %973 = arith.addf %972, %949 : vector<16x32xf32>
    %c0_437 = arith.constant 0 : index
    %c0_438 = arith.constant 0 : index
    %974 = vector.load %arg20[%c0_437, %c0_438] : memref<1x32xf32, #tpu.memory_space<vmem>>, vector<1x32xf32>
    %c0_439 = arith.constant 0 : index
    %c0_440 = arith.constant 0 : index
    %975 = vector.load %arg21[%c0_439, %c0_440] : memref<1x32xf32, #tpu.memory_space<vmem>>, vector<1x32xf32>
    %cst_441 = arith.constant dense<0.000000e+00> : vector<16xf32>
    %976 = vector.multi_reduction <add>, %973, %cst_441 [1] : vector<16x32xf32> to vector<16xf32>
    %977 = vector.shape_cast %976 : vector<16xf32> to vector<16x1xf32>
    %cst_442 = arith.constant 3.200000e+01 : f32
    %978 = vector.broadcast %cst_442 : f32 to vector<16x1xf32>
    %979 = arith.divf %977, %978 : vector<16x1xf32>
    %980 = vector.broadcast %979 : vector<16x1xf32> to vector<16x32xf32>
    %981 = arith.subf %973, %980 : vector<16x32xf32>
    %982 = arith.mulf %981, %981 : vector<16x32xf32>
    %cst_443 = arith.constant dense<0.000000e+00> : vector<16xf32>
    %983 = vector.multi_reduction <add>, %982, %cst_443 [1] : vector<16x32xf32> to vector<16xf32>
    %984 = vector.shape_cast %983 : vector<16xf32> to vector<16x1xf32>
    %cst_444 = arith.constant 3.200000e+01 : f32
    %985 = vector.broadcast %cst_444 : f32 to vector<16x1xf32>
    %986 = arith.divf %984, %985 : vector<16x1xf32>
    %987 = vector.broadcast %979 : vector<16x1xf32> to vector<16x32xf32>
    %988 = arith.subf %973, %987 : vector<16x32xf32>
    %cst_445 = arith.constant 9.99999996E-13 : f32
    %989 = vector.broadcast %cst_445 : f32 to vector<16x1xf32>
    %990 = arith.addf %986, %989 : vector<16x1xf32>
    %991 = math.rsqrt %990 : vector<16x1xf32>
    %992 = vector.broadcast %991 : vector<16x1xf32> to vector<16x32xf32>
    %993 = arith.mulf %988, %992 : vector<16x32xf32>
    %994 = vector.broadcast %974 : vector<1x32xf32> to vector<16x32xf32>
    %995 = arith.mulf %993, %994 : vector<16x32xf32>
    %996 = vector.broadcast %975 : vector<1x32xf32> to vector<16x32xf32>
    %997 = arith.addf %995, %996 : vector<16x32xf32>
    %c0_446 = arith.constant 0 : index
    %c0_447 = arith.constant 0 : index
    %998 = vector.load %arg22[%c0_446, %c0_447] : memref<16x32xf32, #tpu.memory_space<vmem>>, vector<16x32xf32>
    tpu.vector_store %arg22[%c0_446, %c0_447], %997 {strides = array<i32>} : memref<16x32xf32, #tpu.memory_space<vmem>>, vector<16x32xf32>,
    return
  }
}

</mosaic_0001>

<llo_original>
// kernel: eq.1
$region0: #{eq.1}
  %s0 = inlined_call_operand.vmem [shape: s32[2,8,8], index: 0, kind: input, shape index: {}]
  %s1 = inlined_call_operand.vmem [shape: s32[2,64], index: 1, kind: output, shape index: {}]
  $region1: #{eq.1} parent=0
    #allocation0 [shape = 'u8[4096]{0}', space=vmem, size = 0x1000, scoped, tag = 'scoped mem for output reshape']
    %s2 = smov 3
    %v3 = vld [vmem:[%s0] ss:$8 sm:%s2]
    %vm4 = vcmask 64512
    %5 = vst.msk [vmem:[#allocation0] sm:$0x3] %vm4, %v3
    %s6 = scalar_lea.vmem %s0, 7
    %s7 = smov 3
    %v8 = vld [vmem:[%s6] ss:$8 sm:%s7]
    %9 = vrot.lane.b32.xlu0 %v8, 56
    %v10 = vpop.permute.xlu0 %9
    %vm11 = vcmask 523712
    %12 = vst.msk [vmem:[#allocation0] sm:$0x3] %vm11, %v10
    %s13 = scalar_lea.vmem %s0, 6
    %s14 = smov 3
    %v15 = vld [vmem:[%s13] ss:$8 sm:%s14]
    %16 = vrot.lane.b32.xlu0 %v15, 48
    %v17 = vpop.permute.xlu0 %16
    %vm18 = vcmask 458112
    %19 = vst.msk [vmem:[#allocation0] sm:$0x3] %vm18, %v17
    %s20 = scalar_lea.vmem %s0, 5
    %s21 = smov 3
    %v22 = vld [vmem:[%s20] ss:$8 sm:%s21]
    %23 = vrot.lane.b32.xlu0 %v22, 40
    %v24 = vpop.permute.xlu0 %23
    %vm25 = vcmask 392512
    %26 = vst.msk [vmem:[#allocation0] sm:$0x3] %vm25, %v24
    %s27 = scalar_lea.vmem %s0, 4
    %s28 = smov 3
    %v29 = vld [vmem:[%s27] ss:$8 sm:%s28]
    %30 = vrot.lane.b32.xlu0 %v29, 32
    %v31 = vpop.permute.xlu0 %30
    %vm32 = vcmask 326912
    %33 = vst.msk [vmem:[#allocation0] sm:$0x3] %vm32, %v31
    %s34 = scalar_lea.vmem %s0, 3
    %s35 = smov 3
    %v36 = vld [vmem:[%s34] ss:$8 sm:%s35]
    %37 = vrot.lane.b32.xlu0 %v36, 24
    %v38 = vpop.permute.xlu0 %37
    %vm39 = vcmask 261312
    %40 = vst.msk [vmem:[#allocation0] sm:$0x3] %vm39, %v38
    %s41 = scalar_lea.vmem %s0, 2
    %s42 = smov 3
    %v43 = vld [vmem:[%s41] ss:$8 sm:%s42]
    %44 = vrot.lane.b32.xlu0 %v43, 16
    %v45 = vpop.permute.xlu0 %44
    %vm46 = vcmask 195712
    %47 = vst.msk [vmem:[#allocation0] sm:$0x3] %vm46, %v45
    %s48 = scalar_lea.vmem %s0, 1
    %s49 = smov 3
    %v50 = vld [vmem:[%s48] ss:$8 sm:%s49]
    %51 = vrot.lane.b32.xlu0 %v50, 8
    %v52 = vpop.permute.xlu0 %51
    %vm53 = vcmask 130112
    %54 = vst.msk [vmem:[#allocation0] sm:$0x3] %vm53, %v52
    %s56 = sshllo.u32 0, 2
    %v58 = vld [vmem:[#allocation0] sm:%s56]
    %s59 = sshllo.u32 0, 2
    %60 = vst [vmem:[%s1] sm:%s59] %v58

// kernel: bert_graph_layer.1
$region0: #{bert_graph_layer.1}
  #allocation0 [shape = 'u32[]', space=smem, size = 0x4, offset = 0x4, fixed_abs, tag = 'smem constant byte address 0x4 - core index']
  #allocation1 [shape = 'u32[144,128]{1,0:T(1,128)}', space=vmem, size = 0x12000, scoped, tag = 'internal scratch']
  #allocation2 [shape = 'f32[16,96]{1,0:T(8,128)}', space=vmem, size = 0x2000, scoped, tag = 'scratch operand']
  #allocation3 [shape = 'f32[16,32]{1,0:T(8,128)}', space=vmem, size = 0x2000, scoped, tag = 'scratch operand']
  %s0 = inlined_call_operand.vmem [shape: f32[16,32], index: 0, kind: input, shape index: {}]
  %s1 = inlined_call_operand.vmem [shape: f32[2,8], index: 1, kind: input, shape index: {}]
  %s2 = inlined_call_operand.vmem [shape: f32[2,64,4], index: 2, kind: input, shape index: {}]
  %s3 = inlined_call_operand.vmem [shape: f32[2,64,4], index: 3, kind: input, shape index: {}]
  %s4 = inlined_call_operand.vmem [shape: f32[32,96], index: 4, kind: input, shape index: {}]
  %s5 = inlined_call_operand.vmem [shape: f32[1,96], index: 5, kind: input, shape index: {}]
  %s6 = inlined_call_operand.vmem [shape: f32[4,8], index: 6, kind: input, shape index: {}]
  %s7 = inlined_call_operand.vmem [shape: f32[4,8], index: 7, kind: input, shape index: {}]
  %s8 = inlined_call_operand.vmem [shape: f32[4,8], index: 8, kind: input, shape index: {}]
  %s9 = inlined_call_operand.vmem [shape: f32[4,1], index: 9, kind: input, shape index: {}]
  %s10 = inlined_call_operand.vmem [shape: f32[4,8,1], index: 10, kind: input, shape index: {}]
  %s11 = inlined_call_operand.vmem [shape: f32[4,1], index: 11, kind: input, shape index: {}]
  %s12 = inlined_call_operand.vmem [shape: f32[32,32], index: 12, kind: input, shape index: {}]
  %s13 = inlined_call_operand.vmem [shape: f32[1,32], index: 13, kind: input, shape index: {}]
  %s14 = inlined_call_operand.vmem [shape: f32[1,32], index: 14, kind: input, shape index: {}]
  %s15 = inlined_call_operand.vmem [shape: f32[1,32], index: 15, kind: input, shape index: {}]
  %s16 = inlined_call_operand.vmem [shape: f32[32,64], index: 16, kind: input, shape index: {}]
  %s17 = inlined_call_operand.vmem [shape: f32[1,64], index: 17, kind: input, shape index: {}]
  %s18 = inlined_call_operand.vmem [shape: f32[64,32], index: 18, kind: input, shape index: {}]
  %s19 = inlined_call_operand.vmem [shape: f32[1,32], index: 19, kind: input, shape index: {}]
  %s20 = inlined_call_operand.vmem [shape: f32[1,32], index: 20, kind: input, shape index: {}]
  %s21 = inlined_call_operand.vmem [shape: f32[1,32], index: 21, kind: input, shape index: {}]
  %s22 = inlined_call_operand.hbm [shape: f32[16,32], index: 22, kind: output, shape index: {}]
  %s23 = sld [smem:[#allocation0]]
  $region98: #{bert_graph_layer.1} parent=0
    _
  %s25 = ssub.s32 1, %s23
  %s26 = scalar_select 0, %s25, %s23
  $region1: #{bert_graph_layer.1} parent=0
    #allocation4 [shape = 'u8[8192]{0}', space=vmem, size = 0x2000, scoped, tag = 'output window, operand 0, single buffered']
    #allocation5 [shape = 's32[1]{0}', space=sflag, size = 0x4, scoped, tag = 'scoped memory for bert_graph_layer.1']
    %27 = vsyncpa [#allocation5], 0
    // Predicated region
    $region2: #{bert_graph_layer.1} parent=1 // pred_check
      _
    $region3: #{bert_graph_layer.1} parent=1 // pred_check_branch
      %29 = sbr.rel (0) target = $region5
    $region4: #{bert_graph_layer.1} parent=1 // pred_region
      _
    $region5: #{bert_graph_layer.1} parent=1 // pred_fallthru
      _
    // Predicated region
    $region6: #{bert_graph_layer.1} parent=1 // pred_check
      _
    $region7: #{bert_graph_layer.1} parent=1 // pred_check_branch
      %31 = sbr.rel (0) target = $region9
    $region8: #{bert_graph_layer.1} parent=1 // pred_region
      _
    $region9: #{bert_graph_layer.1} parent=1 // pred_fallthru
      _
    // Predicated region
    $region10: #{bert_graph_layer.1} parent=1 // pred_check
      _
    $region11: #{bert_graph_layer.1} parent=1 // pred_check_branch
      %33 = sbr.rel (0) target = $region13
    $region12: #{bert_graph_layer.1} parent=1 // pred_region
      _
    $region13: #{bert_graph_layer.1} parent=1 // pred_fallthru
      _
    // Predicated region
    $region14: #{bert_graph_layer.1} parent=1 // pred_check
      _
    $region15: #{bert_graph_layer.1} parent=1 // pred_check_branch
      %35 = sbr.rel (0) target = $region17
    $region16: #{bert_graph_layer.1} parent=1 // pred_region
      _
    $region17: #{bert_graph_layer.1} parent=1 // pred_fallthru
      _
    // Predicated region
    $region18: #{bert_graph_layer.1} parent=1 // pred_check
      _
    $region19: #{bert_graph_layer.1} parent=1 // pred_check_branch
      %37 = sbr.rel (0) target = $region21
    $region20: #{bert_graph_layer.1} parent=1 // pred_region
      _
    $region21: #{bert_graph_layer.1} parent=1 // pred_fallthru
      _
    // Predicated region
    $region22: #{bert_graph_layer.1} parent=1 // pred_check
      _
    $region23: #{bert_graph_layer.1} parent=1 // pred_check_branch
      %39 = sbr.rel (0) target = $region25
    $region24: #{bert_graph_layer.1} parent=1 // pred_region
      _
    $region25: #{bert_graph_layer.1} parent=1 // pred_fallthru
      _
    // Predicated region
    $region26: #{bert_graph_layer.1} parent=1 // pred_check
      _
    $region27: #{bert_graph_layer.1} parent=1 // pred_check_branch
      %41 = sbr.rel (0) target = $region29
    $region28: #{bert_graph_layer.1} parent=1 // pred_region
      _
    $region29: #{bert_graph_layer.1} parent=1 // pred_fallthru
      _
    // Predicated region
    $region30: #{bert_graph_layer.1} parent=1 // pred_check
      _
    $region31: #{bert_graph_layer.1} parent=1 // pred_check_branch
      %43 = sbr.rel (0) target = $region33
    $region32: #{bert_graph_layer.1} parent=1 // pred_region
      _
    $region33: #{bert_graph_layer.1} parent=1 // pred_fallthru
      _
    // Predicated region
    $region34: #{bert_graph_layer.1} parent=1 // pred_check
      _
    $region35: #{bert_graph_layer.1} parent=1 // pred_check_branch
      %45 = sbr.rel (0) target = $region37
    $region36: #{bert_graph_layer.1} parent=1 // pred_region
      _
    $region37: #{bert_graph_layer.1} parent=1 // pred_fallthru
      _
    // Predicated region
    $region38: #{bert_graph_layer.1} parent=1 // pred_check
      _
    $region39: #{bert_graph_layer.1} parent=1 // pred_check_branch
      %47 = sbr.rel (0) target = $region41
    $region40: #{bert_graph_layer.1} parent=1 // pred_region
      _
    $region41: #{bert_graph_layer.1} parent=1 // pred_fallthru
      _
    // Predicated region
    $region42: #{bert_graph_layer.1} parent=1 // pred_check
      _
    $region43: #{bert_graph_layer.1} parent=1 // pred_check_branch
      %49 = sbr.rel (0) target = $region45
    $region44: #{bert_graph_layer.1} parent=1 // pred_region
      _
    $region45: #{bert_graph_layer.1} parent=1 // pred_fallthru
      _
    // Predicated region
    $region46: #{bert_graph_layer.1} parent=1 // pred_check
      _
    $region47: #{bert_graph_layer.1} parent=1 // pred_check_branch
      %51 = sbr.rel (0) target = $region49
    $region48: #{bert_graph_layer.1} parent=1 // pred_region
      _
    $region49: #{bert_graph_layer.1} parent=1 // pred_fallthru
      _
    // Predicated region
    $region50: #{bert_graph_layer.1} parent=1 // pred_check
      _
    $region51: #{bert_graph_layer.1} parent=1 // pred_check_branch
      %53 = sbr.rel (0) target = $region53
    $region52: #{bert_graph_layer.1} parent=1 // pred_region
      _
    $region53: #{bert_graph_layer.1} parent=1 // pred_fallthru
      _
    // Predicated region
    $region54: #{bert_graph_layer.1} parent=1 // pred_check
      _
    $region55: #{bert_graph_layer.1} parent=1 // pred_check_branch
      %55 = sbr.rel (0) target = $region57
    $region56: #{bert_graph_layer.1} parent=1 // pred_region
      _
    $region57: #{bert_graph_layer.1} parent=1 // pred_fallthru
      _
    // Predicated region
    $region58: #{bert_graph_layer.1} parent=1 // pred_check
      _
    $region59: #{bert_graph_layer.1} parent=1 // pred_check_branch
      %57 = sbr.rel (0) target = $region61
    $region60: #{bert_graph_layer.1} parent=1 // pred_region
      _
    $region61: #{bert_graph_layer.1} parent=1 // pred_fallthru
      _
    // Predicated region
    $region62: #{bert_graph_layer.1} parent=1 // pred_check
      _
    $region63: #{bert_graph_layer.1} parent=1 // pred_check_branch
      %59 = sbr.rel (0) target = $region65
    $region64: #{bert_graph_layer.1} parent=1 // pred_region
      _
    $region65: #{bert_graph_layer.1} parent=1 // pred_fallthru
      _
    // Predicated region
    $region66: #{bert_graph_layer.1} parent=1 // pred_check
      _
    $region67: #{bert_graph_layer.1} parent=1 // pred_check_branch
      %61 = sbr.rel (0) target = $region69
    $region68: #{bert_graph_layer.1} parent=1 // pred_region
      _
    $region69: #{bert_graph_layer.1} parent=1 // pred_fallthru
      _
    // Predicated region
    $region70: #{bert_graph_layer.1} parent=1 // pred_check
      _
    $region71: #{bert_graph_layer.1} parent=1 // pred_check_branch
      %63 = sbr.rel (0) target = $region73
    $region72: #{bert_graph_layer.1} parent=1 // pred_region
      _
    $region73: #{bert_graph_layer.1} parent=1 // pred_fallthru
      _
    // Predicated region
    $region74: #{bert_graph_layer.1} parent=1 // pred_check
      _
    $region75: #{bert_graph_layer.1} parent=1 // pred_check_branch
      %65 = sbr.rel (0) target = $region77
    $region76: #{bert_graph_layer.1} parent=1 // pred_region
      _
    $region77: #{bert_graph_layer.1} parent=1 // pred_fallthru
      _
    // Predicated region
    $region78: #{bert_graph_layer.1} parent=1 // pred_check
      _
    $region79: #{bert_graph_layer.1} parent=1 // pred_check_branch
      %67 = sbr.rel (0) target = $region81
    $region80: #{bert_graph_layer.1} parent=1 // pred_region
      _
    $region81: #{bert_graph_layer.1} parent=1 // pred_fallthru
      _
    // Predicated region
    $region82: #{bert_graph_layer.1} parent=1 // pred_check
      _
    $region83: #{bert_graph_layer.1} parent=1 // pred_check_branch
      %69 = sbr.rel (0) target = $region85
    $region84: #{bert_graph_layer.1} parent=1 // pred_region
      _
    $region85: #{bert_graph_layer.1} parent=1 // pred_fallthru
      _
    // Predicated region
    $region86: #{bert_graph_layer.1} parent=1 // pred_check
      _
    $region87: #{bert_graph_layer.1} parent=1 // pred_check_branch
      %71 = sbr.rel (0) target = $region89
    $region88: #{bert_graph_layer.1} parent=1 // pred_region
      _
    $region89: #{bert_graph_layer.1} parent=1 // pred_fallthru
      _
    %v72 = vld [vmem:[%s0] sm:$0xff]
    %v73 = vld [vmem:[%s0 + $0x8] sm:$0xff]
    %v74 = vld [vmem:[%s4] sm:$0xff]
    %v75 = vld [vmem:[%s4 + $0x8] sm:$0xff]
    %v76 = vld [vmem:[%s4 + $0x10] sm:$0xff]
    %v77 = vld [vmem:[%s4 + $0x18] sm:$0xff]
    %v78 = vld [vmem:[%s5] sm:$0x1]
    %v80 = vlaneseq
    %v81 = vshrl.u32 %v80, 7
    %v82 = vsub.s32 0, %v81
    %v83 = vrot.slane %v78, %v82
    %vm85 = vcmask 261120
    %v87 = vsel %vm85, %v72, 0
    %v90 = vsel %vm85, %v73, 0
    %92 = vmatprep.subr.mxu0 0.0
    %93 = vmatpush1.msra.mxu0 %v74
    %94 = vmatprep.subr.mxu0 0.0
    %95 = vmatpush1.msra.mxu0 %v75
    %96 = vmatprep.subr.mxu0 0.0
    %97 = vmatpush1.msra.mxu0 %v76
    %98 = vmatprep.subr.mxu0 0.0
    %99 = vmatpush1.msra.mxu0 %v77
    %100 = vmatprep.subr.mxu0 0.0
    %101 = vmatpush1.msra.mxu0 0.0
    %102 = vmatprep.subr.mxu0 0.0
    %103 = vmatpush1.msra.mxu0 0.0
    %104 = vmatprep.subr.mxu0 0.0
    %105 = vmatpush1.msra.mxu0 0.0
    %106 = vmatprep.subr.mxu0 0.0
    %107 = vmatpush1.msra.mxu0 0.0
    %108 = vmatprep.subr.mxu0 0.0
    %109 = vmatpush1.msra.mxu0 0.0
    %110 = vmatprep.subr.mxu0 0.0
    %111 = vmatpush1.msra.mxu0 0.0
    %112 = vmatprep.subr.mxu0 0.0
    %113 = vmatpush1.msra.mxu0 0.0
    %114 = vmatprep.subr.mxu0 0.0
    %115 = vmatpush1.msra.mxu0 0.0
    %116 = vmatprep.subr.mxu0 0.0
    %117 = vmatpush1.msra.mxu0 0.0
    %118 = vmatprep.subr.mxu0 0.0
    %119 = vmatpush1.msra.mxu0 0.0
    %120 = vmatprep.subr.mxu0 0.0
    %121 = vmatpush1.msra.mxu0 0.0
    %122 = vmatprep.subr.mxu0 0.0
    %123 = vmatpush1.msra.mxu0 0.0
    %124 = vmatprep.subr.mxu0 0.0
    %125 = vmatpush1.msra.mxu0 0.0
    %126 = vmatprep.subr.mxu0 0.0
    %127 = vmatpush1.msra.mxu0 0.0
    %128 = vmatprep.subr.mxu0 0.0
    %129 = vmatpush1.msra.mxu0 0.0
    %130 = vmatprep.subr.mxu0 0.0
    %131 = vmatpush1.msra.mxu0 0.0
    %132 = vmatprep.subr.mxu0 0.0
    %133 = vmatpush1.msra.mxu0 0.0
    %134 = vmatprep.subr.mxu0 0.0
    %135 = vmatpush1.msra.mxu0 0.0
    %136 = vmatprep.subr.mxu0 0.0
    %137 = vmatpush1.msra.mxu0 0.0
    %138 = vmatprep.subr.mxu0 0.0
    %139 = vmatpush1.msra.mxu0 0.0
    %140 = vmatprep.subr.mxu0 0.0
    %141 = vmatpush1.msra.mxu0 0.0
    %142 = vmatprep.subr.mxu0 0.0
    %143 = vmatpush1.msra.mxu0 0.0
    %144 = vmatprep.subr.mxu0 0.0
    %145 = vmatpush1.msra.mxu0 0.0
    %146 = vmatprep.subr.mxu0 0.0
    %147 = vmatpush1.msra.mxu0 0.0
    %148 = vmatprep.subr.mxu0 0.0
    %149 = vmatpush1.msra.mxu0 0.0
    %150 = vmatprep.subr.mxu0 0.0
    %151 = vmatpush1.msra.mxu0 0.0
    %152 = vmatprep.subr.mxu0 0.0
    %153 = vmatpush1.msra.mxu0 0.0
    %154 = vmatprep.subr.mxu0 0.0
    %155 = vmatpush1.msra.mxu0 0.0
    %156 = vmatprep.mubr.f32.mxu0 0.0
    %157 = vmatmul.mubr.f32.gmra.mrb[0].mxu0 %v87
    %v158 = vpop.f32.mrb[0].mxu0
    %v159 = vadd.f32 %v83, %v158
    %v160 = vpop.f32.mrb[0].mxu0
    %161 = vmatprep.mubr.f32.mxu0 0.0
    %162 = vmatmul.mubr.f32.gmra.mrb[0].mxu0 %v90
    %v163 = vpop.f32.mrb[0].mxu0
    %v164 = vadd.f32 %v83, %v163
    %v165 = vpop.f32.mrb[0].mxu0
    %166 = vdwg.mxu0
    %vm167 = vcmask 785408
    %168 = vst.msk [vmem:[#allocation2] sm:$0xff] %vm167, %v159
    %169 = vst.msk [vmem:[#allocation2 + $0x8] sm:$0xff] %vm167, %v164
    %v170 = vld [vmem:[%s6] sm:$0xf]
    %v171 = vld [vmem:[%s7] sm:$0xf]
    %v172 = vld [vmem:[%s2] sm:$0xff]
    %v173 = vld [vmem:[%s2 + $0x8] sm:$0xff]
    %v174 = vld [vmem:[%s2 + $0x10] sm:$0xff]
    %v175 = vld [vmem:[%s2 + $0x18] sm:$0xff]
    %v176 = vld [vmem:[%s2 + $0x20] sm:$0xff]
    %v177 = vld [vmem:[%s2 + $0x28] sm:$0xff]
    %v178 = vld [vmem:[%s2 + $0x30] sm:$0xff]
    %v179 = vld [vmem:[%s2 + $0x38] sm:$0xff]
    %v180 = vld [vmem:[%s3] sm:$0xff]
    %v181 = vld [vmem:[%s3 + $0x8] sm:$0xff]
    %v182 = vld [vmem:[%s3 + $0x10] sm:$0xff]
    %v183 = vld [vmem:[%s3 + $0x18] sm:$0xff]
    %v184 = vld [vmem:[%s3 + $0x20] sm:$0xff]
    %v185 = vld [vmem:[%s3 + $0x28] sm:$0xff]
    %v186 = vld [vmem:[%s3 + $0x30] sm:$0xff]
    %v187 = vld [vmem:[%s3 + $0x38] sm:$0xff]
    %vm188 = vcmask 31744
    %v190 = vsel %vm188, %v172, 0
    %v193 = vsel %vm188, %v173, 0
    %v196 = vsel %vm188, %v174, 0
    %v199 = vsel %vm188, %v175, 0
    %v202 = vsel %vm188, %v176, 0
    %v205 = vsel %vm188, %v177, 0
    %v208 = vsel %vm188, %v178, 0
    %v211 = vsel %vm188, %v179, 0
    %vm213 = vcmask 1043456
    %v215 = vsel %vm213, %v170, 0
    %217 = vmatprep.subr.mxu0 0.0
    %218 = vmatpush1.msra.mxu0 %v215
    %219 = vmatprep.subr.mxu0 0.0
    %220 = vmatpush1.msra.mxu0 0.0
    %221 = vmatprep.subr.mxu0 0.0
    %222 = vmatpush1.msra.mxu0 0.0
    %223 = vmatprep.subr.mxu0 0.0
    %224 = vmatpush1.msra.mxu0 0.0
    %225 = vmatprep.subr.mxu0 0.0
    %226 = vmatpush1.msra.mxu0 0.0
    %227 = vmatprep.subr.mxu0 0.0
    %228 = vmatpush1.msra.mxu0 0.0
    %229 = vmatprep.subr.mxu0 0.0
    %230 = vmatpush1.msra.mxu0 0.0
    %231 = vmatprep.subr.mxu0 0.0
    %232 = vmatpush1.msra.mxu0 0.0
    %233 = vmatprep.subr.mxu0 0.0
    %234 = vmatpush1.msra.mxu0 0.0
    %235 = vmatprep.subr.mxu0 0.0
    %236 = vmatpush1.msra.mxu0 0.0
    %237 = vmatprep.subr.mxu0 0.0
    %238 = vmatpush1.msra.mxu0 0.0
    %239 = vmatprep.subr.mxu0 0.0
    %240 = vmatpush1.msra.mxu0 0.0
    %241 = vmatprep.subr.mxu0 0.0
    %242 = vmatpush1.msra.mxu0 0.0
    %243 = vmatprep.subr.mxu0 0.0
    %244 = vmatpush1.msra.mxu0 0.0
    %245 = vmatprep.subr.mxu0 0.0
    %246 = vmatpush1.msra.mxu0 0.0
    %247 = vmatprep.subr.mxu0 0.0
    %248 = vmatpush1.msra.mxu0 0.0
    %249 = vmatprep.subr.mxu0 0.0
    %250 = vmatpush1.msra.mxu0 0.0
    %251 = vmatprep.subr.mxu0 0.0
    %252 = vmatpush1.msra.mxu0 0.0
    %253 = vmatprep.subr.mxu0 0.0
    %254 = vmatpush1.msra.mxu0 0.0
    %255 = vmatprep.subr.mxu0 0.0
    %256 = vmatpush1.msra.mxu0 0.0
    %257 = vmatprep.subr.mxu0 0.0
    %258 = vmatpush1.msra.mxu0 0.0
    %259 = vmatprep.subr.mxu0 0.0
    %260 = vmatpush1.msra.mxu0 0.0
    %261 = vmatprep.subr.mxu0 0.0
    %262 = vmatpush1.msra.mxu0 0.0
    %263 = vmatprep.subr.mxu0 0.0
    %264 = vmatpush1.msra.mxu0 0.0
    %265 = vmatprep.subr.mxu0 0.0
    %266 = vmatpush1.msra.mxu0 0.0
    %267 = vmatprep.subr.mxu0 0.0
    %268 = vmatpush1.msra.mxu0 0.0
    %269 = vmatprep.subr.mxu0 0.0
    %270 = vmatpush1.msra.mxu0 0.0
    %271 = vmatprep.subr.mxu0 0.0
    %272 = vmatpush1.msra.mxu0 0.0
    %273 = vmatprep.subr.mxu0 0.0
    %274 = vmatpush1.msra.mxu0 0.0
    %275 = vmatprep.subr.mxu0 0.0
    %276 = vmatpush1.msra.mxu0 0.0
    %277 = vmatprep.subr.mxu0 0.0
    %278 = vmatpush1.msra.mxu0 0.0
    %279 = vmatprep.subr.mxu0 0.0
    %280 = vmatpush1.msra.mxu0 0.0
    %281 = vmatprep.mubr.f32.mxu0 0.0
    %282 = vmatmul.mubr.f32.gmra.mrb[0].mxu0 %v190
    %v283 = vpop.f32.mrb[0].mxu0
    %v284 = vadd.f32 0.0, %v283
    %v285 = vpop.f32.mrb[0].mxu0
    %286 = vmatprep.mubr.f32.mxu0 0.0
    %287 = vmatmul.mubr.f32.gmra.mrb[0].mxu0 %v193
    %v288 = vpop.f32.mrb[0].mxu0
    %v289 = vadd.f32 0.0, %v288
    %v290 = vpop.f32.mrb[0].mxu0
    %291 = vmatprep.mubr.f32.mxu0 0.0
    %292 = vmatmul.mubr.f32.gmra.mrb[0].mxu0 %v196
    %v293 = vpop.f32.mrb[0].mxu0
    %v294 = vadd.f32 0.0, %v293
    %v295 = vpop.f32.mrb[0].mxu0
    %296 = vmatprep.mubr.f32.mxu0 0.0
    %297 = vmatmul.mubr.f32.gmra.mrb[0].mxu0 %v199
    %v298 = vpop.f32.mrb[0].mxu0
    %v299 = vadd.f32 0.0, %v298
    %v300 = vpop.f32.mrb[0].mxu0
    %301 = vmatprep.mubr.f32.mxu0 0.0
    %302 = vmatmul.mubr.f32.gmra.mrb[0].mxu0 %v202
    %v303 = vpop.f32.mrb[0].mxu0
    %v304 = vadd.f32 0.0, %v303
    %v305 = vpop.f32.mrb[0].mxu0
    %306 = vmatprep.mubr.f32.mxu0 0.0
    %307 = vmatmul.mubr.f32.gmra.mrb[0].mxu0 %v205
    %v308 = vpop.f32.mrb[0].mxu0
    %v309 = vadd.f32 0.0, %v308
    %v310 = vpop.f32.mrb[0].mxu0
    %311 = vmatprep.mubr.f32.mxu0 0.0
    %312 = vmatmul.mubr.f32.gmra.mrb[0].mxu0 %v208
    %v313 = vpop.f32.mrb[0].mxu0
    %v314 = vadd.f32 0.0, %v313
    %v315 = vpop.f32.mrb[0].mxu0
    %316 = vmatprep.mubr.f32.mxu0 0.0
    %317 = vmatmul.mubr.f32.gmra.mrb[0].mxu0 %v211
    %v318 = vpop.f32.mrb[0].mxu0
    %v319 = vadd.f32 0.0, %v318
    %v320 = vpop.f32.mrb[0].mxu0
    %321 = vdwg.mxu0
    %v323 = vsel %vm213, %v171, 0
    %325 = vmatprep.subr.mxu0 0.0
    %326 = vmatpush1.msra.mxu0 %v323
    %327 = vmatprep.subr.mxu0 0.0
    %328 = vmatpush1.msra.mxu0 0.0
    %329 = vmatprep.subr.mxu0 0.0
    %330 = vmatpush1.msra.mxu0 0.0
    %331 = vmatprep.subr.mxu0 0.0
    %332 = vmatpush1.msra.mxu0 0.0
    %333 = vmatprep.subr.mxu0 0.0
    %334 = vmatpush1.msra.mxu0 0.0
    %335 = vmatprep.subr.mxu0 0.0
    %336 = vmatpush1.msra.mxu0 0.0
    %337 = vmatprep.subr.mxu0 0.0
    %338 = vmatpush1.msra.mxu0 0.0
    %339 = vmatprep.subr.mxu0 0.0
    %340 = vmatpush1.msra.mxu0 0.0
    %341 = vmatprep.subr.mxu0 0.0
    %342 = vmatpush1.msra.mxu0 0.0
    %343 = vmatprep.subr.mxu0 0.0
    %344 = vmatpush1.msra.mxu0 0.0
    %345 = vmatprep.subr.mxu0 0.0
    %346 = vmatpush1.msra.mxu0 0.0
    %347 = vmatprep.subr.mxu0 0.0
    %348 = vmatpush1.msra.mxu0 0.0
    %349 = vmatprep.subr.mxu0 0.0
    %350 = vmatpush1.msra.mxu0 0.0
    %351 = vmatprep.subr.mxu0 0.0
    %352 = vmatpush1.msra.mxu0 0.0
    %353 = vmatprep.subr.mxu0 0.0
    %354 = vmatpush1.msra.mxu0 0.0
    %355 = vmatprep.subr.mxu0 0.0
    %356 = vmatpush1.msra.mxu0 0.0
    %357 = vmatprep.subr.mxu0 0.0
    %358 = vmatpush1.msra.mxu0 0.0
    %359 = vmatprep.subr.mxu0 0.0
    %360 = vmatpush1.msra.mxu0 0.0
    %361 = vmatprep.subr.mxu0 0.0
    %362 = vmatpush1.msra.mxu0 0.0
    %363 = vmatprep.subr.mxu0 0.0
    %364 = vmatpush1.msra.mxu0 0.0
    %365 = vmatprep.subr.mxu0 0.0
    %366 = vmatpush1.msra.mxu0 0.0
    %367 = vmatprep.subr.mxu0 0.0
    %368 = vmatpush1.msra.mxu0 0.0
    %369 = vmatprep.subr.mxu0 0.0
    %370 = vmatpush1.msra.mxu0 0.0
    %371 = vmatprep.subr.mxu0 0.0
    %372 = vmatpush1.msra.mxu0 0.0
    %373 = vmatprep.subr.mxu0 0.0
    %374 = vmatpush1.msra.mxu0 0.0
    %375 = vmatprep.subr.mxu0 0.0
    %376 = vmatpush1.msra.mxu0 0.0
    %377 = vmatprep.subr.mxu0 0.0
    %378 = vmatpush1.msra.mxu0 0.0
    %379 = vmatprep.subr.mxu0 0.0
    %380 = vmatpush1.msra.mxu0 0.0
    %381 = vmatprep.subr.mxu0 0.0
    %382 = vmatpush1.msra.mxu0 0.0
    %383 = vmatprep.subr.mxu0 0.0
    %384 = vmatpush1.msra.mxu0 0.0
    %385 = vmatprep.subr.mxu0 0.0
    %386 = vmatpush1.msra.mxu0 0.0
    %387 = vmatprep.subr.mxu0 0.0
    %388 = vmatpush1.msra.mxu0 0.0
    %389 = vmatprep.mubr.f32.mxu0 0.0
    %390 = vmatmul.mubr.f32.gmra.mrb[0].mxu0 %v190
    %v391 = vpop.f32.mrb[0].mxu0
    %v392 = vadd.f32 0.0, %v391
    %v393 = vpop.f32.mrb[0].mxu0
    %394 = vmatprep.mubr.f32.mxu0 0.0
    %395 = vmatmul.mubr.f32.gmra.mrb[0].mxu0 %v193
    %v396 = vpop.f32.mrb[0].mxu0
    %v397 = vadd.f32 0.0, %v396
    %v398 = vpop.f32.mrb[0].mxu0
    %399 = vmatprep.mubr.f32.mxu0 0.0
    %400 = vmatmul.mubr.f32.gmra.mrb[0].mxu0 %v196
    %v401 = vpop.f32.mrb[0].mxu0
    %v402 = vadd.f32 0.0, %v401
    %v403 = vpop.f32.mrb[0].mxu0
    %404 = vmatprep.mubr.f32.mxu0 0.0
    %405 = vmatmul.mubr.f32.gmra.mrb[0].mxu0 %v199
    %v406 = vpop.f32.mrb[0].mxu0
    %v407 = vadd.f32 0.0, %v406
    %v408 = vpop.f32.mrb[0].mxu0
    %409 = vmatprep.mubr.f32.mxu0 0.0
    %410 = vmatmul.mubr.f32.gmra.mrb[0].mxu0 %v202
    %v411 = vpop.f32.mrb[0].mxu0
    %v412 = vadd.f32 0.0, %v411
    %v413 = vpop.f32.mrb[0].mxu0
    %414 = vmatprep.mubr.f32.mxu0 0.0
    %415 = vmatmul.mubr.f32.gmra.mrb[0].mxu0 %v205
    %v416 = vpop.f32.mrb[0].mxu0
    %v417 = vadd.f32 0.0, %v416
    %v418 = vpop.f32.mrb[0].mxu0
    %419 = vmatprep.mubr.f32.mxu0 0.0
    %420 = vmatmul.mubr.f32.gmra.mrb[0].mxu0 %v208
    %v421 = vpop.f32.mrb[0].mxu0
    %v422 = vadd.f32 0.0, %v421
    %v423 = vpop.f32.mrb[0].mxu0
    %424 = vmatprep.mubr.f32.mxu0 0.0
    %425 = vmatmul.mubr.f32.gmra.mrb[0].mxu0 %v211
    %v426 = vpop.f32.mrb[0].mxu0
    %v427 = vadd.f32 0.0, %v426
    %v428 = vpop.f32.mrb[0].mxu0
    %429 = vdwg.mxu0
    %v431 = vsel %vm188, %v180, 0
    %v434 = vsel %vm188, %v181, 0
    %v437 = vsel %vm188, %v182, 0
    %v440 = vsel %vm188, %v183, 0
    %v443 = vsel %vm188, %v184, 0
    %v446 = vsel %vm188, %v185, 0
    %v449 = vsel %vm188, %v186, 0
    %v452 = vsel %vm188, %v187, 0
    %454 = vmatprep.subr.mxu0 0.0
    %455 = vmatpush1.msra.mxu0 %v323
    %456 = vmatprep.subr.mxu0 0.0
    %457 = vmatpush1.msra.mxu0 0.0
    %458 = vmatprep.subr.mxu0 0.0
    %459 = vmatpush1.msra.mxu0 0.0
    %460 = vmatprep.subr.mxu0 0.0
    %461 = vmatpush1.msra.mxu0 0.0
    %462 = vmatprep.subr.mxu0 0.0
    %463 = vmatpush1.msra.mxu0 0.0
    %464 = vmatprep.subr.mxu0 0.0
    %465 = vmatpush1.msra.mxu0 0.0
    %466 = vmatprep.subr.mxu0 0.0
    %467 = vmatpush1.msra.mxu0 0.0
    %468 = vmatprep.subr.mxu0 0.0
    %469 = vmatpush1.msra.mxu0 0.0
    %470 = vmatprep.subr.mxu0 0.0
    %471 = vmatpush1.msra.mxu0 0.0
    %472 = vmatprep.subr.mxu0 0.0
    %473 = vmatpush1.msra.mxu0 0.0
    %474 = vmatprep.subr.mxu0 0.0
    %475 = vmatpush1.msra.mxu0 0.0
    %476 = vmatprep.subr.mxu0 0.0
    %477 = vmatpush1.msra.mxu0 0.0
    %478 = vmatprep.subr.mxu0 0.0
    %479 = vmatpush1.msra.mxu0 0.0
    %480 = vmatprep.subr.mxu0 0.0
    %481 = vmatpush1.msra.mxu0 0.0
    %482 = vmatprep.subr.mxu0 0.0
    %483 = vmatpush1.msra.mxu0 0.0
    %484 = vmatprep.subr.mxu0 0.0
    %485 = vmatpush1.msra.mxu0 0.0
    %486 = vmatprep.subr.mxu0 0.0
    %487 = vmatpush1.msra.mxu0 0.0
    %488 = vmatprep.subr.mxu0 0.0
    %489 = vmatpush1.msra.mxu0 0.0
    %490 = vmatprep.subr.mxu0 0.0
    %491 = vmatpush1.msra.mxu0 0.0
    %492 = vmatprep.subr.mxu0 0.0
    %493 = vmatpush1.msra.mxu0 0.0
    %494 = vmatprep.subr.mxu0 0.0
    %495 = vmatpush1.msra.mxu0 0.0
    %496 = vmatprep.subr.mxu0 0.0
    %497 = vmatpush1.msra.mxu0 0.0
    %498 = vmatprep.subr.mxu0 0.0
    %499 = vmatpush1.msra.mxu0 0.0
    %500 = vmatprep.subr.mxu0 0.0
    %501 = vmatpush1.msra.mxu0 0.0
    %502 = vmatprep.subr.mxu0 0.0
    %503 = vmatpush1.msra.mxu0 0.0
    %504 = vmatprep.subr.mxu0 0.0
    %505 = vmatpush1.msra.mxu0 0.0
    %506 = vmatprep.subr.mxu0 0.0
    %507 = vmatpush1.msra.mxu0 0.0
    %508 = vmatprep.subr.mxu0 0.0
    %509 = vmatpush1.msra.mxu0 0.0
    %510 = vmatprep.subr.mxu0 0.0
    %511 = vmatpush1.msra.mxu0 0.0
    %512 = vmatprep.subr.mxu0 0.0
    %513 = vmatpush1.msra.mxu0 0.0
    %514 = vmatprep.subr.mxu0 0.0
    %515 = vmatpush1.msra.mxu0 0.0
    %516 = vmatprep.subr.mxu0 0.0
    %517 = vmatpush1.msra.mxu0 0.0
    %518 = vmatprep.mubr.f32.mxu0 0.0
    %519 = vmatmul.mubr.f32.gmra.mrb[0].mxu0 %v431
    %v520 = vpop.f32.mrb[0].mxu0
    %v521 = vadd.f32 0.0, %v520
    %v522 = vpop.f32.mrb[0].mxu0
    %523 = vmatprep.mubr.f32.mxu0 0.0
    %524 = vmatmul.mubr.f32.gmra.mrb[0].mxu0 %v434
    %v525 = vpop.f32.mrb[0].mxu0
    %v526 = vadd.f32 0.0, %v525
    %v527 = vpop.f32.mrb[0].mxu0
    %528 = vmatprep.mubr.f32.mxu0 0.0
    %529 = vmatmul.mubr.f32.gmra.mrb[0].mxu0 %v437
    %v530 = vpop.f32.mrb[0].mxu0
    %v531 = vadd.f32 0.0, %v530
    %v532 = vpop.f32.mrb[0].mxu0
    %533 = vmatprep.mubr.f32.mxu0 0.0
    %534 = vmatmul.mubr.f32.gmra.mrb[0].mxu0 %v440
    %v535 = vpop.f32.mrb[0].mxu0
    %v536 = vadd.f32 0.0, %v535
    %v537 = vpop.f32.mrb[0].mxu0
    %538 = vmatprep.mubr.f32.mxu0 0.0
    %539 = vmatmul.mubr.f32.gmra.mrb[0].mxu0 %v443
    %v540 = vpop.f32.mrb[0].mxu0
    %v541 = vadd.f32 0.0, %v540
    %v542 = vpop.f32.mrb[0].mxu0
    %543 = vmatprep.mubr.f32.mxu0 0.0
    %544 = vmatmul.mubr.f32.gmra.mrb[0].mxu0 %v446
    %v545 = vpop.f32.mrb[0].mxu0
    %v546 = vadd.f32 0.0, %v545
    %v547 = vpop.f32.mrb[0].mxu0
    %548 = vmatprep.mubr.f32.mxu0 0.0
    %549 = vmatmul.mubr.f32.gmra.mrb[0].mxu0 %v449
    %v550 = vpop.f32.mrb[0].mxu0
    %v551 = vadd.f32 0.0, %v550
    %v552 = vpop.f32.mrb[0].mxu0
    %553 = vmatprep.mubr.f32.mxu0 0.0
    %554 = vmatmul.mubr.f32.gmra.mrb[0].mxu0 %v452
    %v555 = vpop.f32.mrb[0].mxu0
    %v556 = vadd.f32 0.0, %v555
    %v557 = vpop.f32.mrb[0].mxu0
    %558 = vdwg.mxu0
    %v559 = vld [vmem:[%s1] sm:$0x1]
    %v560 = vld [vmem:[#allocation2] sm:$0xff]
    %562 = vrot.lane.b32.xlu0 %v560, 96
    %v563 = vpop.permute.xlu0 %562
    %vm564 = vcmask 64512
    %v565 = vsel %vm564, %v560, 0
    %v567 = vsel %vm564, %v563, 0
    %569 = vmatprep.subr.mxu0 0.0
    %570 = vmatpush1.xpose.msra.mxu0 %v567
    %571 = vmatprep.subr.mxu0 0.0
    %572 = vmatpush1.xpose.msra.mxu0 0.0
    %573 = vmatprep.subr.mxu0 0.0
    %574 = vmatpush1.xpose.msra.mxu0 0.0
    %575 = vmatprep.subr.mxu0 0.0
    %576 = vmatpush1.xpose.msra.mxu0 0.0
    %577 = vmatprep.subr.mxu0 0.0
    %578 = vmatpush1.xpose.msra.mxu0 0.0
    %579 = vmatprep.subr.mxu0 0.0
    %580 = vmatpush1.xpose.msra.mxu0 0.0
    %581 = vmatprep.subr.mxu0 0.0
    %582 = vmatpush1.xpose.msra.mxu0 0.0
    %583 = vmatprep.subr.mxu0 0.0
    %584 = vmatpush1.xpose.msra.mxu0 0.0
    %585 = vmatprep.subr.mxu0 0.0
    %586 = vmatpush1.xpose.msra.mxu0 0.0
    %587 = vmatprep.subr.mxu0 0.0
    %588 = vmatpush1.xpose.msra.mxu0 0.0
    %589 = vmatprep.subr.mxu0 0.0
    %590 = vmatpush1.xpose.msra.mxu0 0.0
    %591 = vmatprep.subr.mxu0 0.0
    %592 = vmatpush1.xpose.msra.mxu0 0.0
    %593 = vmatprep.subr.mxu0 0.0
    %594 = vmatpush1.xpose.msra.mxu0 0.0
    %595 = vmatprep.subr.mxu0 0.0
    %596 = vmatpush1.xpose.msra.mxu0 0.0
    %597 = vmatprep.subr.mxu0 0.0
    %598 = vmatpush1.xpose.msra.mxu0 0.0
    %599 = vmatprep.subr.mxu0 0.0
    %600 = vmatpush1.xpose.msra.mxu0 0.0
    %601 = vmatprep.subr.mxu0 0.0
    %602 = vmatpush1.xpose.msra.mxu0 0.0
    %603 = vmatprep.subr.mxu0 0.0
    %604 = vmatpush1.xpose.msra.mxu0 0.0
    %605 = vmatprep.subr.mxu0 0.0
    %606 = vmatpush1.xpose.msra.mxu0 0.0
    %607 = vmatprep.subr.mxu0 0.0
    %608 = vmatpush1.xpose.msra.mxu0 0.0
    %609 = vmatprep.subr.mxu0 0.0
    %610 = vmatpush1.xpose.msra.mxu0 0.0
    %611 = vmatprep.subr.mxu0 0.0
    %612 = vmatpush1.xpose.msra.mxu0 0.0
    %613 = vmatprep.subr.mxu0 0.0
    %614 = vmatpush1.xpose.msra.mxu0 0.0
    %615 = vmatprep.subr.mxu0 0.0
    %616 = vmatpush1.xpose.msra.mxu0 0.0
    %617 = vmatprep.subr.mxu0 0.0
    %618 = vmatpush1.xpose.msra.mxu0 0.0
    %619 = vmatprep.subr.mxu0 0.0
    %620 = vmatpush1.xpose.msra.mxu0 0.0
    %621 = vmatprep.subr.mxu0 0.0
    %622 = vmatpush1.xpose.msra.mxu0 0.0
    %623 = vmatprep.subr.mxu0 0.0
    %624 = vmatpush1.xpose.msra.mxu0 0.0
    %625 = vmatprep.subr.mxu0 0.0
    %626 = vmatpush1.xpose.msra.mxu0 0.0
    %627 = vmatprep.subr.mxu0 0.0
    %628 = vmatpush1.xpose.msra.mxu0 0.0
    %629 = vmatprep.subr.mxu0 0.0
    %630 = vmatpush1.xpose.msra.mxu0 0.0
    %631 = vmatprep.subr.mxu0 0.0
    %632 = vmatpush1.xpose.msra.mxu0 0.0
    %633 = vmatprep.mubr.f32.mxu0 0.0
    %634 = vmatmul.mubr.f32.gmra.mrb[0].mxu0 %v565
    %v635 = vpop.f32.mrb[0].mxu0
    %v636 = vadd.f32 0.0, %v635
    %v637 = vpop.f32.mrb[0].mxu0
    %638 = vdwg.mxu0
    %v639 = vmul.f32 %v636, 0.35355338
    %v640 = vld [vmem:[%s8] sm:$0x1]
    %v641 = vld [vmem:[%s9] sm:$0x1]
    %v642 = vlaneseq
    %v643 = vshrl.u32 %v642, 7
    %v644 = vsub.s32 0, %v643
    %v645 = vrot.slane %v640, %v644
    %v646 = vmul.f32 %v284, %v645
    %v647 = vmul.f32 %v289, %v645
    %v648 = vmul.f32 %v294, %v645
    %v649 = vmul.f32 %v299, %v645
    %v650 = vmul.f32 %v304, %v645
    %v651 = vmul.f32 %v309, %v645
    %v652 = vmul.f32 %v314, %v645
    %v653 = vmul.f32 %v319, %v645
    %v654 = vsel %vm564, %v646, 0.0
    %655 = vadd.xlane.f32.xlu0 %v654
    %v656 = vpop.xlane.xlu0 %655
    %v657 = vsel %vm564, %v647, 0.0
    %658 = vadd.xlane.f32.xlu0 %v657
    %v659 = vpop.xlane.xlu0 %658
    %v660 = vsel %vm564, %v648, 0.0
    %661 = vadd.xlane.f32.xlu0 %v660
    %v662 = vpop.xlane.xlu0 %661
    %v663 = vsel %vm564, %v649, 0.0
    %664 = vadd.xlane.f32.xlu0 %v663
    %v665 = vpop.xlane.xlu0 %664
    %v666 = vsel %vm564, %v650, 0.0
    %667 = vadd.xlane.f32.xlu0 %v666
    %v668 = vpop.xlane.xlu0 %667
    %v669 = vsel %vm564, %v651, 0.0
    %670 = vadd.xlane.f32.xlu0 %v669
    %v671 = vpop.xlane.xlu0 %670
    %v672 = vsel %vm564, %v652, 0.0
    %673 = vadd.xlane.f32.xlu0 %v672
    %v674 = vpop.xlane.xlu0 %673
    %v675 = vsel %vm564, %v653, 0.0
    %676 = vadd.xlane.f32.xlu0 %v675
    %v677 = vpop.xlane.xlu0 %676
    %s679 = vtos %v641
    %v680 = vstv %s679
    %v682 = vadd.f32 %v656, %v680
    %v683 = vadd.f32 %v659, %v680
    %v684 = vadd.f32 %v662, %v680
    %v685 = vadd.f32 %v665, %v680
    %v686 = vadd.f32 %v668, %v680
    %v687 = vadd.f32 %v671, %v680
    %v688 = vadd.f32 %v674, %v680
    %v689 = vadd.f32 %v677, %v680
    %v690 = vxor.u32 %v682, 2147483648
    %v691 = vxor.u32 %v683, 2147483648
    %v692 = vxor.u32 %v684, 2147483648
    %v693 = vxor.u32 %v685, 2147483648
    %v694 = vxor.u32 %v686, 2147483648
    %v695 = vxor.u32 %v687, 2147483648
    %v696 = vxor.u32 %v688, 2147483648
    %v697 = vxor.u32 %v689, 2147483648
    %v698 = vmul.f32 %v690, 1.442695
    %v699 = vpow.pop %v698
    %v700 = vmul.f32 %v691, 1.442695
    %v701 = vpow.pop %v700
    %v702 = vmul.f32 %v692, 1.442695
    %v703 = vpow.pop %v702
    %v704 = vmul.f32 %v693, 1.442695
    %v705 = vpow.pop %v704
    %v706 = vmul.f32 %v694, 1.442695
    %v707 = vpow.pop %v706
    %v708 = vmul.f32 %v695, 1.442695
    %v709 = vpow.pop %v708
    %v710 = vmul.f32 %v696, 1.442695
    %v711 = vpow.pop %v710
    %v712 = vmul.f32 %v697, 1.442695
    %v713 = vpow.pop %v712
    %v714 = vadd.f32 %v699, 1.0
    %v715 = vadd.f32 %v701, 1.0
    %v716 = vadd.f32 %v703, 1.0
    %v717 = vadd.f32 %v705, 1.0
    %v718 = vadd.f32 %v707, 1.0
    %v719 = vadd.f32 %v709, 1.0
    %v720 = vadd.f32 %v711, 1.0
    %v721 = vadd.f32 %v713, 1.0
    %v722 = vrcp.pop %v714
    %v723 = vmul.f32 1.0, %v722
    %v724 = vrcp.pop %v715
    %v725 = vmul.f32 1.0, %v724
    %v726 = vrcp.pop %v716
    %v727 = vmul.f32 1.0, %v726
    %v728 = vrcp.pop %v717
    %v729 = vmul.f32 1.0, %v728
    %v730 = vrcp.pop %v718
    %v731 = vmul.f32 1.0, %v730
    %v732 = vrcp.pop %v719
    %v733 = vmul.f32 1.0, %v732
    %v734 = vrcp.pop %v720
    %v735 = vmul.f32 1.0, %v734
    %v736 = vrcp.pop %v721
    %v737 = vmul.f32 1.0, %v736
    %v746 = vlaneseq
    %v747 = vand.u32 %v746, 127
    %v748 = vlaneseq
    %v749 = vshrl.u32 %v748, 7
    %v750 = vsub.s32 %v747, %v749
    %v751 = vrot.slane %v723, %v750
    %v752 = vlaneseq
    %v753 = vshrl.u32 %v752, 7
    %v754 = vsub.s32 %v747, %v753
    %v755 = vrot.slane %v725, %v754
    %v756 = vlaneseq
    %v757 = vshrl.u32 %v756, 7
    %v758 = vsub.s32 %v747, %v757
    %v759 = vrot.slane %v727, %v758
    %v760 = vlaneseq
    %v761 = vshrl.u32 %v760, 7
    %v762 = vsub.s32 %v747, %v761
    %v763 = vrot.slane %v729, %v762
    %v764 = vlaneseq
    %v765 = vshrl.u32 %v764, 7
    %v766 = vsub.s32 %v747, %v765
    %v767 = vrot.slane %v731, %v766
    %v768 = vlaneseq
    %v769 = vshrl.u32 %v768, 7
    %v770 = vsub.s32 %v747, %v769
    %v771 = vrot.slane %v733, %v770
    %v772 = vlaneseq
    %v773 = vshrl.u32 %v772, 7
    %v774 = vsub.s32 %v747, %v773
    %v775 = vrot.slane %v735, %v774
    %v776 = vlaneseq
    %v777 = vshrl.u32 %v776, 7
    %v778 = vsub.s32 %v747, %v777
    %v779 = vrot.slane %v737, %v778
    %vm780 = vcmask 1041409
    %v781 = vsel %vm780, %v755, %v751
    %vm782 = vcmask 1042434
    %v783 = vsel %vm782, %v759, %v781
    %vm784 = vcmask 1043459
    %v785 = vsel %vm784, %v763, %v783
    %vm786 = vcmask 1044484
    %v787 = vsel %vm786, %v767, %v785
    %vm788 = vcmask 1045509
    %v789 = vsel %vm788, %v771, %v787
    %vm790 = vcmask 1046534
    %v791 = vsel %vm790, %v775, %v789
    %vm792 = vcmask 1047559
    %v793 = vsel %vm792, %v779, %v791
    %795 = vxpose.xlu0.b32.start [1/16] %v793, 128
    %796 = vxpose.xlu0.b32.cont [2/16] 0.0, 128
    %797 = vxpose.xlu0.b32.cont [3/16] 0.0, 128
    %798 = vxpose.xlu0.b32.cont [4/16] 0.0, 128
    %799 = vxpose.xlu0.b32.cont [5/16] 0.0, 128
    %800 = vxpose.xlu0.b32.cont [6/16] 0.0, 128
    %801 = vxpose.xlu0.b32.cont [7/16] 0.0, 128
    %802 = vxpose.xlu0.b32.cont [8/16] 0.0, 128
    %803 = vxpose.xlu0.b32.cont [9/16] 0.0, 128
    %804 = vxpose.xlu0.b32.cont [10/16] 0.0, 128
    %805 = vxpose.xlu0.b32.cont [11/16] 0.0, 128
    %806 = vxpose.xlu0.b32.cont [12/16] 0.0, 128
    %807 = vxpose.xlu0.b32.cont [13/16] 0.0, 128
    %808 = vxpose.xlu0.b32.cont [14/16] 0.0, 128
    %809 = vxpose.xlu0.b32.cont [15/16] 0.0, 128
    %810 = vxpose.xlu0.b32.end [16/16] 0.0, 128
    %v811 = vpop.trf.xlu0
    %v812 = vpop.trf.xlu0
    %v813 = vpop.trf.xlu0
    %v814 = vpop.trf.xlu0
    %v815 = vpop.trf.xlu0
    %v816 = vpop.trf.xlu0
    %v817 = vpop.trf.xlu0
    %v818 = vpop.trf.xlu0
    %v819 = vpop.trf.xlu0
    %v820 = vpop.trf.xlu0
    %v821 = vpop.trf.xlu0
    %v822 = vpop.trf.xlu0
    %v823 = vpop.trf.xlu0
    %v824 = vpop.trf.xlu0
    %v825 = vpop.trf.xlu0
    %v826 = vpop.trf.xlu0
    %v827 = vcombine.high %v560, %v560
    %v829 = vunpack.c.l.s4 1966171168
    %v830 = vunpack.c.0.s8 %v829
    %v831 = vlaneseq
    %v832 = vshrl.u32 %v831, 7
    %v833 = vsub.s32 %v830, %v832
    %v834 = vrot.slane %v560, %v833
    %v836 = vunpack.c.l.s4 1966171168
    %v837 = vunpack.c.0.s8 %v836
    %v838 = vlaneseq
    %v839 = vshrl.u32 %v838, 7
    %v840 = vsub.s32 %v837, %v839
    %v841 = vrot.slane %v827, %v840
    %v842 = vcombine.high %v834, %v834
    %v843 = vcombine.high %v841, %v841
    %v845 = vunpack.c.l.s4 1966171168
    %v846 = vunpack.c.0.s8 %v845
    %v847 = vlaneseq
    %v848 = vshrl.u32 %v847, 7
    %v849 = vsub.s32 %v846, %v848
    %v850 = vrot.slane %v834, %v849
    %v852 = vunpack.c.l.s4 1966171168
    %v853 = vunpack.c.0.s8 %v852
    %v854 = vlaneseq
    %v855 = vshrl.u32 %v854, 7
    %v856 = vsub.s32 %v853, %v855
    %v857 = vrot.slane %v841, %v856
    %v859 = vunpack.c.l.s4 1966171168
    %v860 = vunpack.c.0.s8 %v859
    %v861 = vlaneseq
    %v862 = vshrl.u32 %v861, 7
    %v863 = vsub.s32 %v860, %v862
    %v864 = vrot.slane %v842, %v863
    %v866 = vunpack.c.l.s4 1966171168
    %v867 = vunpack.c.0.s8 %v866
    %v868 = vlaneseq
    %v869 = vshrl.u32 %v868, 7
    %v870 = vsub.s32 %v867, %v869
    %v871 = vrot.slane %v843, %v870
    %v872 = vcombine.high %v850, %v850
    %v873 = vcombine.high %v857, %v857
    %v874 = vcombine.high %v864, %v864
    %v875 = vcombine.high %v871, %v871
    %v876 = vlaneseq
    %v877 = vshrl.u32 %v876, 7
    %v878 = vsub.s32 0, %v877
    %v879 = vrot.slane %v850, %v878
    %v880 = vlaneseq
    %v881 = vshrl.u32 %v880, 7
    %v882 = vsub.s32 0, %v881
    %v883 = vrot.slane %v864, %v882
    %v884 = vlaneseq
    %v885 = vshrl.u32 %v884, 7
    %v886 = vsub.s32 0, %v885
    %v887 = vrot.slane %v872, %v886
    %v888 = vlaneseq
    %v889 = vshrl.u32 %v888, 7
    %v890 = vsub.s32 0, %v889
    %v891 = vrot.slane %v874, %v890
    %v892 = vlaneseq
    %v893 = vshrl.u32 %v892, 7
    %v894 = vsub.s32 0, %v893
    %v895 = vrot.slane %v857, %v894
    %v896 = vlaneseq
    %v897 = vshrl.u32 %v896, 7
    %v898 = vsub.s32 0, %v897
    %v899 = vrot.slane %v871, %v898
    %v900 = vlaneseq
    %v901 = vshrl.u32 %v900, 7
    %v902 = vsub.s32 0, %v901
    %v903 = vrot.slane %v873, %v902
    %v904 = vlaneseq
    %v905 = vshrl.u32 %v904, 7
    %v906 = vsub.s32 0, %v905
    %v907 = vrot.slane %v875, %v906
    %v916 = vmul.f32 %v879, %v284
    %v917 = vmul.f32 %v883, %v289
    %v918 = vmul.f32 %v887, %v294
    %v919 = vmul.f32 %v891, %v299
    %v920 = vmul.f32 %v895, %v304
    %v921 = vmul.f32 %v899, %v309
    %v922 = vmul.f32 %v903, %v314
    %v923 = vmul.f32 %v907, %v319
    %v924 = vsel %vm564, %v916, 0.0
    %925 = vadd.xlane.f32.xlu0 %v924
    %v926 = vpop.xlane.xlu0 %925
    %v927 = vsel %vm564, %v917, 0.0
    %928 = vadd.xlane.f32.xlu0 %v927
    %v929 = vpop.xlane.xlu0 %928
    %v930 = vsel %vm564, %v918, 0.0
    %931 = vadd.xlane.f32.xlu0 %v930
    %v932 = vpop.xlane.xlu0 %931
    %v933 = vsel %vm564, %v919, 0.0
    %934 = vadd.xlane.f32.xlu0 %v933
    %v935 = vpop.xlane.xlu0 %934
    %v936 = vsel %vm564, %v920, 0.0
    %937 = vadd.xlane.f32.xlu0 %v936
    %v938 = vpop.xlane.xlu0 %937
    %v939 = vsel %vm564, %v921, 0.0
    %940 = vadd.xlane.f32.xlu0 %v939
    %v941 = vpop.xlane.xlu0 %940
    %v942 = vsel %vm564, %v922, 0.0
    %943 = vadd.xlane.f32.xlu0 %v942
    %v944 = vpop.xlane.xlu0 %943
    %v945 = vsel %vm564, %v923, 0.0
    %946 = vadd.xlane.f32.xlu0 %v945
    %v947 = vpop.xlane.xlu0 %946
    %v956 = vlaneseq
    %v957 = vshrl.u32 %v956, 7
    %v958 = vsub.s32 %v747, %v957
    %v959 = vrot.slane %v926, %v958
    %v960 = vlaneseq
    %v961 = vshrl.u32 %v960, 7
    %v962 = vsub.s32 %v747, %v961
    %v963 = vrot.slane %v929, %v962
    %v964 = vlaneseq
    %v965 = vshrl.u32 %v964, 7
    %v966 = vsub.s32 %v747, %v965
    %v967 = vrot.slane %v932, %v966
    %v968 = vlaneseq
    %v969 = vshrl.u32 %v968, 7
    %v970 = vsub.s32 %v747, %v969
    %v971 = vrot.slane %v935, %v970
    %v972 = vlaneseq
    %v973 = vshrl.u32 %v972, 7
    %v974 = vsub.s32 %v747, %v973
    %v975 = vrot.slane %v938, %v974
    %v976 = vlaneseq
    %v977 = vshrl.u32 %v976, 7
    %v978 = vsub.s32 %v747, %v977
    %v979 = vrot.slane %v941, %v978
    %v980 = vlaneseq
    %v981 = vshrl.u32 %v980, 7
    %v982 = vsub.s32 %v747, %v981
    %v983 = vrot.slane %v944, %v982
    %v984 = vlaneseq
    %v985 = vshrl.u32 %v984, 7
    %v986 = vsub.s32 %v747, %v985
    %v987 = vrot.slane %v947, %v986
    %v988 = vsel %vm780, %v963, %v959
    %v989 = vsel %vm782, %v967, %v988
    %v990 = vsel %vm784, %v971, %v989
    %v991 = vsel %vm786, %v975, %v990
    %v992 = vsel %vm788, %v979, %v991
    %v993 = vsel %vm790, %v983, %v992
    %v994 = vsel %vm792, %v987, %v993
    %v996 = vmul.f32 %v811, %v994
    %v997 = vadd.f32 %v639, %v996
    %v998 = vlaneseq
    %v999 = vshrl.u32 %v998, 7
    %v1000 = vsub.s32 0, %v999
    %v1001 = vrot.slane %v559, %v1000
    %v1002 = vadd.f32 %v997, %v1001
    %v1003 = vsel %vm564, %v1002, -inf
    %1004 = vmax.xlane.f32.xlu0 %v1003
    %v1005 = vpop.xlane.xlu0 %1004
    %v1006 = vsub.f32 %v1002, %v1005
    %v1007 = vmul.f32 %v1006, 1.442695
    %v1008 = vpow.pop %v1007
    %v1009 = vsel %vm564, %v1008, 0.0
    %1010 = vadd.xlane.f32.xlu0 %v1009
    %v1011 = vpop.xlane.xlu0 %1010
    %v1012 = vrcp.pop %v1011
    %v1013 = vmul.f32 %v1008, %v1012
    %v1014 = vlaneseq
    %v1015 = vshrl.u32 %v1014, 7
    %v1016 = vsub.s32 0, %v1015
    %v1017 = vrot.slane %v1013, %v1016
    %1019 = vbcast.lane.b32.xlu0 %v1017, 256
    %v1020 = vpop.permute.xlu0 %1019
    %v1021 = vlaneseq
    %v1022 = vshrl.u32 %v1021, 7
    %v1023 = vsub.s32 1, %v1022
    %v1024 = vrot.slane %v1013, %v1023
    %1026 = vbcast.lane.b32.xlu0 %v1024, 256
    %v1027 = vpop.permute.xlu0 %1026
    %v1028 = vlaneseq
    %v1029 = vshrl.u32 %v1028, 7
    %v1030 = vsub.s32 2, %v1029
    %v1031 = vrot.slane %v1013, %v1030
    %1033 = vbcast.lane.b32.xlu0 %v1031, 256
    %v1034 = vpop.permute.xlu0 %1033
    %v1035 = vlaneseq
    %v1036 = vshrl.u32 %v1035, 7
    %v1037 = vsub.s32 3, %v1036
    %v1038 = vrot.slane %v1013, %v1037
    %1040 = vbcast.lane.b32.xlu0 %v1038, 256
    %v1041 = vpop.permute.xlu0 %1040
    %v1042 = vlaneseq
    %v1043 = vshrl.u32 %v1042, 7
    %v1044 = vsub.s32 4, %v1043
    %v1045 = vrot.slane %v1013, %v1044
    %1047 = vbcast.lane.b32.xlu0 %v1045, 256
    %v1048 = vpop.permute.xlu0 %1047
    %v1049 = vlaneseq
    %v1050 = vshrl.u32 %v1049, 7
    %v1051 = vsub.s32 5, %v1050
    %v1052 = vrot.slane %v1013, %v1051
    %1054 = vbcast.lane.b32.xlu0 %v1052, 256
    %v1055 = vpop.permute.xlu0 %1054
    %v1056 = vlaneseq
    %v1057 = vshrl.u32 %v1056, 7
    %v1058 = vsub.s32 6, %v1057
    %v1059 = vrot.slane %v1013, %v1058
    %1061 = vbcast.lane.b32.xlu0 %v1059, 256
    %v1062 = vpop.permute.xlu0 %1061
    %v1063 = vlaneseq
    %v1064 = vshrl.u32 %v1063, 7
    %v1065 = vsub.s32 7, %v1064
    %v1066 = vrot.slane %v1013, %v1065
    %1068 = vbcast.lane.b32.xlu0 %v1066, 256
    %v1069 = vpop.permute.xlu0 %1068
    %v1070 = vmul.f32 %v1020, %v392
    %v1071 = vmul.f32 %v1027, %v397
    %v1072 = vmul.f32 %v1034, %v402
    %v1073 = vmul.f32 %v1041, %v407
    %v1074 = vmul.f32 %v1048, %v412
    %v1075 = vmul.f32 %v1055, %v417
    %v1076 = vmul.f32 %v1062, %v422
    %v1077 = vmul.f32 %v1069, %v427
    %v1078 = vsel %vm564, %v1070, 0.0
    %v1079 = vrot.slane %v1078, 4
    %v1080 = vadd.f32 %v1078, %v1079
    %v1081 = vrot.slane %v1080, 2
    %v1082 = vadd.f32 %v1080, %v1081
    %v1083 = vrot.slane %v1082, 1
    %v1084 = vadd.f32 %v1082, %v1083
    %v1085 = vsel %vm564, %v1071, 0.0
    %v1086 = vrot.slane %v1085, 4
    %v1087 = vadd.f32 %v1085, %v1086
    %v1088 = vrot.slane %v1087, 2
    %v1089 = vadd.f32 %v1087, %v1088
    %v1090 = vrot.slane %v1089, 1
    %v1091 = vadd.f32 %v1089, %v1090
    %v1092 = vsel %vm564, %v1072, 0.0
    %v1093 = vrot.slane %v1092, 4
    %v1094 = vadd.f32 %v1092, %v1093
    %v1095 = vrot.slane %v1094, 2
    %v1096 = vadd.f32 %v1094, %v1095
    %v1097 = vrot.slane %v1096, 1
    %v1098 = vadd.f32 %v1096, %v1097
    %v1099 = vsel %vm564, %v1073, 0.0
    %v1100 = vrot.slane %v1099, 4
    %v1101 = vadd.f32 %v1099, %v1100
    %v1102 = vrot.slane %v1101, 2
    %v1103 = vadd.f32 %v1101, %v1102
    %v1104 = vrot.slane %v1103, 1
    %v1105 = vadd.f32 %v1103, %v1104
    %v1106 = vsel %vm564, %v1074, 0.0
    %v1107 = vrot.slane %v1106, 4
    %v1108 = vadd.f32 %v1106, %v1107
    %v1109 = vrot.slane %v1108, 2
    %v1110 = vadd.f32 %v1108, %v1109
    %v1111 = vrot.slane %v1110, 1
    %v1112 = vadd.f32 %v1110, %v1111
    %v1113 = vsel %vm564, %v1075, 0.0
    %v1114 = vrot.slane %v1113, 4
    %v1115 = vadd.f32 %v1113, %v1114
    %v1116 = vrot.slane %v1115, 2
    %v1117 = vadd.f32 %v1115, %v1116
    %v1118 = vrot.slane %v1117, 1
    %v1119 = vadd.f32 %v1117, %v1118
    %v1120 = vsel %vm564, %v1076, 0.0
    %v1121 = vrot.slane %v1120, 4
    %v1122 = vadd.f32 %v1120, %v1121
    %v1123 = vrot.slane %v1122, 2
    %v1124 = vadd.f32 %v1122, %v1123
    %v1125 = vrot.slane %v1124, 1
    %v1126 = vadd.f32 %v1124, %v1125
    %v1127 = vsel %vm564, %v1077, 0.0
    %v1128 = vrot.slane %v1127, 4
    %v1129 = vadd.f32 %v1127, %v1128
    %v1130 = vrot.slane %v1129, 2
    %v1131 = vadd.f32 %v1129, %v1130
    %v1132 = vrot.slane %v1131, 1
    %v1133 = vadd.f32 %v1131, %v1132
    %v1134 = vld [vmem:[%s10] sm:$0x1]
    %s1136 = vtos %v1134
    %v1137 = vstv %s1136
    %v1139 = vmul.f32 %v1137, %v521
    %v1140 = vadd.f32 %v1139, 0.0
    %v1141 = vld [vmem:[%s10 + $0x1] sm:$0x1]
    %s1143 = vtos %v1141
    %v1144 = vstv %s1143
    %v1146 = vmul.f32 %v1144, %v526
    %v1147 = vadd.f32 %v1140, %v1146
    %v1148 = vld [vmem:[%s10 + $0x2] sm:$0x1]
    %s1150 = vtos %v1148
    %v1151 = vstv %s1150
    %v1153 = vmul.f32 %v1151, %v531
    %v1154 = vadd.f32 %v1147, %v1153
    %v1155 = vld [vmem:[%s10 + $0x3] sm:$0x1]
    %s1157 = vtos %v1155
    %v1158 = vstv %s1157
    %v1160 = vmul.f32 %v1158, %v536
    %v1161 = vadd.f32 %v1154, %v1160
    %v1162 = vld [vmem:[%s10 + $0x4] sm:$0x1]
    %s1164 = vtos %v1162
    %v1165 = vstv %s1164
    %v1167 = vmul.f32 %v1165, %v541
    %v1168 = vadd.f32 %v1161, %v1167
    %v1169 = vld [vmem:[%s10 + $0x5] sm:$0x1]
    %s1171 = vtos %v1169
    %v1172 = vstv %s1171
    %v1174 = vmul.f32 %v1172, %v546
    %v1175 = vadd.f32 %v1168, %v1174
    %v1176 = vld [vmem:[%s10 + $0x6] sm:$0x1]
    %s1178 = vtos %v1176
    %v1179 = vstv %s1178
    %v1181 = vmul.f32 %v1179, %v551
    %v1182 = vadd.f32 %v1175, %v1181
    %v1183 = vld [vmem:[%s10 + $0x7] sm:$0x1]
    %s1185 = vtos %v1183
    %v1186 = vstv %s1185
    %v1188 = vmul.f32 %v1186, %v556
    %v1189 = vadd.f32 %v1182, %v1188
    %v1190 = vld [vmem:[%s11] sm:$0x1]
    %s1192 = vtos %v1190
    %v1193 = vstv %s1192
    %v1195 = vadd.f32 %v1189, %v1193
    %v1196 = vxor.u32 %v1195, 2147483648
    %v1197 = vmul.f32 %v1196, 1.442695
    %v1198 = vpow.pop %v1197
    %v1199 = vadd.f32 %v1198, 1.0
    %v1200 = vrcp.pop %v1199
    %v1201 = vmul.f32 1.0, %v1200
    %v1210 = vsel %vm780, %v1091, %v1084
    %v1211 = vsel %vm782, %v1098, %v1210
    %v1212 = vsel %vm784, %v1105, %v1211
    %v1213 = vsel %vm786, %v1112, %v1212
    %v1214 = vsel %vm788, %v1119, %v1213
    %v1215 = vsel %vm790, %v1126, %v1214
    %v1216 = vsel %vm792, %v1133, %v1215
    %v1218 = vmul.f32 %v1201, %v1216
    %1219 = vrot.lane.b32.xlu0 %v560, 64
    %v1220 = vpop.permute.xlu0 %1219
    %v1223 = vsel %vm564, %v1013, 0
    %1225 = vmatprep.subr.mxu0 0.0
    %1226 = vmatpush1.msra.mxu0 %v1220
    %1227 = vmatprep.subr.mxu0 0.0
    %1228 = vmatpush1.msra.mxu0 0.0
    %1229 = vmatprep.subr.mxu0 0.0
    %1230 = vmatpush1.msra.mxu0 0.0
    %1231 = vmatprep.subr.mxu0 0.0
    %1232 = vmatpush1.msra.mxu0 0.0
    %1233 = vmatprep.subr.mxu0 0.0
    %1234 = vmatpush1.msra.mxu0 0.0
    %1235 = vmatprep.subr.mxu0 0.0
    %1236 = vmatpush1.msra.mxu0 0.0
    %1237 = vmatprep.subr.mxu0 0.0
    %1238 = vmatpush1.msra.mxu0 0.0
    %1239 = vmatprep.subr.mxu0 0.0
    %1240 = vmatpush1.msra.mxu0 0.0
    %1241 = vmatprep.subr.mxu0 0.0
    %1242 = vmatpush1.msra.mxu0 0.0
    %1243 = vmatprep.subr.mxu0 0.0
    %1244 = vmatpush1.msra.mxu0 0.0
    %1245 = vmatprep.subr.mxu0 0.0
    %1246 = vmatpush1.msra.mxu0 0.0
    %1247 = vmatprep.subr.mxu0 0.0
    %1248 = vmatpush1.msra.mxu0 0.0
    %1249 = vmatprep.subr.mxu0 0.0
    %1250 = vmatpush1.msra.mxu0 0.0
    %1251 = vmatprep.subr.mxu0 0.0
    %1252 = vmatpush1.msra.mxu0 0.0
    %1253 = vmatprep.subr.mxu0 0.0
    %1254 = vmatpush1.msra.mxu0 0.0
    %1255 = vmatprep.subr.mxu0 0.0
    %1256 = vmatpush1.msra.mxu0 0.0
    %1257 = vmatprep.subr.mxu0 0.0
    %1258 = vmatpush1.msra.mxu0 0.0
    %1259 = vmatprep.subr.mxu0 0.0
    %1260 = vmatpush1.msra.mxu0 0.0
    %1261 = vmatprep.subr.mxu0 0.0
    %1262 = vmatpush1.msra.mxu0 0.0
    %1263 = vmatprep.subr.mxu0 0.0
    %1264 = vmatpush1.msra.mxu0 0.0
    %1265 = vmatprep.subr.mxu0 0.0
    %1266 = vmatpush1.msra.mxu0 0.0
    %1267 = vmatprep.subr.mxu0 0.0
    %1268 = vmatpush1.msra.mxu0 0.0
    %1269 = vmatprep.subr.mxu0 0.0
    %1270 = vmatpush1.msra.mxu0 0.0
    %1271 = vmatprep.subr.mxu0 0.0
    %1272 = vmatpush1.msra.mxu0 0.0
    %1273 = vmatprep.subr.mxu0 0.0
    %1274 = vmatpush1.msra.mxu0 0.0
    %1275 = vmatprep.subr.mxu0 0.0
    %1276 = vmatpush1.msra.mxu0 0.0
    %1277 = vmatprep.subr.mxu0 0.0
    %1278 = vmatpush1.msra.mxu0 0.0
    %1279 = vmatprep.subr.mxu0 0.0
    %1280 = vmatpush1.msra.mxu0 0.0
    %1281 = vmatprep.subr.mxu0 0.0
    %1282 = vmatpush1.msra.mxu0 0.0
    %1283 = vmatprep.subr.mxu0 0.0
    %1284 = vmatpush1.msra.mxu0 0.0
    %1285 = vmatprep.subr.mxu0 0.0
    %1286 = vmatpush1.msra.mxu0 0.0
    %1287 = vmatprep.subr.mxu0 0.0
    %1288 = vmatpush1.msra.mxu0 0.0
    %1289 = vmatprep.mubr.f32.mxu0 0.0
    %1290 = vmatmul.mubr.f32.gmra.mrb[0].mxu0 %v1223
    %v1291 = vpop.f32.mrb[0].mxu0
    %v1292 = vadd.f32 %v1218, %v1291
    %v1293 = vpop.f32.mrb[0].mxu0
    %1294 = vdwg.mxu0
    %1295 = vst.msk [vmem:[#allocation3] sm:$0xff] %vm564, %v1292
    %v1296 = vld [vmem:[#allocation2] sm:$0xff]
    %1298 = vrot.lane.b32.xlu0 %v1296, 120
    %v1299 = vpop.permute.xlu0 %1298
    %1300 = vrot.lane.b32.xlu0 %v1296, 88
    %v1301 = vpop.permute.xlu0 %1300
    %v1302 = vsel %vm564, %v1299, 0
    %v1304 = vsel %vm564, %v1301, 0
    %1306 = vmatprep.subr.mxu0 0.0
    %1307 = vmatpush1.xpose.msra.mxu0 %v1304
    %1308 = vmatprep.subr.mxu0 0.0
    %1309 = vmatpush1.xpose.msra.mxu0 0.0
    %1310 = vmatprep.subr.mxu0 0.0
    %1311 = vmatpush1.xpose.msra.mxu0 0.0
    %1312 = vmatprep.subr.mxu0 0.0
    %1313 = vmatpush1.xpose.msra.mxu0 0.0
    %1314 = vmatprep.subr.mxu0 0.0
    %1315 = vmatpush1.xpose.msra.mxu0 0.0
    %1316 = vmatprep.subr.mxu0 0.0
    %1317 = vmatpush1.xpose.msra.mxu0 0.0
    %1318 = vmatprep.subr.mxu0 0.0
    %1319 = vmatpush1.xpose.msra.mxu0 0.0
    %1320 = vmatprep.subr.mxu0 0.0
    %1321 = vmatpush1.xpose.msra.mxu0 0.0
    %1322 = vmatprep.subr.mxu0 0.0
    %1323 = vmatpush1.xpose.msra.mxu0 0.0
    %1324 = vmatprep.subr.mxu0 0.0
    %1325 = vmatpush1.xpose.msra.mxu0 0.0
    %1326 = vmatprep.subr.mxu0 0.0
    %1327 = vmatpush1.xpose.msra.mxu0 0.0
    %1328 = vmatprep.subr.mxu0 0.0
    %1329 = vmatpush1.xpose.msra.mxu0 0.0
    %1330 = vmatprep.subr.mxu0 0.0
    %1331 = vmatpush1.xpose.msra.mxu0 0.0
    %1332 = vmatprep.subr.mxu0 0.0
    %1333 = vmatpush1.xpose.msra.mxu0 0.0
    %1334 = vmatprep.subr.mxu0 0.0
    %1335 = vmatpush1.xpose.msra.mxu0 0.0
    %1336 = vmatprep.subr.mxu0 0.0
    %1337 = vmatpush1.xpose.msra.mxu0 0.0
    %1338 = vmatprep.subr.mxu0 0.0
    %1339 = vmatpush1.xpose.msra.mxu0 0.0
    %1340 = vmatprep.subr.mxu0 0.0
    %1341 = vmatpush1.xpose.msra.mxu0 0.0
    %1342 = vmatprep.subr.mxu0 0.0
    %1343 = vmatpush1.xpose.msra.mxu0 0.0
    %1344 = vmatprep.subr.mxu0 0.0
    %1345 = vmatpush1.xpose.msra.mxu0 0.0
    %1346 = vmatprep.subr.mxu0 0.0
    %1347 = vmatpush1.xpose.msra.mxu0 0.0
    %1348 = vmatprep.subr.mxu0 0.0
    %1349 = vmatpush1.xpose.msra.mxu0 0.0
    %1350 = vmatprep.subr.mxu0 0.0
    %1351 = vmatpush1.xpose.msra.mxu0 0.0
    %1352 = vmatprep.subr.mxu0 0.0
    %1353 = vmatpush1.xpose.msra.mxu0 0.0
    %1354 = vmatprep.subr.mxu0 0.0
    %1355 = vmatpush1.xpose.msra.mxu0 0.0
    %1356 = vmatprep.subr.mxu0 0.0
    %1357 = vmatpush1.xpose.msra.mxu0 0.0
    %1358 = vmatprep.subr.mxu0 0.0
    %1359 = vmatpush1.xpose.msra.mxu0 0.0
    %1360 = vmatprep.subr.mxu0 0.0
    %1361 = vmatpush1.xpose.msra.mxu0 0.0
    %1362 = vmatprep.subr.mxu0 0.0
    %1363 = vmatpush1.xpose.msra.mxu0 0.0
    %1364 = vmatprep.subr.mxu0 0.0
    %1365 = vmatpush1.xpose.msra.mxu0 0.0
    %1366 = vmatprep.subr.mxu0 0.0
    %1367 = vmatpush1.xpose.msra.mxu0 0.0
    %1368 = vmatprep.subr.mxu0 0.0
    %1369 = vmatpush1.xpose.msra.mxu0 0.0
    %1370 = vmatprep.mubr.f32.mxu0 0.0
    %1371 = vmatmul.mubr.f32.gmra.mrb[0].mxu0 %v1302
    %v1372 = vpop.f32.mrb[0].mxu0
    %v1373 = vadd.f32 0.0, %v1372
    %v1374 = vpop.f32.mrb[0].mxu0
    %1375 = vdwg.mxu0
    %v1376 = vmul.f32 %v1373, 0.35355338
    %v1377 = vld [vmem:[%s8 + $0x1] sm:$0x1]
    %v1378 = vld [vmem:[%s9 + $0x1] sm:$0x1]
    %v1379 = vlaneseq
    %v1380 = vshrl.u32 %v1379, 7
    %v1381 = vsub.s32 0, %v1380
    %v1382 = vrot.slane %v1377, %v1381
    %v1383 = vmul.f32 %v284, %v1382
    %v1384 = vmul.f32 %v289, %v1382
    %v1385 = vmul.f32 %v294, %v1382
    %v1386 = vmul.f32 %v299, %v1382
    %v1387 = vmul.f32 %v304, %v1382
    %v1388 = vmul.f32 %v309, %v1382
    %v1389 = vmul.f32 %v314, %v1382
    %v1390 = vmul.f32 %v319, %v1382
    %v1391 = vsel %vm564, %v1383, 0.0
    %1392 = vadd.xlane.f32.xlu0 %v1391
    %v1393 = vpop.xlane.xlu0 %1392
    %v1394 = vsel %vm564, %v1384, 0.0
    %1395 = vadd.xlane.f32.xlu0 %v1394
    %v1396 = vpop.xlane.xlu0 %1395
    %v1397 = vsel %vm564, %v1385, 0.0
    %1398 = vadd.xlane.f32.xlu0 %v1397
    %v1399 = vpop.xlane.xlu0 %1398
    %v1400 = vsel %vm564, %v1386, 0.0
    %1401 = vadd.xlane.f32.xlu0 %v1400
    %v1402 = vpop.xlane.xlu0 %1401
    %v1403 = vsel %vm564, %v1387, 0.0
    %1404 = vadd.xlane.f32.xlu0 %v1403
    %v1405 = vpop.xlane.xlu0 %1404
    %v1406 = vsel %vm564, %v1388, 0.0
    %1407 = vadd.xlane.f32.xlu0 %v1406
    %v1408 = vpop.xlane.xlu0 %1407
    %v1409 = vsel %vm564, %v1389, 0.0
    %1410 = vadd.xlane.f32.xlu0 %v1409
    %v1411 = vpop.xlane.xlu0 %1410
    %v1412 = vsel %vm564, %v1390, 0.0
    %1413 = vadd.xlane.f32.xlu0 %v1412
    %v1414 = vpop.xlane.xlu0 %1413
    %s1416 = vtos %v1378
    %v1417 = vstv %s1416
    %v1419 = vadd.f32 %v1393, %v1417
    %v1420 = vadd.f32 %v1396, %v1417
    %v1421 = vadd.f32 %v1399, %v1417
    %v1422 = vadd.f32 %v1402, %v1417
    %v1423 = vadd.f32 %v1405, %v1417
    %v1424 = vadd.f32 %v1408, %v1417
    %v1425 = vadd.f32 %v1411, %v1417
    %v1426 = vadd.f32 %v1414, %v1417
    %v1427 = vxor.u32 %v1419, 2147483648
    %v1428 = vxor.u32 %v1420, 2147483648
    %v1429 = vxor.u32 %v1421, 2147483648
    %v1430 = vxor.u32 %v1422, 2147483648
    %v1431 = vxor.u32 %v1423, 2147483648
    %v1432 = vxor.u32 %v1424, 2147483648
    %v1433 = vxor.u32 %v1425, 2147483648
    %v1434 = vxor.u32 %v1426, 2147483648
    %v1435 = vmul.f32 %v1427, 1.442695
    %v1436 = vpow.pop %v1435
    %v1437 = vmul.f32 %v1428, 1.442695
    %v1438 = vpow.pop %v1437
    %v1439 = vmul.f32 %v1429, 1.442695
    %v1440 = vpow.pop %v1439
    %v1441 = vmul.f32 %v1430, 1.442695
    %v1442 = vpow.pop %v1441
    %v1443 = vmul.f32 %v1431, 1.442695
    %v1444 = vpow.pop %v1443
    %v1445 = vmul.f32 %v1432, 1.442695
    %v1446 = vpow.pop %v1445
    %v1447 = vmul.f32 %v1433, 1.442695
    %v1448 = vpow.pop %v1447
    %v1449 = vmul.f32 %v1434, 1.442695
    %v1450 = vpow.pop %v1449
    %v1451 = vadd.f32 %v1436, 1.0
    %v1452 = vadd.f32 %v1438, 1.0
    %v1453 = vadd.f32 %v1440, 1.0
    %v1454 = vadd.f32 %v1442, 1.0
    %v1455 = vadd.f32 %v1444, 1.0
    %v1456 = vadd.f32 %v1446, 1.0
    %v1457 = vadd.f32 %v1448, 1.0
    %v1458 = vadd.f32 %v1450, 1.0
    %v1459 = vrcp.pop %v1451
    %v1460 = vmul.f32 1.0, %v1459
    %v1461 = vrcp.pop %v1452
    %v1462 = vmul.f32 1.0, %v1461
    %v1463 = vrcp.pop %v1453
    %v1464 = vmul.f32 1.0, %v1463
    %v1465 = vrcp.pop %v1454
    %v1466 = vmul.f32 1.0, %v1465
    %v1467 = vrcp.pop %v1455
    %v1468 = vmul.f32 1.0, %v1467
    %v1469 = vrcp.pop %v1456
    %v1470 = vmul.f32 1.0, %v1469
    %v1471 = vrcp.pop %v1457
    %v1472 = vmul.f32 1.0, %v1471
    %v1473 = vrcp.pop %v1458
    %v1474 = vmul.f32 1.0, %v1473
    %v1483 = vlaneseq
    %v1484 = vshrl.u32 %v1483, 7
    %v1485 = vsub.s32 %v747, %v1484
    %v1486 = vrot.slane %v1460, %v1485
    %v1487 = vlaneseq
    %v1488 = vshrl.u32 %v1487, 7
    %v1489 = vsub.s32 %v747, %v1488
    %v1490 = vrot.slane %v1462, %v1489
    %v1491 = vlaneseq
    %v1492 = vshrl.u32 %v1491, 7
    %v1493 = vsub.s32 %v747, %v1492
    %v1494 = vrot.slane %v1464, %v1493
    %v1495 = vlaneseq
    %v1496 = vshrl.u32 %v1495, 7
    %v1497 = vsub.s32 %v747, %v1496
    %v1498 = vrot.slane %v1466, %v1497
    %v1499 = vlaneseq
    %v1500 = vshrl.u32 %v1499, 7
    %v1501 = vsub.s32 %v747, %v1500
    %v1502 = vrot.slane %v1468, %v1501
    %v1503 = vlaneseq
    %v1504 = vshrl.u32 %v1503, 7
    %v1505 = vsub.s32 %v747, %v1504
    %v1506 = vrot.slane %v1470, %v1505
    %v1507 = vlaneseq
    %v1508 = vshrl.u32 %v1507, 7
    %v1509 = vsub.s32 %v747, %v1508
    %v1510 = vrot.slane %v1472, %v1509
    %v1511 = vlaneseq
    %v1512 = vshrl.u32 %v1511, 7
    %v1513 = vsub.s32 %v747, %v1512
    %v1514 = vrot.slane %v1474, %v1513
    %v1515 = vsel %vm780, %v1490, %v1486
    %v1516 = vsel %vm782, %v1494, %v1515
    %v1517 = vsel %vm784, %v1498, %v1516
    %v1518 = vsel %vm786, %v1502, %v1517
    %v1519 = vsel %vm788, %v1506, %v1518
    %v1520 = vsel %vm790, %v1510, %v1519
    %v1521 = vsel %vm792, %v1514, %v1520
    %1523 = vxpose.xlu0.b32.start [1/16] %v1521, 128
    %1524 = vxpose.xlu0.b32.cont [2/16] 0.0, 128
    %1525 = vxpose.xlu0.b32.cont [3/16] 0.0, 128
    %1526 = vxpose.xlu0.b32.cont [4/16] 0.0, 128
    %1527 = vxpose.xlu0.b32.cont [5/16] 0.0, 128
    %1528 = vxpose.xlu0.b32.cont [6/16] 0.0, 128
    %1529 = vxpose.xlu0.b32.cont [7/16] 0.0, 128
    %1530 = vxpose.xlu0.b32.cont [8/16] 0.0, 128
    %1531 = vxpose.xlu0.b32.cont [9/16] 0.0, 128
    %1532 = vxpose.xlu0.b32.cont [10/16] 0.0, 128
    %1533 = vxpose.xlu0.b32.cont [11/16] 0.0, 128
    %1534 = vxpose.xlu0.b32.cont [12/16] 0.0, 128
    %1535 = vxpose.xlu0.b32.cont [13/16] 0.0, 128
    %1536 = vxpose.xlu0.b32.cont [14/16] 0.0, 128
    %1537 = vxpose.xlu0.b32.cont [15/16] 0.0, 128
    %1538 = vxpose.xlu0.b32.end [16/16] 0.0, 128
    %v1539 = vpop.trf.xlu0
    %v1540 = vpop.trf.xlu0
    %v1541 = vpop.trf.xlu0
    %v1542 = vpop.trf.xlu0
    %v1543 = vpop.trf.xlu0
    %v1544 = vpop.trf.xlu0
    %v1545 = vpop.trf.xlu0
    %v1546 = vpop.trf.xlu0
    %v1547 = vpop.trf.xlu0
    %v1548 = vpop.trf.xlu0
    %v1549 = vpop.trf.xlu0
    %v1550 = vpop.trf.xlu0
    %v1551 = vpop.trf.xlu0
    %v1552 = vpop.trf.xlu0
    %v1553 = vpop.trf.xlu0
    %v1554 = vpop.trf.xlu0
    %v1555 = vcombine.high %v1296, %v1296
    %v1557 = vunpack.c.l.s4 1966171168
    %v1558 = vunpack.c.0.s8 %v1557
    %v1559 = vlaneseq
    %v1560 = vshrl.u32 %v1559, 7
    %v1561 = vsub.s32 %v1558, %v1560
    %v1562 = vrot.slane %v1296, %v1561
    %v1564 = vunpack.c.l.s4 1966171168
    %v1565 = vunpack.c.0.s8 %v1564
    %v1566 = vlaneseq
    %v1567 = vshrl.u32 %v1566, 7
    %v1568 = vsub.s32 %v1565, %v1567
    %v1569 = vrot.slane %v1555, %v1568
    %v1570 = vcombine.high %v1562, %v1562
    %v1571 = vcombine.high %v1569, %v1569
    %v1573 = vunpack.c.l.s4 1966171168
    %v1574 = vunpack.c.0.s8 %v1573
    %v1575 = vlaneseq
    %v1576 = vshrl.u32 %v1575, 7
    %v1577 = vsub.s32 %v1574, %v1576
    %v1578 = vrot.slane %v1562, %v1577
    %v1580 = vunpack.c.l.s4 1966171168
    %v1581 = vunpack.c.0.s8 %v1580
    %v1582 = vlaneseq
    %v1583 = vshrl.u32 %v1582, 7
    %v1584 = vsub.s32 %v1581, %v1583
    %v1585 = vrot.slane %v1569, %v1584
    %v1587 = vunpack.c.l.s4 1966171168
    %v1588 = vunpack.c.0.s8 %v1587
    %v1589 = vlaneseq
    %v1590 = vshrl.u32 %v1589, 7
    %v1591 = vsub.s32 %v1588, %v1590
    %v1592 = vrot.slane %v1570, %v1591
    %v1594 = vunpack.c.l.s4 1966171168
    %v1595 = vunpack.c.0.s8 %v1594
    %v1596 = vlaneseq
    %v1597 = vshrl.u32 %v1596, 7
    %v1598 = vsub.s32 %v1595, %v1597
    %v1599 = vrot.slane %v1571, %v1598
    %v1600 = vcombine.high %v1578, %v1578
    %v1601 = vcombine.high %v1585, %v1585
    %v1602 = vcombine.high %v1592, %v1592
    %v1603 = vcombine.high %v1599, %v1599
    %v1604 = vlaneseq
    %v1605 = vshrl.u32 %v1604, 7
    %v1606 = vsub.s32 0, %v1605
    %v1607 = vrot.slane %v1578, %v1606
    %v1608 = vlaneseq
    %v1609 = vshrl.u32 %v1608, 7
    %v1610 = vsub.s32 0, %v1609
    %v1611 = vrot.slane %v1592, %v1610
    %v1612 = vlaneseq
    %v1613 = vshrl.u32 %v1612, 7
    %v1614 = vsub.s32 0, %v1613
    %v1615 = vrot.slane %v1600, %v1614
    %v1616 = vlaneseq
    %v1617 = vshrl.u32 %v1616, 7
    %v1618 = vsub.s32 0, %v1617
    %v1619 = vrot.slane %v1602, %v1618
    %v1620 = vlaneseq
    %v1621 = vshrl.u32 %v1620, 7
    %v1622 = vsub.s32 0, %v1621
    %v1623 = vrot.slane %v1585, %v1622
    %v1624 = vlaneseq
    %v1625 = vshrl.u32 %v1624, 7
    %v1626 = vsub.s32 0, %v1625
    %v1627 = vrot.slane %v1599, %v1626
    %v1628 = vlaneseq
    %v1629 = vshrl.u32 %v1628, 7
    %v1630 = vsub.s32 0, %v1629
    %v1631 = vrot.slane %v1601, %v1630
    %v1632 = vlaneseq
    %v1633 = vshrl.u32 %v1632, 7
    %v1634 = vsub.s32 0, %v1633
    %v1635 = vrot.slane %v1603, %v1634
    %1652 = vrot.lane.b32.xlu0 %v284, 8
    %v1653 = vpop.permute.xlu0 %1652
    %1654 = vrot.lane.b32.xlu0 %v289, 8
    %v1655 = vpop.permute.xlu0 %1654
    %1656 = vrot.lane.b32.xlu0 %v294, 8
    %v1657 = vpop.permute.xlu0 %1656
    %1658 = vrot.lane.b32.xlu0 %v299, 8
    %v1659 = vpop.permute.xlu0 %1658
    %1660 = vrot.lane.b32.xlu0 %v304, 8
    %v1661 = vpop.permute.xlu0 %1660
    %1662 = vrot.lane.b32.xlu0 %v309, 8
    %v1663 = vpop.permute.xlu0 %1662
    %1664 = vrot.lane.b32.xlu0 %v314, 8
    %v1665 = vpop.permute.xlu0 %1664
    %1666 = vrot.lane.b32.xlu0 %v319, 8
    %v1667 = vpop.permute.xlu0 %1666
    %v1676 = vmul.f32 %v1607, %v1653
    %v1677 = vmul.f32 %v1611, %v1655
    %v1678 = vmul.f32 %v1615, %v1657
    %v1679 = vmul.f32 %v1619, %v1659
    %v1680 = vmul.f32 %v1623, %v1661
    %v1681 = vmul.f32 %v1627, %v1663
    %v1682 = vmul.f32 %v1631, %v1665
    %v1683 = vmul.f32 %v1635, %v1667
    %1692 = vrot.lane.b32.xlu0 %v1676, 120
    %v1693 = vpop.permute.xlu0 %1692
    %1694 = vrot.lane.b32.xlu0 %v1677, 120
    %v1695 = vpop.permute.xlu0 %1694
    %1696 = vrot.lane.b32.xlu0 %v1678, 120
    %v1697 = vpop.permute.xlu0 %1696
    %1698 = vrot.lane.b32.xlu0 %v1679, 120
    %v1699 = vpop.permute.xlu0 %1698
    %1700 = vrot.lane.b32.xlu0 %v1680, 120
    %v1701 = vpop.permute.xlu0 %1700
    %1702 = vrot.lane.b32.xlu0 %v1681, 120
    %v1703 = vpop.permute.xlu0 %1702
    %1704 = vrot.lane.b32.xlu0 %v1682, 120
    %v1705 = vpop.permute.xlu0 %1704
    %1706 = vrot.lane.b32.xlu0 %v1683, 120
    %v1707 = vpop.permute.xlu0 %1706
    %v1716 = vsel %vm564, %v1693, 0.0
    %1717 = vadd.xlane.f32.xlu0 %v1716
    %v1718 = vpop.xlane.xlu0 %1717
    %v1719 = vsel %vm564, %v1695, 0.0
    %1720 = vadd.xlane.f32.xlu0 %v1719
    %v1721 = vpop.xlane.xlu0 %1720
    %v1722 = vsel %vm564, %v1697, 0.0
    %1723 = vadd.xlane.f32.xlu0 %v1722
    %v1724 = vpop.xlane.xlu0 %1723
    %v1725 = vsel %vm564, %v1699, 0.0
    %1726 = vadd.xlane.f32.xlu0 %v1725
    %v1727 = vpop.xlane.xlu0 %1726
    %v1728 = vsel %vm564, %v1701, 0.0
    %1729 = vadd.xlane.f32.xlu0 %v1728
    %v1730 = vpop.xlane.xlu0 %1729
    %v1731 = vsel %vm564, %v1703, 0.0
    %1732 = vadd.xlane.f32.xlu0 %v1731
    %v1733 = vpop.xlane.xlu0 %1732
    %v1734 = vsel %vm564, %v1705, 0.0
    %1735 = vadd.xlane.f32.xlu0 %v1734
    %v1736 = vpop.xlane.xlu0 %1735
    %v1737 = vsel %vm564, %v1707, 0.0
    %1738 = vadd.xlane.f32.xlu0 %v1737
    %v1739 = vpop.xlane.xlu0 %1738
    %v1748 = vlaneseq
    %v1749 = vshrl.u32 %v1748, 7
    %v1750 = vsub.s32 %v747, %v1749
    %v1751 = vrot.slane %v1718, %v1750
    %v1752 = vlaneseq
    %v1753 = vshrl.u32 %v1752, 7
    %v1754 = vsub.s32 %v747, %v1753
    %v1755 = vrot.slane %v1721, %v1754
    %v1756 = vlaneseq
    %v1757 = vshrl.u32 %v1756, 7
    %v1758 = vsub.s32 %v747, %v1757
    %v1759 = vrot.slane %v1724, %v1758
    %v1760 = vlaneseq
    %v1761 = vshrl.u32 %v1760, 7
    %v1762 = vsub.s32 %v747, %v1761
    %v1763 = vrot.slane %v1727, %v1762
    %v1764 = vlaneseq
    %v1765 = vshrl.u32 %v1764, 7
    %v1766 = vsub.s32 %v747, %v1765
    %v1767 = vrot.slane %v1730, %v1766
    %v1768 = vlaneseq
    %v1769 = vshrl.u32 %v1768, 7
    %v1770 = vsub.s32 %v747, %v1769
    %v1771 = vrot.slane %v1733, %v1770
    %v1772 = vlaneseq
    %v1773 = vshrl.u32 %v1772, 7
    %v1774 = vsub.s32 %v747, %v1773
    %v1775 = vrot.slane %v1736, %v1774
    %v1776 = vlaneseq
    %v1777 = vshrl.u32 %v1776, 7
    %v1778 = vsub.s32 %v747, %v1777
    %v1779 = vrot.slane %v1739, %v1778
    %v1780 = vsel %vm780, %v1755, %v1751
    %v1781 = vsel %vm782, %v1759, %v1780
    %v1782 = vsel %vm784, %v1763, %v1781
    %v1783 = vsel %vm786, %v1767, %v1782
    %v1784 = vsel %vm788, %v1771, %v1783
    %v1785 = vsel %vm790, %v1775, %v1784
    %v1786 = vsel %vm792, %v1779, %v1785
    %v1788 = vmul.f32 %v1539, %v1786
    %v1789 = vadd.f32 %v1376, %v1788
    %v1790 = vadd.f32 %v1789, %v1001
    %v1791 = vsel %vm564, %v1790, -inf
    %1792 = vmax.xlane.f32.xlu0 %v1791
    %v1793 = vpop.xlane.xlu0 %1792
    %v1794 = vsub.f32 %v1790, %v1793
    %v1795 = vmul.f32 %v1794, 1.442695
    %v1796 = vpow.pop %v1795
    %v1797 = vsel %vm564, %v1796, 0.0
    %1798 = vadd.xlane.f32.xlu0 %v1797
    %v1799 = vpop.xlane.xlu0 %1798
    %v1800 = vrcp.pop %v1799
    %v1801 = vmul.f32 %v1796, %v1800
    %v1802 = vlaneseq
    %v1803 = vshrl.u32 %v1802, 7
    %v1804 = vsub.s32 0, %v1803
    %v1805 = vrot.slane %v1801, %v1804
    %1807 = vbcast.lane.b32.xlu0 %v1805, 256
    %v1808 = vpop.permute.xlu0 %1807
    %v1809 = vlaneseq
    %v1810 = vshrl.u32 %v1809, 7
    %v1811 = vsub.s32 1, %v1810
    %v1812 = vrot.slane %v1801, %v1811
    %1814 = vbcast.lane.b32.xlu0 %v1812, 256
    %v1815 = vpop.permute.xlu0 %1814
    %v1816 = vlaneseq
    %v1817 = vshrl.u32 %v1816, 7
    %v1818 = vsub.s32 2, %v1817
    %v1819 = vrot.slane %v1801, %v1818
    %1821 = vbcast.lane.b32.xlu0 %v1819, 256
    %v1822 = vpop.permute.xlu0 %1821
    %v1823 = vlaneseq
    %v1824 = vshrl.u32 %v1823, 7
    %v1825 = vsub.s32 3, %v1824
    %v1826 = vrot.slane %v1801, %v1825
    %1828 = vbcast.lane.b32.xlu0 %v1826, 256
    %v1829 = vpop.permute.xlu0 %1828
    %v1830 = vlaneseq
    %v1831 = vshrl.u32 %v1830, 7
    %v1832 = vsub.s32 4, %v1831
    %v1833 = vrot.slane %v1801, %v1832
    %1835 = vbcast.lane.b32.xlu0 %v1833, 256
    %v1836 = vpop.permute.xlu0 %1835
    %v1837 = vlaneseq
    %v1838 = vshrl.u32 %v1837, 7
    %v1839 = vsub.s32 5, %v1838
    %v1840 = vrot.slane %v1801, %v1839
    %1842 = vbcast.lane.b32.xlu0 %v1840, 256
    %v1843 = vpop.permute.xlu0 %1842
    %v1844 = vlaneseq
    %v1845 = vshrl.u32 %v1844, 7
    %v1846 = vsub.s32 6, %v1845
    %v1847 = vrot.slane %v1801, %v1846
    %1849 = vbcast.lane.b32.xlu0 %v1847, 256
    %v1850 = vpop.permute.xlu0 %1849
    %v1851 = vlaneseq
    %v1852 = vshrl.u32 %v1851, 7
    %v1853 = vsub.s32 7, %v1852
    %v1854 = vrot.slane %v1801, %v1853
    %1856 = vbcast.lane.b32.xlu0 %v1854, 256
    %v1857 = vpop.permute.xlu0 %1856
    %v1858 = vmul.f32 %v1808, %v392
    %v1859 = vmul.f32 %v1815, %v397
    %v1860 = vmul.f32 %v1822, %v402
    %v1861 = vmul.f32 %v1829, %v407
    %v1862 = vmul.f32 %v1836, %v412
    %v1863 = vmul.f32 %v1843, %v417
    %v1864 = vmul.f32 %v1850, %v422
    %v1865 = vmul.f32 %v1857, %v427
    %v1866 = vsel %vm564, %v1858, 0.0
    %v1867 = vrot.slane %v1866, 4
    %v1868 = vadd.f32 %v1866, %v1867
    %v1869 = vrot.slane %v1868, 2
    %v1870 = vadd.f32 %v1868, %v1869
    %v1871 = vrot.slane %v1870, 1
    %v1872 = vadd.f32 %v1870, %v1871
    %v1873 = vsel %vm564, %v1859, 0.0
    %v1874 = vrot.slane %v1873, 4
    %v1875 = vadd.f32 %v1873, %v1874
    %v1876 = vrot.slane %v1875, 2
    %v1877 = vadd.f32 %v1875, %v1876
    %v1878 = vrot.slane %v1877, 1
    %v1879 = vadd.f32 %v1877, %v1878
    %v1880 = vsel %vm564, %v1860, 0.0
    %v1881 = vrot.slane %v1880, 4
    %v1882 = vadd.f32 %v1880, %v1881
    %v1883 = vrot.slane %v1882, 2
    %v1884 = vadd.f32 %v1882, %v1883
    %v1885 = vrot.slane %v1884, 1
    %v1886 = vadd.f32 %v1884, %v1885
    %v1887 = vsel %vm564, %v1861, 0.0
    %v1888 = vrot.slane %v1887, 4
    %v1889 = vadd.f32 %v1887, %v1888
    %v1890 = vrot.slane %v1889, 2
    %v1891 = vadd.f32 %v1889, %v1890
    %v1892 = vrot.slane %v1891, 1
    %v1893 = vadd.f32 %v1891, %v1892
    %v1894 = vsel %vm564, %v1862, 0.0
    %v1895 = vrot.slane %v1894, 4
    %v1896 = vadd.f32 %v1894, %v1895
    %v1897 = vrot.slane %v1896, 2
    %v1898 = vadd.f32 %v1896, %v1897
    %v1899 = vrot.slane %v1898, 1
    %v1900 = vadd.f32 %v1898, %v1899
    %v1901 = vsel %vm564, %v1863, 0.0
    %v1902 = vrot.slane %v1901, 4
    %v1903 = vadd.f32 %v1901, %v1902
    %v1904 = vrot.slane %v1903, 2
    %v1905 = vadd.f32 %v1903, %v1904
    %v1906 = vrot.slane %v1905, 1
    %v1907 = vadd.f32 %v1905, %v1906
    %v1908 = vsel %vm564, %v1864, 0.0
    %v1909 = vrot.slane %v1908, 4
    %v1910 = vadd.f32 %v1908, %v1909
    %v1911 = vrot.slane %v1910, 2
    %v1912 = vadd.f32 %v1910, %v1911
    %v1913 = vrot.slane %v1912, 1
    %v1914 = vadd.f32 %v1912, %v1913
    %v1915 = vsel %vm564, %v1865, 0.0
    %v1916 = vrot.slane %v1915, 4
    %v1917 = vadd.f32 %v1915, %v1916
    %v1918 = vrot.slane %v1917, 2
    %v1919 = vadd.f32 %v1917, %v1918
    %v1920 = vrot.slane %v1919, 1
    %v1921 = vadd.f32 %v1919, %v1920
    %s1922 = scalar_lea.vmem %s10, 8
    %v1923 = vld [vmem:[%s1922] sm:$0x1]
    %s1925 = vtos %v1923
    %v1926 = vstv %s1925
    %v1928 = vmul.f32 %v1926, %v521
    %v1929 = vadd.f32 %v1928, 0.0
    %v1930 = vld [vmem:[%s1922 + $0x1] sm:$0x1]
    %s1932 = vtos %v1930
    %v1933 = vstv %s1932
    %v1935 = vmul.f32 %v1933, %v526
    %v1936 = vadd.f32 %v1929, %v1935
    %v1937 = vld [vmem:[%s1922 + $0x2] sm:$0x1]
    %s1939 = vtos %v1937
    %v1940 = vstv %s1939
    %v1942 = vmul.f32 %v1940, %v531
    %v1943 = vadd.f32 %v1936, %v1942
    %v1944 = vld [vmem:[%s1922 + $0x3] sm:$0x1]
    %s1946 = vtos %v1944
    %v1947 = vstv %s1946
    %v1949 = vmul.f32 %v1947, %v536
    %v1950 = vadd.f32 %v1943, %v1949
    %v1951 = vld [vmem:[%s1922 + $0x4] sm:$0x1]
    %s1953 = vtos %v1951
    %v1954 = vstv %s1953
    %v1956 = vmul.f32 %v1954, %v541
    %v1957 = vadd.f32 %v1950, %v1956
    %v1958 = vld [vmem:[%s1922 + $0x5] sm:$0x1]
    %s1960 = vtos %v1958
    %v1961 = vstv %s1960
    %v1963 = vmul.f32 %v1961, %v546
    %v1964 = vadd.f32 %v1957, %v1963
    %v1965 = vld [vmem:[%s1922 + $0x6] sm:$0x1]
    %s1967 = vtos %v1965
    %v1968 = vstv %s1967
    %v1970 = vmul.f32 %v1968, %v551
    %v1971 = vadd.f32 %v1964, %v1970
    %v1972 = vld [vmem:[%s1922 + $0x7] sm:$0x1]
    %s1974 = vtos %v1972
    %v1975 = vstv %s1974
    %v1977 = vmul.f32 %v1975, %v556
    %v1978 = vadd.f32 %v1971, %v1977
    %v1979 = vld [vmem:[%s11 + $0x1] sm:$0x1]
    %s1981 = vtos %v1979
    %v1982 = vstv %s1981
    %v1984 = vadd.f32 %v1978, %v1982
    %v1985 = vxor.u32 %v1984, 2147483648
    %v1986 = vmul.f32 %v1985, 1.442695
    %v1987 = vpow.pop %v1986
    %v1988 = vadd.f32 %v1987, 1.0
    %v1989 = vrcp.pop %v1988
    %v1990 = vmul.f32 1.0, %v1989
    %v1999 = vsel %vm780, %v1879, %v1872
    %v2000 = vsel %vm782, %v1886, %v1999
    %v2001 = vsel %vm784, %v1893, %v2000
    %v2002 = vsel %vm786, %v1900, %v2001
    %v2003 = vsel %vm788, %v1907, %v2002
    %v2004 = vsel %vm790, %v1914, %v2003
    %v2005 = vsel %vm792, %v1921, %v2004
    %v2007 = vmul.f32 %v1990, %v2005
    %2008 = vrot.lane.b32.xlu0 %v1296, 56
    %v2009 = vpop.permute.xlu0 %2008
    %v2012 = vsel %vm564, %v1801, 0
    %2014 = vmatprep.subr.mxu0 0.0
    %2015 = vmatpush1.msra.mxu0 %v2009
    %2016 = vmatprep.subr.mxu0 0.0
    %2017 = vmatpush1.msra.mxu0 0.0
    %2018 = vmatprep.subr.mxu0 0.0
    %2019 = vmatpush1.msra.mxu0 0.0
    %2020 = vmatprep.subr.mxu0 0.0
    %2021 = vmatpush1.msra.mxu0 0.0
    %2022 = vmatprep.subr.mxu0 0.0
    %2023 = vmatpush1.msra.mxu0 0.0
    %2024 = vmatprep.subr.mxu0 0.0
    %2025 = vmatpush1.msra.mxu0 0.0
    %2026 = vmatprep.subr.mxu0 0.0
    %2027 = vmatpush1.msra.mxu0 0.0
    %2028 = vmatprep.subr.mxu0 0.0
    %2029 = vmatpush1.msra.mxu0 0.0
    %2030 = vmatprep.subr.mxu0 0.0
    %2031 = vmatpush1.msra.mxu0 0.0
    %2032 = vmatprep.subr.mxu0 0.0
    %2033 = vmatpush1.msra.mxu0 0.0
    %2034 = vmatprep.subr.mxu0 0.0
    %2035 = vmatpush1.msra.mxu0 0.0
    %2036 = vmatprep.subr.mxu0 0.0
    %2037 = vmatpush1.msra.mxu0 0.0
    %2038 = vmatprep.subr.mxu0 0.0
    %2039 = vmatpush1.msra.mxu0 0.0
    %2040 = vmatprep.subr.mxu0 0.0
    %2041 = vmatpush1.msra.mxu0 0.0
    %2042 = vmatprep.subr.mxu0 0.0
    %2043 = vmatpush1.msra.mxu0 0.0
    %2044 = vmatprep.subr.mxu0 0.0
    %2045 = vmatpush1.msra.mxu0 0.0
    %2046 = vmatprep.subr.mxu0 0.0
    %2047 = vmatpush1.msra.mxu0 0.0
    %2048 = vmatprep.subr.mxu0 0.0
    %2049 = vmatpush1.msra.mxu0 0.0
    %2050 = vmatprep.subr.mxu0 0.0
    %2051 = vmatpush1.msra.mxu0 0.0
    %2052 = vmatprep.subr.mxu0 0.0
    %2053 = vmatpush1.msra.mxu0 0.0
    %2054 = vmatprep.subr.mxu0 0.0
    %2055 = vmatpush1.msra.mxu0 0.0
    %2056 = vmatprep.subr.mxu0 0.0
    %2057 = vmatpush1.msra.mxu0 0.0
    %2058 = vmatprep.subr.mxu0 0.0
    %2059 = vmatpush1.msra.mxu0 0.0
    %2060 = vmatprep.subr.mxu0 0.0
    %2061 = vmatpush1.msra.mxu0 0.0
    %2062 = vmatprep.subr.mxu0 0.0
    %2063 = vmatpush1.msra.mxu0 0.0
    %2064 = vmatprep.subr.mxu0 0.0
    %2065 = vmatpush1.msra.mxu0 0.0
    %2066 = vmatprep.subr.mxu0 0.0
    %2067 = vmatpush1.msra.mxu0 0.0
    %2068 = vmatprep.subr.mxu0 0.0
    %2069 = vmatpush1.msra.mxu0 0.0
    %2070 = vmatprep.subr.mxu0 0.0
    %2071 = vmatpush1.msra.mxu0 0.0
    %2072 = vmatprep.subr.mxu0 0.0
    %2073 = vmatpush1.msra.mxu0 0.0
    %2074 = vmatprep.subr.mxu0 0.0
    %2075 = vmatpush1.msra.mxu0 0.0
    %2076 = vmatprep.subr.mxu0 0.0
    %2077 = vmatpush1.msra.mxu0 0.0
    %2078 = vmatprep.mubr.f32.mxu0 0.0
    %2079 = vmatmul.mubr.f32.gmra.mrb[0].mxu0 %v2012
    %v2080 = vpop.f32.mrb[0].mxu0
    %v2081 = vadd.f32 %v2007, %v2080
    %v2082 = vpop.f32.mrb[0].mxu0
    %2083 = vdwg.mxu0
    %2085 = vrot.lane.b32.xlu0 %v2081, 8
    %v2086 = vpop.permute.xlu0 %2085
    %vm2088 = vcmask 130112
    %2089 = vst.msk [vmem:[#allocation3] sm:$0xff] %vm2088, %v2086
    %v2090 = vld [vmem:[#allocation2] sm:$0xff]
    %2092 = vrot.lane.b32.xlu0 %v2090, 112
    %v2093 = vpop.permute.xlu0 %2092
    %2094 = vrot.lane.b32.xlu0 %v2090, 80
    %v2095 = vpop.permute.xlu0 %2094
    %v2096 = vsel %vm564, %v2093, 0
    %v2098 = vsel %vm564, %v2095, 0
    %2100 = vmatprep.subr.mxu0 0.0
    %2101 = vmatpush1.xpose.msra.mxu0 %v2098
    %2102 = vmatprep.subr.mxu0 0.0
    %2103 = vmatpush1.xpose.msra.mxu0 0.0
    %2104 = vmatprep.subr.mxu0 0.0
    %2105 = vmatpush1.xpose.msra.mxu0 0.0
    %2106 = vmatprep.subr.mxu0 0.0
    %2107 = vmatpush1.xpose.msra.mxu0 0.0
    %2108 = vmatprep.subr.mxu0 0.0
    %2109 = vmatpush1.xpose.msra.mxu0 0.0
    %2110 = vmatprep.subr.mxu0 0.0
    %2111 = vmatpush1.xpose.msra.mxu0 0.0
    %2112 = vmatprep.subr.mxu0 0.0
    %2113 = vmatpush1.xpose.msra.mxu0 0.0
    %2114 = vmatprep.subr.mxu0 0.0
    %2115 = vmatpush1.xpose.msra.mxu0 0.0
    %2116 = vmatprep.subr.mxu0 0.0
    %2117 = vmatpush1.xpose.msra.mxu0 0.0
    %2118 = vmatprep.subr.mxu0 0.0
    %2119 = vmatpush1.xpose.msra.mxu0 0.0
    %2120 = vmatprep.subr.mxu0 0.0
    %2121 = vmatpush1.xpose.msra.mxu0 0.0
    %2122 = vmatprep.subr.mxu0 0.0
    %2123 = vmatpush1.xpose.msra.mxu0 0.0
    %2124 = vmatprep.subr.mxu0 0.0
    %2125 = vmatpush1.xpose.msra.mxu0 0.0
    %2126 = vmatprep.subr.mxu0 0.0
    %2127 = vmatpush1.xpose.msra.mxu0 0.0
    %2128 = vmatprep.subr.mxu0 0.0
    %2129 = vmatpush1.xpose.msra.mxu0 0.0
    %2130 = vmatprep.subr.mxu0 0.0
    %2131 = vmatpush1.xpose.msra.mxu0 0.0
    %2132 = vmatprep.subr.mxu0 0.0
    %2133 = vmatpush1.xpose.msra.mxu0 0.0
    %2134 = vmatprep.subr.mxu0 0.0
    %2135 = vmatpush1.xpose.msra.mxu0 0.0
    %2136 = vmatprep.subr.mxu0 0.0
    %2137 = vmatpush1.xpose.msra.mxu0 0.0
    %2138 = vmatprep.subr.mxu0 0.0
    %2139 = vmatpush1.xpose.msra.mxu0 0.0
    %2140 = vmatprep.subr.mxu0 0.0
    %2141 = vmatpush1.xpose.msra.mxu0 0.0
    %2142 = vmatprep.subr.mxu0 0.0
    %2143 = vmatpush1.xpose.msra.mxu0 0.0
    %2144 = vmatprep.subr.mxu0 0.0
    %2145 = vmatpush1.xpose.msra.mxu0 0.0
    %2146 = vmatprep.subr.mxu0 0.0
    %2147 = vmatpush1.xpose.msra.mxu0 0.0
    %2148 = vmatprep.subr.mxu0 0.0
    %2149 = vmatpush1.xpose.msra.mxu0 0.0
    %2150 = vmatprep.subr.mxu0 0.0
    %2151 = vmatpush1.xpose.msra.mxu0 0.0
    %2152 = vmatprep.subr.mxu0 0.0
    %2153 = vmatpush1.xpose.msra.mxu0 0.0
    %2154 = vmatprep.subr.mxu0 0.0
    %2155 = vmatpush1.xpose.msra.mxu0 0.0
    %2156 = vmatprep.subr.mxu0 0.0
    %2157 = vmatpush1.xpose.msra.mxu0 0.0
    %2158 = vmatprep.subr.mxu0 0.0
    %2159 = vmatpush1.xpose.msra.mxu0 0.0
    %2160 = vmatprep.subr.mxu0 0.0
    %2161 = vmatpush1.xpose.msra.mxu0 0.0
    %2162 = vmatprep.subr.mxu0 0.0
    %2163 = vmatpush1.xpose.msra.mxu0 0.0
    %2164 = vmatprep.mubr.f32.mxu0 0.0
    %2165 = vmatmul.mubr.f32.gmra.mrb[0].mxu0 %v2096
    %v2166 = vpop.f32.mrb[0].mxu0
    %v2167 = vadd.f32 0.0, %v2166
    %v2168 = vpop.f32.mrb[0].mxu0
    %2169 = vdwg.mxu0
    %v2170 = vmul.f32 %v2167, 0.35355338
    %v2171 = vld [vmem:[%s8 + $0x2] sm:$0x1]
    %v2172 = vld [vmem:[%s9 + $0x2] sm:$0x1]
    %v2173 = vlaneseq
    %v2174 = vshrl.u32 %v2173, 7
    %v2175 = vsub.s32 0, %v2174
    %v2176 = vrot.slane %v2171, %v2175
    %v2177 = vmul.f32 %v284, %v2176
    %v2178 = vmul.f32 %v289, %v2176
    %v2179 = vmul.f32 %v294, %v2176
    %v2180 = vmul.f32 %v299, %v2176
    %v2181 = vmul.f32 %v304, %v2176
    %v2182 = vmul.f32 %v309, %v2176
    %v2183 = vmul.f32 %v314, %v2176
    %v2184 = vmul.f32 %v319, %v2176
    %v2185 = vsel %vm564, %v2177, 0.0
    %2186 = vadd.xlane.f32.xlu0 %v2185
    %v2187 = vpop.xlane.xlu0 %2186
    %v2188 = vsel %vm564, %v2178, 0.0
    %2189 = vadd.xlane.f32.xlu0 %v2188
    %v2190 = vpop.xlane.xlu0 %2189
    %v2191 = vsel %vm564, %v2179, 0.0
    %2192 = vadd.xlane.f32.xlu0 %v2191
    %v2193 = vpop.xlane.xlu0 %2192
    %v2194 = vsel %vm564, %v2180, 0.0
    %2195 = vadd.xlane.f32.xlu0 %v2194
    %v2196 = vpop.xlane.xlu0 %2195
    %v2197 = vsel %vm564, %v2181, 0.0
    %2198 = vadd.xlane.f32.xlu0 %v2197
    %v2199 = vpop.xlane.xlu0 %2198
    %v2200 = vsel %vm564, %v2182, 0.0
    %2201 = vadd.xlane.f32.xlu0 %v2200
    %v2202 = vpop.xlane.xlu0 %2201
    %v2203 = vsel %vm564, %v2183, 0.0
    %2204 = vadd.xlane.f32.xlu0 %v2203
    %v2205 = vpop.xlane.xlu0 %2204
    %v2206 = vsel %vm564, %v2184, 0.0
    %2207 = vadd.xlane.f32.xlu0 %v2206
    %v2208 = vpop.xlane.xlu0 %2207
    %s2210 = vtos %v2172
    %v2211 = vstv %s2210
    %v2213 = vadd.f32 %v2187, %v2211
    %v2214 = vadd.f32 %v2190, %v2211
    %v2215 = vadd.f32 %v2193, %v2211
    %v2216 = vadd.f32 %v2196, %v2211
    %v2217 = vadd.f32 %v2199, %v2211
    %v2218 = vadd.f32 %v2202, %v2211
    %v2219 = vadd.f32 %v2205, %v2211
    %v2220 = vadd.f32 %v2208, %v2211
    %v2221 = vxor.u32 %v2213, 2147483648
    %v2222 = vxor.u32 %v2214, 2147483648
    %v2223 = vxor.u32 %v2215, 2147483648
    %v2224 = vxor.u32 %v2216, 2147483648
    %v2225 = vxor.u32 %v2217, 2147483648
    %v2226 = vxor.u32 %v2218, 2147483648
    %v2227 = vxor.u32 %v2219, 2147483648
    %v2228 = vxor.u32 %v2220, 2147483648
    %v2229 = vmul.f32 %v2221, 1.442695
    %v2230 = vpow.pop %v2229
    %v2231 = vmul.f32 %v2222, 1.442695
    %v2232 = vpow.pop %v2231
    %v2233 = vmul.f32 %v2223, 1.442695
    %v2234 = vpow.pop %v2233
    %v2235 = vmul.f32 %v2224, 1.442695
    %v2236 = vpow.pop %v2235
    %v2237 = vmul.f32 %v2225, 1.442695
    %v2238 = vpow.pop %v2237
    %v2239 = vmul.f32 %v2226, 1.442695
    %v2240 = vpow.pop %v2239
    %v2241 = vmul.f32 %v2227, 1.442695
    %v2242 = vpow.pop %v2241
    %v2243 = vmul.f32 %v2228, 1.442695
    %v2244 = vpow.pop %v2243
    %v2245 = vadd.f32 %v2230, 1.0
    %v2246 = vadd.f32 %v2232, 1.0
    %v2247 = vadd.f32 %v2234, 1.0
    %v2248 = vadd.f32 %v2236, 1.0
    %v2249 = vadd.f32 %v2238, 1.0
    %v2250 = vadd.f32 %v2240, 1.0
    %v2251 = vadd.f32 %v2242, 1.0
    %v2252 = vadd.f32 %v2244, 1.0
    %v2253 = vrcp.pop %v2245
    %v2254 = vmul.f32 1.0, %v2253
    %v2255 = vrcp.pop %v2246
    %v2256 = vmul.f32 1.0, %v2255
    %v2257 = vrcp.pop %v2247
    %v2258 = vmul.f32 1.0, %v2257
    %v2259 = vrcp.pop %v2248
    %v2260 = vmul.f32 1.0, %v2259
    %v2261 = vrcp.pop %v2249
    %v2262 = vmul.f32 1.0, %v2261
    %v2263 = vrcp.pop %v2250
    %v2264 = vmul.f32 1.0, %v2263
    %v2265 = vrcp.pop %v2251
    %v2266 = vmul.f32 1.0, %v2265
    %v2267 = vrcp.pop %v2252
    %v2268 = vmul.f32 1.0, %v2267
    %v2277 = vlaneseq
    %v2278 = vshrl.u32 %v2277, 7
    %v2279 = vsub.s32 %v747, %v2278
    %v2280 = vrot.slane %v2254, %v2279
    %v2281 = vlaneseq
    %v2282 = vshrl.u32 %v2281, 7
    %v2283 = vsub.s32 %v747, %v2282
    %v2284 = vrot.slane %v2256, %v2283
    %v2285 = vlaneseq
    %v2286 = vshrl.u32 %v2285, 7
    %v2287 = vsub.s32 %v747, %v2286
    %v2288 = vrot.slane %v2258, %v2287
    %v2289 = vlaneseq
    %v2290 = vshrl.u32 %v2289, 7
    %v2291 = vsub.s32 %v747, %v2290
    %v2292 = vrot.slane %v2260, %v2291
    %v2293 = vlaneseq
    %v2294 = vshrl.u32 %v2293, 7
    %v2295 = vsub.s32 %v747, %v2294
    %v2296 = vrot.slane %v2262, %v2295
    %v2297 = vlaneseq
    %v2298 = vshrl.u32 %v2297, 7
    %v2299 = vsub.s32 %v747, %v2298
    %v2300 = vrot.slane %v2264, %v2299
    %v2301 = vlaneseq
    %v2302 = vshrl.u32 %v2301, 7
    %v2303 = vsub.s32 %v747, %v2302
    %v2304 = vrot.slane %v2266, %v2303
    %v2305 = vlaneseq
    %v2306 = vshrl.u32 %v2305, 7
    %v2307 = vsub.s32 %v747, %v2306
    %v2308 = vrot.slane %v2268, %v2307
    %v2309 = vsel %vm780, %v2284, %v2280
    %v2310 = vsel %vm782, %v2288, %v2309
    %v2311 = vsel %vm784, %v2292, %v2310
    %v2312 = vsel %vm786, %v2296, %v2311
    %v2313 = vsel %vm788, %v2300, %v2312
    %v2314 = vsel %vm790, %v2304, %v2313
    %v2315 = vsel %vm792, %v2308, %v2314
    %2317 = vxpose.xlu0.b32.start [1/16] %v2315, 128
    %2318 = vxpose.xlu0.b32.cont [2/16] 0.0, 128
    %2319 = vxpose.xlu0.b32.cont [3/16] 0.0, 128
    %2320 = vxpose.xlu0.b32.cont [4/16] 0.0, 128
    %2321 = vxpose.xlu0.b32.cont [5/16] 0.0, 128
    %2322 = vxpose.xlu0.b32.cont [6/16] 0.0, 128
    %2323 = vxpose.xlu0.b32.cont [7/16] 0.0, 128
    %2324 = vxpose.xlu0.b32.cont [8/16] 0.0, 128
    %2325 = vxpose.xlu0.b32.cont [9/16] 0.0, 128
    %2326 = vxpose.xlu0.b32.cont [10/16] 0.0, 128
    %2327 = vxpose.xlu0.b32.cont [11/16] 0.0, 128
    %2328 = vxpose.xlu0.b32.cont [12/16] 0.0, 128
    %2329 = vxpose.xlu0.b32.cont [13/16] 0.0, 128
    %2330 = vxpose.xlu0.b32.cont [14/16] 0.0, 128
    %2331 = vxpose.xlu0.b32.cont [15/16] 0.0, 128
    %2332 = vxpose.xlu0.b32.end [16/16] 0.0, 128
    %v2333 = vpop.trf.xlu0
    %v2334 = vpop.trf.xlu0
    %v2335 = vpop.trf.xlu0
    %v2336 = vpop.trf.xlu0
    %v2337 = vpop.trf.xlu0
    %v2338 = vpop.trf.xlu0
    %v2339 = vpop.trf.xlu0
    %v2340 = vpop.trf.xlu0
    %v2341 = vpop.trf.xlu0
    %v2342 = vpop.trf.xlu0
    %v2343 = vpop.trf.xlu0
    %v2344 = vpop.trf.xlu0
    %v2345 = vpop.trf.xlu0
    %v2346 = vpop.trf.xlu0
    %v2347 = vpop.trf.xlu0
    %v2348 = vpop.trf.xlu0
    %v2349 = vcombine.high %v2090, %v2090
    %v2351 = vunpack.c.l.s4 1966171168
    %v2352 = vunpack.c.0.s8 %v2351
    %v2353 = vlaneseq
    %v2354 = vshrl.u32 %v2353, 7
    %v2355 = vsub.s32 %v2352, %v2354
    %v2356 = vrot.slane %v2090, %v2355
    %v2358 = vunpack.c.l.s4 1966171168
    %v2359 = vunpack.c.0.s8 %v2358
    %v2360 = vlaneseq
    %v2361 = vshrl.u32 %v2360, 7
    %v2362 = vsub.s32 %v2359, %v2361
    %v2363 = vrot.slane %v2349, %v2362
    %v2364 = vcombine.high %v2356, %v2356
    %v2365 = vcombine.high %v2363, %v2363
    %v2367 = vunpack.c.l.s4 1966171168
    %v2368 = vunpack.c.0.s8 %v2367
    %v2369 = vlaneseq
    %v2370 = vshrl.u32 %v2369, 7
    %v2371 = vsub.s32 %v2368, %v2370
    %v2372 = vrot.slane %v2356, %v2371
    %v2374 = vunpack.c.l.s4 1966171168
    %v2375 = vunpack.c.0.s8 %v2374
    %v2376 = vlaneseq
    %v2377 = vshrl.u32 %v2376, 7
    %v2378 = vsub.s32 %v2375, %v2377
    %v2379 = vrot.slane %v2363, %v2378
    %v2381 = vunpack.c.l.s4 1966171168
    %v2382 = vunpack.c.0.s8 %v2381
    %v2383 = vlaneseq
    %v2384 = vshrl.u32 %v2383, 7
    %v2385 = vsub.s32 %v2382, %v2384
    %v2386 = vrot.slane %v2364, %v2385
    %v2388 = vunpack.c.l.s4 1966171168
    %v2389 = vunpack.c.0.s8 %v2388
    %v2390 = vlaneseq
    %v2391 = vshrl.u32 %v2390, 7
    %v2392 = vsub.s32 %v2389, %v2391
    %v2393 = vrot.slane %v2365, %v2392
    %v2394 = vcombine.high %v2372, %v2372
    %v2395 = vcombine.high %v2379, %v2379
    %v2396 = vcombine.high %v2386, %v2386
    %v2397 = vcombine.high %v2393, %v2393
    %v2398 = vlaneseq
    %v2399 = vshrl.u32 %v2398, 7
    %v2400 = vsub.s32 0, %v2399
    %v2401 = vrot.slane %v2372, %v2400
    %v2402 = vlaneseq
    %v2403 = vshrl.u32 %v2402, 7
    %v2404 = vsub.s32 0, %v2403
    %v2405 = vrot.slane %v2386, %v2404
    %v2406 = vlaneseq
    %v2407 = vshrl.u32 %v2406, 7
    %v2408 = vsub.s32 0, %v2407
    %v2409 = vrot.slane %v2394, %v2408
    %v2410 = vlaneseq
    %v2411 = vshrl.u32 %v2410, 7
    %v2412 = vsub.s32 0, %v2411
    %v2413 = vrot.slane %v2396, %v2412
    %v2414 = vlaneseq
    %v2415 = vshrl.u32 %v2414, 7
    %v2416 = vsub.s32 0, %v2415
    %v2417 = vrot.slane %v2379, %v2416
    %v2418 = vlaneseq
    %v2419 = vshrl.u32 %v2418, 7
    %v2420 = vsub.s32 0, %v2419
    %v2421 = vrot.slane %v2393, %v2420
    %v2422 = vlaneseq
    %v2423 = vshrl.u32 %v2422, 7
    %v2424 = vsub.s32 0, %v2423
    %v2425 = vrot.slane %v2395, %v2424
    %v2426 = vlaneseq
    %v2427 = vshrl.u32 %v2426, 7
    %v2428 = vsub.s32 0, %v2427
    %v2429 = vrot.slane %v2397, %v2428
    %2438 = vrot.lane.b32.xlu0 %v284, 16
    %v2439 = vpop.permute.xlu0 %2438
    %2440 = vrot.lane.b32.xlu0 %v289, 16
    %v2441 = vpop.permute.xlu0 %2440
    %2442 = vrot.lane.b32.xlu0 %v294, 16
    %v2443 = vpop.permute.xlu0 %2442
    %2444 = vrot.lane.b32.xlu0 %v299, 16
    %v2445 = vpop.permute.xlu0 %2444
    %2446 = vrot.lane.b32.xlu0 %v304, 16
    %v2447 = vpop.permute.xlu0 %2446
    %2448 = vrot.lane.b32.xlu0 %v309, 16
    %v2449 = vpop.permute.xlu0 %2448
    %2450 = vrot.lane.b32.xlu0 %v314, 16
    %v2451 = vpop.permute.xlu0 %2450
    %2452 = vrot.lane.b32.xlu0 %v319, 16
    %v2453 = vpop.permute.xlu0 %2452
    %v2462 = vmul.f32 %v2401, %v2439
    %v2463 = vmul.f32 %v2405, %v2441
    %v2464 = vmul.f32 %v2409, %v2443
    %v2465 = vmul.f32 %v2413, %v2445
    %v2466 = vmul.f32 %v2417, %v2447
    %v2467 = vmul.f32 %v2421, %v2449
    %v2468 = vmul.f32 %v2425, %v2451
    %v2469 = vmul.f32 %v2429, %v2453
    %2478 = vrot.lane.b32.xlu0 %v2462, 112
    %v2479 = vpop.permute.xlu0 %2478
    %2480 = vrot.lane.b32.xlu0 %v2463, 112
    %v2481 = vpop.permute.xlu0 %2480
    %2482 = vrot.lane.b32.xlu0 %v2464, 112
    %v2483 = vpop.permute.xlu0 %2482
    %2484 = vrot.lane.b32.xlu0 %v2465, 112
    %v2485 = vpop.permute.xlu0 %2484
    %2486 = vrot.lane.b32.xlu0 %v2466, 112
    %v2487 = vpop.permute.xlu0 %2486
    %2488 = vrot.lane.b32.xlu0 %v2467, 112
    %v2489 = vpop.permute.xlu0 %2488
    %2490 = vrot.lane.b32.xlu0 %v2468, 112
    %v2491 = vpop.permute.xlu0 %2490
    %2492 = vrot.lane.b32.xlu0 %v2469, 112
    %v2493 = vpop.permute.xlu0 %2492
    %v2502 = vsel %vm564, %v2479, 0.0
    %2503 = vadd.xlane.f32.xlu0 %v2502
    %v2504 = vpop.xlane.xlu0 %2503
    %v2505 = vsel %vm564, %v2481, 0.0
    %2506 = vadd.xlane.f32.xlu0 %v2505
    %v2507 = vpop.xlane.xlu0 %2506
    %v2508 = vsel %vm564, %v2483, 0.0
    %2509 = vadd.xlane.f32.xlu0 %v2508
    %v2510 = vpop.xlane.xlu0 %2509
    %v2511 = vsel %vm564, %v2485, 0.0
    %2512 = vadd.xlane.f32.xlu0 %v2511
    %v2513 = vpop.xlane.xlu0 %2512
    %v2514 = vsel %vm564, %v2487, 0.0
    %2515 = vadd.xlane.f32.xlu0 %v2514
    %v2516 = vpop.xlane.xlu0 %2515
    %v2517 = vsel %vm564, %v2489, 0.0
    %2518 = vadd.xlane.f32.xlu0 %v2517
    %v2519 = vpop.xlane.xlu0 %2518
    %v2520 = vsel %vm564, %v2491, 0.0
    %2521 = vadd.xlane.f32.xlu0 %v2520
    %v2522 = vpop.xlane.xlu0 %2521
    %v2523 = vsel %vm564, %v2493, 0.0
    %2524 = vadd.xlane.f32.xlu0 %v2523
    %v2525 = vpop.xlane.xlu0 %2524
    %v2534 = vlaneseq
    %v2535 = vshrl.u32 %v2534, 7
    %v2536 = vsub.s32 %v747, %v2535
    %v2537 = vrot.slane %v2504, %v2536
    %v2538 = vlaneseq
    %v2539 = vshrl.u32 %v2538, 7
    %v2540 = vsub.s32 %v747, %v2539
    %v2541 = vrot.slane %v2507, %v2540
    %v2542 = vlaneseq
    %v2543 = vshrl.u32 %v2542, 7
    %v2544 = vsub.s32 %v747, %v2543
    %v2545 = vrot.slane %v2510, %v2544
    %v2546 = vlaneseq
    %v2547 = vshrl.u32 %v2546, 7
    %v2548 = vsub.s32 %v747, %v2547
    %v2549 = vrot.slane %v2513, %v2548
    %v2550 = vlaneseq
    %v2551 = vshrl.u32 %v2550, 7
    %v2552 = vsub.s32 %v747, %v2551
    %v2553 = vrot.slane %v2516, %v2552
    %v2554 = vlaneseq
    %v2555 = vshrl.u32 %v2554, 7
    %v2556 = vsub.s32 %v747, %v2555
    %v2557 = vrot.slane %v2519, %v2556
    %v2558 = vlaneseq
    %v2559 = vshrl.u32 %v2558, 7
    %v2560 = vsub.s32 %v747, %v2559
    %v2561 = vrot.slane %v2522, %v2560
    %v2562 = vlaneseq
    %v2563 = vshrl.u32 %v2562, 7
    %v2564 = vsub.s32 %v747, %v2563
    %v2565 = vrot.slane %v2525, %v2564
    %v2566 = vsel %vm780, %v2541, %v2537
    %v2567 = vsel %vm782, %v2545, %v2566
    %v2568 = vsel %vm784, %v2549, %v2567
    %v2569 = vsel %vm786, %v2553, %v2568
    %v2570 = vsel %vm788, %v2557, %v2569
    %v2571 = vsel %vm790, %v2561, %v2570
    %v2572 = vsel %vm792, %v2565, %v2571
    %v2574 = vmul.f32 %v2333, %v2572
    %v2575 = vadd.f32 %v2170, %v2574
    %v2576 = vadd.f32 %v2575, %v1001
    %v2577 = vsel %vm564, %v2576, -inf
    %2578 = vmax.xlane.f32.xlu0 %v2577
    %v2579 = vpop.xlane.xlu0 %2578
    %v2580 = vsub.f32 %v2576, %v2579
    %v2581 = vmul.f32 %v2580, 1.442695
    %v2582 = vpow.pop %v2581
    %v2583 = vsel %vm564, %v2582, 0.0
    %2584 = vadd.xlane.f32.xlu0 %v2583
    %v2585 = vpop.xlane.xlu0 %2584
    %v2586 = vrcp.pop %v2585
    %v2587 = vmul.f32 %v2582, %v2586
    %v2588 = vlaneseq
    %v2589 = vshrl.u32 %v2588, 7
    %v2590 = vsub.s32 0, %v2589
    %v2591 = vrot.slane %v2587, %v2590
    %2593 = vbcast.lane.b32.xlu0 %v2591, 256
    %v2594 = vpop.permute.xlu0 %2593
    %v2595 = vlaneseq
    %v2596 = vshrl.u32 %v2595, 7
    %v2597 = vsub.s32 1, %v2596
    %v2598 = vrot.slane %v2587, %v2597
    %2600 = vbcast.lane.b32.xlu0 %v2598, 256
    %v2601 = vpop.permute.xlu0 %2600
    %v2602 = vlaneseq
    %v2603 = vshrl.u32 %v2602, 7
    %v2604 = vsub.s32 2, %v2603
    %v2605 = vrot.slane %v2587, %v2604
    %2607 = vbcast.lane.b32.xlu0 %v2605, 256
    %v2608 = vpop.permute.xlu0 %2607
    %v2609 = vlaneseq
    %v2610 = vshrl.u32 %v2609, 7
    %v2611 = vsub.s32 3, %v2610
    %v2612 = vrot.slane %v2587, %v2611
    %2614 = vbcast.lane.b32.xlu0 %v2612, 256
    %v2615 = vpop.permute.xlu0 %2614
    %v2616 = vlaneseq
    %v2617 = vshrl.u32 %v2616, 7
    %v2618 = vsub.s32 4, %v2617
    %v2619 = vrot.slane %v2587, %v2618
    %2621 = vbcast.lane.b32.xlu0 %v2619, 256
    %v2622 = vpop.permute.xlu0 %2621
    %v2623 = vlaneseq
    %v2624 = vshrl.u32 %v2623, 7
    %v2625 = vsub.s32 5, %v2624
    %v2626 = vrot.slane %v2587, %v2625
    %2628 = vbcast.lane.b32.xlu0 %v2626, 256
    %v2629 = vpop.permute.xlu0 %2628
    %v2630 = vlaneseq
    %v2631 = vshrl.u32 %v2630, 7
    %v2632 = vsub.s32 6, %v2631
    %v2633 = vrot.slane %v2587, %v2632
    %2635 = vbcast.lane.b32.xlu0 %v2633, 256
    %v2636 = vpop.permute.xlu0 %2635
    %v2637 = vlaneseq
    %v2638 = vshrl.u32 %v2637, 7
    %v2639 = vsub.s32 7, %v2638
    %v2640 = vrot.slane %v2587, %v2639
    %2642 = vbcast.lane.b32.xlu0 %v2640, 256
    %v2643 = vpop.permute.xlu0 %2642
    %v2644 = vmul.f32 %v2594, %v392
    %v2645 = vmul.f32 %v2601, %v397
    %v2646 = vmul.f32 %v2608, %v402
    %v2647 = vmul.f32 %v2615, %v407
    %v2648 = vmul.f32 %v2622, %v412
    %v2649 = vmul.f32 %v2629, %v417
    %v2650 = vmul.f32 %v2636, %v422
    %v2651 = vmul.f32 %v2643, %v427
    %v2652 = vsel %vm564, %v2644, 0.0
    %v2653 = vrot.slane %v2652, 4
    %v2654 = vadd.f32 %v2652, %v2653
    %v2655 = vrot.slane %v2654, 2
    %v2656 = vadd.f32 %v2654, %v2655
    %v2657 = vrot.slane %v2656, 1
    %v2658 = vadd.f32 %v2656, %v2657
    %v2659 = vsel %vm564, %v2645, 0.0
    %v2660 = vrot.slane %v2659, 4
    %v2661 = vadd.f32 %v2659, %v2660
    %v2662 = vrot.slane %v2661, 2
    %v2663 = vadd.f32 %v2661, %v2662
    %v2664 = vrot.slane %v2663, 1
    %v2665 = vadd.f32 %v2663, %v2664
    %v2666 = vsel %vm564, %v2646, 0.0
    %v2667 = vrot.slane %v2666, 4
    %v2668 = vadd.f32 %v2666, %v2667
    %v2669 = vrot.slane %v2668, 2
    %v2670 = vadd.f32 %v2668, %v2669
    %v2671 = vrot.slane %v2670, 1
    %v2672 = vadd.f32 %v2670, %v2671
    %v2673 = vsel %vm564, %v2647, 0.0
    %v2674 = vrot.slane %v2673, 4
    %v2675 = vadd.f32 %v2673, %v2674
    %v2676 = vrot.slane %v2675, 2
    %v2677 = vadd.f32 %v2675, %v2676
    %v2678 = vrot.slane %v2677, 1
    %v2679 = vadd.f32 %v2677, %v2678
    %v2680 = vsel %vm564, %v2648, 0.0
    %v2681 = vrot.slane %v2680, 4
    %v2682 = vadd.f32 %v2680, %v2681
    %v2683 = vrot.slane %v2682, 2
    %v2684 = vadd.f32 %v2682, %v2683
    %v2685 = vrot.slane %v2684, 1
    %v2686 = vadd.f32 %v2684, %v2685
    %v2687 = vsel %vm564, %v2649, 0.0
    %v2688 = vrot.slane %v2687, 4
    %v2689 = vadd.f32 %v2687, %v2688
    %v2690 = vrot.slane %v2689, 2
    %v2691 = vadd.f32 %v2689, %v2690
    %v2692 = vrot.slane %v2691, 1
    %v2693 = vadd.f32 %v2691, %v2692
    %v2694 = vsel %vm564, %v2650, 0.0
    %v2695 = vrot.slane %v2694, 4
    %v2696 = vadd.f32 %v2694, %v2695
    %v2697 = vrot.slane %v2696, 2
    %v2698 = vadd.f32 %v2696, %v2697
    %v2699 = vrot.slane %v2698, 1
    %v2700 = vadd.f32 %v2698, %v2699
    %v2701 = vsel %vm564, %v2651, 0.0
    %v2702 = vrot.slane %v2701, 4
    %v2703 = vadd.f32 %v2701, %v2702
    %v2704 = vrot.slane %v2703, 2
    %v2705 = vadd.f32 %v2703, %v2704
    %v2706 = vrot.slane %v2705, 1
    %v2707 = vadd.f32 %v2705, %v2706
    %s2708 = scalar_lea.vmem %s10, 16
    %v2709 = vld [vmem:[%s2708] sm:$0x1]
    %s2711 = vtos %v2709
    %v2712 = vstv %s2711
    %v2714 = vmul.f32 %v2712, %v521
    %v2715 = vadd.f32 %v2714, 0.0
    %v2716 = vld [vmem:[%s2708 + $0x1] sm:$0x1]
    %s2718 = vtos %v2716
    %v2719 = vstv %s2718
    %v2721 = vmul.f32 %v2719, %v526
    %v2722 = vadd.f32 %v2715, %v2721
    %v2723 = vld [vmem:[%s2708 + $0x2] sm:$0x1]
    %s2725 = vtos %v2723
    %v2726 = vstv %s2725
    %v2728 = vmul.f32 %v2726, %v531
    %v2729 = vadd.f32 %v2722, %v2728
    %v2730 = vld [vmem:[%s2708 + $0x3] sm:$0x1]
    %s2732 = vtos %v2730
    %v2733 = vstv %s2732
    %v2735 = vmul.f32 %v2733, %v536
    %v2736 = vadd.f32 %v2729, %v2735
    %v2737 = vld [vmem:[%s2708 + $0x4] sm:$0x1]
    %s2739 = vtos %v2737
    %v2740 = vstv %s2739
    %v2742 = vmul.f32 %v2740, %v541
    %v2743 = vadd.f32 %v2736, %v2742
    %v2744 = vld [vmem:[%s2708 + $0x5] sm:$0x1]
    %s2746 = vtos %v2744
    %v2747 = vstv %s2746
    %v2749 = vmul.f32 %v2747, %v546
    %v2750 = vadd.f32 %v2743, %v2749
    %v2751 = vld [vmem:[%s2708 + $0x6] sm:$0x1]
    %s2753 = vtos %v2751
    %v2754 = vstv %s2753
    %v2756 = vmul.f32 %v2754, %v551
    %v2757 = vadd.f32 %v2750, %v2756
    %v2758 = vld [vmem:[%s2708 + $0x7] sm:$0x1]
    %s2760 = vtos %v2758
    %v2761 = vstv %s2760
    %v2763 = vmul.f32 %v2761, %v556
    %v2764 = vadd.f32 %v2757, %v2763
    %v2765 = vld [vmem:[%s11 + $0x2] sm:$0x1]
    %s2767 = vtos %v2765
    %v2768 = vstv %s2767
    %v2770 = vadd.f32 %v2764, %v2768
    %v2771 = vxor.u32 %v2770, 2147483648
    %v2772 = vmul.f32 %v2771, 1.442695
    %v2773 = vpow.pop %v2772
    %v2774 = vadd.f32 %v2773, 1.0
    %v2775 = vrcp.pop %v2774
    %v2776 = vmul.f32 1.0, %v2775
    %v2785 = vsel %vm780, %v2665, %v2658
    %v2786 = vsel %vm782, %v2672, %v2785
    %v2787 = vsel %vm784, %v2679, %v2786
    %v2788 = vsel %vm786, %v2686, %v2787
    %v2789 = vsel %vm788, %v2693, %v2788
    %v2790 = vsel %vm790, %v2700, %v2789
    %v2791 = vsel %vm792, %v2707, %v2790
    %v2793 = vmul.f32 %v2776, %v2791
    %2794 = vrot.lane.b32.xlu0 %v2090, 48
    %v2795 = vpop.permute.xlu0 %2794
    %v2798 = vsel %vm564, %v2587, 0
    %2800 = vmatprep.subr.mxu0 0.0
    %2801 = vmatpush1.msra.mxu0 %v2795
    %2802 = vmatprep.subr.mxu0 0.0
    %2803 = vmatpush1.msra.mxu0 0.0
    %2804 = vmatprep.subr.mxu0 0.0
    %2805 = vmatpush1.msra.mxu0 0.0
    %2806 = vmatprep.subr.mxu0 0.0
    %2807 = vmatpush1.msra.mxu0 0.0
    %2808 = vmatprep.subr.mxu0 0.0
    %2809 = vmatpush1.msra.mxu0 0.0
    %2810 = vmatprep.subr.mxu0 0.0
    %2811 = vmatpush1.msra.mxu0 0.0
    %2812 = vmatprep.subr.mxu0 0.0
    %2813 = vmatpush1.msra.mxu0 0.0
    %2814 = vmatprep.subr.mxu0 0.0
    %2815 = vmatpush1.msra.mxu0 0.0
    %2816 = vmatprep.subr.mxu0 0.0
    %2817 = vmatpush1.msra.mxu0 0.0
    %2818 = vmatprep.subr.mxu0 0.0
    %2819 = vmatpush1.msra.mxu0 0.0
    %2820 = vmatprep.subr.mxu0 0.0
    %2821 = vmatpush1.msra.mxu0 0.0
    %2822 = vmatprep.subr.mxu0 0.0
    %2823 = vmatpush1.msra.mxu0 0.0
    %2824 = vmatprep.subr.mxu0 0.0
    %2825 = vmatpush1.msra.mxu0 0.0
    %2826 = vmatprep.subr.mxu0 0.0
    %2827 = vmatpush1.msra.mxu0 0.0
    %2828 = vmatprep.subr.mxu0 0.0
    %2829 = vmatpush1.msra.mxu0 0.0
    %2830 = vmatprep.subr.mxu0 0.0
    %2831 = vmatpush1.msra.mxu0 0.0
    %2832 = vmatprep.subr.mxu0 0.0
    %2833 = vmatpush1.msra.mxu0 0.0
    %2834 = vmatprep.subr.mxu0 0.0
    %2835 = vmatpush1.msra.mxu0 0.0
    %2836 = vmatprep.subr.mxu0 0.0
    %2837 = vmatpush1.msra.mxu0 0.0
    %2838 = vmatprep.subr.mxu0 0.0
    %2839 = vmatpush1.msra.mxu0 0.0
    %2840 = vmatprep.subr.mxu0 0.0
    %2841 = vmatpush1.msra.mxu0 0.0
    %2842 = vmatprep.subr.mxu0 0.0
    %2843 = vmatpush1.msra.mxu0 0.0
    %2844 = vmatprep.subr.mxu0 0.0
    %2845 = vmatpush1.msra.mxu0 0.0
    %2846 = vmatprep.subr.mxu0 0.0
    %2847 = vmatpush1.msra.mxu0 0.0
    %2848 = vmatprep.subr.mxu0 0.0
    %2849 = vmatpush1.msra.mxu0 0.0
    %2850 = vmatprep.subr.mxu0 0.0
    %2851 = vmatpush1.msra.mxu0 0.0
    %2852 = vmatprep.subr.mxu0 0.0
    %2853 = vmatpush1.msra.mxu0 0.0
    %2854 = vmatprep.subr.mxu0 0.0
    %2855 = vmatpush1.msra.mxu0 0.0
    %2856 = vmatprep.subr.mxu0 0.0
    %2857 = vmatpush1.msra.mxu0 0.0
    %2858 = vmatprep.subr.mxu0 0.0
    %2859 = vmatpush1.msra.mxu0 0.0
    %2860 = vmatprep.subr.mxu0 0.0
    %2861 = vmatpush1.msra.mxu0 0.0
    %2862 = vmatprep.subr.mxu0 0.0
    %2863 = vmatpush1.msra.mxu0 0.0
    %2864 = vmatprep.mubr.f32.mxu0 0.0
    %2865 = vmatmul.mubr.f32.gmra.mrb[0].mxu0 %v2798
    %v2866 = vpop.f32.mrb[0].mxu0
    %v2867 = vadd.f32 %v2793, %v2866
    %v2868 = vpop.f32.mrb[0].mxu0
    %2869 = vdwg.mxu0
    %2871 = vrot.lane.b32.xlu0 %v2867, 16
    %v2872 = vpop.permute.xlu0 %2871
    %vm2874 = vcmask 195712
    %2875 = vst.msk [vmem:[#allocation3] sm:$0xff] %vm2874, %v2872
    %v2876 = vld [vmem:[#allocation2] sm:$0xff]
    %2878 = vrot.lane.b32.xlu0 %v2876, 104
    %v2879 = vpop.permute.xlu0 %2878
    %2880 = vrot.lane.b32.xlu0 %v2876, 72
    %v2881 = vpop.permute.xlu0 %2880
    %v2882 = vsel %vm564, %v2879, 0
    %v2884 = vsel %vm564, %v2881, 0
    %2886 = vmatprep.subr.mxu0 0.0
    %2887 = vmatpush1.xpose.msra.mxu0 %v2884
    %2888 = vmatprep.subr.mxu0 0.0
    %2889 = vmatpush1.xpose.msra.mxu0 0.0
    %2890 = vmatprep.subr.mxu0 0.0
    %2891 = vmatpush1.xpose.msra.mxu0 0.0
    %2892 = vmatprep.subr.mxu0 0.0
    %2893 = vmatpush1.xpose.msra.mxu0 0.0
    %2894 = vmatprep.subr.mxu0 0.0
    %2895 = vmatpush1.xpose.msra.mxu0 0.0
    %2896 = vmatprep.subr.mxu0 0.0
    %2897 = vmatpush1.xpose.msra.mxu0 0.0
    %2898 = vmatprep.subr.mxu0 0.0
    %2899 = vmatpush1.xpose.msra.mxu0 0.0
    %2900 = vmatprep.subr.mxu0 0.0
    %2901 = vmatpush1.xpose.msra.mxu0 0.0
    %2902 = vmatprep.subr.mxu0 0.0
    %2903 = vmatpush1.xpose.msra.mxu0 0.0
    %2904 = vmatprep.subr.mxu0 0.0
    %2905 = vmatpush1.xpose.msra.mxu0 0.0
    %2906 = vmatprep.subr.mxu0 0.0
    %2907 = vmatpush1.xpose.msra.mxu0 0.0
    %2908 = vmatprep.subr.mxu0 0.0
    %2909 = vmatpush1.xpose.msra.mxu0 0.0
    %2910 = vmatprep.subr.mxu0 0.0
    %2911 = vmatpush1.xpose.msra.mxu0 0.0
    %2912 = vmatprep.subr.mxu0 0.0
    %2913 = vmatpush1.xpose.msra.mxu0 0.0
    %2914 = vmatprep.subr.mxu0 0.0
    %2915 = vmatpush1.xpose.msra.mxu0 0.0
    %2916 = vmatprep.subr.mxu0 0.0
    %2917 = vmatpush1.xpose.msra.mxu0 0.0
    %2918 = vmatprep.subr.mxu0 0.0
    %2919 = vmatpush1.xpose.msra.mxu0 0.0
    %2920 = vmatprep.subr.mxu0 0.0
    %2921 = vmatpush1.xpose.msra.mxu0 0.0
    %2922 = vmatprep.subr.mxu0 0.0
    %2923 = vmatpush1.xpose.msra.mxu0 0.0
    %2924 = vmatprep.subr.mxu0 0.0
    %2925 = vmatpush1.xpose.msra.mxu0 0.0
    %2926 = vmatprep.subr.mxu0 0.0
    %2927 = vmatpush1.xpose.msra.mxu0 0.0
    %2928 = vmatprep.subr.mxu0 0.0
    %2929 = vmatpush1.xpose.msra.mxu0 0.0
    %2930 = vmatprep.subr.mxu0 0.0
    %2931 = vmatpush1.xpose.msra.mxu0 0.0
    %2932 = vmatprep.subr.mxu0 0.0
    %2933 = vmatpush1.xpose.msra.mxu0 0.0
    %2934 = vmatprep.subr.mxu0 0.0
    %2935 = vmatpush1.xpose.msra.mxu0 0.0
    %2936 = vmatprep.subr.mxu0 0.0
    %2937 = vmatpush1.xpose.msra.mxu0 0.0
    %2938 = vmatprep.subr.mxu0 0.0
    %2939 = vmatpush1.xpose.msra.mxu0 0.0
    %2940 = vmatprep.subr.mxu0 0.0
    %2941 = vmatpush1.xpose.msra.mxu0 0.0
    %2942 = vmatprep.subr.mxu0 0.0
    %2943 = vmatpush1.xpose.msra.mxu0 0.0
    %2944 = vmatprep.subr.mxu0 0.0
    %2945 = vmatpush1.xpose.msra.mxu0 0.0
    %2946 = vmatprep.subr.mxu0 0.0
    %2947 = vmatpush1.xpose.msra.mxu0 0.0
    %2948 = vmatprep.subr.mxu0 0.0
    %2949 = vmatpush1.xpose.msra.mxu0 0.0
    %2950 = vmatprep.mubr.f32.mxu0 0.0
    %2951 = vmatmul.mubr.f32.gmra.mrb[0].mxu0 %v2882
    %v2952 = vpop.f32.mrb[0].mxu0
    %v2953 = vadd.f32 0.0, %v2952
    %v2954 = vpop.f32.mrb[0].mxu0
    %2955 = vdwg.mxu0
    %v2956 = vmul.f32 %v2953, 0.35355338
    %v2957 = vld [vmem:[%s8 + $0x3] sm:$0x1]
    %v2958 = vld [vmem:[%s9 + $0x3] sm:$0x1]
    %v2959 = vlaneseq
    %v2960 = vshrl.u32 %v2959, 7
    %v2961 = vsub.s32 0, %v2960
    %v2962 = vrot.slane %v2957, %v2961
    %v2963 = vmul.f32 %v284, %v2962
    %v2964 = vmul.f32 %v289, %v2962
    %v2965 = vmul.f32 %v294, %v2962
    %v2966 = vmul.f32 %v299, %v2962
    %v2967 = vmul.f32 %v304, %v2962
    %v2968 = vmul.f32 %v309, %v2962
    %v2969 = vmul.f32 %v314, %v2962
    %v2970 = vmul.f32 %v319, %v2962
    %v2971 = vsel %vm564, %v2963, 0.0
    %2972 = vadd.xlane.f32.xlu0 %v2971
    %v2973 = vpop.xlane.xlu0 %2972
    %v2974 = vsel %vm564, %v2964, 0.0
    %2975 = vadd.xlane.f32.xlu0 %v2974
    %v2976 = vpop.xlane.xlu0 %2975
    %v2977 = vsel %vm564, %v2965, 0.0
    %2978 = vadd.xlane.f32.xlu0 %v2977
    %v2979 = vpop.xlane.xlu0 %2978
    %v2980 = vsel %vm564, %v2966, 0.0
    %2981 = vadd.xlane.f32.xlu0 %v2980
    %v2982 = vpop.xlane.xlu0 %2981
    %v2983 = vsel %vm564, %v2967, 0.0
    %2984 = vadd.xlane.f32.xlu0 %v2983
    %v2985 = vpop.xlane.xlu0 %2984
    %v2986 = vsel %vm564, %v2968, 0.0
    %2987 = vadd.xlane.f32.xlu0 %v2986
    %v2988 = vpop.xlane.xlu0 %2987
    %v2989 = vsel %vm564, %v2969, 0.0
    %2990 = vadd.xlane.f32.xlu0 %v2989
    %v2991 = vpop.xlane.xlu0 %2990
    %v2992 = vsel %vm564, %v2970, 0.0
    %2993 = vadd.xlane.f32.xlu0 %v2992
    %v2994 = vpop.xlane.xlu0 %2993
    %s2996 = vtos %v2958
    %v2997 = vstv %s2996
    %v2999 = vadd.f32 %v2973, %v2997
    %v3000 = vadd.f32 %v2976, %v2997
    %v3001 = vadd.f32 %v2979, %v2997
    %v3002 = vadd.f32 %v2982, %v2997
    %v3003 = vadd.f32 %v2985, %v2997
    %v3004 = vadd.f32 %v2988, %v2997
    %v3005 = vadd.f32 %v2991, %v2997
    %v3006 = vadd.f32 %v2994, %v2997
    %v3007 = vxor.u32 %v2999, 2147483648
    %v3008 = vxor.u32 %v3000, 2147483648
    %v3009 = vxor.u32 %v3001, 2147483648
    %v3010 = vxor.u32 %v3002, 2147483648
    %v3011 = vxor.u32 %v3003, 2147483648
    %v3012 = vxor.u32 %v3004, 2147483648
    %v3013 = vxor.u32 %v3005, 2147483648
    %v3014 = vxor.u32 %v3006, 2147483648
    %v3015 = vmul.f32 %v3007, 1.442695
    %v3016 = vpow.pop %v3015
    %v3017 = vmul.f32 %v3008, 1.442695
    %v3018 = vpow.pop %v3017
    %v3019 = vmul.f32 %v3009, 1.442695
    %v3020 = vpow.pop %v3019
    %v3021 = vmul.f32 %v3010, 1.442695
    %v3022 = vpow.pop %v3021
    %v3023 = vmul.f32 %v3011, 1.442695
    %v3024 = vpow.pop %v3023
    %v3025 = vmul.f32 %v3012, 1.442695
    %v3026 = vpow.pop %v3025
    %v3027 = vmul.f32 %v3013, 1.442695
    %v3028 = vpow.pop %v3027
    %v3029 = vmul.f32 %v3014, 1.442695
    %v3030 = vpow.pop %v3029
    %v3031 = vadd.f32 %v3016, 1.0
    %v3032 = vadd.f32 %v3018, 1.0
    %v3033 = vadd.f32 %v3020, 1.0
    %v3034 = vadd.f32 %v3022, 1.0
    %v3035 = vadd.f32 %v3024, 1.0
    %v3036 = vadd.f32 %v3026, 1.0
    %v3037 = vadd.f32 %v3028, 1.0
    %v3038 = vadd.f32 %v3030, 1.0
    %v3039 = vrcp.pop %v3031
    %v3040 = vmul.f32 1.0, %v3039
    %v3041 = vrcp.pop %v3032
    %v3042 = vmul.f32 1.0, %v3041
    %v3043 = vrcp.pop %v3033
    %v3044 = vmul.f32 1.0, %v3043
    %v3045 = vrcp.pop %v3034
    %v3046 = vmul.f32 1.0, %v3045
    %v3047 = vrcp.pop %v3035
    %v3048 = vmul.f32 1.0, %v3047
    %v3049 = vrcp.pop %v3036
    %v3050 = vmul.f32 1.0, %v3049
    %v3051 = vrcp.pop %v3037
    %v3052 = vmul.f32 1.0, %v3051
    %v3053 = vrcp.pop %v3038
    %v3054 = vmul.f32 1.0, %v3053
    %v3063 = vlaneseq
    %v3064 = vshrl.u32 %v3063, 7
    %v3065 = vsub.s32 %v747, %v3064
    %v3066 = vrot.slane %v3040, %v3065
    %v3067 = vlaneseq
    %v3068 = vshrl.u32 %v3067, 7
    %v3069 = vsub.s32 %v747, %v3068
    %v3070 = vrot.slane %v3042, %v3069
    %v3071 = vlaneseq
    %v3072 = vshrl.u32 %v3071, 7
    %v3073 = vsub.s32 %v747, %v3072
    %v3074 = vrot.slane %v3044, %v3073
    %v3075 = vlaneseq
    %v3076 = vshrl.u32 %v3075, 7
    %v3077 = vsub.s32 %v747, %v3076
    %v3078 = vrot.slane %v3046, %v3077
    %v3079 = vlaneseq
    %v3080 = vshrl.u32 %v3079, 7
    %v3081 = vsub.s32 %v747, %v3080
    %v3082 = vrot.slane %v3048, %v3081
    %v3083 = vlaneseq
    %v3084 = vshrl.u32 %v3083, 7
    %v3085 = vsub.s32 %v747, %v3084
    %v3086 = vrot.slane %v3050, %v3085
    %v3087 = vlaneseq
    %v3088 = vshrl.u32 %v3087, 7
    %v3089 = vsub.s32 %v747, %v3088
    %v3090 = vrot.slane %v3052, %v3089
    %v3091 = vlaneseq
    %v3092 = vshrl.u32 %v3091, 7
    %v3093 = vsub.s32 %v747, %v3092
    %v3094 = vrot.slane %v3054, %v3093
    %v3095 = vsel %vm780, %v3070, %v3066
    %v3096 = vsel %vm782, %v3074, %v3095
    %v3097 = vsel %vm784, %v3078, %v3096
    %v3098 = vsel %vm786, %v3082, %v3097
    %v3099 = vsel %vm788, %v3086, %v3098
    %v3100 = vsel %vm790, %v3090, %v3099
    %v3101 = vsel %vm792, %v3094, %v3100
    %3103 = vxpose.xlu0.b32.start [1/16] %v3101, 128
    %3104 = vxpose.xlu0.b32.cont [2/16] 0.0, 128
    %3105 = vxpose.xlu0.b32.cont [3/16] 0.0, 128
    %3106 = vxpose.xlu0.b32.cont [4/16] 0.0, 128
    %3107 = vxpose.xlu0.b32.cont [5/16] 0.0, 128
    %3108 = vxpose.xlu0.b32.cont [6/16] 0.0, 128
    %3109 = vxpose.xlu0.b32.cont [7/16] 0.0, 128
    %3110 = vxpose.xlu0.b32.cont [8/16] 0.0, 128
    %3111 = vxpose.xlu0.b32.cont [9/16] 0.0, 128
    %3112 = vxpose.xlu0.b32.cont [10/16] 0.0, 128
    %3113 = vxpose.xlu0.b32.cont [11/16] 0.0, 128
    %3114 = vxpose.xlu0.b32.cont [12/16] 0.0, 128
    %3115 = vxpose.xlu0.b32.cont [13/16] 0.0, 128
    %3116 = vxpose.xlu0.b32.cont [14/16] 0.0, 128
    %3117 = vxpose.xlu0.b32.cont [15/16] 0.0, 128
    %3118 = vxpose.xlu0.b32.end [16/16] 0.0, 128
    %v3119 = vpop.trf.xlu0
    %v3120 = vpop.trf.xlu0
    %v3121 = vpop.trf.xlu0
    %v3122 = vpop.trf.xlu0
    %v3123 = vpop.trf.xlu0
    %v3124 = vpop.trf.xlu0
    %v3125 = vpop.trf.xlu0
    %v3126 = vpop.trf.xlu0
    %v3127 = vpop.trf.xlu0
    %v3128 = vpop.trf.xlu0
    %v3129 = vpop.trf.xlu0
    %v3130 = vpop.trf.xlu0
    %v3131 = vpop.trf.xlu0
    %v3132 = vpop.trf.xlu0
    %v3133 = vpop.trf.xlu0
    %v3134 = vpop.trf.xlu0
    %v3135 = vcombine.high %v2876, %v2876
    %v3137 = vunpack.c.l.s4 1966171168
    %v3138 = vunpack.c.0.s8 %v3137
    %v3139 = vlaneseq
    %v3140 = vshrl.u32 %v3139, 7
    %v3141 = vsub.s32 %v3138, %v3140
    %v3142 = vrot.slane %v2876, %v3141
    %v3144 = vunpack.c.l.s4 1966171168
    %v3145 = vunpack.c.0.s8 %v3144
    %v3146 = vlaneseq
    %v3147 = vshrl.u32 %v3146, 7
    %v3148 = vsub.s32 %v3145, %v3147
    %v3149 = vrot.slane %v3135, %v3148
    %v3150 = vcombine.high %v3142, %v3142
    %v3151 = vcombine.high %v3149, %v3149
    %v3153 = vunpack.c.l.s4 1966171168
    %v3154 = vunpack.c.0.s8 %v3153
    %v3155 = vlaneseq
    %v3156 = vshrl.u32 %v3155, 7
    %v3157 = vsub.s32 %v3154, %v3156
    %v3158 = vrot.slane %v3142, %v3157
    %v3160 = vunpack.c.l.s4 1966171168
    %v3161 = vunpack.c.0.s8 %v3160
    %v3162 = vlaneseq
    %v3163 = vshrl.u32 %v3162, 7
    %v3164 = vsub.s32 %v3161, %v3163
    %v3165 = vrot.slane %v3149, %v3164
    %v3167 = vunpack.c.l.s4 1966171168
    %v3168 = vunpack.c.0.s8 %v3167
    %v3169 = vlaneseq
    %v3170 = vshrl.u32 %v3169, 7
    %v3171 = vsub.s32 %v3168, %v3170
    %v3172 = vrot.slane %v3150, %v3171
    %v3174 = vunpack.c.l.s4 1966171168
    %v3175 = vunpack.c.0.s8 %v3174
    %v3176 = vlaneseq
    %v3177 = vshrl.u32 %v3176, 7
    %v3178 = vsub.s32 %v3175, %v3177
    %v3179 = vrot.slane %v3151, %v3178
    %v3180 = vcombine.high %v3158, %v3158
    %v3181 = vcombine.high %v3165, %v3165
    %v3182 = vcombine.high %v3172, %v3172
    %v3183 = vcombine.high %v3179, %v3179
    %v3184 = vlaneseq
    %v3185 = vshrl.u32 %v3184, 7
    %v3186 = vsub.s32 0, %v3185
    %v3187 = vrot.slane %v3158, %v3186
    %v3188 = vlaneseq
    %v3189 = vshrl.u32 %v3188, 7
    %v3190 = vsub.s32 0, %v3189
    %v3191 = vrot.slane %v3172, %v3190
    %v3192 = vlaneseq
    %v3193 = vshrl.u32 %v3192, 7
    %v3194 = vsub.s32 0, %v3193
    %v3195 = vrot.slane %v3180, %v3194
    %v3196 = vlaneseq
    %v3197 = vshrl.u32 %v3196, 7
    %v3198 = vsub.s32 0, %v3197
    %v3199 = vrot.slane %v3182, %v3198
    %v3200 = vlaneseq
    %v3201 = vshrl.u32 %v3200, 7
    %v3202 = vsub.s32 0, %v3201
    %v3203 = vrot.slane %v3165, %v3202
    %v3204 = vlaneseq
    %v3205 = vshrl.u32 %v3204, 7
    %v3206 = vsub.s32 0, %v3205
    %v3207 = vrot.slane %v3179, %v3206
    %v3208 = vlaneseq
    %v3209 = vshrl.u32 %v3208, 7
    %v3210 = vsub.s32 0, %v3209
    %v3211 = vrot.slane %v3181, %v3210
    %v3212 = vlaneseq
    %v3213 = vshrl.u32 %v3212, 7
    %v3214 = vsub.s32 0, %v3213
    %v3215 = vrot.slane %v3183, %v3214
    %3224 = vrot.lane.b32.xlu0 %v284, 24
    %v3225 = vpop.permute.xlu0 %3224
    %3226 = vrot.lane.b32.xlu0 %v289, 24
    %v3227 = vpop.permute.xlu0 %3226
    %3228 = vrot.lane.b32.xlu0 %v294, 24
    %v3229 = vpop.permute.xlu0 %3228
    %3230 = vrot.lane.b32.xlu0 %v299, 24
    %v3231 = vpop.permute.xlu0 %3230
    %3232 = vrot.lane.b32.xlu0 %v304, 24
    %v3233 = vpop.permute.xlu0 %3232
    %3234 = vrot.lane.b32.xlu0 %v309, 24
    %v3235 = vpop.permute.xlu0 %3234
    %3236 = vrot.lane.b32.xlu0 %v314, 24
    %v3237 = vpop.permute.xlu0 %3236
    %3238 = vrot.lane.b32.xlu0 %v319, 24
    %v3239 = vpop.permute.xlu0 %3238
    %v3248 = vmul.f32 %v3187, %v3225
    %v3249 = vmul.f32 %v3191, %v3227
    %v3250 = vmul.f32 %v3195, %v3229
    %v3251 = vmul.f32 %v3199, %v3231
    %v3252 = vmul.f32 %v3203, %v3233
    %v3253 = vmul.f32 %v3207, %v3235
    %v3254 = vmul.f32 %v3211, %v3237
    %v3255 = vmul.f32 %v3215, %v3239
    %3264 = vrot.lane.b32.xlu0 %v3248, 104
    %v3265 = vpop.permute.xlu0 %3264
    %3266 = vrot.lane.b32.xlu0 %v3249, 104
    %v3267 = vpop.permute.xlu0 %3266
    %3268 = vrot.lane.b32.xlu0 %v3250, 104
    %v3269 = vpop.permute.xlu0 %3268
    %3270 = vrot.lane.b32.xlu0 %v3251, 104
    %v3271 = vpop.permute.xlu0 %3270
    %3272 = vrot.lane.b32.xlu0 %v3252, 104
    %v3273 = vpop.permute.xlu0 %3272
    %3274 = vrot.lane.b32.xlu0 %v3253, 104
    %v3275 = vpop.permute.xlu0 %3274
    %3276 = vrot.lane.b32.xlu0 %v3254, 104
    %v3277 = vpop.permute.xlu0 %3276
    %3278 = vrot.lane.b32.xlu0 %v3255, 104
    %v3279 = vpop.permute.xlu0 %3278
    %v3288 = vsel %vm564, %v3265, 0.0
    %3289 = vadd.xlane.f32.xlu0 %v3288
    %v3290 = vpop.xlane.xlu0 %3289
    %v3291 = vsel %vm564, %v3267, 0.0
    %3292 = vadd.xlane.f32.xlu0 %v3291
    %v3293 = vpop.xlane.xlu0 %3292
    %v3294 = vsel %vm564, %v3269, 0.0
    %3295 = vadd.xlane.f32.xlu0 %v3294
    %v3296 = vpop.xlane.xlu0 %3295
    %v3297 = vsel %vm564, %v3271, 0.0
    %3298 = vadd.xlane.f32.xlu0 %v3297
    %v3299 = vpop.xlane.xlu0 %3298
    %v3300 = vsel %vm564, %v3273, 0.0
    %3301 = vadd.xlane.f32.xlu0 %v3300
    %v3302 = vpop.xlane.xlu0 %3301
    %v3303 = vsel %vm564, %v3275, 0.0
    %3304 = vadd.xlane.f32.xlu0 %v3303
    %v3305 = vpop.xlane.xlu0 %3304
    %v3306 = vsel %vm564, %v3277, 0.0
    %3307 = vadd.xlane.f32.xlu0 %v3306
    %v3308 = vpop.xlane.xlu0 %3307
    %v3309 = vsel %vm564, %v3279, 0.0
    %3310 = vadd.xlane.f32.xlu0 %v3309
    %v3311 = vpop.xlane.xlu0 %3310
    %v3320 = vlaneseq
    %v3321 = vshrl.u32 %v3320, 7
    %v3322 = vsub.s32 %v747, %v3321
    %v3323 = vrot.slane %v3290, %v3322
    %v3324 = vlaneseq
    %v3325 = vshrl.u32 %v3324, 7
    %v3326 = vsub.s32 %v747, %v3325
    %v3327 = vrot.slane %v3293, %v3326
    %v3328 = vlaneseq
    %v3329 = vshrl.u32 %v3328, 7
    %v3330 = vsub.s32 %v747, %v3329
    %v3331 = vrot.slane %v3296, %v3330
    %v3332 = vlaneseq
    %v3333 = vshrl.u32 %v3332, 7
    %v3334 = vsub.s32 %v747, %v3333
    %v3335 = vrot.slane %v3299, %v3334
    %v3336 = vlaneseq
    %v3337 = vshrl.u32 %v3336, 7
    %v3338 = vsub.s32 %v747, %v3337
    %v3339 = vrot.slane %v3302, %v3338
    %v3340 = vlaneseq
    %v3341 = vshrl.u32 %v3340, 7
    %v3342 = vsub.s32 %v747, %v3341
    %v3343 = vrot.slane %v3305, %v3342
    %v3344 = vlaneseq
    %v3345 = vshrl.u32 %v3344, 7
    %v3346 = vsub.s32 %v747, %v3345
    %v3347 = vrot.slane %v3308, %v3346
    %v3348 = vlaneseq
    %v3349 = vshrl.u32 %v3348, 7
    %v3350 = vsub.s32 %v747, %v3349
    %v3351 = vrot.slane %v3311, %v3350
    %v3352 = vsel %vm780, %v3327, %v3323
    %v3353 = vsel %vm782, %v3331, %v3352
    %v3354 = vsel %vm784, %v3335, %v3353
    %v3355 = vsel %vm786, %v3339, %v3354
    %v3356 = vsel %vm788, %v3343, %v3355
    %v3357 = vsel %vm790, %v3347, %v3356
    %v3358 = vsel %vm792, %v3351, %v3357
    %v3360 = vmul.f32 %v3119, %v3358
    %v3361 = vadd.f32 %v2956, %v3360
    %v3362 = vadd.f32 %v3361, %v1001
    %v3363 = vsel %vm564, %v3362, -inf
    %3364 = vmax.xlane.f32.xlu0 %v3363
    %v3365 = vpop.xlane.xlu0 %3364
    %v3366 = vsub.f32 %v3362, %v3365
    %v3367 = vmul.f32 %v3366, 1.442695
    %v3368 = vpow.pop %v3367
    %v3369 = vsel %vm564, %v3368, 0.0
    %3370 = vadd.xlane.f32.xlu0 %v3369
    %v3371 = vpop.xlane.xlu0 %3370
    %v3372 = vrcp.pop %v3371
    %v3373 = vmul.f32 %v3368, %v3372
    %v3374 = vlaneseq
    %v3375 = vshrl.u32 %v3374, 7
    %v3376 = vsub.s32 0, %v3375
    %v3377 = vrot.slane %v3373, %v3376
    %3379 = vbcast.lane.b32.xlu0 %v3377, 256
    %v3380 = vpop.permute.xlu0 %3379
    %v3381 = vlaneseq
    %v3382 = vshrl.u32 %v3381, 7
    %v3383 = vsub.s32 1, %v3382
    %v3384 = vrot.slane %v3373, %v3383
    %3386 = vbcast.lane.b32.xlu0 %v3384, 256
    %v3387 = vpop.permute.xlu0 %3386
    %v3388 = vlaneseq
    %v3389 = vshrl.u32 %v3388, 7
    %v3390 = vsub.s32 2, %v3389
    %v3391 = vrot.slane %v3373, %v3390
    %3393 = vbcast.lane.b32.xlu0 %v3391, 256
    %v3394 = vpop.permute.xlu0 %3393
    %v3395 = vlaneseq
    %v3396 = vshrl.u32 %v3395, 7
    %v3397 = vsub.s32 3, %v3396
    %v3398 = vrot.slane %v3373, %v3397
    %3400 = vbcast.lane.b32.xlu0 %v3398, 256
    %v3401 = vpop.permute.xlu0 %3400
    %v3402 = vlaneseq
    %v3403 = vshrl.u32 %v3402, 7
    %v3404 = vsub.s32 4, %v3403
    %v3405 = vrot.slane %v3373, %v3404
    %3407 = vbcast.lane.b32.xlu0 %v3405, 256
    %v3408 = vpop.permute.xlu0 %3407
    %v3409 = vlaneseq
    %v3410 = vshrl.u32 %v3409, 7
    %v3411 = vsub.s32 5, %v3410
    %v3412 = vrot.slane %v3373, %v3411
    %3414 = vbcast.lane.b32.xlu0 %v3412, 256
    %v3415 = vpop.permute.xlu0 %3414
    %v3416 = vlaneseq
    %v3417 = vshrl.u32 %v3416, 7
    %v3418 = vsub.s32 6, %v3417
    %v3419 = vrot.slane %v3373, %v3418
    %3421 = vbcast.lane.b32.xlu0 %v3419, 256
    %v3422 = vpop.permute.xlu0 %3421
    %v3423 = vlaneseq
    %v3424 = vshrl.u32 %v3423, 7
    %v3425 = vsub.s32 7, %v3424
    %v3426 = vrot.slane %v3373, %v3425
    %3428 = vbcast.lane.b32.xlu0 %v3426, 256
    %v3429 = vpop.permute.xlu0 %3428
    %v3430 = vmul.f32 %v3380, %v392
    %v3431 = vmul.f32 %v3387, %v397
    %v3432 = vmul.f32 %v3394, %v402
    %v3433 = vmul.f32 %v3401, %v407
    %v3434 = vmul.f32 %v3408, %v412
    %v3435 = vmul.f32 %v3415, %v417
    %v3436 = vmul.f32 %v3422, %v422
    %v3437 = vmul.f32 %v3429, %v427
    %v3438 = vsel %vm564, %v3430, 0.0
    %v3439 = vrot.slane %v3438, 4
    %v3440 = vadd.f32 %v3438, %v3439
    %v3441 = vrot.slane %v3440, 2
    %v3442 = vadd.f32 %v3440, %v3441
    %v3443 = vrot.slane %v3442, 1
    %v3444 = vadd.f32 %v3442, %v3443
    %v3445 = vsel %vm564, %v3431, 0.0
    %v3446 = vrot.slane %v3445, 4
    %v3447 = vadd.f32 %v3445, %v3446
    %v3448 = vrot.slane %v3447, 2
    %v3449 = vadd.f32 %v3447, %v3448
    %v3450 = vrot.slane %v3449, 1
    %v3451 = vadd.f32 %v3449, %v3450
    %v3452 = vsel %vm564, %v3432, 0.0
    %v3453 = vrot.slane %v3452, 4
    %v3454 = vadd.f32 %v3452, %v3453
    %v3455 = vrot.slane %v3454, 2
    %v3456 = vadd.f32 %v3454, %v3455
    %v3457 = vrot.slane %v3456, 1
    %v3458 = vadd.f32 %v3456, %v3457
    %v3459 = vsel %vm564, %v3433, 0.0
    %v3460 = vrot.slane %v3459, 4
    %v3461 = vadd.f32 %v3459, %v3460
    %v3462 = vrot.slane %v3461, 2
    %v3463 = vadd.f32 %v3461, %v3462
    %v3464 = vrot.slane %v3463, 1
    %v3465 = vadd.f32 %v3463, %v3464
    %v3466 = vsel %vm564, %v3434, 0.0
    %v3467 = vrot.slane %v3466, 4
    %v3468 = vadd.f32 %v3466, %v3467
    %v3469 = vrot.slane %v3468, 2
    %v3470 = vadd.f32 %v3468, %v3469
    %v3471 = vrot.slane %v3470, 1
    %v3472 = vadd.f32 %v3470, %v3471
    %v3473 = vsel %vm564, %v3435, 0.0
    %v3474 = vrot.slane %v3473, 4
    %v3475 = vadd.f32 %v3473, %v3474
    %v3476 = vrot.slane %v3475, 2
    %v3477 = vadd.f32 %v3475, %v3476
    %v3478 = vrot.slane %v3477, 1
    %v3479 = vadd.f32 %v3477, %v3478
    %v3480 = vsel %vm564, %v3436, 0.0
    %v3481 = vrot.slane %v3480, 4
    %v3482 = vadd.f32 %v3480, %v3481
    %v3483 = vrot.slane %v3482, 2
    %v3484 = vadd.f32 %v3482, %v3483
    %v3485 = vrot.slane %v3484, 1
    %v3486 = vadd.f32 %v3484, %v3485
    %v3487 = vsel %vm564, %v3437, 0.0
    %v3488 = vrot.slane %v3487, 4
    %v3489 = vadd.f32 %v3487, %v3488
    %v3490 = vrot.slane %v3489, 2
    %v3491 = vadd.f32 %v3489, %v3490
    %v3492 = vrot.slane %v3491, 1
    %v3493 = vadd.f32 %v3491, %v3492
    %s3494 = scalar_lea.vmem %s10, 24
    %v3495 = vld [vmem:[%s3494] sm:$0x1]
    %s3497 = vtos %v3495
    %v3498 = vstv %s3497
    %v3500 = vmul.f32 %v3498, %v521
    %v3501 = vadd.f32 %v3500, 0.0
    %v3502 = vld [vmem:[%s3494 + $0x1] sm:$0x1]
    %s3504 = vtos %v3502
    %v3505 = vstv %s3504
    %v3507 = vmul.f32 %v3505, %v526
    %v3508 = vadd.f32 %v3501, %v3507
    %v3509 = vld [vmem:[%s3494 + $0x2] sm:$0x1]
    %s3511 = vtos %v3509
    %v3512 = vstv %s3511
    %v3514 = vmul.f32 %v3512, %v531
    %v3515 = vadd.f32 %v3508, %v3514
    %v3516 = vld [vmem:[%s3494 + $0x3] sm:$0x1]
    %s3518 = vtos %v3516
    %v3519 = vstv %s3518
    %v3521 = vmul.f32 %v3519, %v536
    %v3522 = vadd.f32 %v3515, %v3521
    %v3523 = vld [vmem:[%s3494 + $0x4] sm:$0x1]
    %s3525 = vtos %v3523
    %v3526 = vstv %s3525
    %v3528 = vmul.f32 %v3526, %v541
    %v3529 = vadd.f32 %v3522, %v3528
    %v3530 = vld [vmem:[%s3494 + $0x5] sm:$0x1]
    %s3532 = vtos %v3530
    %v3533 = vstv %s3532
    %v3535 = vmul.f32 %v3533, %v546
    %v3536 = vadd.f32 %v3529, %v3535
    %v3537 = vld [vmem:[%s3494 + $0x6] sm:$0x1]
    %s3539 = vtos %v3537
    %v3540 = vstv %s3539
    %v3542 = vmul.f32 %v3540, %v551
    %v3543 = vadd.f32 %v3536, %v3542
    %v3544 = vld [vmem:[%s3494 + $0x7] sm:$0x1]
    %s3546 = vtos %v3544
    %v3547 = vstv %s3546
    %v3549 = vmul.f32 %v3547, %v556
    %v3550 = vadd.f32 %v3543, %v3549
    %v3551 = vld [vmem:[%s11 + $0x3] sm:$0x1]
    %s3553 = vtos %v3551
    %v3554 = vstv %s3553
    %v3556 = vadd.f32 %v3550, %v3554
    %v3557 = vxor.u32 %v3556, 2147483648
    %v3558 = vmul.f32 %v3557, 1.442695
    %v3559 = vpow.pop %v3558
    %v3560 = vadd.f32 %v3559, 1.0
    %v3561 = vrcp.pop %v3560
    %v3562 = vmul.f32 1.0, %v3561
    %v3571 = vsel %vm780, %v3451, %v3444
    %v3572 = vsel %vm782, %v3458, %v3571
    %v3573 = vsel %vm784, %v3465, %v3572
    %v3574 = vsel %vm786, %v3472, %v3573
    %v3575 = vsel %vm788, %v3479, %v3574
    %v3576 = vsel %vm790, %v3486, %v3575
    %v3577 = vsel %vm792, %v3493, %v3576
    %v3579 = vmul.f32 %v3562, %v3577
    %3580 = vrot.lane.b32.xlu0 %v2876, 40
    %v3581 = vpop.permute.xlu0 %3580
    %v3584 = vsel %vm564, %v3373, 0
    %3586 = vmatprep.subr.mxu0 0.0
    %3587 = vmatpush1.msra.mxu0 %v3581
    %3588 = vmatprep.subr.mxu0 0.0
    %3589 = vmatpush1.msra.mxu0 0.0
    %3590 = vmatprep.subr.mxu0 0.0
    %3591 = vmatpush1.msra.mxu0 0.0
    %3592 = vmatprep.subr.mxu0 0.0
    %3593 = vmatpush1.msra.mxu0 0.0
    %3594 = vmatprep.subr.mxu0 0.0
    %3595 = vmatpush1.msra.mxu0 0.0
    %3596 = vmatprep.subr.mxu0 0.0
    %3597 = vmatpush1.msra.mxu0 0.0
    %3598 = vmatprep.subr.mxu0 0.0
    %3599 = vmatpush1.msra.mxu0 0.0
    %3600 = vmatprep.subr.mxu0 0.0
    %3601 = vmatpush1.msra.mxu0 0.0
    %3602 = vmatprep.subr.mxu0 0.0
    %3603 = vmatpush1.msra.mxu0 0.0
    %3604 = vmatprep.subr.mxu0 0.0
    %3605 = vmatpush1.msra.mxu0 0.0
    %3606 = vmatprep.subr.mxu0 0.0
    %3607 = vmatpush1.msra.mxu0 0.0
    %3608 = vmatprep.subr.mxu0 0.0
    %3609 = vmatpush1.msra.mxu0 0.0
    %3610 = vmatprep.subr.mxu0 0.0
    %3611 = vmatpush1.msra.mxu0 0.0
    %3612 = vmatprep.subr.mxu0 0.0
    %3613 = vmatpush1.msra.mxu0 0.0
    %3614 = vmatprep.subr.mxu0 0.0
    %3615 = vmatpush1.msra.mxu0 0.0
    %3616 = vmatprep.subr.mxu0 0.0
    %3617 = vmatpush1.msra.mxu0 0.0
    %3618 = vmatprep.subr.mxu0 0.0
    %3619 = vmatpush1.msra.mxu0 0.0
    %3620 = vmatprep.subr.mxu0 0.0
    %3621 = vmatpush1.msra.mxu0 0.0
    %3622 = vmatprep.subr.mxu0 0.0
    %3623 = vmatpush1.msra.mxu0 0.0
    %3624 = vmatprep.subr.mxu0 0.0
    %3625 = vmatpush1.msra.mxu0 0.0
    %3626 = vmatprep.subr.mxu0 0.0
    %3627 = vmatpush1.msra.mxu0 0.0
    %3628 = vmatprep.subr.mxu0 0.0
    %3629 = vmatpush1.msra.mxu0 0.0
    %3630 = vmatprep.subr.mxu0 0.0
    %3631 = vmatpush1.msra.mxu0 0.0
    %3632 = vmatprep.subr.mxu0 0.0
    %3633 = vmatpush1.msra.mxu0 0.0
    %3634 = vmatprep.subr.mxu0 0.0
    %3635 = vmatpush1.msra.mxu0 0.0
    %3636 = vmatprep.subr.mxu0 0.0
    %3637 = vmatpush1.msra.mxu0 0.0
    %3638 = vmatprep.subr.mxu0 0.0
    %3639 = vmatpush1.msra.mxu0 0.0
    %3640 = vmatprep.subr.mxu0 0.0
    %3641 = vmatpush1.msra.mxu0 0.0
    %3642 = vmatprep.subr.mxu0 0.0
    %3643 = vmatpush1.msra.mxu0 0.0
    %3644 = vmatprep.subr.mxu0 0.0
    %3645 = vmatpush1.msra.mxu0 0.0
    %3646 = vmatprep.subr.mxu0 0.0
    %3647 = vmatpush1.msra.mxu0 0.0
    %3648 = vmatprep.subr.mxu0 0.0
    %3649 = vmatpush1.msra.mxu0 0.0
    %3650 = vmatprep.mubr.f32.mxu0 0.0
    %3651 = vmatmul.mubr.f32.gmra.mrb[0].mxu0 %v3584
    %v3652 = vpop.f32.mrb[0].mxu0
    %v3653 = vadd.f32 %v3579, %v3652
    %v3654 = vpop.f32.mrb[0].mxu0
    %3655 = vdwg.mxu0
    %3657 = vrot.lane.b32.xlu0 %v3653, 24
    %v3658 = vpop.permute.xlu0 %3657
    %vm3660 = vcmask 261312
    %3661 = vst.msk [vmem:[#allocation3] sm:$0xff] %vm3660, %v3658
    %s3662 = scalar_lea.vmem %s2, 64
    %v3663 = vld [vmem:[%s3662] sm:$0xff]
    %v3664 = vld [vmem:[%s3662 + $0x8] sm:$0xff]
    %v3665 = vld [vmem:[%s3662 + $0x10] sm:$0xff]
    %v3666 = vld [vmem:[%s3662 + $0x18] sm:$0xff]
    %v3667 = vld [vmem:[%s3662 + $0x20] sm:$0xff]
    %v3668 = vld [vmem:[%s3662 + $0x28] sm:$0xff]
    %v3669 = vld [vmem:[%s3662 + $0x30] sm:$0xff]
    %v3670 = vld [vmem:[%s3662 + $0x38] sm:$0xff]
    %s3671 = scalar_lea.vmem %s3, 64
    %v3672 = vld [vmem:[%s3671] sm:$0xff]
    %v3673 = vld [vmem:[%s3671 + $0x8] sm:$0xff]
    %v3674 = vld [vmem:[%s3671 + $0x10] sm:$0xff]
    %v3675 = vld [vmem:[%s3671 + $0x18] sm:$0xff]
    %v3676 = vld [vmem:[%s3671 + $0x20] sm:$0xff]
    %v3677 = vld [vmem:[%s3671 + $0x28] sm:$0xff]
    %v3678 = vld [vmem:[%s3671 + $0x30] sm:$0xff]
    %v3679 = vld [vmem:[%s3671 + $0x38] sm:$0xff]
    %v3681 = vsel %vm188, %v3663, 0
    %v3684 = vsel %vm188, %v3664, 0
    %v3687 = vsel %vm188, %v3665, 0
    %v3690 = vsel %vm188, %v3666, 0
    %v3693 = vsel %vm188, %v3667, 0
    %v3696 = vsel %vm188, %v3668, 0
    %v3699 = vsel %vm188, %v3669, 0
    %v3702 = vsel %vm188, %v3670, 0
    %3704 = vmatprep.subr.mxu0 0.0
    %3705 = vmatpush1.msra.mxu0 %v215
    %3706 = vmatprep.subr.mxu0 0.0
    %3707 = vmatpush1.msra.mxu0 0.0
    %3708 = vmatprep.subr.mxu0 0.0
    %3709 = vmatpush1.msra.mxu0 0.0
    %3710 = vmatprep.subr.mxu0 0.0
    %3711 = vmatpush1.msra.mxu0 0.0
    %3712 = vmatprep.subr.mxu0 0.0
    %3713 = vmatpush1.msra.mxu0 0.0
    %3714 = vmatprep.subr.mxu0 0.0
    %3715 = vmatpush1.msra.mxu0 0.0
    %3716 = vmatprep.subr.mxu0 0.0
    %3717 = vmatpush1.msra.mxu0 0.0
    %3718 = vmatprep.subr.mxu0 0.0
    %3719 = vmatpush1.msra.mxu0 0.0
    %3720 = vmatprep.subr.mxu0 0.0
    %3721 = vmatpush1.msra.mxu0 0.0
    %3722 = vmatprep.subr.mxu0 0.0
    %3723 = vmatpush1.msra.mxu0 0.0
    %3724 = vmatprep.subr.mxu0 0.0
    %3725 = vmatpush1.msra.mxu0 0.0
    %3726 = vmatprep.subr.mxu0 0.0
    %3727 = vmatpush1.msra.mxu0 0.0
    %3728 = vmatprep.subr.mxu0 0.0
    %3729 = vmatpush1.msra.mxu0 0.0
    %3730 = vmatprep.subr.mxu0 0.0
    %3731 = vmatpush1.msra.mxu0 0.0
    %3732 = vmatprep.subr.mxu0 0.0
    %3733 = vmatpush1.msra.mxu0 0.0
    %3734 = vmatprep.subr.mxu0 0.0
    %3735 = vmatpush1.msra.mxu0 0.0
    %3736 = vmatprep.subr.mxu0 0.0
    %3737 = vmatpush1.msra.mxu0 0.0
    %3738 = vmatprep.subr.mxu0 0.0
    %3739 = vmatpush1.msra.mxu0 0.0
    %3740 = vmatprep.subr.mxu0 0.0
    %3741 = vmatpush1.msra.mxu0 0.0
    %3742 = vmatprep.subr.mxu0 0.0
    %3743 = vmatpush1.msra.mxu0 0.0
    %3744 = vmatprep.subr.mxu0 0.0
    %3745 = vmatpush1.msra.mxu0 0.0
    %3746 = vmatprep.subr.mxu0 0.0
    %3747 = vmatpush1.msra.mxu0 0.0
    %3748 = vmatprep.subr.mxu0 0.0
    %3749 = vmatpush1.msra.mxu0 0.0
    %3750 = vmatprep.subr.mxu0 0.0
    %3751 = vmatpush1.msra.mxu0 0.0
    %3752 = vmatprep.subr.mxu0 0.0
    %3753 = vmatpush1.msra.mxu0 0.0
    %3754 = vmatprep.subr.mxu0 0.0
    %3755 = vmatpush1.msra.mxu0 0.0
    %3756 = vmatprep.subr.mxu0 0.0
    %3757 = vmatpush1.msra.mxu0 0.0
    %3758 = vmatprep.subr.mxu0 0.0
    %3759 = vmatpush1.msra.mxu0 0.0
    %3760 = vmatprep.subr.mxu0 0.0
    %3761 = vmatpush1.msra.mxu0 0.0
    %3762 = vmatprep.subr.mxu0 0.0
    %3763 = vmatpush1.msra.mxu0 0.0
    %3764 = vmatprep.subr.mxu0 0.0
    %3765 = vmatpush1.msra.mxu0 0.0
    %3766 = vmatprep.subr.mxu0 0.0
    %3767 = vmatpush1.msra.mxu0 0.0
    %3768 = vmatprep.mubr.f32.mxu0 0.0
    %3769 = vmatmul.mubr.f32.gmra.mrb[0].mxu0 %v3681
    %v3770 = vpop.f32.mrb[0].mxu0
    %v3771 = vadd.f32 0.0, %v3770
    %v3772 = vpop.f32.mrb[0].mxu0
    %3773 = vmatprep.mubr.f32.mxu0 0.0
    %3774 = vmatmul.mubr.f32.gmra.mrb[0].mxu0 %v3684
    %v3775 = vpop.f32.mrb[0].mxu0
    %v3776 = vadd.f32 0.0, %v3775
    %v3777 = vpop.f32.mrb[0].mxu0
    %3778 = vmatprep.mubr.f32.mxu0 0.0
    %3779 = vmatmul.mubr.f32.gmra.mrb[0].mxu0 %v3687
    %v3780 = vpop.f32.mrb[0].mxu0
    %v3781 = vadd.f32 0.0, %v3780
    %v3782 = vpop.f32.mrb[0].mxu0
    %3783 = vmatprep.mubr.f32.mxu0 0.0
    %3784 = vmatmul.mubr.f32.gmra.mrb[0].mxu0 %v3690
    %v3785 = vpop.f32.mrb[0].mxu0
    %v3786 = vadd.f32 0.0, %v3785
    %v3787 = vpop.f32.mrb[0].mxu0
    %3788 = vmatprep.mubr.f32.mxu0 0.0
    %3789 = vmatmul.mubr.f32.gmra.mrb[0].mxu0 %v3693
    %v3790 = vpop.f32.mrb[0].mxu0
    %v3791 = vadd.f32 0.0, %v3790
    %v3792 = vpop.f32.mrb[0].mxu0
    %3793 = vmatprep.mubr.f32.mxu0 0.0
    %3794 = vmatmul.mubr.f32.gmra.mrb[0].mxu0 %v3696
    %v3795 = vpop.f32.mrb[0].mxu0
    %v3796 = vadd.f32 0.0, %v3795
    %v3797 = vpop.f32.mrb[0].mxu0
    %3798 = vmatprep.mubr.f32.mxu0 0.0
    %3799 = vmatmul.mubr.f32.gmra.mrb[0].mxu0 %v3699
    %v3800 = vpop.f32.mrb[0].mxu0
    %v3801 = vadd.f32 0.0, %v3800
    %v3802 = vpop.f32.mrb[0].mxu0
    %3803 = vmatprep.mubr.f32.mxu0 0.0
    %3804 = vmatmul.mubr.f32.gmra.mrb[0].mxu0 %v3702
    %v3805 = vpop.f32.mrb[0].mxu0
    %v3806 = vadd.f32 0.0, %v3805
    %v3807 = vpop.f32.mrb[0].mxu0
    %3808 = vdwg.mxu0
    %3809 = vmatprep.subr.mxu0 0.0
    %3810 = vmatpush1.msra.mxu0 %v323
    %3811 = vmatprep.subr.mxu0 0.0
    %3812 = vmatpush1.msra.mxu0 0.0
    %3813 = vmatprep.subr.mxu0 0.0
    %3814 = vmatpush1.msra.mxu0 0.0
    %3815 = vmatprep.subr.mxu0 0.0
    %3816 = vmatpush1.msra.mxu0 0.0
    %3817 = vmatprep.subr.mxu0 0.0
    %3818 = vmatpush1.msra.mxu0 0.0
    %3819 = vmatprep.subr.mxu0 0.0
    %3820 = vmatpush1.msra.mxu0 0.0
    %3821 = vmatprep.subr.mxu0 0.0
    %3822 = vmatpush1.msra.mxu0 0.0
    %3823 = vmatprep.subr.mxu0 0.0
    %3824 = vmatpush1.msra.mxu0 0.0
    %3825 = vmatprep.subr.mxu0 0.0
    %3826 = vmatpush1.msra.mxu0 0.0
    %3827 = vmatprep.subr.mxu0 0.0
    %3828 = vmatpush1.msra.mxu0 0.0
    %3829 = vmatprep.subr.mxu0 0.0
    %3830 = vmatpush1.msra.mxu0 0.0
    %3831 = vmatprep.subr.mxu0 0.0
    %3832 = vmatpush1.msra.mxu0 0.0
    %3833 = vmatprep.subr.mxu0 0.0
    %3834 = vmatpush1.msra.mxu0 0.0
    %3835 = vmatprep.subr.mxu0 0.0
    %3836 = vmatpush1.msra.mxu0 0.0
    %3837 = vmatprep.subr.mxu0 0.0
    %3838 = vmatpush1.msra.mxu0 0.0
    %3839 = vmatprep.subr.mxu0 0.0
    %3840 = vmatpush1.msra.mxu0 0.0
    %3841 = vmatprep.subr.mxu0 0.0
    %3842 = vmatpush1.msra.mxu0 0.0
    %3843 = vmatprep.subr.mxu0 0.0
    %3844 = vmatpush1.msra.mxu0 0.0
    %3845 = vmatprep.subr.mxu0 0.0
    %3846 = vmatpush1.msra.mxu0 0.0
    %3847 = vmatprep.subr.mxu0 0.0
    %3848 = vmatpush1.msra.mxu0 0.0
    %3849 = vmatprep.subr.mxu0 0.0
    %3850 = vmatpush1.msra.mxu0 0.0
    %3851 = vmatprep.subr.mxu0 0.0
    %3852 = vmatpush1.msra.mxu0 0.0
    %3853 = vmatprep.subr.mxu0 0.0
    %3854 = vmatpush1.msra.mxu0 0.0
    %3855 = vmatprep.subr.mxu0 0.0
    %3856 = vmatpush1.msra.mxu0 0.0
    %3857 = vmatprep.subr.mxu0 0.0
    %3858 = vmatpush1.msra.mxu0 0.0
    %3859 = vmatprep.subr.mxu0 0.0
    %3860 = vmatpush1.msra.mxu0 0.0
    %3861 = vmatprep.subr.mxu0 0.0
    %3862 = vmatpush1.msra.mxu0 0.0
    %3863 = vmatprep.subr.mxu0 0.0
    %3864 = vmatpush1.msra.mxu0 0.0
    %3865 = vmatprep.subr.mxu0 0.0
    %3866 = vmatpush1.msra.mxu0 0.0
    %3867 = vmatprep.subr.mxu0 0.0
    %3868 = vmatpush1.msra.mxu0 0.0
    %3869 = vmatprep.subr.mxu0 0.0
    %3870 = vmatpush1.msra.mxu0 0.0
    %3871 = vmatprep.subr.mxu0 0.0
    %3872 = vmatpush1.msra.mxu0 0.0
    %3873 = vmatprep.mubr.f32.mxu0 0.0
    %3874 = vmatmul.mubr.f32.gmra.mrb[0].mxu0 %v3681
    %v3875 = vpop.f32.mrb[0].mxu0
    %v3876 = vadd.f32 0.0, %v3875
    %v3877 = vpop.f32.mrb[0].mxu0
    %3878 = vmatprep.mubr.f32.mxu0 0.0
    %3879 = vmatmul.mubr.f32.gmra.mrb[0].mxu0 %v3684
    %v3880 = vpop.f32.mrb[0].mxu0
    %v3881 = vadd.f32 0.0, %v3880
    %v3882 = vpop.f32.mrb[0].mxu0
    %3883 = vmatprep.mubr.f32.mxu0 0.0
    %3884 = vmatmul.mubr.f32.gmra.mrb[0].mxu0 %v3687
    %v3885 = vpop.f32.mrb[0].mxu0
    %v3886 = vadd.f32 0.0, %v3885
    %v3887 = vpop.f32.mrb[0].mxu0
    %3888 = vmatprep.mubr.f32.mxu0 0.0
    %3889 = vmatmul.mubr.f32.gmra.mrb[0].mxu0 %v3690
    %v3890 = vpop.f32.mrb[0].mxu0
    %v3891 = vadd.f32 0.0, %v3890
    %v3892 = vpop.f32.mrb[0].mxu0
    %3893 = vmatprep.mubr.f32.mxu0 0.0
    %3894 = vmatmul.mubr.f32.gmra.mrb[0].mxu0 %v3693
    %v3895 = vpop.f32.mrb[0].mxu0
    %v3896 = vadd.f32 0.0, %v3895
    %v3897 = vpop.f32.mrb[0].mxu0
    %3898 = vmatprep.mubr.f32.mxu0 0.0
    %3899 = vmatmul.mubr.f32.gmra.mrb[0].mxu0 %v3696
    %v3900 = vpop.f32.mrb[0].mxu0
    %v3901 = vadd.f32 0.0, %v3900
    %v3902 = vpop.f32.mrb[0].mxu0
    %3903 = vmatprep.mubr.f32.mxu0 0.0
    %3904 = vmatmul.mubr.f32.gmra.mrb[0].mxu0 %v3699
    %v3905 = vpop.f32.mrb[0].mxu0
    %v3906 = vadd.f32 0.0, %v3905
    %v3907 = vpop.f32.mrb[0].mxu0
    %3908 = vmatprep.mubr.f32.mxu0 0.0
    %3909 = vmatmul.mubr.f32.gmra.mrb[0].mxu0 %v3702
    %v3910 = vpop.f32.mrb[0].mxu0
    %v3911 = vadd.f32 0.0, %v3910
    %v3912 = vpop.f32.mrb[0].mxu0
    %3913 = vdwg.mxu0
    %v3915 = vsel %vm188, %v3672, 0
    %v3918 = vsel %vm188, %v3673, 0
    %v3921 = vsel %vm188, %v3674, 0
    %v3924 = vsel %vm188, %v3675, 0
    %v3927 = vsel %vm188, %v3676, 0
    %v3930 = vsel %vm188, %v3677, 0
    %v3933 = vsel %vm188, %v3678, 0
    %v3936 = vsel %vm188, %v3679, 0
    %3938 = vmatprep.subr.mxu0 0.0
    %3939 = vmatpush1.msra.mxu0 %v323
    %3940 = vmatprep.subr.mxu0 0.0
    %3941 = vmatpush1.msra.mxu0 0.0
    %3942 = vmatprep.subr.mxu0 0.0
    %3943 = vmatpush1.msra.mxu0 0.0
    %3944 = vmatprep.subr.mxu0 0.0
    %3945 = vmatpush1.msra.mxu0 0.0
    %3946 = vmatprep.subr.mxu0 0.0
    %3947 = vmatpush1.msra.mxu0 0.0
    %3948 = vmatprep.subr.mxu0 0.0
    %3949 = vmatpush1.msra.mxu0 0.0
    %3950 = vmatprep.subr.mxu0 0.0
    %3951 = vmatpush1.msra.mxu0 0.0
    %3952 = vmatprep.subr.mxu0 0.0
    %3953 = vmatpush1.msra.mxu0 0.0
    %3954 = vmatprep.subr.mxu0 0.0
    %3955 = vmatpush1.msra.mxu0 0.0
    %3956 = vmatprep.subr.mxu0 0.0
    %3957 = vmatpush1.msra.mxu0 0.0
    %3958 = vmatprep.subr.mxu0 0.0
    %3959 = vmatpush1.msra.mxu0 0.0
    %3960 = vmatprep.subr.mxu0 0.0
    %3961 = vmatpush1.msra.mxu0 0.0
    %3962 = vmatprep.subr.mxu0 0.0
    %3963 = vmatpush1.msra.mxu0 0.0
    %3964 = vmatprep.subr.mxu0 0.0
    %3965 = vmatpush1.msra.mxu0 0.0
    %3966 = vmatprep.subr.mxu0 0.0
    %3967 = vmatpush1.msra.mxu0 0.0
    %3968 = vmatprep.subr.mxu0 0.0
    %3969 = vmatpush1.msra.mxu0 0.0
    %3970 = vmatprep.subr.mxu0 0.0
    %3971 = vmatpush1.msra.mxu0 0.0
    %3972 = vmatprep.subr.mxu0 0.0
    %3973 = vmatpush1.msra.mxu0 0.0
    %3974 = vmatprep.subr.mxu0 0.0
    %3975 = vmatpush1.msra.mxu0 0.0
    %3976 = vmatprep.subr.mxu0 0.0
    %3977 = vmatpush1.msra.mxu0 0.0
    %3978 = vmatprep.subr.mxu0 0.0
    %3979 = vmatpush1.msra.mxu0 0.0
    %3980 = vmatprep.subr.mxu0 0.0
    %3981 = vmatpush1.msra.mxu0 0.0
    %3982 = vmatprep.subr.mxu0 0.0
    %3983 = vmatpush1.msra.mxu0 0.0
    %3984 = vmatprep.subr.mxu0 0.0
    %3985 = vmatpush1.msra.mxu0 0.0
    %3986 = vmatprep.subr.mxu0 0.0
    %3987 = vmatpush1.msra.mxu0 0.0
    %3988 = vmatprep.subr.mxu0 0.0
    %3989 = vmatpush1.msra.mxu0 0.0
    %3990 = vmatprep.subr.mxu0 0.0
    %3991 = vmatpush1.msra.mxu0 0.0
    %3992 = vmatprep.subr.mxu0 0.0
    %3993 = vmatpush1.msra.mxu0 0.0
    %3994 = vmatprep.subr.mxu0 0.0
    %3995 = vmatpush1.msra.mxu0 0.0
    %3996 = vmatprep.subr.mxu0 0.0
    %3997 = vmatpush1.msra.mxu0 0.0
    %3998 = vmatprep.subr.mxu0 0.0
    %3999 = vmatpush1.msra.mxu0 0.0
    %4000 = vmatprep.subr.mxu0 0.0
    %4001 = vmatpush1.msra.mxu0 0.0
    %4002 = vmatprep.mubr.f32.mxu0 0.0
    %4003 = vmatmul.mubr.f32.gmra.mrb[0].mxu0 %v3915
    %v4004 = vpop.f32.mrb[0].mxu0
    %v4005 = vadd.f32 0.0, %v4004
    %v4006 = vpop.f32.mrb[0].mxu0
    %4007 = vmatprep.mubr.f32.mxu0 0.0
    %4008 = vmatmul.mubr.f32.gmra.mrb[0].mxu0 %v3918
    %v4009 = vpop.f32.mrb[0].mxu0
    %v4010 = vadd.f32 0.0, %v4009
    %v4011 = vpop.f32.mrb[0].mxu0
    %4012 = vmatprep.mubr.f32.mxu0 0.0
    %4013 = vmatmul.mubr.f32.gmra.mrb[0].mxu0 %v3921
    %v4014 = vpop.f32.mrb[0].mxu0
    %v4015 = vadd.f32 0.0, %v4014
    %v4016 = vpop.f32.mrb[0].mxu0
    %4017 = vmatprep.mubr.f32.mxu0 0.0
    %4018 = vmatmul.mubr.f32.gmra.mrb[0].mxu0 %v3924
    %v4019 = vpop.f32.mrb[0].mxu0
    %v4020 = vadd.f32 0.0, %v4019
    %v4021 = vpop.f32.mrb[0].mxu0
    %4022 = vmatprep.mubr.f32.mxu0 0.0
    %4023 = vmatmul.mubr.f32.gmra.mrb[0].mxu0 %v3927
    %v4024 = vpop.f32.mrb[0].mxu0
    %v4025 = vadd.f32 0.0, %v4024
    %v4026 = vpop.f32.mrb[0].mxu0
    %4027 = vmatprep.mubr.f32.mxu0 0.0
    %4028 = vmatmul.mubr.f32.gmra.mrb[0].mxu0 %v3930
    %v4029 = vpop.f32.mrb[0].mxu0
    %v4030 = vadd.f32 0.0, %v4029
    %v4031 = vpop.f32.mrb[0].mxu0
    %4032 = vmatprep.mubr.f32.mxu0 0.0
    %4033 = vmatmul.mubr.f32.gmra.mrb[0].mxu0 %v3933
    %v4034 = vpop.f32.mrb[0].mxu0
    %v4035 = vadd.f32 0.0, %v4034
    %v4036 = vpop.f32.mrb[0].mxu0
    %4037 = vmatprep.mubr.f32.mxu0 0.0
    %4038 = vmatmul.mubr.f32.gmra.mrb[0].mxu0 %v3936
    %v4039 = vpop.f32.mrb[0].mxu0
    %v4040 = vadd.f32 0.0, %v4039
    %v4041 = vpop.f32.mrb[0].mxu0
    %4042 = vdwg.mxu0
    %v4043 = vld [vmem:[%s1 + $0x1] sm:$0x1]
    %v4044 = vld [vmem:[#allocation2 + $0x8] sm:$0xff]
    %4046 = vrot.lane.b32.xlu0 %v4044, 96
    %v4047 = vpop.permute.xlu0 %4046
    %v4048 = vsel %vm564, %v4044, 0
    %v4050 = vsel %vm564, %v4047, 0
    %4052 = vmatprep.subr.mxu0 0.0
    %4053 = vmatpush1.xpose.msra.mxu0 %v4050
    %4054 = vmatprep.subr.mxu0 0.0
    %4055 = vmatpush1.xpose.msra.mxu0 0.0
    %4056 = vmatprep.subr.mxu0 0.0
    %4057 = vmatpush1.xpose.msra.mxu0 0.0
    %4058 = vmatprep.subr.mxu0 0.0
    %4059 = vmatpush1.xpose.msra.mxu0 0.0
    %4060 = vmatprep.subr.mxu0 0.0
    %4061 = vmatpush1.xpose.msra.mxu0 0.0
    %4062 = vmatprep.subr.mxu0 0.0
    %4063 = vmatpush1.xpose.msra.mxu0 0.0
    %4064 = vmatprep.subr.mxu0 0.0
    %4065 = vmatpush1.xpose.msra.mxu0 0.0
    %4066 = vmatprep.subr.mxu0 0.0
    %4067 = vmatpush1.xpose.msra.mxu0 0.0
    %4068 = vmatprep.subr.mxu0 0.0
    %4069 = vmatpush1.xpose.msra.mxu0 0.0
    %4070 = vmatprep.subr.mxu0 0.0
    %4071 = vmatpush1.xpose.msra.mxu0 0.0
    %4072 = vmatprep.subr.mxu0 0.0
    %4073 = vmatpush1.xpose.msra.mxu0 0.0
    %4074 = vmatprep.subr.mxu0 0.0
    %4075 = vmatpush1.xpose.msra.mxu0 0.0
    %4076 = vmatprep.subr.mxu0 0.0
    %4077 = vmatpush1.xpose.msra.mxu0 0.0
    %4078 = vmatprep.subr.mxu0 0.0
    %4079 = vmatpush1.xpose.msra.mxu0 0.0
    %4080 = vmatprep.subr.mxu0 0.0
    %4081 = vmatpush1.xpose.msra.mxu0 0.0
    %4082 = vmatprep.subr.mxu0 0.0
    %4083 = vmatpush1.xpose.msra.mxu0 0.0
    %4084 = vmatprep.subr.mxu0 0.0
    %4085 = vmatpush1.xpose.msra.mxu0 0.0
    %4086 = vmatprep.subr.mxu0 0.0
    %4087 = vmatpush1.xpose.msra.mxu0 0.0
    %4088 = vmatprep.subr.mxu0 0.0
    %4089 = vmatpush1.xpose.msra.mxu0 0.0
    %4090 = vmatprep.subr.mxu0 0.0
    %4091 = vmatpush1.xpose.msra.mxu0 0.0
    %4092 = vmatprep.subr.mxu0 0.0
    %4093 = vmatpush1.xpose.msra.mxu0 0.0
    %4094 = vmatprep.subr.mxu0 0.0
    %4095 = vmatpush1.xpose.msra.mxu0 0.0
    %4096 = vmatprep.subr.mxu0 0.0
    %4097 = vmatpush1.xpose.msra.mxu0 0.0
    %4098 = vmatprep.subr.mxu0 0.0
    %4099 = vmatpush1.xpose.msra.mxu0 0.0
    %4100 = vmatprep.subr.mxu0 0.0
    %4101 = vmatpush1.xpose.msra.mxu0 0.0
    %4102 = vmatprep.subr.mxu0 0.0
    %4103 = vmatpush1.xpose.msra.mxu0 0.0
    %4104 = vmatprep.subr.mxu0 0.0
    %4105 = vmatpush1.xpose.msra.mxu0 0.0
    %4106 = vmatprep.subr.mxu0 0.0
    %4107 = vmatpush1.xpose.msra.mxu0 0.0
    %4108 = vmatprep.subr.mxu0 0.0
    %4109 = vmatpush1.xpose.msra.mxu0 0.0
    %4110 = vmatprep.subr.mxu0 0.0
    %4111 = vmatpush1.xpose.msra.mxu0 0.0
    %4112 = vmatprep.subr.mxu0 0.0
    %4113 = vmatpush1.xpose.msra.mxu0 0.0
    %4114 = vmatprep.subr.mxu0 0.0
    %4115 = vmatpush1.xpose.msra.mxu0 0.0
    %4116 = vmatprep.mubr.f32.mxu0 0.0
    %4117 = vmatmul.mubr.f32.gmra.mrb[0].mxu0 %v4048
    %v4118 = vpop.f32.mrb[0].mxu0
    %v4119 = vadd.f32 0.0, %v4118
    %v4120 = vpop.f32.mrb[0].mxu0
    %4121 = vdwg.mxu0
    %v4122 = vmul.f32 %v4119, 0.35355338
    %v4123 = vld [vmem:[%s8] sm:$0x1]
    %v4124 = vld [vmem:[%s9] sm:$0x1]
    %v4125 = vlaneseq
    %v4126 = vshrl.u32 %v4125, 7
    %v4127 = vsub.s32 0, %v4126
    %v4128 = vrot.slane %v4123, %v4127
    %v4129 = vmul.f32 %v3771, %v4128
    %v4130 = vmul.f32 %v3776, %v4128
    %v4131 = vmul.f32 %v3781, %v4128
    %v4132 = vmul.f32 %v3786, %v4128
    %v4133 = vmul.f32 %v3791, %v4128
    %v4134 = vmul.f32 %v3796, %v4128
    %v4135 = vmul.f32 %v3801, %v4128
    %v4136 = vmul.f32 %v3806, %v4128
    %v4137 = vsel %vm564, %v4129, 0.0
    %4138 = vadd.xlane.f32.xlu0 %v4137
    %v4139 = vpop.xlane.xlu0 %4138
    %v4140 = vsel %vm564, %v4130, 0.0
    %4141 = vadd.xlane.f32.xlu0 %v4140
    %v4142 = vpop.xlane.xlu0 %4141
    %v4143 = vsel %vm564, %v4131, 0.0
    %4144 = vadd.xlane.f32.xlu0 %v4143
    %v4145 = vpop.xlane.xlu0 %4144
    %v4146 = vsel %vm564, %v4132, 0.0
    %4147 = vadd.xlane.f32.xlu0 %v4146
    %v4148 = vpop.xlane.xlu0 %4147
    %v4149 = vsel %vm564, %v4133, 0.0
    %4150 = vadd.xlane.f32.xlu0 %v4149
    %v4151 = vpop.xlane.xlu0 %4150
    %v4152 = vsel %vm564, %v4134, 0.0
    %4153 = vadd.xlane.f32.xlu0 %v4152
    %v4154 = vpop.xlane.xlu0 %4153
    %v4155 = vsel %vm564, %v4135, 0.0
    %4156 = vadd.xlane.f32.xlu0 %v4155
    %v4157 = vpop.xlane.xlu0 %4156
    %v4158 = vsel %vm564, %v4136, 0.0
    %4159 = vadd.xlane.f32.xlu0 %v4158
    %v4160 = vpop.xlane.xlu0 %4159
    %s4162 = vtos %v4124
    %v4163 = vstv %s4162
    %v4165 = vadd.f32 %v4139, %v4163
    %v4166 = vadd.f32 %v4142, %v4163
    %v4167 = vadd.f32 %v4145, %v4163
    %v4168 = vadd.f32 %v4148, %v4163
    %v4169 = vadd.f32 %v4151, %v4163
    %v4170 = vadd.f32 %v4154, %v4163
    %v4171 = vadd.f32 %v4157, %v4163
    %v4172 = vadd.f32 %v4160, %v4163
    %v4173 = vxor.u32 %v4165, 2147483648
    %v4174 = vxor.u32 %v4166, 2147483648
    %v4175 = vxor.u32 %v4167, 2147483648
    %v4176 = vxor.u32 %v4168, 2147483648
    %v4177 = vxor.u32 %v4169, 2147483648
    %v4178 = vxor.u32 %v4170, 2147483648
    %v4179 = vxor.u32 %v4171, 2147483648
    %v4180 = vxor.u32 %v4172, 2147483648
    %v4181 = vmul.f32 %v4173, 1.442695
    %v4182 = vpow.pop %v4181
    %v4183 = vmul.f32 %v4174, 1.442695
    %v4184 = vpow.pop %v4183
    %v4185 = vmul.f32 %v4175, 1.442695
    %v4186 = vpow.pop %v4185
    %v4187 = vmul.f32 %v4176, 1.442695
    %v4188 = vpow.pop %v4187
    %v4189 = vmul.f32 %v4177, 1.442695
    %v4190 = vpow.pop %v4189
    %v4191 = vmul.f32 %v4178, 1.442695
    %v4192 = vpow.pop %v4191
    %v4193 = vmul.f32 %v4179, 1.442695
    %v4194 = vpow.pop %v4193
    %v4195 = vmul.f32 %v4180, 1.442695
    %v4196 = vpow.pop %v4195
    %v4197 = vadd.f32 %v4182, 1.0
    %v4198 = vadd.f32 %v4184, 1.0
    %v4199 = vadd.f32 %v4186, 1.0
    %v4200 = vadd.f32 %v4188, 1.0
    %v4201 = vadd.f32 %v4190, 1.0
    %v4202 = vadd.f32 %v4192, 1.0
    %v4203 = vadd.f32 %v4194, 1.0
    %v4204 = vadd.f32 %v4196, 1.0
    %v4205 = vrcp.pop %v4197
    %v4206 = vmul.f32 1.0, %v4205
    %v4207 = vrcp.pop %v4198
    %v4208 = vmul.f32 1.0, %v4207
    %v4209 = vrcp.pop %v4199
    %v4210 = vmul.f32 1.0, %v4209
    %v4211 = vrcp.pop %v4200
    %v4212 = vmul.f32 1.0, %v4211
    %v4213 = vrcp.pop %v4201
    %v4214 = vmul.f32 1.0, %v4213
    %v4215 = vrcp.pop %v4202
    %v4216 = vmul.f32 1.0, %v4215
    %v4217 = vrcp.pop %v4203
    %v4218 = vmul.f32 1.0, %v4217
    %v4219 = vrcp.pop %v4204
    %v4220 = vmul.f32 1.0, %v4219
    %v4229 = vlaneseq
    %v4230 = vshrl.u32 %v4229, 7
    %v4231 = vsub.s32 %v747, %v4230
    %v4232 = vrot.slane %v4206, %v4231
    %v4233 = vlaneseq
    %v4234 = vshrl.u32 %v4233, 7
    %v4235 = vsub.s32 %v747, %v4234
    %v4236 = vrot.slane %v4208, %v4235
    %v4237 = vlaneseq
    %v4238 = vshrl.u32 %v4237, 7
    %v4239 = vsub.s32 %v747, %v4238
    %v4240 = vrot.slane %v4210, %v4239
    %v4241 = vlaneseq
    %v4242 = vshrl.u32 %v4241, 7
    %v4243 = vsub.s32 %v747, %v4242
    %v4244 = vrot.slane %v4212, %v4243
    %v4245 = vlaneseq
    %v4246 = vshrl.u32 %v4245, 7
    %v4247 = vsub.s32 %v747, %v4246
    %v4248 = vrot.slane %v4214, %v4247
    %v4249 = vlaneseq
    %v4250 = vshrl.u32 %v4249, 7
    %v4251 = vsub.s32 %v747, %v4250
    %v4252 = vrot.slane %v4216, %v4251
    %v4253 = vlaneseq
    %v4254 = vshrl.u32 %v4253, 7
    %v4255 = vsub.s32 %v747, %v4254
    %v4256 = vrot.slane %v4218, %v4255
    %v4257 = vlaneseq
    %v4258 = vshrl.u32 %v4257, 7
    %v4259 = vsub.s32 %v747, %v4258
    %v4260 = vrot.slane %v4220, %v4259
    %v4261 = vsel %vm780, %v4236, %v4232
    %v4262 = vsel %vm782, %v4240, %v4261
    %v4263 = vsel %vm784, %v4244, %v4262
    %v4264 = vsel %vm786, %v4248, %v4263
    %v4265 = vsel %vm788, %v4252, %v4264
    %v4266 = vsel %vm790, %v4256, %v4265
    %v4267 = vsel %vm792, %v4260, %v4266
    %4269 = vxpose.xlu0.b32.start [1/16] %v4267, 128
    %4270 = vxpose.xlu0.b32.cont [2/16] 0.0, 128
    %4271 = vxpose.xlu0.b32.cont [3/16] 0.0, 128
    %4272 = vxpose.xlu0.b32.cont [4/16] 0.0, 128
    %4273 = vxpose.xlu0.b32.cont [5/16] 0.0, 128
    %4274 = vxpose.xlu0.b32.cont [6/16] 0.0, 128
    %4275 = vxpose.xlu0.b32.cont [7/16] 0.0, 128
    %4276 = vxpose.xlu0.b32.cont [8/16] 0.0, 128
    %4277 = vxpose.xlu0.b32.cont [9/16] 0.0, 128
    %4278 = vxpose.xlu0.b32.cont [10/16] 0.0, 128
    %4279 = vxpose.xlu0.b32.cont [11/16] 0.0, 128
    %4280 = vxpose.xlu0.b32.cont [12/16] 0.0, 128
    %4281 = vxpose.xlu0.b32.cont [13/16] 0.0, 128
    %4282 = vxpose.xlu0.b32.cont [14/16] 0.0, 128
    %4283 = vxpose.xlu0.b32.cont [15/16] 0.0, 128
    %4284 = vxpose.xlu0.b32.end [16/16] 0.0, 128
    %v4285 = vpop.trf.xlu0
    %v4286 = vpop.trf.xlu0
    %v4287 = vpop.trf.xlu0
    %v4288 = vpop.trf.xlu0
    %v4289 = vpop.trf.xlu0
    %v4290 = vpop.trf.xlu0
    %v4291 = vpop.trf.xlu0
    %v4292 = vpop.trf.xlu0
    %v4293 = vpop.trf.xlu0
    %v4294 = vpop.trf.xlu0
    %v4295 = vpop.trf.xlu0
    %v4296 = vpop.trf.xlu0
    %v4297 = vpop.trf.xlu0
    %v4298 = vpop.trf.xlu0
    %v4299 = vpop.trf.xlu0
    %v4300 = vpop.trf.xlu0
    %v4301 = vcombine.high %v4044, %v4044
    %v4303 = vunpack.c.l.s4 1966171168
    %v4304 = vunpack.c.0.s8 %v4303
    %v4305 = vlaneseq
    %v4306 = vshrl.u32 %v4305, 7
    %v4307 = vsub.s32 %v4304, %v4306
    %v4308 = vrot.slane %v4044, %v4307
    %v4310 = vunpack.c.l.s4 1966171168
    %v4311 = vunpack.c.0.s8 %v4310
    %v4312 = vlaneseq
    %v4313 = vshrl.u32 %v4312, 7
    %v4314 = vsub.s32 %v4311, %v4313
    %v4315 = vrot.slane %v4301, %v4314
    %v4316 = vcombine.high %v4308, %v4308
    %v4317 = vcombine.high %v4315, %v4315
    %v4319 = vunpack.c.l.s4 1966171168
    %v4320 = vunpack.c.0.s8 %v4319
    %v4321 = vlaneseq
    %v4322 = vshrl.u32 %v4321, 7
    %v4323 = vsub.s32 %v4320, %v4322
    %v4324 = vrot.slane %v4308, %v4323
    %v4326 = vunpack.c.l.s4 1966171168
    %v4327 = vunpack.c.0.s8 %v4326
    %v4328 = vlaneseq
    %v4329 = vshrl.u32 %v4328, 7
    %v4330 = vsub.s32 %v4327, %v4329
    %v4331 = vrot.slane %v4315, %v4330
    %v4333 = vunpack.c.l.s4 1966171168
    %v4334 = vunpack.c.0.s8 %v4333
    %v4335 = vlaneseq
    %v4336 = vshrl.u32 %v4335, 7
    %v4337 = vsub.s32 %v4334, %v4336
    %v4338 = vrot.slane %v4316, %v4337
    %v4340 = vunpack.c.l.s4 1966171168
    %v4341 = vunpack.c.0.s8 %v4340
    %v4342 = vlaneseq
    %v4343 = vshrl.u32 %v4342, 7
    %v4344 = vsub.s32 %v4341, %v4343
    %v4345 = vrot.slane %v4317, %v4344
    %v4346 = vcombine.high %v4324, %v4324
    %v4347 = vcombine.high %v4331, %v4331
    %v4348 = vcombine.high %v4338, %v4338
    %v4349 = vcombine.high %v4345, %v4345
    %v4350 = vlaneseq
    %v4351 = vshrl.u32 %v4350, 7
    %v4352 = vsub.s32 0, %v4351
    %v4353 = vrot.slane %v4324, %v4352
    %v4354 = vlaneseq
    %v4355 = vshrl.u32 %v4354, 7
    %v4356 = vsub.s32 0, %v4355
    %v4357 = vrot.slane %v4338, %v4356
    %v4358 = vlaneseq
    %v4359 = vshrl.u32 %v4358, 7
    %v4360 = vsub.s32 0, %v4359
    %v4361 = vrot.slane %v4346, %v4360
    %v4362 = vlaneseq
    %v4363 = vshrl.u32 %v4362, 7
    %v4364 = vsub.s32 0, %v4363
    %v4365 = vrot.slane %v4348, %v4364
    %v4366 = vlaneseq
    %v4367 = vshrl.u32 %v4366, 7
    %v4368 = vsub.s32 0, %v4367
    %v4369 = vrot.slane %v4331, %v4368
    %v4370 = vlaneseq
    %v4371 = vshrl.u32 %v4370, 7
    %v4372 = vsub.s32 0, %v4371
    %v4373 = vrot.slane %v4345, %v4372
    %v4374 = vlaneseq
    %v4375 = vshrl.u32 %v4374, 7
    %v4376 = vsub.s32 0, %v4375
    %v4377 = vrot.slane %v4347, %v4376
    %v4378 = vlaneseq
    %v4379 = vshrl.u32 %v4378, 7
    %v4380 = vsub.s32 0, %v4379
    %v4381 = vrot.slane %v4349, %v4380
    %v4390 = vmul.f32 %v4353, %v3771
    %v4391 = vmul.f32 %v4357, %v3776
    %v4392 = vmul.f32 %v4361, %v3781
    %v4393 = vmul.f32 %v4365, %v3786
    %v4394 = vmul.f32 %v4369, %v3791
    %v4395 = vmul.f32 %v4373, %v3796
    %v4396 = vmul.f32 %v4377, %v3801
    %v4397 = vmul.f32 %v4381, %v3806
    %v4398 = vsel %vm564, %v4390, 0.0
    %4399 = vadd.xlane.f32.xlu0 %v4398
    %v4400 = vpop.xlane.xlu0 %4399
    %v4401 = vsel %vm564, %v4391, 0.0
    %4402 = vadd.xlane.f32.xlu0 %v4401
    %v4403 = vpop.xlane.xlu0 %4402
    %v4404 = vsel %vm564, %v4392, 0.0
    %4405 = vadd.xlane.f32.xlu0 %v4404
    %v4406 = vpop.xlane.xlu0 %4405
    %v4407 = vsel %vm564, %v4393, 0.0
    %4408 = vadd.xlane.f32.xlu0 %v4407
    %v4409 = vpop.xlane.xlu0 %4408
    %v4410 = vsel %vm564, %v4394, 0.0
    %4411 = vadd.xlane.f32.xlu0 %v4410
    %v4412 = vpop.xlane.xlu0 %4411
    %v4413 = vsel %vm564, %v4395, 0.0
    %4414 = vadd.xlane.f32.xlu0 %v4413
    %v4415 = vpop.xlane.xlu0 %4414
    %v4416 = vsel %vm564, %v4396, 0.0
    %4417 = vadd.xlane.f32.xlu0 %v4416
    %v4418 = vpop.xlane.xlu0 %4417
    %v4419 = vsel %vm564, %v4397, 0.0
    %4420 = vadd.xlane.f32.xlu0 %v4419
    %v4421 = vpop.xlane.xlu0 %4420
    %v4430 = vlaneseq
    %v4431 = vshrl.u32 %v4430, 7
    %v4432 = vsub.s32 %v747, %v4431
    %v4433 = vrot.slane %v4400, %v4432
    %v4434 = vlaneseq
    %v4435 = vshrl.u32 %v4434, 7
    %v4436 = vsub.s32 %v747, %v4435
    %v4437 = vrot.slane %v4403, %v4436
    %v4438 = vlaneseq
    %v4439 = vshrl.u32 %v4438, 7
    %v4440 = vsub.s32 %v747, %v4439
    %v4441 = vrot.slane %v4406, %v4440
    %v4442 = vlaneseq
    %v4443 = vshrl.u32 %v4442, 7
    %v4444 = vsub.s32 %v747, %v4443
    %v4445 = vrot.slane %v4409, %v4444
    %v4446 = vlaneseq
    %v4447 = vshrl.u32 %v4446, 7
    %v4448 = vsub.s32 %v747, %v4447
    %v4449 = vrot.slane %v4412, %v4448
    %v4450 = vlaneseq
    %v4451 = vshrl.u32 %v4450, 7
    %v4452 = vsub.s32 %v747, %v4451
    %v4453 = vrot.slane %v4415, %v4452
    %v4454 = vlaneseq
    %v4455 = vshrl.u32 %v4454, 7
    %v4456 = vsub.s32 %v747, %v4455
    %v4457 = vrot.slane %v4418, %v4456
    %v4458 = vlaneseq
    %v4459 = vshrl.u32 %v4458, 7
    %v4460 = vsub.s32 %v747, %v4459
    %v4461 = vrot.slane %v4421, %v4460
    %v4462 = vsel %vm780, %v4437, %v4433
    %v4463 = vsel %vm782, %v4441, %v4462
    %v4464 = vsel %vm784, %v4445, %v4463
    %v4465 = vsel %vm786, %v4449, %v4464
    %v4466 = vsel %vm788, %v4453, %v4465
    %v4467 = vsel %vm790, %v4457, %v4466
    %v4468 = vsel %vm792, %v4461, %v4467
    %v4470 = vmul.f32 %v4285, %v4468
    %v4471 = vadd.f32 %v4122, %v4470
    %v4472 = vlaneseq
    %v4473 = vshrl.u32 %v4472, 7
    %v4474 = vsub.s32 0, %v4473
    %v4475 = vrot.slane %v4043, %v4474
    %v4476 = vadd.f32 %v4471, %v4475
    %v4477 = vsel %vm564, %v4476, -inf
    %4478 = vmax.xlane.f32.xlu0 %v4477
    %v4479 = vpop.xlane.xlu0 %4478
    %v4480 = vsub.f32 %v4476, %v4479
    %v4481 = vmul.f32 %v4480, 1.442695
    %v4482 = vpow.pop %v4481
    %v4483 = vsel %vm564, %v4482, 0.0
    %4484 = vadd.xlane.f32.xlu0 %v4483
    %v4485 = vpop.xlane.xlu0 %4484
    %v4486 = vrcp.pop %v4485
    %v4487 = vmul.f32 %v4482, %v4486
    %v4488 = vlaneseq
    %v4489 = vshrl.u32 %v4488, 7
    %v4490 = vsub.s32 0, %v4489
    %v4491 = vrot.slane %v4487, %v4490
    %4493 = vbcast.lane.b32.xlu0 %v4491, 256
    %v4494 = vpop.permute.xlu0 %4493
    %v4495 = vlaneseq
    %v4496 = vshrl.u32 %v4495, 7
    %v4497 = vsub.s32 1, %v4496
    %v4498 = vrot.slane %v4487, %v4497
    %4500 = vbcast.lane.b32.xlu0 %v4498, 256
    %v4501 = vpop.permute.xlu0 %4500
    %v4502 = vlaneseq
    %v4503 = vshrl.u32 %v4502, 7
    %v4504 = vsub.s32 2, %v4503
    %v4505 = vrot.slane %v4487, %v4504
    %4507 = vbcast.lane.b32.xlu0 %v4505, 256
    %v4508 = vpop.permute.xlu0 %4507
    %v4509 = vlaneseq
    %v4510 = vshrl.u32 %v4509, 7
    %v4511 = vsub.s32 3, %v4510
    %v4512 = vrot.slane %v4487, %v4511
    %4514 = vbcast.lane.b32.xlu0 %v4512, 256
    %v4515 = vpop.permute.xlu0 %4514
    %v4516 = vlaneseq
    %v4517 = vshrl.u32 %v4516, 7
    %v4518 = vsub.s32 4, %v4517
    %v4519 = vrot.slane %v4487, %v4518
    %4521 = vbcast.lane.b32.xlu0 %v4519, 256
    %v4522 = vpop.permute.xlu0 %4521
    %v4523 = vlaneseq
    %v4524 = vshrl.u32 %v4523, 7
    %v4525 = vsub.s32 5, %v4524
    %v4526 = vrot.slane %v4487, %v4525
    %4528 = vbcast.lane.b32.xlu0 %v4526, 256
    %v4529 = vpop.permute.xlu0 %4528
    %v4530 = vlaneseq
    %v4531 = vshrl.u32 %v4530, 7
    %v4532 = vsub.s32 6, %v4531
    %v4533 = vrot.slane %v4487, %v4532
    %4535 = vbcast.lane.b32.xlu0 %v4533, 256
    %v4536 = vpop.permute.xlu0 %4535
    %v4537 = vlaneseq
    %v4538 = vshrl.u32 %v4537, 7
    %v4539 = vsub.s32 7, %v4538
    %v4540 = vrot.slane %v4487, %v4539
    %4542 = vbcast.lane.b32.xlu0 %v4540, 256
    %v4543 = vpop.permute.xlu0 %4542
    %v4544 = vmul.f32 %v4494, %v3876
    %v4545 = vmul.f32 %v4501, %v3881
    %v4546 = vmul.f32 %v4508, %v3886
    %v4547 = vmul.f32 %v4515, %v3891
    %v4548 = vmul.f32 %v4522, %v3896
    %v4549 = vmul.f32 %v4529, %v3901
    %v4550 = vmul.f32 %v4536, %v3906
    %v4551 = vmul.f32 %v4543, %v3911
    %v4552 = vsel %vm564, %v4544, 0.0
    %v4553 = vrot.slane %v4552, 4
    %v4554 = vadd.f32 %v4552, %v4553
    %v4555 = vrot.slane %v4554, 2
    %v4556 = vadd.f32 %v4554, %v4555
    %v4557 = vrot.slane %v4556, 1
    %v4558 = vadd.f32 %v4556, %v4557
    %v4559 = vsel %vm564, %v4545, 0.0
    %v4560 = vrot.slane %v4559, 4
    %v4561 = vadd.f32 %v4559, %v4560
    %v4562 = vrot.slane %v4561, 2
    %v4563 = vadd.f32 %v4561, %v4562
    %v4564 = vrot.slane %v4563, 1
    %v4565 = vadd.f32 %v4563, %v4564
    %v4566 = vsel %vm564, %v4546, 0.0
    %v4567 = vrot.slane %v4566, 4
    %v4568 = vadd.f32 %v4566, %v4567
    %v4569 = vrot.slane %v4568, 2
    %v4570 = vadd.f32 %v4568, %v4569
    %v4571 = vrot.slane %v4570, 1
    %v4572 = vadd.f32 %v4570, %v4571
    %v4573 = vsel %vm564, %v4547, 0.0
    %v4574 = vrot.slane %v4573, 4
    %v4575 = vadd.f32 %v4573, %v4574
    %v4576 = vrot.slane %v4575, 2
    %v4577 = vadd.f32 %v4575, %v4576
    %v4578 = vrot.slane %v4577, 1
    %v4579 = vadd.f32 %v4577, %v4578
    %v4580 = vsel %vm564, %v4548, 0.0
    %v4581 = vrot.slane %v4580, 4
    %v4582 = vadd.f32 %v4580, %v4581
    %v4583 = vrot.slane %v4582, 2
    %v4584 = vadd.f32 %v4582, %v4583
    %v4585 = vrot.slane %v4584, 1
    %v4586 = vadd.f32 %v4584, %v4585
    %v4587 = vsel %vm564, %v4549, 0.0
    %v4588 = vrot.slane %v4587, 4
    %v4589 = vadd.f32 %v4587, %v4588
    %v4590 = vrot.slane %v4589, 2
    %v4591 = vadd.f32 %v4589, %v4590
    %v4592 = vrot.slane %v4591, 1
    %v4593 = vadd.f32 %v4591, %v4592
    %v4594 = vsel %vm564, %v4550, 0.0
    %v4595 = vrot.slane %v4594, 4
    %v4596 = vadd.f32 %v4594, %v4595
    %v4597 = vrot.slane %v4596, 2
    %v4598 = vadd.f32 %v4596, %v4597
    %v4599 = vrot.slane %v4598, 1
    %v4600 = vadd.f32 %v4598, %v4599
    %v4601 = vsel %vm564, %v4551, 0.0
    %v4602 = vrot.slane %v4601, 4
    %v4603 = vadd.f32 %v4601, %v4602
    %v4604 = vrot.slane %v4603, 2
    %v4605 = vadd.f32 %v4603, %v4604
    %v4606 = vrot.slane %v4605, 1
    %v4607 = vadd.f32 %v4605, %v4606
    %v4608 = vld [vmem:[%s10] sm:$0x1]
    %s4610 = vtos %v4608
    %v4611 = vstv %s4610
    %v4613 = vmul.f32 %v4611, %v4005
    %v4614 = vadd.f32 %v4613, 0.0
    %v4615 = vld [vmem:[%s10 + $0x1] sm:$0x1]
    %s4617 = vtos %v4615
    %v4618 = vstv %s4617
    %v4620 = vmul.f32 %v4618, %v4010
    %v4621 = vadd.f32 %v4614, %v4620
    %v4622 = vld [vmem:[%s10 + $0x2] sm:$0x1]
    %s4624 = vtos %v4622
    %v4625 = vstv %s4624
    %v4627 = vmul.f32 %v4625, %v4015
    %v4628 = vadd.f32 %v4621, %v4627
    %v4629 = vld [vmem:[%s10 + $0x3] sm:$0x1]
    %s4631 = vtos %v4629
    %v4632 = vstv %s4631
    %v4634 = vmul.f32 %v4632, %v4020
    %v4635 = vadd.f32 %v4628, %v4634
    %v4636 = vld [vmem:[%s10 + $0x4] sm:$0x1]
    %s4638 = vtos %v4636
    %v4639 = vstv %s4638
    %v4641 = vmul.f32 %v4639, %v4025
    %v4642 = vadd.f32 %v4635, %v4641
    %v4643 = vld [vmem:[%s10 + $0x5] sm:$0x1]
    %s4645 = vtos %v4643
    %v4646 = vstv %s4645
    %v4648 = vmul.f32 %v4646, %v4030
    %v4649 = vadd.f32 %v4642, %v4648
    %v4650 = vld [vmem:[%s10 + $0x6] sm:$0x1]
    %s4652 = vtos %v4650
    %v4653 = vstv %s4652
    %v4655 = vmul.f32 %v4653, %v4035
    %v4656 = vadd.f32 %v4649, %v4655
    %v4657 = vld [vmem:[%s10 + $0x7] sm:$0x1]
    %s4659 = vtos %v4657
    %v4660 = vstv %s4659
    %v4662 = vmul.f32 %v4660, %v4040
    %v4663 = vadd.f32 %v4656, %v4662
    %v4664 = vld [vmem:[%s11] sm:$0x1]
    %s4666 = vtos %v4664
    %v4667 = vstv %s4666
    %v4669 = vadd.f32 %v4663, %v4667
    %v4670 = vxor.u32 %v4669, 2147483648
    %v4671 = vmul.f32 %v4670, 1.442695
    %v4672 = vpow.pop %v4671
    %v4673 = vadd.f32 %v4672, 1.0
    %v4674 = vrcp.pop %v4673
    %v4675 = vmul.f32 1.0, %v4674
    %v4684 = vsel %vm780, %v4565, %v4558
    %v4685 = vsel %vm782, %v4572, %v4684
    %v4686 = vsel %vm784, %v4579, %v4685
    %v4687 = vsel %vm786, %v4586, %v4686
    %v4688 = vsel %vm788, %v4593, %v4687
    %v4689 = vsel %vm790, %v4600, %v4688
    %v4690 = vsel %vm792, %v4607, %v4689
    %v4692 = vmul.f32 %v4675, %v4690
    %4693 = vrot.lane.b32.xlu0 %v4044, 64
    %v4694 = vpop.permute.xlu0 %4693
    %v4697 = vsel %vm564, %v4487, 0
    %4699 = vmatprep.subr.mxu0 0.0
    %4700 = vmatpush1.msra.mxu0 %v4694
    %4701 = vmatprep.subr.mxu0 0.0
    %4702 = vmatpush1.msra.mxu0 0.0
    %4703 = vmatprep.subr.mxu0 0.0
    %4704 = vmatpush1.msra.mxu0 0.0
    %4705 = vmatprep.subr.mxu0 0.0
    %4706 = vmatpush1.msra.mxu0 0.0
    %4707 = vmatprep.subr.mxu0 0.0
    %4708 = vmatpush1.msra.mxu0 0.0
    %4709 = vmatprep.subr.mxu0 0.0
    %4710 = vmatpush1.msra.mxu0 0.0
    %4711 = vmatprep.subr.mxu0 0.0
    %4712 = vmatpush1.msra.mxu0 0.0
    %4713 = vmatprep.subr.mxu0 0.0
    %4714 = vmatpush1.msra.mxu0 0.0
    %4715 = vmatprep.subr.mxu0 0.0
    %4716 = vmatpush1.msra.mxu0 0.0
    %4717 = vmatprep.subr.mxu0 0.0
    %4718 = vmatpush1.msra.mxu0 0.0
    %4719 = vmatprep.subr.mxu0 0.0
    %4720 = vmatpush1.msra.mxu0 0.0
    %4721 = vmatprep.subr.mxu0 0.0
    %4722 = vmatpush1.msra.mxu0 0.0
    %4723 = vmatprep.subr.mxu0 0.0
    %4724 = vmatpush1.msra.mxu0 0.0
    %4725 = vmatprep.subr.mxu0 0.0
    %4726 = vmatpush1.msra.mxu0 0.0
    %4727 = vmatprep.subr.mxu0 0.0
    %4728 = vmatpush1.msra.mxu0 0.0
    %4729 = vmatprep.subr.mxu0 0.0
    %4730 = vmatpush1.msra.mxu0 0.0
    %4731 = vmatprep.subr.mxu0 0.0
    %4732 = vmatpush1.msra.mxu0 0.0
    %4733 = vmatprep.subr.mxu0 0.0
    %4734 = vmatpush1.msra.mxu0 0.0
    %4735 = vmatprep.subr.mxu0 0.0
    %4736 = vmatpush1.msra.mxu0 0.0
    %4737 = vmatprep.subr.mxu0 0.0
    %4738 = vmatpush1.msra.mxu0 0.0
    %4739 = vmatprep.subr.mxu0 0.0
    %4740 = vmatpush1.msra.mxu0 0.0
    %4741 = vmatprep.subr.mxu0 0.0
    %4742 = vmatpush1.msra.mxu0 0.0
    %4743 = vmatprep.subr.mxu0 0.0
    %4744 = vmatpush1.msra.mxu0 0.0
    %4745 = vmatprep.subr.mxu0 0.0
    %4746 = vmatpush1.msra.mxu0 0.0
    %4747 = vmatprep.subr.mxu0 0.0
    %4748 = vmatpush1.msra.mxu0 0.0
    %4749 = vmatprep.subr.mxu0 0.0
    %4750 = vmatpush1.msra.mxu0 0.0
    %4751 = vmatprep.subr.mxu0 0.0
    %4752 = vmatpush1.msra.mxu0 0.0
    %4753 = vmatprep.subr.mxu0 0.0
    %4754 = vmatpush1.msra.mxu0 0.0
    %4755 = vmatprep.subr.mxu0 0.0
    %4756 = vmatpush1.msra.mxu0 0.0
    %4757 = vmatprep.subr.mxu0 0.0
    %4758 = vmatpush1.msra.mxu0 0.0
    %4759 = vmatprep.subr.mxu0 0.0
    %4760 = vmatpush1.msra.mxu0 0.0
    %4761 = vmatprep.subr.mxu0 0.0
    %4762 = vmatpush1.msra.mxu0 0.0
    %4763 = vmatprep.mubr.f32.mxu0 0.0
    %4764 = vmatmul.mubr.f32.gmra.mrb[0].mxu0 %v4697
    %v4765 = vpop.f32.mrb[0].mxu0
    %v4766 = vadd.f32 %v4692, %v4765
    %v4767 = vpop.f32.mrb[0].mxu0
    %4768 = vdwg.mxu0
    %4769 = vst.msk [vmem:[#allocation3 + $0x8] sm:$0xff] %vm564, %v4766
    %v4770 = vld [vmem:[#allocation2 + $0x8] sm:$0xff]
    %4772 = vrot.lane.b32.xlu0 %v4770, 120
    %v4773 = vpop.permute.xlu0 %4772
    %4774 = vrot.lane.b32.xlu0 %v4770, 88
    %v4775 = vpop.permute.xlu0 %4774
    %v4776 = vsel %vm564, %v4773, 0
    %v4778 = vsel %vm564, %v4775, 0
    %4780 = vmatprep.subr.mxu0 0.0
    %4781 = vmatpush1.xpose.msra.mxu0 %v4778
    %4782 = vmatprep.subr.mxu0 0.0
    %4783 = vmatpush1.xpose.msra.mxu0 0.0
    %4784 = vmatprep.subr.mxu0 0.0
    %4785 = vmatpush1.xpose.msra.mxu0 0.0
    %4786 = vmatprep.subr.mxu0 0.0
    %4787 = vmatpush1.xpose.msra.mxu0 0.0
    %4788 = vmatprep.subr.mxu0 0.0
    %4789 = vmatpush1.xpose.msra.mxu0 0.0
    %4790 = vmatprep.subr.mxu0 0.0
    %4791 = vmatpush1.xpose.msra.mxu0 0.0
    %4792 = vmatprep.subr.mxu0 0.0
    %4793 = vmatpush1.xpose.msra.mxu0 0.0
    %4794 = vmatprep.subr.mxu0 0.0
    %4795 = vmatpush1.xpose.msra.mxu0 0.0
    %4796 = vmatprep.subr.mxu0 0.0
    %4797 = vmatpush1.xpose.msra.mxu0 0.0
    %4798 = vmatprep.subr.mxu0 0.0
    %4799 = vmatpush1.xpose.msra.mxu0 0.0
    %4800 = vmatprep.subr.mxu0 0.0
    %4801 = vmatpush1.xpose.msra.mxu0 0.0
    %4802 = vmatprep.subr.mxu0 0.0
    %4803 = vmatpush1.xpose.msra.mxu0 0.0
    %4804 = vmatprep.subr.mxu0 0.0
    %4805 = vmatpush1.xpose.msra.mxu0 0.0
    %4806 = vmatprep.subr.mxu0 0.0
    %4807 = vmatpush1.xpose.msra.mxu0 0.0
    %4808 = vmatprep.subr.mxu0 0.0
    %4809 = vmatpush1.xpose.msra.mxu0 0.0
    %4810 = vmatprep.subr.mxu0 0.0
    %4811 = vmatpush1.xpose.msra.mxu0 0.0
    %4812 = vmatprep.subr.mxu0 0.0
    %4813 = vmatpush1.xpose.msra.mxu0 0.0
    %4814 = vmatprep.subr.mxu0 0.0
    %4815 = vmatpush1.xpose.msra.mxu0 0.0
    %4816 = vmatprep.subr.mxu0 0.0
    %4817 = vmatpush1.xpose.msra.mxu0 0.0
    %4818 = vmatprep.subr.mxu0 0.0
    %4819 = vmatpush1.xpose.msra.mxu0 0.0
    %4820 = vmatprep.subr.mxu0 0.0
    %4821 = vmatpush1.xpose.msra.mxu0 0.0
    %4822 = vmatprep.subr.mxu0 0.0
    %4823 = vmatpush1.xpose.msra.mxu0 0.0
    %4824 = vmatprep.subr.mxu0 0.0
    %4825 = vmatpush1.xpose.msra.mxu0 0.0
    %4826 = vmatprep.subr.mxu0 0.0
    %4827 = vmatpush1.xpose.msra.mxu0 0.0
    %4828 = vmatprep.subr.mxu0 0.0
    %4829 = vmatpush1.xpose.msra.mxu0 0.0
    %4830 = vmatprep.subr.mxu0 0.0
    %4831 = vmatpush1.xpose.msra.mxu0 0.0
    %4832 = vmatprep.subr.mxu0 0.0
    %4833 = vmatpush1.xpose.msra.mxu0 0.0
    %4834 = vmatprep.subr.mxu0 0.0
    %4835 = vmatpush1.xpose.msra.mxu0 0.0
    %4836 = vmatprep.subr.mxu0 0.0
    %4837 = vmatpush1.xpose.msra.mxu0 0.0
    %4838 = vmatprep.subr.mxu0 0.0
    %4839 = vmatpush1.xpose.msra.mxu0 0.0
    %4840 = vmatprep.subr.mxu0 0.0
    %4841 = vmatpush1.xpose.msra.mxu0 0.0
    %4842 = vmatprep.subr.mxu0 0.0
    %4843 = vmatpush1.xpose.msra.mxu0 0.0
    %4844 = vmatprep.mubr.f32.mxu0 0.0
    %4845 = vmatmul.mubr.f32.gmra.mrb[0].mxu0 %v4776
    %v4846 = vpop.f32.mrb[0].mxu0
    %v4847 = vadd.f32 0.0, %v4846
    %v4848 = vpop.f32.mrb[0].mxu0
    %4849 = vdwg.mxu0
    %v4850 = vmul.f32 %v4847, 0.35355338
    %v4851 = vld [vmem:[%s8 + $0x1] sm:$0x1]
    %v4852 = vld [vmem:[%s9 + $0x1] sm:$0x1]
    %v4853 = vlaneseq
    %v4854 = vshrl.u32 %v4853, 7
    %v4855 = vsub.s32 0, %v4854
    %v4856 = vrot.slane %v4851, %v4855
    %v4857 = vmul.f32 %v3771, %v4856
    %v4858 = vmul.f32 %v3776, %v4856
    %v4859 = vmul.f32 %v3781, %v4856
    %v4860 = vmul.f32 %v3786, %v4856
    %v4861 = vmul.f32 %v3791, %v4856
    %v4862 = vmul.f32 %v3796, %v4856
    %v4863 = vmul.f32 %v3801, %v4856
    %v4864 = vmul.f32 %v3806, %v4856
    %v4865 = vsel %vm564, %v4857, 0.0
    %4866 = vadd.xlane.f32.xlu0 %v4865
    %v4867 = vpop.xlane.xlu0 %4866
    %v4868 = vsel %vm564, %v4858, 0.0
    %4869 = vadd.xlane.f32.xlu0 %v4868
    %v4870 = vpop.xlane.xlu0 %4869
    %v4871 = vsel %vm564, %v4859, 0.0
    %4872 = vadd.xlane.f32.xlu0 %v4871
    %v4873 = vpop.xlane.xlu0 %4872
    %v4874 = vsel %vm564, %v4860, 0.0
    %4875 = vadd.xlane.f32.xlu0 %v4874
    %v4876 = vpop.xlane.xlu0 %4875
    %v4877 = vsel %vm564, %v4861, 0.0
    %4878 = vadd.xlane.f32.xlu0 %v4877
    %v4879 = vpop.xlane.xlu0 %4878
    %v4880 = vsel %vm564, %v4862, 0.0
    %4881 = vadd.xlane.f32.xlu0 %v4880
    %v4882 = vpop.xlane.xlu0 %4881
    %v4883 = vsel %vm564, %v4863, 0.0
    %4884 = vadd.xlane.f32.xlu0 %v4883
    %v4885 = vpop.xlane.xlu0 %4884
    %v4886 = vsel %vm564, %v4864, 0.0
    %4887 = vadd.xlane.f32.xlu0 %v4886
    %v4888 = vpop.xlane.xlu0 %4887
    %s4890 = vtos %v4852
    %v4891 = vstv %s4890
    %v4893 = vadd.f32 %v4867, %v4891
    %v4894 = vadd.f32 %v4870, %v4891
    %v4895 = vadd.f32 %v4873, %v4891
    %v4896 = vadd.f32 %v4876, %v4891
    %v4897 = vadd.f32 %v4879, %v4891
    %v4898 = vadd.f32 %v4882, %v4891
    %v4899 = vadd.f32 %v4885, %v4891
    %v4900 = vadd.f32 %v4888, %v4891
    %v4901 = vxor.u32 %v4893, 2147483648
    %v4902 = vxor.u32 %v4894, 2147483648
    %v4903 = vxor.u32 %v4895, 2147483648
    %v4904 = vxor.u32 %v4896, 2147483648
    %v4905 = vxor.u32 %v4897, 2147483648
    %v4906 = vxor.u32 %v4898, 2147483648
    %v4907 = vxor.u32 %v4899, 2147483648
    %v4908 = vxor.u32 %v4900, 2147483648
    %v4909 = vmul.f32 %v4901, 1.442695
    %v4910 = vpow.pop %v4909
    %v4911 = vmul.f32 %v4902, 1.442695
    %v4912 = vpow.pop %v4911
    %v4913 = vmul.f32 %v4903, 1.442695
    %v4914 = vpow.pop %v4913
    %v4915 = vmul.f32 %v4904, 1.442695
    %v4916 = vpow.pop %v4915
    %v4917 = vmul.f32 %v4905, 1.442695
    %v4918 = vpow.pop %v4917
    %v4919 = vmul.f32 %v4906, 1.442695
    %v4920 = vpow.pop %v4919
    %v4921 = vmul.f32 %v4907, 1.442695
    %v4922 = vpow.pop %v4921
    %v4923 = vmul.f32 %v4908, 1.442695
    %v4924 = vpow.pop %v4923
    %v4925 = vadd.f32 %v4910, 1.0
    %v4926 = vadd.f32 %v4912, 1.0
    %v4927 = vadd.f32 %v4914, 1.0
    %v4928 = vadd.f32 %v4916, 1.0
    %v4929 = vadd.f32 %v4918, 1.0
    %v4930 = vadd.f32 %v4920, 1.0
    %v4931 = vadd.f32 %v4922, 1.0
    %v4932 = vadd.f32 %v4924, 1.0
    %v4933 = vrcp.pop %v4925
    %v4934 = vmul.f32 1.0, %v4933
    %v4935 = vrcp.pop %v4926
    %v4936 = vmul.f32 1.0, %v4935
    %v4937 = vrcp.pop %v4927
    %v4938 = vmul.f32 1.0, %v4937
    %v4939 = vrcp.pop %v4928
    %v4940 = vmul.f32 1.0, %v4939
    %v4941 = vrcp.pop %v4929
    %v4942 = vmul.f32 1.0, %v4941
    %v4943 = vrcp.pop %v4930
    %v4944 = vmul.f32 1.0, %v4943
    %v4945 = vrcp.pop %v4931
    %v4946 = vmul.f32 1.0, %v4945
    %v4947 = vrcp.pop %v4932
    %v4948 = vmul.f32 1.0, %v4947
    %v4957 = vlaneseq
    %v4958 = vshrl.u32 %v4957, 7
    %v4959 = vsub.s32 %v747, %v4958
    %v4960 = vrot.slane %v4934, %v4959
    %v4961 = vlaneseq
    %v4962 = vshrl.u32 %v4961, 7
    %v4963 = vsub.s32 %v747, %v4962
    %v4964 = vrot.slane %v4936, %v4963
    %v4965 = vlaneseq
    %v4966 = vshrl.u32 %v4965, 7
    %v4967 = vsub.s32 %v747, %v4966
    %v4968 = vrot.slane %v4938, %v4967
    %v4969 = vlaneseq
    %v4970 = vshrl.u32 %v4969, 7
    %v4971 = vsub.s32 %v747, %v4970
    %v4972 = vrot.slane %v4940, %v4971
    %v4973 = vlaneseq
    %v4974 = vshrl.u32 %v4973, 7
    %v4975 = vsub.s32 %v747, %v4974
    %v4976 = vrot.slane %v4942, %v4975
    %v4977 = vlaneseq
    %v4978 = vshrl.u32 %v4977, 7
    %v4979 = vsub.s32 %v747, %v4978
    %v4980 = vrot.slane %v4944, %v4979
    %v4981 = vlaneseq
    %v4982 = vshrl.u32 %v4981, 7
    %v4983 = vsub.s32 %v747, %v4982
    %v4984 = vrot.slane %v4946, %v4983
    %v4985 = vlaneseq
    %v4986 = vshrl.u32 %v4985, 7
    %v4987 = vsub.s32 %v747, %v4986
    %v4988 = vrot.slane %v4948, %v4987
    %v4989 = vsel %vm780, %v4964, %v4960
    %v4990 = vsel %vm782, %v4968, %v4989
    %v4991 = vsel %vm784, %v4972, %v4990
    %v4992 = vsel %vm786, %v4976, %v4991
    %v4993 = vsel %vm788, %v4980, %v4992
    %v4994 = vsel %vm790, %v4984, %v4993
    %v4995 = vsel %vm792, %v4988, %v4994
    %4997 = vxpose.xlu0.b32.start [1/16] %v4995, 128
    %4998 = vxpose.xlu0.b32.cont [2/16] 0.0, 128
    %4999 = vxpose.xlu0.b32.cont [3/16] 0.0, 128
    %5000 = vxpose.xlu0.b32.cont [4/16] 0.0, 128
    %5001 = vxpose.xlu0.b32.cont [5/16] 0.0, 128
    %5002 = vxpose.xlu0.b32.cont [6/16] 0.0, 128
    %5003 = vxpose.xlu0.b32.cont [7/16] 0.0, 128
    %5004 = vxpose.xlu0.b32.cont [8/16] 0.0, 128
    %5005 = vxpose.xlu0.b32.cont [9/16] 0.0, 128
    %5006 = vxpose.xlu0.b32.cont [10/16] 0.0, 128
    %5007 = vxpose.xlu0.b32.cont [11/16] 0.0, 128
    %5008 = vxpose.xlu0.b32.cont [12/16] 0.0, 128
    %5009 = vxpose.xlu0.b32.cont [13/16] 0.0, 128
    %5010 = vxpose.xlu0.b32.cont [14/16] 0.0, 128
    %5011 = vxpose.xlu0.b32.cont [15/16] 0.0, 128
    %5012 = vxpose.xlu0.b32.end [16/16] 0.0, 128
    %v5013 = vpop.trf.xlu0
    %v5014 = vpop.trf.xlu0
    %v5015 = vpop.trf.xlu0
    %v5016 = vpop.trf.xlu0
    %v5017 = vpop.trf.xlu0
    %v5018 = vpop.trf.xlu0
    %v5019 = vpop.trf.xlu0
    %v5020 = vpop.trf.xlu0
    %v5021 = vpop.trf.xlu0
    %v5022 = vpop.trf.xlu0
    %v5023 = vpop.trf.xlu0
    %v5024 = vpop.trf.xlu0
    %v5025 = vpop.trf.xlu0
    %v5026 = vpop.trf.xlu0
    %v5027 = vpop.trf.xlu0
    %v5028 = vpop.trf.xlu0
    %v5029 = vcombine.high %v4770, %v4770
    %v5031 = vunpack.c.l.s4 1966171168
    %v5032 = vunpack.c.0.s8 %v5031
    %v5033 = vlaneseq
    %v5034 = vshrl.u32 %v5033, 7
    %v5035 = vsub.s32 %v5032, %v5034
    %v5036 = vrot.slane %v4770, %v5035
    %v5038 = vunpack.c.l.s4 1966171168
    %v5039 = vunpack.c.0.s8 %v5038
    %v5040 = vlaneseq
    %v5041 = vshrl.u32 %v5040, 7
    %v5042 = vsub.s32 %v5039, %v5041
    %v5043 = vrot.slane %v5029, %v5042
    %v5044 = vcombine.high %v5036, %v5036
    %v5045 = vcombine.high %v5043, %v5043
    %v5047 = vunpack.c.l.s4 1966171168
    %v5048 = vunpack.c.0.s8 %v5047
    %v5049 = vlaneseq
    %v5050 = vshrl.u32 %v5049, 7
    %v5051 = vsub.s32 %v5048, %v5050
    %v5052 = vrot.slane %v5036, %v5051
    %v5054 = vunpack.c.l.s4 1966171168
    %v5055 = vunpack.c.0.s8 %v5054
    %v5056 = vlaneseq
    %v5057 = vshrl.u32 %v5056, 7
    %v5058 = vsub.s32 %v5055, %v5057
    %v5059 = vrot.slane %v5043, %v5058
    %v5061 = vunpack.c.l.s4 1966171168
    %v5062 = vunpack.c.0.s8 %v5061
    %v5063 = vlaneseq
    %v5064 = vshrl.u32 %v5063, 7
    %v5065 = vsub.s32 %v5062, %v5064
    %v5066 = vrot.slane %v5044, %v5065
    %v5068 = vunpack.c.l.s4 1966171168
    %v5069 = vunpack.c.0.s8 %v5068
    %v5070 = vlaneseq
    %v5071 = vshrl.u32 %v5070, 7
    %v5072 = vsub.s32 %v5069, %v5071
    %v5073 = vrot.slane %v5045, %v5072
    %v5074 = vcombine.high %v5052, %v5052
    %v5075 = vcombine.high %v5059, %v5059
    %v5076 = vcombine.high %v5066, %v5066
    %v5077 = vcombine.high %v5073, %v5073
    %v5078 = vlaneseq
    %v5079 = vshrl.u32 %v5078, 7
    %v5080 = vsub.s32 0, %v5079
    %v5081 = vrot.slane %v5052, %v5080
    %v5082 = vlaneseq
    %v5083 = vshrl.u32 %v5082, 7
    %v5084 = vsub.s32 0, %v5083
    %v5085 = vrot.slane %v5066, %v5084
    %v5086 = vlaneseq
    %v5087 = vshrl.u32 %v5086, 7
    %v5088 = vsub.s32 0, %v5087
    %v5089 = vrot.slane %v5074, %v5088
    %v5090 = vlaneseq
    %v5091 = vshrl.u32 %v5090, 7
    %v5092 = vsub.s32 0, %v5091
    %v5093 = vrot.slane %v5076, %v5092
    %v5094 = vlaneseq
    %v5095 = vshrl.u32 %v5094, 7
    %v5096 = vsub.s32 0, %v5095
    %v5097 = vrot.slane %v5059, %v5096
    %v5098 = vlaneseq
    %v5099 = vshrl.u32 %v5098, 7
    %v5100 = vsub.s32 0, %v5099
    %v5101 = vrot.slane %v5073, %v5100
    %v5102 = vlaneseq
    %v5103 = vshrl.u32 %v5102, 7
    %v5104 = vsub.s32 0, %v5103
    %v5105 = vrot.slane %v5075, %v5104
    %v5106 = vlaneseq
    %v5107 = vshrl.u32 %v5106, 7
    %v5108 = vsub.s32 0, %v5107
    %v5109 = vrot.slane %v5077, %v5108
    %5126 = vrot.lane.b32.xlu0 %v3771, 8
    %v5127 = vpop.permute.xlu0 %5126
    %5128 = vrot.lane.b32.xlu0 %v3776, 8
    %v5129 = vpop.permute.xlu0 %5128
    %5130 = vrot.lane.b32.xlu0 %v3781, 8
    %v5131 = vpop.permute.xlu0 %5130
    %5132 = vrot.lane.b32.xlu0 %v3786, 8
    %v5133 = vpop.permute.xlu0 %5132
    %5134 = vrot.lane.b32.xlu0 %v3791, 8
    %v5135 = vpop.permute.xlu0 %5134
    %5136 = vrot.lane.b32.xlu0 %v3796, 8
    %v5137 = vpop.permute.xlu0 %5136
    %5138 = vrot.lane.b32.xlu0 %v3801, 8
    %v5139 = vpop.permute.xlu0 %5138
    %5140 = vrot.lane.b32.xlu0 %v3806, 8
    %v5141 = vpop.permute.xlu0 %5140
    %v5150 = vmul.f32 %v5081, %v5127
    %v5151 = vmul.f32 %v5085, %v5129
    %v5152 = vmul.f32 %v5089, %v5131
    %v5153 = vmul.f32 %v5093, %v5133
    %v5154 = vmul.f32 %v5097, %v5135
    %v5155 = vmul.f32 %v5101, %v5137
    %v5156 = vmul.f32 %v5105, %v5139
    %v5157 = vmul.f32 %v5109, %v5141
    %5166 = vrot.lane.b32.xlu0 %v5150, 120
    %v5167 = vpop.permute.xlu0 %5166
    %5168 = vrot.lane.b32.xlu0 %v5151, 120
    %v5169 = vpop.permute.xlu0 %5168
    %5170 = vrot.lane.b32.xlu0 %v5152, 120
    %v5171 = vpop.permute.xlu0 %5170
    %5172 = vrot.lane.b32.xlu0 %v5153, 120
    %v5173 = vpop.permute.xlu0 %5172
    %5174 = vrot.lane.b32.xlu0 %v5154, 120
    %v5175 = vpop.permute.xlu0 %5174
    %5176 = vrot.lane.b32.xlu0 %v5155, 120
    %v5177 = vpop.permute.xlu0 %5176
    %5178 = vrot.lane.b32.xlu0 %v5156, 120
    %v5179 = vpop.permute.xlu0 %5178
    %5180 = vrot.lane.b32.xlu0 %v5157, 120
    %v5181 = vpop.permute.xlu0 %5180
    %v5190 = vsel %vm564, %v5167, 0.0
    %5191 = vadd.xlane.f32.xlu0 %v5190
    %v5192 = vpop.xlane.xlu0 %5191
    %v5193 = vsel %vm564, %v5169, 0.0
    %5194 = vadd.xlane.f32.xlu0 %v5193
    %v5195 = vpop.xlane.xlu0 %5194
    %v5196 = vsel %vm564, %v5171, 0.0
    %5197 = vadd.xlane.f32.xlu0 %v5196
    %v5198 = vpop.xlane.xlu0 %5197
    %v5199 = vsel %vm564, %v5173, 0.0
    %5200 = vadd.xlane.f32.xlu0 %v5199
    %v5201 = vpop.xlane.xlu0 %5200
    %v5202 = vsel %vm564, %v5175, 0.0
    %5203 = vadd.xlane.f32.xlu0 %v5202
    %v5204 = vpop.xlane.xlu0 %5203
    %v5205 = vsel %vm564, %v5177, 0.0
    %5206 = vadd.xlane.f32.xlu0 %v5205
    %v5207 = vpop.xlane.xlu0 %5206
    %v5208 = vsel %vm564, %v5179, 0.0
    %5209 = vadd.xlane.f32.xlu0 %v5208
    %v5210 = vpop.xlane.xlu0 %5209
    %v5211 = vsel %vm564, %v5181, 0.0
    %5212 = vadd.xlane.f32.xlu0 %v5211
    %v5213 = vpop.xlane.xlu0 %5212
    %v5222 = vlaneseq
    %v5223 = vshrl.u32 %v5222, 7
    %v5224 = vsub.s32 %v747, %v5223
    %v5225 = vrot.slane %v5192, %v5224
    %v5226 = vlaneseq
    %v5227 = vshrl.u32 %v5226, 7
    %v5228 = vsub.s32 %v747, %v5227
    %v5229 = vrot.slane %v5195, %v5228
    %v5230 = vlaneseq
    %v5231 = vshrl.u32 %v5230, 7
    %v5232 = vsub.s32 %v747, %v5231
    %v5233 = vrot.slane %v5198, %v5232
    %v5234 = vlaneseq
    %v5235 = vshrl.u32 %v5234, 7
    %v5236 = vsub.s32 %v747, %v5235
    %v5237 = vrot.slane %v5201, %v5236
    %v5238 = vlaneseq
    %v5239 = vshrl.u32 %v5238, 7
    %v5240 = vsub.s32 %v747, %v5239
    %v5241 = vrot.slane %v5204, %v5240
    %v5242 = vlaneseq
    %v5243 = vshrl.u32 %v5242, 7
    %v5244 = vsub.s32 %v747, %v5243
    %v5245 = vrot.slane %v5207, %v5244
    %v5246 = vlaneseq
    %v5247 = vshrl.u32 %v5246, 7
    %v5248 = vsub.s32 %v747, %v5247
    %v5249 = vrot.slane %v5210, %v5248
    %v5250 = vlaneseq
    %v5251 = vshrl.u32 %v5250, 7
    %v5252 = vsub.s32 %v747, %v5251
    %v5253 = vrot.slane %v5213, %v5252
    %v5254 = vsel %vm780, %v5229, %v5225
    %v5255 = vsel %vm782, %v5233, %v5254
    %v5256 = vsel %vm784, %v5237, %v5255
    %v5257 = vsel %vm786, %v5241, %v5256
    %v5258 = vsel %vm788, %v5245, %v5257
    %v5259 = vsel %vm790, %v5249, %v5258
    %v5260 = vsel %vm792, %v5253, %v5259
    %v5262 = vmul.f32 %v5013, %v5260
    %v5263 = vadd.f32 %v4850, %v5262
    %v5264 = vadd.f32 %v5263, %v4475
    %v5265 = vsel %vm564, %v5264, -inf
    %5266 = vmax.xlane.f32.xlu0 %v5265
    %v5267 = vpop.xlane.xlu0 %5266
    %v5268 = vsub.f32 %v5264, %v5267
    %v5269 = vmul.f32 %v5268, 1.442695
    %v5270 = vpow.pop %v5269
    %v5271 = vsel %vm564, %v5270, 0.0
    %5272 = vadd.xlane.f32.xlu0 %v5271
    %v5273 = vpop.xlane.xlu0 %5272
    %v5274 = vrcp.pop %v5273
    %v5275 = vmul.f32 %v5270, %v5274
    %v5276 = vlaneseq
    %v5277 = vshrl.u32 %v5276, 7
    %v5278 = vsub.s32 0, %v5277
    %v5279 = vrot.slane %v5275, %v5278
    %5281 = vbcast.lane.b32.xlu0 %v5279, 256
    %v5282 = vpop.permute.xlu0 %5281
    %v5283 = vlaneseq
    %v5284 = vshrl.u32 %v5283, 7
    %v5285 = vsub.s32 1, %v5284
    %v5286 = vrot.slane %v5275, %v5285
    %5288 = vbcast.lane.b32.xlu0 %v5286, 256
    %v5289 = vpop.permute.xlu0 %5288
    %v5290 = vlaneseq
    %v5291 = vshrl.u32 %v5290, 7
    %v5292 = vsub.s32 2, %v5291
    %v5293 = vrot.slane %v5275, %v5292
    %5295 = vbcast.lane.b32.xlu0 %v5293, 256
    %v5296 = vpop.permute.xlu0 %5295
    %v5297 = vlaneseq
    %v5298 = vshrl.u32 %v5297, 7
    %v5299 = vsub.s32 3, %v5298
    %v5300 = vrot.slane %v5275, %v5299
    %5302 = vbcast.lane.b32.xlu0 %v5300, 256
    %v5303 = vpop.permute.xlu0 %5302
    %v5304 = vlaneseq
    %v5305 = vshrl.u32 %v5304, 7
    %v5306 = vsub.s32 4, %v5305
    %v5307 = vrot.slane %v5275, %v5306
    %5309 = vbcast.lane.b32.xlu0 %v5307, 256
    %v5310 = vpop.permute.xlu0 %5309
    %v5311 = vlaneseq
    %v5312 = vshrl.u32 %v5311, 7
    %v5313 = vsub.s32 5, %v5312
    %v5314 = vrot.slane %v5275, %v5313
    %5316 = vbcast.lane.b32.xlu0 %v5314, 256
    %v5317 = vpop.permute.xlu0 %5316
    %v5318 = vlaneseq
    %v5319 = vshrl.u32 %v5318, 7
    %v5320 = vsub.s32 6, %v5319
    %v5321 = vrot.slane %v5275, %v5320
    %5323 = vbcast.lane.b32.xlu0 %v5321, 256
    %v5324 = vpop.permute.xlu0 %5323
    %v5325 = vlaneseq
    %v5326 = vshrl.u32 %v5325, 7
    %v5327 = vsub.s32 7, %v5326
    %v5328 = vrot.slane %v5275, %v5327
    %5330 = vbcast.lane.b32.xlu0 %v5328, 256
    %v5331 = vpop.permute.xlu0 %5330
    %v5332 = vmul.f32 %v5282, %v3876
    %v5333 = vmul.f32 %v5289, %v3881
    %v5334 = vmul.f32 %v5296, %v3886
    %v5335 = vmul.f32 %v5303, %v3891
    %v5336 = vmul.f32 %v5310, %v3896
    %v5337 = vmul.f32 %v5317, %v3901
    %v5338 = vmul.f32 %v5324, %v3906
    %v5339 = vmul.f32 %v5331, %v3911
    %v5340 = vsel %vm564, %v5332, 0.0
    %v5341 = vrot.slane %v5340, 4
    %v5342 = vadd.f32 %v5340, %v5341
    %v5343 = vrot.slane %v5342, 2
    %v5344 = vadd.f32 %v5342, %v5343
    %v5345 = vrot.slane %v5344, 1
    %v5346 = vadd.f32 %v5344, %v5345
    %v5347 = vsel %vm564, %v5333, 0.0
    %v5348 = vrot.slane %v5347, 4
    %v5349 = vadd.f32 %v5347, %v5348
    %v5350 = vrot.slane %v5349, 2
    %v5351 = vadd.f32 %v5349, %v5350
    %v5352 = vrot.slane %v5351, 1
    %v5353 = vadd.f32 %v5351, %v5352
    %v5354 = vsel %vm564, %v5334, 0.0
    %v5355 = vrot.slane %v5354, 4
    %v5356 = vadd.f32 %v5354, %v5355
    %v5357 = vrot.slane %v5356, 2
    %v5358 = vadd.f32 %v5356, %v5357
    %v5359 = vrot.slane %v5358, 1
    %v5360 = vadd.f32 %v5358, %v5359
    %v5361 = vsel %vm564, %v5335, 0.0
    %v5362 = vrot.slane %v5361, 4
    %v5363 = vadd.f32 %v5361, %v5362
    %v5364 = vrot.slane %v5363, 2
    %v5365 = vadd.f32 %v5363, %v5364
    %v5366 = vrot.slane %v5365, 1
    %v5367 = vadd.f32 %v5365, %v5366
    %v5368 = vsel %vm564, %v5336, 0.0
    %v5369 = vrot.slane %v5368, 4
    %v5370 = vadd.f32 %v5368, %v5369
    %v5371 = vrot.slane %v5370, 2
    %v5372 = vadd.f32 %v5370, %v5371
    %v5373 = vrot.slane %v5372, 1
    %v5374 = vadd.f32 %v5372, %v5373
    %v5375 = vsel %vm564, %v5337, 0.0
    %v5376 = vrot.slane %v5375, 4
    %v5377 = vadd.f32 %v5375, %v5376
    %v5378 = vrot.slane %v5377, 2
    %v5379 = vadd.f32 %v5377, %v5378
    %v5380 = vrot.slane %v5379, 1
    %v5381 = vadd.f32 %v5379, %v5380
    %v5382 = vsel %vm564, %v5338, 0.0
    %v5383 = vrot.slane %v5382, 4
    %v5384 = vadd.f32 %v5382, %v5383
    %v5385 = vrot.slane %v5384, 2
    %v5386 = vadd.f32 %v5384, %v5385
    %v5387 = vrot.slane %v5386, 1
    %v5388 = vadd.f32 %v5386, %v5387
    %v5389 = vsel %vm564, %v5339, 0.0
    %v5390 = vrot.slane %v5389, 4
    %v5391 = vadd.f32 %v5389, %v5390
    %v5392 = vrot.slane %v5391, 2
    %v5393 = vadd.f32 %v5391, %v5392
    %v5394 = vrot.slane %v5393, 1
    %v5395 = vadd.f32 %v5393, %v5394
    %v5396 = vld [vmem:[%s1922] sm:$0x1]
    %s5398 = vtos %v5396
    %v5399 = vstv %s5398
    %v5401 = vmul.f32 %v5399, %v4005
    %v5402 = vadd.f32 %v5401, 0.0
    %v5403 = vld [vmem:[%s1922 + $0x1] sm:$0x1]
    %s5405 = vtos %v5403
    %v5406 = vstv %s5405
    %v5408 = vmul.f32 %v5406, %v4010
    %v5409 = vadd.f32 %v5402, %v5408
    %v5410 = vld [vmem:[%s1922 + $0x2] sm:$0x1]
    %s5412 = vtos %v5410
    %v5413 = vstv %s5412
    %v5415 = vmul.f32 %v5413, %v4015
    %v5416 = vadd.f32 %v5409, %v5415
    %v5417 = vld [vmem:[%s1922 + $0x3] sm:$0x1]
    %s5419 = vtos %v5417
    %v5420 = vstv %s5419
    %v5422 = vmul.f32 %v5420, %v4020
    %v5423 = vadd.f32 %v5416, %v5422
    %v5424 = vld [vmem:[%s1922 + $0x4] sm:$0x1]
    %s5426 = vtos %v5424
    %v5427 = vstv %s5426
    %v5429 = vmul.f32 %v5427, %v4025
    %v5430 = vadd.f32 %v5423, %v5429
    %v5431 = vld [vmem:[%s1922 + $0x5] sm:$0x1]
    %s5433 = vtos %v5431
    %v5434 = vstv %s5433
    %v5436 = vmul.f32 %v5434, %v4030
    %v5437 = vadd.f32 %v5430, %v5436
    %v5438 = vld [vmem:[%s1922 + $0x6] sm:$0x1]
    %s5440 = vtos %v5438
    %v5441 = vstv %s5440
    %v5443 = vmul.f32 %v5441, %v4035
    %v5444 = vadd.f32 %v5437, %v5443
    %v5445 = vld [vmem:[%s1922 + $0x7] sm:$0x1]
    %s5447 = vtos %v5445
    %v5448 = vstv %s5447
    %v5450 = vmul.f32 %v5448, %v4040
    %v5451 = vadd.f32 %v5444, %v5450
    %v5452 = vld [vmem:[%s11 + $0x1] sm:$0x1]
    %s5454 = vtos %v5452
    %v5455 = vstv %s5454
    %v5457 = vadd.f32 %v5451, %v5455
    %v5458 = vxor.u32 %v5457, 2147483648
    %v5459 = vmul.f32 %v5458, 1.442695
    %v5460 = vpow.pop %v5459
    %v5461 = vadd.f32 %v5460, 1.0
    %v5462 = vrcp.pop %v5461
    %v5463 = vmul.f32 1.0, %v5462
    %v5472 = vsel %vm780, %v5353, %v5346
    %v5473 = vsel %vm782, %v5360, %v5472
    %v5474 = vsel %vm784, %v5367, %v5473
    %v5475 = vsel %vm786, %v5374, %v5474
    %v5476 = vsel %vm788, %v5381, %v5475
    %v5477 = vsel %vm790, %v5388, %v5476
    %v5478 = vsel %vm792, %v5395, %v5477
    %v5480 = vmul.f32 %v5463, %v5478
    %5481 = vrot.lane.b32.xlu0 %v4770, 56
    %v5482 = vpop.permute.xlu0 %5481
    %v5485 = vsel %vm564, %v5275, 0
    %5487 = vmatprep.subr.mxu0 0.0
    %5488 = vmatpush1.msra.mxu0 %v5482
    %5489 = vmatprep.subr.mxu0 0.0
    %5490 = vmatpush1.msra.mxu0 0.0
    %5491 = vmatprep.subr.mxu0 0.0
    %5492 = vmatpush1.msra.mxu0 0.0
    %5493 = vmatprep.subr.mxu0 0.0
    %5494 = vmatpush1.msra.mxu0 0.0
    %5495 = vmatprep.subr.mxu0 0.0
    %5496 = vmatpush1.msra.mxu0 0.0
    %5497 = vmatprep.subr.mxu0 0.0
    %5498 = vmatpush1.msra.mxu0 0.0
    %5499 = vmatprep.subr.mxu0 0.0
    %5500 = vmatpush1.msra.mxu0 0.0
    %5501 = vmatprep.subr.mxu0 0.0
    %5502 = vmatpush1.msra.mxu0 0.0
    %5503 = vmatprep.subr.mxu0 0.0
    %5504 = vmatpush1.msra.mxu0 0.0
    %5505 = vmatprep.subr.mxu0 0.0
    %5506 = vmatpush1.msra.mxu0 0.0
    %5507 = vmatprep.subr.mxu0 0.0
    %5508 = vmatpush1.msra.mxu0 0.0
    %5509 = vmatprep.subr.mxu0 0.0
    %5510 = vmatpush1.msra.mxu0 0.0
    %5511 = vmatprep.subr.mxu0 0.0
    %5512 = vmatpush1.msra.mxu0 0.0
    %5513 = vmatprep.subr.mxu0 0.0
    %5514 = vmatpush1.msra.mxu0 0.0
    %5515 = vmatprep.subr.mxu0 0.0
    %5516 = vmatpush1.msra.mxu0 0.0
    %5517 = vmatprep.subr.mxu0 0.0
    %5518 = vmatpush1.msra.mxu0 0.0
    %5519 = vmatprep.subr.mxu0 0.0
    %5520 = vmatpush1.msra.mxu0 0.0
    %5521 = vmatprep.subr.mxu0 0.0
    %5522 = vmatpush1.msra.mxu0 0.0
    %5523 = vmatprep.subr.mxu0 0.0
    %5524 = vmatpush1.msra.mxu0 0.0
    %5525 = vmatprep.subr.mxu0 0.0
    %5526 = vmatpush1.msra.mxu0 0.0
    %5527 = vmatprep.subr.mxu0 0.0
    %5528 = vmatpush1.msra.mxu0 0.0
    %5529 = vmatprep.subr.mxu0 0.0
    %5530 = vmatpush1.msra.mxu0 0.0
    %5531 = vmatprep.subr.mxu0 0.0
    %5532 = vmatpush1.msra.mxu0 0.0
    %5533 = vmatprep.subr.mxu0 0.0
    %5534 = vmatpush1.msra.mxu0 0.0
    %5535 = vmatprep.subr.mxu0 0.0
    %5536 = vmatpush1.msra.mxu0 0.0
    %5537 = vmatprep.subr.mxu0 0.0
    %5538 = vmatpush1.msra.mxu0 0.0
    %5539 = vmatprep.subr.mxu0 0.0
    %5540 = vmatpush1.msra.mxu0 0.0
    %5541 = vmatprep.subr.mxu0 0.0
    %5542 = vmatpush1.msra.mxu0 0.0
    %5543 = vmatprep.subr.mxu0 0.0
    %5544 = vmatpush1.msra.mxu0 0.0
    %5545 = vmatprep.subr.mxu0 0.0
    %5546 = vmatpush1.msra.mxu0 0.0
    %5547 = vmatprep.subr.mxu0 0.0
    %5548 = vmatpush1.msra.mxu0 0.0
    %5549 = vmatprep.subr.mxu0 0.0
    %5550 = vmatpush1.msra.mxu0 0.0
    %5551 = vmatprep.mubr.f32.mxu0 0.0
    %5552 = vmatmul.mubr.f32.gmra.mrb[0].mxu0 %v5485
    %v5553 = vpop.f32.mrb[0].mxu0
    %v5554 = vadd.f32 %v5480, %v5553
    %v5555 = vpop.f32.mrb[0].mxu0
    %5556 = vdwg.mxu0
    %5558 = vrot.lane.b32.xlu0 %v5554, 8
    %v5559 = vpop.permute.xlu0 %5558
    %5561 = vst.msk [vmem:[#allocation3 + $0x8] sm:$0xff] %vm2088, %v5559
    %v5562 = vld [vmem:[#allocation2 + $0x8] sm:$0xff]
    %5564 = vrot.lane.b32.xlu0 %v5562, 112
    %v5565 = vpop.permute.xlu0 %5564
    %5566 = vrot.lane.b32.xlu0 %v5562, 80
    %v5567 = vpop.permute.xlu0 %5566
    %v5568 = vsel %vm564, %v5565, 0
    %v5570 = vsel %vm564, %v5567, 0
    %5572 = vmatprep.subr.mxu0 0.0
    %5573 = vmatpush1.xpose.msra.mxu0 %v5570
    %5574 = vmatprep.subr.mxu0 0.0
    %5575 = vmatpush1.xpose.msra.mxu0 0.0
    %5576 = vmatprep.subr.mxu0 0.0
    %5577 = vmatpush1.xpose.msra.mxu0 0.0
    %5578 = vmatprep.subr.mxu0 0.0
    %5579 = vmatpush1.xpose.msra.mxu0 0.0
    %5580 = vmatprep.subr.mxu0 0.0
    %5581 = vmatpush1.xpose.msra.mxu0 0.0
    %5582 = vmatprep.subr.mxu0 0.0
    %5583 = vmatpush1.xpose.msra.mxu0 0.0
    %5584 = vmatprep.subr.mxu0 0.0
    %5585 = vmatpush1.xpose.msra.mxu0 0.0
    %5586 = vmatprep.subr.mxu0 0.0
    %5587 = vmatpush1.xpose.msra.mxu0 0.0
    %5588 = vmatprep.subr.mxu0 0.0
    %5589 = vmatpush1.xpose.msra.mxu0 0.0
    %5590 = vmatprep.subr.mxu0 0.0
    %5591 = vmatpush1.xpose.msra.mxu0 0.0
    %5592 = vmatprep.subr.mxu0 0.0
    %5593 = vmatpush1.xpose.msra.mxu0 0.0
    %5594 = vmatprep.subr.mxu0 0.0
    %5595 = vmatpush1.xpose.msra.mxu0 0.0
    %5596 = vmatprep.subr.mxu0 0.0
    %5597 = vmatpush1.xpose.msra.mxu0 0.0
    %5598 = vmatprep.subr.mxu0 0.0
    %5599 = vmatpush1.xpose.msra.mxu0 0.0
    %5600 = vmatprep.subr.mxu0 0.0
    %5601 = vmatpush1.xpose.msra.mxu0 0.0
    %5602 = vmatprep.subr.mxu0 0.0
    %5603 = vmatpush1.xpose.msra.mxu0 0.0
    %5604 = vmatprep.subr.mxu0 0.0
    %5605 = vmatpush1.xpose.msra.mxu0 0.0
    %5606 = vmatprep.subr.mxu0 0.0
    %5607 = vmatpush1.xpose.msra.mxu0 0.0
    %5608 = vmatprep.subr.mxu0 0.0
    %5609 = vmatpush1.xpose.msra.mxu0 0.0
    %5610 = vmatprep.subr.mxu0 0.0
    %5611 = vmatpush1.xpose.msra.mxu0 0.0
    %5612 = vmatprep.subr.mxu0 0.0
    %5613 = vmatpush1.xpose.msra.mxu0 0.0
    %5614 = vmatprep.subr.mxu0 0.0
    %5615 = vmatpush1.xpose.msra.mxu0 0.0
    %5616 = vmatprep.subr.mxu0 0.0
    %5617 = vmatpush1.xpose.msra.mxu0 0.0
    %5618 = vmatprep.subr.mxu0 0.0
    %5619 = vmatpush1.xpose.msra.mxu0 0.0
    %5620 = vmatprep.subr.mxu0 0.0
    %5621 = vmatpush1.xpose.msra.mxu0 0.0
    %5622 = vmatprep.subr.mxu0 0.0
    %5623 = vmatpush1.xpose.msra.mxu0 0.0
    %5624 = vmatprep.subr.mxu0 0.0
    %5625 = vmatpush1.xpose.msra.mxu0 0.0
    %5626 = vmatprep.subr.mxu0 0.0
    %5627 = vmatpush1.xpose.msra.mxu0 0.0
    %5628 = vmatprep.subr.mxu0 0.0
    %5629 = vmatpush1.xpose.msra.mxu0 0.0
    %5630 = vmatprep.subr.mxu0 0.0
    %5631 = vmatpush1.xpose.msra.mxu0 0.0
    %5632 = vmatprep.subr.mxu0 0.0
    %5633 = vmatpush1.xpose.msra.mxu0 0.0
    %5634 = vmatprep.subr.mxu0 0.0
    %5635 = vmatpush1.xpose.msra.mxu0 0.0
    %5636 = vmatprep.mubr.f32.mxu0 0.0
    %5637 = vmatmul.mubr.f32.gmra.mrb[0].mxu0 %v5568
    %v5638 = vpop.f32.mrb[0].mxu0
    %v5639 = vadd.f32 0.0, %v5638
    %v5640 = vpop.f32.mrb[0].mxu0
    %5641 = vdwg.mxu0
    %v5642 = vmul.f32 %v5639, 0.35355338
    %v5643 = vld [vmem:[%s8 + $0x2] sm:$0x1]
    %v5644 = vld [vmem:[%s9 + $0x2] sm:$0x1]
    %v5645 = vlaneseq
    %v5646 = vshrl.u32 %v5645, 7
    %v5647 = vsub.s32 0, %v5646
    %v5648 = vrot.slane %v5643, %v5647
    %v5649 = vmul.f32 %v3771, %v5648
    %v5650 = vmul.f32 %v3776, %v5648
    %v5651 = vmul.f32 %v3781, %v5648
    %v5652 = vmul.f32 %v3786, %v5648
    %v5653 = vmul.f32 %v3791, %v5648
    %v5654 = vmul.f32 %v3796, %v5648
    %v5655 = vmul.f32 %v3801, %v5648
    %v5656 = vmul.f32 %v3806, %v5648
    %v5657 = vsel %vm564, %v5649, 0.0
    %5658 = vadd.xlane.f32.xlu0 %v5657
    %v5659 = vpop.xlane.xlu0 %5658
    %v5660 = vsel %vm564, %v5650, 0.0
    %5661 = vadd.xlane.f32.xlu0 %v5660
    %v5662 = vpop.xlane.xlu0 %5661
    %v5663 = vsel %vm564, %v5651, 0.0
    %5664 = vadd.xlane.f32.xlu0 %v5663
    %v5665 = vpop.xlane.xlu0 %5664
    %v5666 = vsel %vm564, %v5652, 0.0
    %5667 = vadd.xlane.f32.xlu0 %v5666
    %v5668 = vpop.xlane.xlu0 %5667
    %v5669 = vsel %vm564, %v5653, 0.0
    %5670 = vadd.xlane.f32.xlu0 %v5669
    %v5671 = vpop.xlane.xlu0 %5670
    %v5672 = vsel %vm564, %v5654, 0.0
    %5673 = vadd.xlane.f32.xlu0 %v5672
    %v5674 = vpop.xlane.xlu0 %5673
    %v5675 = vsel %vm564, %v5655, 0.0
    %5676 = vadd.xlane.f32.xlu0 %v5675
    %v5677 = vpop.xlane.xlu0 %5676
    %v5678 = vsel %vm564, %v5656, 0.0
    %5679 = vadd.xlane.f32.xlu0 %v5678
    %v5680 = vpop.xlane.xlu0 %5679
    %s5682 = vtos %v5644
    %v5683 = vstv %s5682
    %v5685 = vadd.f32 %v5659, %v5683
    %v5686 = vadd.f32 %v5662, %v5683
    %v5687 = vadd.f32 %v5665, %v5683
    %v5688 = vadd.f32 %v5668, %v5683
    %v5689 = vadd.f32 %v5671, %v5683
    %v5690 = vadd.f32 %v5674, %v5683
    %v5691 = vadd.f32 %v5677, %v5683
    %v5692 = vadd.f32 %v5680, %v5683
    %v5693 = vxor.u32 %v5685, 2147483648
    %v5694 = vxor.u32 %v5686, 2147483648
    %v5695 = vxor.u32 %v5687, 2147483648
    %v5696 = vxor.u32 %v5688, 2147483648
    %v5697 = vxor.u32 %v5689, 2147483648
    %v5698 = vxor.u32 %v5690, 2147483648
    %v5699 = vxor.u32 %v5691, 2147483648
    %v5700 = vxor.u32 %v5692, 2147483648
    %v5701 = vmul.f32 %v5693, 1.442695
    %v5702 = vpow.pop %v5701
    %v5703 = vmul.f32 %v5694, 1.442695
    %v5704 = vpow.pop %v5703
    %v5705 = vmul.f32 %v5695, 1.442695
    %v5706 = vpow.pop %v5705
    %v5707 = vmul.f32 %v5696, 1.442695
    %v5708 = vpow.pop %v5707
    %v5709 = vmul.f32 %v5697, 1.442695
    %v5710 = vpow.pop %v5709
    %v5711 = vmul.f32 %v5698, 1.442695
    %v5712 = vpow.pop %v5711
    %v5713 = vmul.f32 %v5699, 1.442695
    %v5714 = vpow.pop %v5713
    %v5715 = vmul.f32 %v5700, 1.442695
    %v5716 = vpow.pop %v5715
    %v5717 = vadd.f32 %v5702, 1.0
    %v5718 = vadd.f32 %v5704, 1.0
    %v5719 = vadd.f32 %v5706, 1.0
    %v5720 = vadd.f32 %v5708, 1.0
    %v5721 = vadd.f32 %v5710, 1.0
    %v5722 = vadd.f32 %v5712, 1.0
    %v5723 = vadd.f32 %v5714, 1.0
    %v5724 = vadd.f32 %v5716, 1.0
    %v5725 = vrcp.pop %v5717
    %v5726 = vmul.f32 1.0, %v5725
    %v5727 = vrcp.pop %v5718
    %v5728 = vmul.f32 1.0, %v5727
    %v5729 = vrcp.pop %v5719
    %v5730 = vmul.f32 1.0, %v5729
    %v5731 = vrcp.pop %v5720
    %v5732 = vmul.f32 1.0, %v5731
    %v5733 = vrcp.pop %v5721
    %v5734 = vmul.f32 1.0, %v5733
    %v5735 = vrcp.pop %v5722
    %v5736 = vmul.f32 1.0, %v5735
    %v5737 = vrcp.pop %v5723
    %v5738 = vmul.f32 1.0, %v5737
    %v5739 = vrcp.pop %v5724
    %v5740 = vmul.f32 1.0, %v5739
    %v5749 = vlaneseq
    %v5750 = vshrl.u32 %v5749, 7
    %v5751 = vsub.s32 %v747, %v5750
    %v5752 = vrot.slane %v5726, %v5751
    %v5753 = vlaneseq
    %v5754 = vshrl.u32 %v5753, 7
    %v5755 = vsub.s32 %v747, %v5754
    %v5756 = vrot.slane %v5728, %v5755
    %v5757 = vlaneseq
    %v5758 = vshrl.u32 %v5757, 7
    %v5759 = vsub.s32 %v747, %v5758
    %v5760 = vrot.slane %v5730, %v5759
    %v5761 = vlaneseq
    %v5762 = vshrl.u32 %v5761, 7
    %v5763 = vsub.s32 %v747, %v5762
    %v5764 = vrot.slane %v5732, %v5763
    %v5765 = vlaneseq
    %v5766 = vshrl.u32 %v5765, 7
    %v5767 = vsub.s32 %v747, %v5766
    %v5768 = vrot.slane %v5734, %v5767
    %v5769 = vlaneseq
    %v5770 = vshrl.u32 %v5769, 7
    %v5771 = vsub.s32 %v747, %v5770
    %v5772 = vrot.slane %v5736, %v5771
    %v5773 = vlaneseq
    %v5774 = vshrl.u32 %v5773, 7
    %v5775 = vsub.s32 %v747, %v5774
    %v5776 = vrot.slane %v5738, %v5775
    %v5777 = vlaneseq
    %v5778 = vshrl.u32 %v5777, 7
    %v5779 = vsub.s32 %v747, %v5778
    %v5780 = vrot.slane %v5740, %v5779
    %v5781 = vsel %vm780, %v5756, %v5752
    %v5782 = vsel %vm782, %v5760, %v5781
    %v5783 = vsel %vm784, %v5764, %v5782
    %v5784 = vsel %vm786, %v5768, %v5783
    %v5785 = vsel %vm788, %v5772, %v5784
    %v5786 = vsel %vm790, %v5776, %v5785
    %v5787 = vsel %vm792, %v5780, %v5786
    %5789 = vxpose.xlu0.b32.start [1/16] %v5787, 128
    %5790 = vxpose.xlu0.b32.cont [2/16] 0.0, 128
    %5791 = vxpose.xlu0.b32.cont [3/16] 0.0, 128
    %5792 = vxpose.xlu0.b32.cont [4/16] 0.0, 128
    %5793 = vxpose.xlu0.b32.cont [5/16] 0.0, 128
    %5794 = vxpose.xlu0.b32.cont [6/16] 0.0, 128
    %5795 = vxpose.xlu0.b32.cont [7/16] 0.0, 128
    %5796 = vxpose.xlu0.b32.cont [8/16] 0.0, 128
    %5797 = vxpose.xlu0.b32.cont [9/16] 0.0, 128
    %5798 = vxpose.xlu0.b32.cont [10/16] 0.0, 128
    %5799 = vxpose.xlu0.b32.cont [11/16] 0.0, 128
    %5800 = vxpose.xlu0.b32.cont [12/16] 0.0, 128
    %5801 = vxpose.xlu0.b32.cont [13/16] 0.0, 128
    %5802 = vxpose.xlu0.b32.cont [14/16] 0.0, 128
    %5803 = vxpose.xlu0.b32.cont [15/16] 0.0, 128
    %5804 = vxpose.xlu0.b32.end [16/16] 0.0, 128
    %v5805 = vpop.trf.xlu0
    %v5806 = vpop.trf.xlu0
    %v5807 = vpop.trf.xlu0
    %v5808 = vpop.trf.xlu0
    %v5809 = vpop.trf.xlu0
    %v5810 = vpop.trf.xlu0
    %v5811 = vpop.trf.xlu0
    %v5812 = vpop.trf.xlu0
    %v5813 = vpop.trf.xlu0
    %v5814 = vpop.trf.xlu0
    %v5815 = vpop.trf.xlu0
    %v5816 = vpop.trf.xlu0
    %v5817 = vpop.trf.xlu0
    %v5818 = vpop.trf.xlu0
    %v5819 = vpop.trf.xlu0
    %v5820 = vpop.trf.xlu0
    %v5821 = vcombine.high %v5562, %v5562
    %v5823 = vunpack.c.l.s4 1966171168
    %v5824 = vunpack.c.0.s8 %v5823
    %v5825 = vlaneseq
    %v5826 = vshrl.u32 %v5825, 7
    %v5827 = vsub.s32 %v5824, %v5826
    %v5828 = vrot.slane %v5562, %v5827
    %v5830 = vunpack.c.l.s4 1966171168
    %v5831 = vunpack.c.0.s8 %v5830
    %v5832 = vlaneseq
    %v5833 = vshrl.u32 %v5832, 7
    %v5834 = vsub.s32 %v5831, %v5833
    %v5835 = vrot.slane %v5821, %v5834
    %v5836 = vcombine.high %v5828, %v5828
    %v5837 = vcombine.high %v5835, %v5835
    %v5839 = vunpack.c.l.s4 1966171168
    %v5840 = vunpack.c.0.s8 %v5839
    %v5841 = vlaneseq
    %v5842 = vshrl.u32 %v5841, 7
    %v5843 = vsub.s32 %v5840, %v5842
    %v5844 = vrot.slane %v5828, %v5843
    %v5846 = vunpack.c.l.s4 1966171168
    %v5847 = vunpack.c.0.s8 %v5846
    %v5848 = vlaneseq
    %v5849 = vshrl.u32 %v5848, 7
    %v5850 = vsub.s32 %v5847, %v5849
    %v5851 = vrot.slane %v5835, %v5850
    %v5853 = vunpack.c.l.s4 1966171168
    %v5854 = vunpack.c.0.s8 %v5853
    %v5855 = vlaneseq
    %v5856 = vshrl.u32 %v5855, 7
    %v5857 = vsub.s32 %v5854, %v5856
    %v5858 = vrot.slane %v5836, %v5857
    %v5860 = vunpack.c.l.s4 1966171168
    %v5861 = vunpack.c.0.s8 %v5860
    %v5862 = vlaneseq
    %v5863 = vshrl.u32 %v5862, 7
    %v5864 = vsub.s32 %v5861, %v5863
    %v5865 = vrot.slane %v5837, %v5864
    %v5866 = vcombine.high %v5844, %v5844
    %v5867 = vcombine.high %v5851, %v5851
    %v5868 = vcombine.high %v5858, %v5858
    %v5869 = vcombine.high %v5865, %v5865
    %v5870 = vlaneseq
    %v5871 = vshrl.u32 %v5870, 7
    %v5872 = vsub.s32 0, %v5871
    %v5873 = vrot.slane %v5844, %v5872
    %v5874 = vlaneseq
    %v5875 = vshrl.u32 %v5874, 7
    %v5876 = vsub.s32 0, %v5875
    %v5877 = vrot.slane %v5858, %v5876
    %v5878 = vlaneseq
    %v5879 = vshrl.u32 %v5878, 7
    %v5880 = vsub.s32 0, %v5879
    %v5881 = vrot.slane %v5866, %v5880
    %v5882 = vlaneseq
    %v5883 = vshrl.u32 %v5882, 7
    %v5884 = vsub.s32 0, %v5883
    %v5885 = vrot.slane %v5868, %v5884
    %v5886 = vlaneseq
    %v5887 = vshrl.u32 %v5886, 7
    %v5888 = vsub.s32 0, %v5887
    %v5889 = vrot.slane %v5851, %v5888
    %v5890 = vlaneseq
    %v5891 = vshrl.u32 %v5890, 7
    %v5892 = vsub.s32 0, %v5891
    %v5893 = vrot.slane %v5865, %v5892
    %v5894 = vlaneseq
    %v5895 = vshrl.u32 %v5894, 7
    %v5896 = vsub.s32 0, %v5895
    %v5897 = vrot.slane %v5867, %v5896
    %v5898 = vlaneseq
    %v5899 = vshrl.u32 %v5898, 7
    %v5900 = vsub.s32 0, %v5899
    %v5901 = vrot.slane %v5869, %v5900
    %5910 = vrot.lane.b32.xlu0 %v3771, 16
    %v5911 = vpop.permute.xlu0 %5910
    %5912 = vrot.lane.b32.xlu0 %v3776, 16
    %v5913 = vpop.permute.xlu0 %5912
    %5914 = vrot.lane.b32.xlu0 %v3781, 16
    %v5915 = vpop.permute.xlu0 %5914
    %5916 = vrot.lane.b32.xlu0 %v3786, 16
    %v5917 = vpop.permute.xlu0 %5916
    %5918 = vrot.lane.b32.xlu0 %v3791, 16
    %v5919 = vpop.permute.xlu0 %5918
    %5920 = vrot.lane.b32.xlu0 %v3796, 16
    %v5921 = vpop.permute.xlu0 %5920
    %5922 = vrot.lane.b32.xlu0 %v3801, 16
    %v5923 = vpop.permute.xlu0 %5922
    %5924 = vrot.lane.b32.xlu0 %v3806, 16
    %v5925 = vpop.permute.xlu0 %5924
    %v5934 = vmul.f32 %v5873, %v5911
    %v5935 = vmul.f32 %v5877, %v5913
    %v5936 = vmul.f32 %v5881, %v5915
    %v5937 = vmul.f32 %v5885, %v5917
    %v5938 = vmul.f32 %v5889, %v5919
    %v5939 = vmul.f32 %v5893, %v5921
    %v5940 = vmul.f32 %v5897, %v5923
    %v5941 = vmul.f32 %v5901, %v5925
    %5950 = vrot.lane.b32.xlu0 %v5934, 112
    %v5951 = vpop.permute.xlu0 %5950
    %5952 = vrot.lane.b32.xlu0 %v5935, 112
    %v5953 = vpop.permute.xlu0 %5952
    %5954 = vrot.lane.b32.xlu0 %v5936, 112
    %v5955 = vpop.permute.xlu0 %5954
    %5956 = vrot.lane.b32.xlu0 %v5937, 112
    %v5957 = vpop.permute.xlu0 %5956
    %5958 = vrot.lane.b32.xlu0 %v5938, 112
    %v5959 = vpop.permute.xlu0 %5958
    %5960 = vrot.lane.b32.xlu0 %v5939, 112
    %v5961 = vpop.permute.xlu0 %5960
    %5962 = vrot.lane.b32.xlu0 %v5940, 112
    %v5963 = vpop.permute.xlu0 %5962
    %5964 = vrot.lane.b32.xlu0 %v5941, 112
    %v5965 = vpop.permute.xlu0 %5964
    %v5974 = vsel %vm564, %v5951, 0.0
    %5975 = vadd.xlane.f32.xlu0 %v5974
    %v5976 = vpop.xlane.xlu0 %5975
    %v5977 = vsel %vm564, %v5953, 0.0
    %5978 = vadd.xlane.f32.xlu0 %v5977
    %v5979 = vpop.xlane.xlu0 %5978
    %v5980 = vsel %vm564, %v5955, 0.0
    %5981 = vadd.xlane.f32.xlu0 %v5980
    %v5982 = vpop.xlane.xlu0 %5981
    %v5983 = vsel %vm564, %v5957, 0.0
    %5984 = vadd.xlane.f32.xlu0 %v5983
    %v5985 = vpop.xlane.xlu0 %5984
    %v5986 = vsel %vm564, %v5959, 0.0
    %5987 = vadd.xlane.f32.xlu0 %v5986
    %v5988 = vpop.xlane.xlu0 %5987
    %v5989 = vsel %vm564, %v5961, 0.0
    %5990 = vadd.xlane.f32.xlu0 %v5989
    %v5991 = vpop.xlane.xlu0 %5990
    %v5992 = vsel %vm564, %v5963, 0.0
    %5993 = vadd.xlane.f32.xlu0 %v5992
    %v5994 = vpop.xlane.xlu0 %5993
    %v5995 = vsel %vm564, %v5965, 0.0
    %5996 = vadd.xlane.f32.xlu0 %v5995
    %v5997 = vpop.xlane.xlu0 %5996
    %v6006 = vlaneseq
    %v6007 = vshrl.u32 %v6006, 7
    %v6008 = vsub.s32 %v747, %v6007
    %v6009 = vrot.slane %v5976, %v6008
    %v6010 = vlaneseq
    %v6011 = vshrl.u32 %v6010, 7
    %v6012 = vsub.s32 %v747, %v6011
    %v6013 = vrot.slane %v5979, %v6012
    %v6014 = vlaneseq
    %v6015 = vshrl.u32 %v6014, 7
    %v6016 = vsub.s32 %v747, %v6015
    %v6017 = vrot.slane %v5982, %v6016
    %v6018 = vlaneseq
    %v6019 = vshrl.u32 %v6018, 7
    %v6020 = vsub.s32 %v747, %v6019
    %v6021 = vrot.slane %v5985, %v6020
    %v6022 = vlaneseq
    %v6023 = vshrl.u32 %v6022, 7
    %v6024 = vsub.s32 %v747, %v6023
    %v6025 = vrot.slane %v5988, %v6024
    %v6026 = vlaneseq
    %v6027 = vshrl.u32 %v6026, 7
    %v6028 = vsub.s32 %v747, %v6027
    %v6029 = vrot.slane %v5991, %v6028
    %v6030 = vlaneseq
    %v6031 = vshrl.u32 %v6030, 7
    %v6032 = vsub.s32 %v747, %v6031
    %v6033 = vrot.slane %v5994, %v6032
    %v6034 = vlaneseq
    %v6035 = vshrl.u32 %v6034, 7
    %v6036 = vsub.s32 %v747, %v6035
    %v6037 = vrot.slane %v5997, %v6036
    %v6038 = vsel %vm780, %v6013, %v6009
    %v6039 = vsel %vm782, %v6017, %v6038
    %v6040 = vsel %vm784, %v6021, %v6039
    %v6041 = vsel %vm786, %v6025, %v6040
    %v6042 = vsel %vm788, %v6029, %v6041
    %v6043 = vsel %vm790, %v6033, %v6042
    %v6044 = vsel %vm792, %v6037, %v6043
    %v6046 = vmul.f32 %v5805, %v6044
    %v6047 = vadd.f32 %v5642, %v6046
    %v6048 = vadd.f32 %v6047, %v4475
    %v6049 = vsel %vm564, %v6048, -inf
    %6050 = vmax.xlane.f32.xlu0 %v6049
    %v6051 = vpop.xlane.xlu0 %6050
    %v6052 = vsub.f32 %v6048, %v6051
    %v6053 = vmul.f32 %v6052, 1.442695
    %v6054 = vpow.pop %v6053
    %v6055 = vsel %vm564, %v6054, 0.0
    %6056 = vadd.xlane.f32.xlu0 %v6055
    %v6057 = vpop.xlane.xlu0 %6056
    %v6058 = vrcp.pop %v6057
    %v6059 = vmul.f32 %v6054, %v6058
    %v6060 = vlaneseq
    %v6061 = vshrl.u32 %v6060, 7
    %v6062 = vsub.s32 0, %v6061
    %v6063 = vrot.slane %v6059, %v6062
    %6065 = vbcast.lane.b32.xlu0 %v6063, 256
    %v6066 = vpop.permute.xlu0 %6065
    %v6067 = vlaneseq
    %v6068 = vshrl.u32 %v6067, 7
    %v6069 = vsub.s32 1, %v6068
    %v6070 = vrot.slane %v6059, %v6069
    %6072 = vbcast.lane.b32.xlu0 %v6070, 256
    %v6073 = vpop.permute.xlu0 %6072
    %v6074 = vlaneseq
    %v6075 = vshrl.u32 %v6074, 7
    %v6076 = vsub.s32 2, %v6075
    %v6077 = vrot.slane %v6059, %v6076
    %6079 = vbcast.lane.b32.xlu0 %v6077, 256
    %v6080 = vpop.permute.xlu0 %6079
    %v6081 = vlaneseq
    %v6082 = vshrl.u32 %v6081, 7
    %v6083 = vsub.s32 3, %v6082
    %v6084 = vrot.slane %v6059, %v6083
    %6086 = vbcast.lane.b32.xlu0 %v6084, 256
    %v6087 = vpop.permute.xlu0 %6086
    %v6088 = vlaneseq
    %v6089 = vshrl.u32 %v6088, 7
    %v6090 = vsub.s32 4, %v6089
    %v6091 = vrot.slane %v6059, %v6090
    %6093 = vbcast.lane.b32.xlu0 %v6091, 256
    %v6094 = vpop.permute.xlu0 %6093
    %v6095 = vlaneseq
    %v6096 = vshrl.u32 %v6095, 7
    %v6097 = vsub.s32 5, %v6096
    %v6098 = vrot.slane %v6059, %v6097
    %6100 = vbcast.lane.b32.xlu0 %v6098, 256
    %v6101 = vpop.permute.xlu0 %6100
    %v6102 = vlaneseq
    %v6103 = vshrl.u32 %v6102, 7
    %v6104 = vsub.s32 6, %v6103
    %v6105 = vrot.slane %v6059, %v6104
    %6107 = vbcast.lane.b32.xlu0 %v6105, 256
    %v6108 = vpop.permute.xlu0 %6107
    %v6109 = vlaneseq
    %v6110 = vshrl.u32 %v6109, 7
    %v6111 = vsub.s32 7, %v6110
    %v6112 = vrot.slane %v6059, %v6111
    %6114 = vbcast.lane.b32.xlu0 %v6112, 256
    %v6115 = vpop.permute.xlu0 %6114
    %v6116 = vmul.f32 %v6066, %v3876
    %v6117 = vmul.f32 %v6073, %v3881
    %v6118 = vmul.f32 %v6080, %v3886
    %v6119 = vmul.f32 %v6087, %v3891
    %v6120 = vmul.f32 %v6094, %v3896
    %v6121 = vmul.f32 %v6101, %v3901
    %v6122 = vmul.f32 %v6108, %v3906
    %v6123 = vmul.f32 %v6115, %v3911
    %v6124 = vsel %vm564, %v6116, 0.0
    %v6125 = vrot.slane %v6124, 4
    %v6126 = vadd.f32 %v6124, %v6125
    %v6127 = vrot.slane %v6126, 2
    %v6128 = vadd.f32 %v6126, %v6127
    %v6129 = vrot.slane %v6128, 1
    %v6130 = vadd.f32 %v6128, %v6129
    %v6131 = vsel %vm564, %v6117, 0.0
    %v6132 = vrot.slane %v6131, 4
    %v6133 = vadd.f32 %v6131, %v6132
    %v6134 = vrot.slane %v6133, 2
    %v6135 = vadd.f32 %v6133, %v6134
    %v6136 = vrot.slane %v6135, 1
    %v6137 = vadd.f32 %v6135, %v6136
    %v6138 = vsel %vm564, %v6118, 0.0
    %v6139 = vrot.slane %v6138, 4
    %v6140 = vadd.f32 %v6138, %v6139
    %v6141 = vrot.slane %v6140, 2
    %v6142 = vadd.f32 %v6140, %v6141
    %v6143 = vrot.slane %v6142, 1
    %v6144 = vadd.f32 %v6142, %v6143
    %v6145 = vsel %vm564, %v6119, 0.0
    %v6146 = vrot.slane %v6145, 4
    %v6147 = vadd.f32 %v6145, %v6146
    %v6148 = vrot.slane %v6147, 2
    %v6149 = vadd.f32 %v6147, %v6148
    %v6150 = vrot.slane %v6149, 1
    %v6151 = vadd.f32 %v6149, %v6150
    %v6152 = vsel %vm564, %v6120, 0.0
    %v6153 = vrot.slane %v6152, 4
    %v6154 = vadd.f32 %v6152, %v6153
    %v6155 = vrot.slane %v6154, 2
    %v6156 = vadd.f32 %v6154, %v6155
    %v6157 = vrot.slane %v6156, 1
    %v6158 = vadd.f32 %v6156, %v6157
    %v6159 = vsel %vm564, %v6121, 0.0
    %v6160 = vrot.slane %v6159, 4
    %v6161 = vadd.f32 %v6159, %v6160
    %v6162 = vrot.slane %v6161, 2
    %v6163 = vadd.f32 %v6161, %v6162
    %v6164 = vrot.slane %v6163, 1
    %v6165 = vadd.f32 %v6163, %v6164
    %v6166 = vsel %vm564, %v6122, 0.0
    %v6167 = vrot.slane %v6166, 4
    %v6168 = vadd.f32 %v6166, %v6167
    %v6169 = vrot.slane %v6168, 2
    %v6170 = vadd.f32 %v6168, %v6169
    %v6171 = vrot.slane %v6170, 1
    %v6172 = vadd.f32 %v6170, %v6171
    %v6173 = vsel %vm564, %v6123, 0.0
    %v6174 = vrot.slane %v6173, 4
    %v6175 = vadd.f32 %v6173, %v6174
    %v6176 = vrot.slane %v6175, 2
    %v6177 = vadd.f32 %v6175, %v6176
    %v6178 = vrot.slane %v6177, 1
    %v6179 = vadd.f32 %v6177, %v6178
    %v6180 = vld [vmem:[%s2708] sm:$0x1]
    %s6182 = vtos %v6180
    %v6183 = vstv %s6182
    %v6185 = vmul.f32 %v6183, %v4005
    %v6186 = vadd.f32 %v6185, 0.0
    %v6187 = vld [vmem:[%s2708 + $0x1] sm:$0x1]
    %s6189 = vtos %v6187
    %v6190 = vstv %s6189
    %v6192 = vmul.f32 %v6190, %v4010
    %v6193 = vadd.f32 %v6186, %v6192
    %v6194 = vld [vmem:[%s2708 + $0x2] sm:$0x1]
    %s6196 = vtos %v6194
    %v6197 = vstv %s6196
    %v6199 = vmul.f32 %v6197, %v4015
    %v6200 = vadd.f32 %v6193, %v6199
    %v6201 = vld [vmem:[%s2708 + $0x3] sm:$0x1]
    %s6203 = vtos %v6201
    %v6204 = vstv %s6203
    %v6206 = vmul.f32 %v6204, %v4020
    %v6207 = vadd.f32 %v6200, %v6206
    %v6208 = vld [vmem:[%s2708 + $0x4] sm:$0x1]
    %s6210 = vtos %v6208
    %v6211 = vstv %s6210
    %v6213 = vmul.f32 %v6211, %v4025
    %v6214 = vadd.f32 %v6207, %v6213
    %v6215 = vld [vmem:[%s2708 + $0x5] sm:$0x1]
    %s6217 = vtos %v6215
    %v6218 = vstv %s6217
    %v6220 = vmul.f32 %v6218, %v4030
    %v6221 = vadd.f32 %v6214, %v6220
    %v6222 = vld [vmem:[%s2708 + $0x6] sm:$0x1]
    %s6224 = vtos %v6222
    %v6225 = vstv %s6224
    %v6227 = vmul.f32 %v6225, %v4035
    %v6228 = vadd.f32 %v6221, %v6227
    %v6229 = vld [vmem:[%s2708 + $0x7] sm:$0x1]
    %s6231 = vtos %v6229
    %v6232 = vstv %s6231
    %v6234 = vmul.f32 %v6232, %v4040
    %v6235 = vadd.f32 %v6228, %v6234
    %v6236 = vld [vmem:[%s11 + $0x2] sm:$0x1]
    %s6238 = vtos %v6236
    %v6239 = vstv %s6238
    %v6241 = vadd.f32 %v6235, %v6239
    %v6242 = vxor.u32 %v6241, 2147483648
    %v6243 = vmul.f32 %v6242, 1.442695
    %v6244 = vpow.pop %v6243
    %v6245 = vadd.f32 %v6244, 1.0
    %v6246 = vrcp.pop %v6245
    %v6247 = vmul.f32 1.0, %v6246
    %v6256 = vsel %vm780, %v6137, %v6130
    %v6257 = vsel %vm782, %v6144, %v6256
    %v6258 = vsel %vm784, %v6151, %v6257
    %v6259 = vsel %vm786, %v6158, %v6258
    %v6260 = vsel %vm788, %v6165, %v6259
    %v6261 = vsel %vm790, %v6172, %v6260
    %v6262 = vsel %vm792, %v6179, %v6261
    %v6264 = vmul.f32 %v6247, %v6262
    %6265 = vrot.lane.b32.xlu0 %v5562, 48
    %v6266 = vpop.permute.xlu0 %6265
    %v6269 = vsel %vm564, %v6059, 0
    %6271 = vmatprep.subr.mxu0 0.0
    %6272 = vmatpush1.msra.mxu0 %v6266
    %6273 = vmatprep.subr.mxu0 0.0
    %6274 = vmatpush1.msra.mxu0 0.0
    %6275 = vmatprep.subr.mxu0 0.0
    %6276 = vmatpush1.msra.mxu0 0.0
    %6277 = vmatprep.subr.mxu0 0.0
    %6278 = vmatpush1.msra.mxu0 0.0
    %6279 = vmatprep.subr.mxu0 0.0
    %6280 = vmatpush1.msra.mxu0 0.0
    %6281 = vmatprep.subr.mxu0 0.0
    %6282 = vmatpush1.msra.mxu0 0.0
    %6283 = vmatprep.subr.mxu0 0.0
    %6284 = vmatpush1.msra.mxu0 0.0
    %6285 = vmatprep.subr.mxu0 0.0
    %6286 = vmatpush1.msra.mxu0 0.0
    %6287 = vmatprep.subr.mxu0 0.0
    %6288 = vmatpush1.msra.mxu0 0.0
    %6289 = vmatprep.subr.mxu0 0.0
    %6290 = vmatpush1.msra.mxu0 0.0
    %6291 = vmatprep.subr.mxu0 0.0
    %6292 = vmatpush1.msra.mxu0 0.0
    %6293 = vmatprep.subr.mxu0 0.0
    %6294 = vmatpush1.msra.mxu0 0.0
    %6295 = vmatprep.subr.mxu0 0.0
    %6296 = vmatpush1.msra.mxu0 0.0
    %6297 = vmatprep.subr.mxu0 0.0
    %6298 = vmatpush1.msra.mxu0 0.0
    %6299 = vmatprep.subr.mxu0 0.0
    %6300 = vmatpush1.msra.mxu0 0.0
    %6301 = vmatprep.subr.mxu0 0.0
    %6302 = vmatpush1.msra.mxu0 0.0
    %6303 = vmatprep.subr.mxu0 0.0
    %6304 = vmatpush1.msra.mxu0 0.0
    %6305 = vmatprep.subr.mxu0 0.0
    %6306 = vmatpush1.msra.mxu0 0.0
    %6307 = vmatprep.subr.mxu0 0.0
    %6308 = vmatpush1.msra.mxu0 0.0
    %6309 = vmatprep.subr.mxu0 0.0
    %6310 = vmatpush1.msra.mxu0 0.0
    %6311 = vmatprep.subr.mxu0 0.0
    %6312 = vmatpush1.msra.mxu0 0.0
    %6313 = vmatprep.subr.mxu0 0.0
    %6314 = vmatpush1.msra.mxu0 0.0
    %6315 = vmatprep.subr.mxu0 0.0
    %6316 = vmatpush1.msra.mxu0 0.0
    %6317 = vmatprep.subr.mxu0 0.0
    %6318 = vmatpush1.msra.mxu0 0.0
    %6319 = vmatprep.subr.mxu0 0.0
    %6320 = vmatpush1.msra.mxu0 0.0
    %6321 = vmatprep.subr.mxu0 0.0
    %6322 = vmatpush1.msra.mxu0 0.0
    %6323 = vmatprep.subr.mxu0 0.0
    %6324 = vmatpush1.msra.mxu0 0.0
    %6325 = vmatprep.subr.mxu0 0.0
    %6326 = vmatpush1.msra.mxu0 0.0
    %6327 = vmatprep.subr.mxu0 0.0
    %6328 = vmatpush1.msra.mxu0 0.0
    %6329 = vmatprep.subr.mxu0 0.0
    %6330 = vmatpush1.msra.mxu0 0.0
    %6331 = vmatprep.subr.mxu0 0.0
    %6332 = vmatpush1.msra.mxu0 0.0
    %6333 = vmatprep.subr.mxu0 0.0
    %6334 = vmatpush1.msra.mxu0 0.0
    %6335 = vmatprep.mubr.f32.mxu0 0.0
    %6336 = vmatmul.mubr.f32.gmra.mrb[0].mxu0 %v6269
    %v6337 = vpop.f32.mrb[0].mxu0
    %v6338 = vadd.f32 %v6264, %v6337
    %v6339 = vpop.f32.mrb[0].mxu0
    %6340 = vdwg.mxu0
    %6342 = vrot.lane.b32.xlu0 %v6338, 16
    %v6343 = vpop.permute.xlu0 %6342
    %6345 = vst.msk [vmem:[#allocation3 + $0x8] sm:$0xff] %vm2874, %v6343
    %v6346 = vld [vmem:[#allocation2 + $0x8] sm:$0xff]
    %6348 = vrot.lane.b32.xlu0 %v6346, 104
    %v6349 = vpop.permute.xlu0 %6348
    %6350 = vrot.lane.b32.xlu0 %v6346, 72
    %v6351 = vpop.permute.xlu0 %6350
    %v6352 = vsel %vm564, %v6349, 0
    %v6354 = vsel %vm564, %v6351, 0
    %6356 = vmatprep.subr.mxu0 0.0
    %6357 = vmatpush1.xpose.msra.mxu0 %v6354
    %6358 = vmatprep.subr.mxu0 0.0
    %6359 = vmatpush1.xpose.msra.mxu0 0.0
    %6360 = vmatprep.subr.mxu0 0.0
    %6361 = vmatpush1.xpose.msra.mxu0 0.0
    %6362 = vmatprep.subr.mxu0 0.0
    %6363 = vmatpush1.xpose.msra.mxu0 0.0
    %6364 = vmatprep.subr.mxu0 0.0
    %6365 = vmatpush1.xpose.msra.mxu0 0.0
    %6366 = vmatprep.subr.mxu0 0.0
    %6367 = vmatpush1.xpose.msra.mxu0 0.0
    %6368 = vmatprep.subr.mxu0 0.0
    %6369 = vmatpush1.xpose.msra.mxu0 0.0
    %6370 = vmatprep.subr.mxu0 0.0
    %6371 = vmatpush1.xpose.msra.mxu0 0.0
    %6372 = vmatprep.subr.mxu0 0.0
    %6373 = vmatpush1.xpose.msra.mxu0 0.0
    %6374 = vmatprep.subr.mxu0 0.0
    %6375 = vmatpush1.xpose.msra.mxu0 0.0
    %6376 = vmatprep.subr.mxu0 0.0
    %6377 = vmatpush1.xpose.msra.mxu0 0.0
    %6378 = vmatprep.subr.mxu0 0.0
    %6379 = vmatpush1.xpose.msra.mxu0 0.0
    %6380 = vmatprep.subr.mxu0 0.0
    %6381 = vmatpush1.xpose.msra.mxu0 0.0
    %6382 = vmatprep.subr.mxu0 0.0
    %6383 = vmatpush1.xpose.msra.mxu0 0.0
    %6384 = vmatprep.subr.mxu0 0.0
    %6385 = vmatpush1.xpose.msra.mxu0 0.0
    %6386 = vmatprep.subr.mxu0 0.0
    %6387 = vmatpush1.xpose.msra.mxu0 0.0
    %6388 = vmatprep.subr.mxu0 0.0
    %6389 = vmatpush1.xpose.msra.mxu0 0.0
    %6390 = vmatprep.subr.mxu0 0.0
    %6391 = vmatpush1.xpose.msra.mxu0 0.0
    %6392 = vmatprep.subr.mxu0 0.0
    %6393 = vmatpush1.xpose.msra.mxu0 0.0
    %6394 = vmatprep.subr.mxu0 0.0
    %6395 = vmatpush1.xpose.msra.mxu0 0.0
    %6396 = vmatprep.subr.mxu0 0.0
    %6397 = vmatpush1.xpose.msra.mxu0 0.0
    %6398 = vmatprep.subr.mxu0 0.0
    %6399 = vmatpush1.xpose.msra.mxu0 0.0
    %6400 = vmatprep.subr.mxu0 0.0
    %6401 = vmatpush1.xpose.msra.mxu0 0.0
    %6402 = vmatprep.subr.mxu0 0.0
    %6403 = vmatpush1.xpose.msra.mxu0 0.0
    %6404 = vmatprep.subr.mxu0 0.0
    %6405 = vmatpush1.xpose.msra.mxu0 0.0
    %6406 = vmatprep.subr.mxu0 0.0
    %6407 = vmatpush1.xpose.msra.mxu0 0.0
    %6408 = vmatprep.subr.mxu0 0.0
    %6409 = vmatpush1.xpose.msra.mxu0 0.0
    %6410 = vmatprep.subr.mxu0 0.0
    %6411 = vmatpush1.xpose.msra.mxu0 0.0
    %6412 = vmatprep.subr.mxu0 0.0
    %6413 = vmatpush1.xpose.msra.mxu0 0.0
    %6414 = vmatprep.subr.mxu0 0.0
    %6415 = vmatpush1.xpose.msra.mxu0 0.0
    %6416 = vmatprep.subr.mxu0 0.0
    %6417 = vmatpush1.xpose.msra.mxu0 0.0
    %6418 = vmatprep.subr.mxu0 0.0
    %6419 = vmatpush1.xpose.msra.mxu0 0.0
    %6420 = vmatprep.mubr.f32.mxu0 0.0
    %6421 = vmatmul.mubr.f32.gmra.mrb[0].mxu0 %v6352
    %v6422 = vpop.f32.mrb[0].mxu0
    %v6423 = vadd.f32 0.0, %v6422
    %v6424 = vpop.f32.mrb[0].mxu0
    %6425 = vdwg.mxu0
    %v6426 = vmul.f32 %v6423, 0.35355338
    %v6427 = vld [vmem:[%s8 + $0x3] sm:$0x1]
    %v6428 = vld [vmem:[%s9 + $0x3] sm:$0x1]
    %v6429 = vlaneseq
    %v6430 = vshrl.u32 %v6429, 7
    %v6431 = vsub.s32 0, %v6430
    %v6432 = vrot.slane %v6427, %v6431
    %v6433 = vmul.f32 %v3771, %v6432
    %v6434 = vmul.f32 %v3776, %v6432
    %v6435 = vmul.f32 %v3781, %v6432
    %v6436 = vmul.f32 %v3786, %v6432
    %v6437 = vmul.f32 %v3791, %v6432
    %v6438 = vmul.f32 %v3796, %v6432
    %v6439 = vmul.f32 %v3801, %v6432
    %v6440 = vmul.f32 %v3806, %v6432
    %v6441 = vsel %vm564, %v6433, 0.0
    %6442 = vadd.xlane.f32.xlu0 %v6441
    %v6443 = vpop.xlane.xlu0 %6442
    %v6444 = vsel %vm564, %v6434, 0.0
    %6445 = vadd.xlane.f32.xlu0 %v6444
    %v6446 = vpop.xlane.xlu0 %6445
    %v6447 = vsel %vm564, %v6435, 0.0
    %6448 = vadd.xlane.f32.xlu0 %v6447
    %v6449 = vpop.xlane.xlu0 %6448
    %v6450 = vsel %vm564, %v6436, 0.0
    %6451 = vadd.xlane.f32.xlu0 %v6450
    %v6452 = vpop.xlane.xlu0 %6451
    %v6453 = vsel %vm564, %v6437, 0.0
    %6454 = vadd.xlane.f32.xlu0 %v6453
    %v6455 = vpop.xlane.xlu0 %6454
    %v6456 = vsel %vm564, %v6438, 0.0
    %6457 = vadd.xlane.f32.xlu0 %v6456
    %v6458 = vpop.xlane.xlu0 %6457
    %v6459 = vsel %vm564, %v6439, 0.0
    %6460 = vadd.xlane.f32.xlu0 %v6459
    %v6461 = vpop.xlane.xlu0 %6460
    %v6462 = vsel %vm564, %v6440, 0.0
    %6463 = vadd.xlane.f32.xlu0 %v6462
    %v6464 = vpop.xlane.xlu0 %6463
    %s6466 = vtos %v6428
    %v6467 = vstv %s6466
    %v6469 = vadd.f32 %v6443, %v6467
    %v6470 = vadd.f32 %v6446, %v6467
    %v6471 = vadd.f32 %v6449, %v6467
    %v6472 = vadd.f32 %v6452, %v6467
    %v6473 = vadd.f32 %v6455, %v6467
    %v6474 = vadd.f32 %v6458, %v6467
    %v6475 = vadd.f32 %v6461, %v6467
    %v6476 = vadd.f32 %v6464, %v6467
    %v6477 = vxor.u32 %v6469, 2147483648
    %v6478 = vxor.u32 %v6470, 2147483648
    %v6479 = vxor.u32 %v6471, 2147483648
    %v6480 = vxor.u32 %v6472, 2147483648
    %v6481 = vxor.u32 %v6473, 2147483648
    %v6482 = vxor.u32 %v6474, 2147483648
    %v6483 = vxor.u32 %v6475, 2147483648
    %v6484 = vxor.u32 %v6476, 2147483648
    %v6485 = vmul.f32 %v6477, 1.442695
    %v6486 = vpow.pop %v6485
    %v6487 = vmul.f32 %v6478, 1.442695
    %v6488 = vpow.pop %v6487
    %v6489 = vmul.f32 %v6479, 1.442695
    %v6490 = vpow.pop %v6489
    %v6491 = vmul.f32 %v6480, 1.442695
    %v6492 = vpow.pop %v6491
    %v6493 = vmul.f32 %v6481, 1.442695
    %v6494 = vpow.pop %v6493
    %v6495 = vmul.f32 %v6482, 1.442695
    %v6496 = vpow.pop %v6495
    %v6497 = vmul.f32 %v6483, 1.442695
    %v6498 = vpow.pop %v6497
    %v6499 = vmul.f32 %v6484, 1.442695
    %v6500 = vpow.pop %v6499
    %v6501 = vadd.f32 %v6486, 1.0
    %v6502 = vadd.f32 %v6488, 1.0
    %v6503 = vadd.f32 %v6490, 1.0
    %v6504 = vadd.f32 %v6492, 1.0
    %v6505 = vadd.f32 %v6494, 1.0
    %v6506 = vadd.f32 %v6496, 1.0
    %v6507 = vadd.f32 %v6498, 1.0
    %v6508 = vadd.f32 %v6500, 1.0
    %v6509 = vrcp.pop %v6501
    %v6510 = vmul.f32 1.0, %v6509
    %v6511 = vrcp.pop %v6502
    %v6512 = vmul.f32 1.0, %v6511
    %v6513 = vrcp.pop %v6503
    %v6514 = vmul.f32 1.0, %v6513
    %v6515 = vrcp.pop %v6504
    %v6516 = vmul.f32 1.0, %v6515
    %v6517 = vrcp.pop %v6505
    %v6518 = vmul.f32 1.0, %v6517
    %v6519 = vrcp.pop %v6506
    %v6520 = vmul.f32 1.0, %v6519
    %v6521 = vrcp.pop %v6507
    %v6522 = vmul.f32 1.0, %v6521
    %v6523 = vrcp.pop %v6508
    %v6524 = vmul.f32 1.0, %v6523
    %v6533 = vlaneseq
    %v6534 = vshrl.u32 %v6533, 7
    %v6535 = vsub.s32 %v747, %v6534
    %v6536 = vrot.slane %v6510, %v6535
    %v6537 = vlaneseq
    %v6538 = vshrl.u32 %v6537, 7
    %v6539 = vsub.s32 %v747, %v6538
    %v6540 = vrot.slane %v6512, %v6539
    %v6541 = vlaneseq
    %v6542 = vshrl.u32 %v6541, 7
    %v6543 = vsub.s32 %v747, %v6542
    %v6544 = vrot.slane %v6514, %v6543
    %v6545 = vlaneseq
    %v6546 = vshrl.u32 %v6545, 7
    %v6547 = vsub.s32 %v747, %v6546
    %v6548 = vrot.slane %v6516, %v6547
    %v6549 = vlaneseq
    %v6550 = vshrl.u32 %v6549, 7
    %v6551 = vsub.s32 %v747, %v6550
    %v6552 = vrot.slane %v6518, %v6551
    %v6553 = vlaneseq
    %v6554 = vshrl.u32 %v6553, 7
    %v6555 = vsub.s32 %v747, %v6554
    %v6556 = vrot.slane %v6520, %v6555
    %v6557 = vlaneseq
    %v6558 = vshrl.u32 %v6557, 7
    %v6559 = vsub.s32 %v747, %v6558
    %v6560 = vrot.slane %v6522, %v6559
    %v6561 = vlaneseq
    %v6562 = vshrl.u32 %v6561, 7
    %v6563 = vsub.s32 %v747, %v6562
    %v6564 = vrot.slane %v6524, %v6563
    %v6565 = vsel %vm780, %v6540, %v6536
    %v6566 = vsel %vm782, %v6544, %v6565
    %v6567 = vsel %vm784, %v6548, %v6566
    %v6568 = vsel %vm786, %v6552, %v6567
    %v6569 = vsel %vm788, %v6556, %v6568
    %v6570 = vsel %vm790, %v6560, %v6569
    %v6571 = vsel %vm792, %v6564, %v6570
    %6573 = vxpose.xlu0.b32.start [1/16] %v6571, 128
    %6574 = vxpose.xlu0.b32.cont [2/16] 0.0, 128
    %6575 = vxpose.xlu0.b32.cont [3/16] 0.0, 128
    %6576 = vxpose.xlu0.b32.cont [4/16] 0.0, 128
    %6577 = vxpose.xlu0.b32.cont [5/16] 0.0, 128
    %6578 = vxpose.xlu0.b32.cont [6/16] 0.0, 128
    %6579 = vxpose.xlu0.b32.cont [7/16] 0.0, 128
    %6580 = vxpose.xlu0.b32.cont [8/16] 0.0, 128
    %6581 = vxpose.xlu0.b32.cont [9/16] 0.0, 128
    %6582 = vxpose.xlu0.b32.cont [10/16] 0.0, 128
    %6583 = vxpose.xlu0.b32.cont [11/16] 0.0, 128
    %6584 = vxpose.xlu0.b32.cont [12/16] 0.0, 128
    %6585 = vxpose.xlu0.b32.cont [13/16] 0.0, 128
    %6586 = vxpose.xlu0.b32.cont [14/16] 0.0, 128
    %6587 = vxpose.xlu0.b32.cont [15/16] 0.0, 128
    %6588 = vxpose.xlu0.b32.end [16/16] 0.0, 128
    %v6589 = vpop.trf.xlu0
    %v6590 = vpop.trf.xlu0
    %v6591 = vpop.trf.xlu0
    %v6592 = vpop.trf.xlu0
    %v6593 = vpop.trf.xlu0
    %v6594 = vpop.trf.xlu0
    %v6595 = vpop.trf.xlu0
    %v6596 = vpop.trf.xlu0
    %v6597 = vpop.trf.xlu0
    %v6598 = vpop.trf.xlu0
    %v6599 = vpop.trf.xlu0
    %v6600 = vpop.trf.xlu0
    %v6601 = vpop.trf.xlu0
    %v6602 = vpop.trf.xlu0
    %v6603 = vpop.trf.xlu0
    %v6604 = vpop.trf.xlu0
    %v6605 = vcombine.high %v6346, %v6346
    %v6607 = vunpack.c.l.s4 1966171168
    %v6608 = vunpack.c.0.s8 %v6607
    %v6609 = vlaneseq
    %v6610 = vshrl.u32 %v6609, 7
    %v6611 = vsub.s32 %v6608, %v6610
    %v6612 = vrot.slane %v6346, %v6611
    %v6614 = vunpack.c.l.s4 1966171168
    %v6615 = vunpack.c.0.s8 %v6614
    %v6616 = vlaneseq
    %v6617 = vshrl.u32 %v6616, 7
    %v6618 = vsub.s32 %v6615, %v6617
    %v6619 = vrot.slane %v6605, %v6618
    %v6620 = vcombine.high %v6612, %v6612
    %v6621 = vcombine.high %v6619, %v6619
    %v6623 = vunpack.c.l.s4 1966171168
    %v6624 = vunpack.c.0.s8 %v6623
    %v6625 = vlaneseq
    %v6626 = vshrl.u32 %v6625, 7
    %v6627 = vsub.s32 %v6624, %v6626
    %v6628 = vrot.slane %v6612, %v6627
    %v6630 = vunpack.c.l.s4 1966171168
    %v6631 = vunpack.c.0.s8 %v6630
    %v6632 = vlaneseq
    %v6633 = vshrl.u32 %v6632, 7
    %v6634 = vsub.s32 %v6631, %v6633
    %v6635 = vrot.slane %v6619, %v6634
    %v6637 = vunpack.c.l.s4 1966171168
    %v6638 = vunpack.c.0.s8 %v6637
    %v6639 = vlaneseq
    %v6640 = vshrl.u32 %v6639, 7
    %v6641 = vsub.s32 %v6638, %v6640
    %v6642 = vrot.slane %v6620, %v6641
    %v6644 = vunpack.c.l.s4 1966171168
    %v6645 = vunpack.c.0.s8 %v6644
    %v6646 = vlaneseq
    %v6647 = vshrl.u32 %v6646, 7
    %v6648 = vsub.s32 %v6645, %v6647
    %v6649 = vrot.slane %v6621, %v6648
    %v6650 = vcombine.high %v6628, %v6628
    %v6651 = vcombine.high %v6635, %v6635
    %v6652 = vcombine.high %v6642, %v6642
    %v6653 = vcombine.high %v6649, %v6649
    %v6654 = vlaneseq
    %v6655 = vshrl.u32 %v6654, 7
    %v6656 = vsub.s32 0, %v6655
    %v6657 = vrot.slane %v6628, %v6656
    %v6658 = vlaneseq
    %v6659 = vshrl.u32 %v6658, 7
    %v6660 = vsub.s32 0, %v6659
    %v6661 = vrot.slane %v6642, %v6660
    %v6662 = vlaneseq
    %v6663 = vshrl.u32 %v6662, 7
    %v6664 = vsub.s32 0, %v6663
    %v6665 = vrot.slane %v6650, %v6664
    %v6666 = vlaneseq
    %v6667 = vshrl.u32 %v6666, 7
    %v6668 = vsub.s32 0, %v6667
    %v6669 = vrot.slane %v6652, %v6668
    %v6670 = vlaneseq
    %v6671 = vshrl.u32 %v6670, 7
    %v6672 = vsub.s32 0, %v6671
    %v6673 = vrot.slane %v6635, %v6672
    %v6674 = vlaneseq
    %v6675 = vshrl.u32 %v6674, 7
    %v6676 = vsub.s32 0, %v6675
    %v6677 = vrot.slane %v6649, %v6676
    %v6678 = vlaneseq
    %v6679 = vshrl.u32 %v6678, 7
    %v6680 = vsub.s32 0, %v6679
    %v6681 = vrot.slane %v6651, %v6680
    %v6682 = vlaneseq
    %v6683 = vshrl.u32 %v6682, 7
    %v6684 = vsub.s32 0, %v6683
    %v6685 = vrot.slane %v6653, %v6684
    %6694 = vrot.lane.b32.xlu0 %v3771, 24
    %v6695 = vpop.permute.xlu0 %6694
    %6696 = vrot.lane.b32.xlu0 %v3776, 24
    %v6697 = vpop.permute.xlu0 %6696
    %6698 = vrot.lane.b32.xlu0 %v3781, 24
    %v6699 = vpop.permute.xlu0 %6698
    %6700 = vrot.lane.b32.xlu0 %v3786, 24
    %v6701 = vpop.permute.xlu0 %6700
    %6702 = vrot.lane.b32.xlu0 %v3791, 24
    %v6703 = vpop.permute.xlu0 %6702
    %6704 = vrot.lane.b32.xlu0 %v3796, 24
    %v6705 = vpop.permute.xlu0 %6704
    %6706 = vrot.lane.b32.xlu0 %v3801, 24
    %v6707 = vpop.permute.xlu0 %6706
    %6708 = vrot.lane.b32.xlu0 %v3806, 24
    %v6709 = vpop.permute.xlu0 %6708
    %v6718 = vmul.f32 %v6657, %v6695
    %v6719 = vmul.f32 %v6661, %v6697
    %v6720 = vmul.f32 %v6665, %v6699
    %v6721 = vmul.f32 %v6669, %v6701
    %v6722 = vmul.f32 %v6673, %v6703
    %v6723 = vmul.f32 %v6677, %v6705
    %v6724 = vmul.f32 %v6681, %v6707
    %v6725 = vmul.f32 %v6685, %v6709
    %6734 = vrot.lane.b32.xlu0 %v6718, 104
    %v6735 = vpop.permute.xlu0 %6734
    %6736 = vrot.lane.b32.xlu0 %v6719, 104
    %v6737 = vpop.permute.xlu0 %6736
    %6738 = vrot.lane.b32.xlu0 %v6720, 104
    %v6739 = vpop.permute.xlu0 %6738
    %6740 = vrot.lane.b32.xlu0 %v6721, 104
    %v6741 = vpop.permute.xlu0 %6740
    %6742 = vrot.lane.b32.xlu0 %v6722, 104
    %v6743 = vpop.permute.xlu0 %6742
    %6744 = vrot.lane.b32.xlu0 %v6723, 104
    %v6745 = vpop.permute.xlu0 %6744
    %6746 = vrot.lane.b32.xlu0 %v6724, 104
    %v6747 = vpop.permute.xlu0 %6746
    %6748 = vrot.lane.b32.xlu0 %v6725, 104
    %v6749 = vpop.permute.xlu0 %6748
    %v6758 = vsel %vm564, %v6735, 0.0
    %6759 = vadd.xlane.f32.xlu0 %v6758
    %v6760 = vpop.xlane.xlu0 %6759
    %v6761 = vsel %vm564, %v6737, 0.0
    %6762 = vadd.xlane.f32.xlu0 %v6761
    %v6763 = vpop.xlane.xlu0 %6762
    %v6764 = vsel %vm564, %v6739, 0.0
    %6765 = vadd.xlane.f32.xlu0 %v6764
    %v6766 = vpop.xlane.xlu0 %6765
    %v6767 = vsel %vm564, %v6741, 0.0
    %6768 = vadd.xlane.f32.xlu0 %v6767
    %v6769 = vpop.xlane.xlu0 %6768
    %v6770 = vsel %vm564, %v6743, 0.0
    %6771 = vadd.xlane.f32.xlu0 %v6770
    %v6772 = vpop.xlane.xlu0 %6771
    %v6773 = vsel %vm564, %v6745, 0.0
    %6774 = vadd.xlane.f32.xlu0 %v6773
    %v6775 = vpop.xlane.xlu0 %6774
    %v6776 = vsel %vm564, %v6747, 0.0
    %6777 = vadd.xlane.f32.xlu0 %v6776
    %v6778 = vpop.xlane.xlu0 %6777
    %v6779 = vsel %vm564, %v6749, 0.0
    %6780 = vadd.xlane.f32.xlu0 %v6779
    %v6781 = vpop.xlane.xlu0 %6780
    %v6790 = vlaneseq
    %v6791 = vshrl.u32 %v6790, 7
    %v6792 = vsub.s32 %v747, %v6791
    %v6793 = vrot.slane %v6760, %v6792
    %v6794 = vlaneseq
    %v6795 = vshrl.u32 %v6794, 7
    %v6796 = vsub.s32 %v747, %v6795
    %v6797 = vrot.slane %v6763, %v6796
    %v6798 = vlaneseq
    %v6799 = vshrl.u32 %v6798, 7
    %v6800 = vsub.s32 %v747, %v6799
    %v6801 = vrot.slane %v6766, %v6800
    %v6802 = vlaneseq
    %v6803 = vshrl.u32 %v6802, 7
    %v6804 = vsub.s32 %v747, %v6803
    %v6805 = vrot.slane %v6769, %v6804
    %v6806 = vlaneseq
    %v6807 = vshrl.u32 %v6806, 7
    %v6808 = vsub.s32 %v747, %v6807
    %v6809 = vrot.slane %v6772, %v6808
    %v6810 = vlaneseq
    %v6811 = vshrl.u32 %v6810, 7
    %v6812 = vsub.s32 %v747, %v6811
    %v6813 = vrot.slane %v6775, %v6812
    %v6814 = vlaneseq
    %v6815 = vshrl.u32 %v6814, 7
    %v6816 = vsub.s32 %v747, %v6815
    %v6817 = vrot.slane %v6778, %v6816
    %v6818 = vlaneseq
    %v6819 = vshrl.u32 %v6818, 7
    %v6820 = vsub.s32 %v747, %v6819
    %v6821 = vrot.slane %v6781, %v6820
    %v6822 = vsel %vm780, %v6797, %v6793
    %v6823 = vsel %vm782, %v6801, %v6822
    %v6824 = vsel %vm784, %v6805, %v6823
    %v6825 = vsel %vm786, %v6809, %v6824
    %v6826 = vsel %vm788, %v6813, %v6825
    %v6827 = vsel %vm790, %v6817, %v6826
    %v6828 = vsel %vm792, %v6821, %v6827
    %v6830 = vmul.f32 %v6589, %v6828
    %v6831 = vadd.f32 %v6426, %v6830
    %v6832 = vadd.f32 %v6831, %v4475
    %v6833 = vsel %vm564, %v6832, -inf
    %6834 = vmax.xlane.f32.xlu0 %v6833
    %v6835 = vpop.xlane.xlu0 %6834
    %v6836 = vsub.f32 %v6832, %v6835
    %v6837 = vmul.f32 %v6836, 1.442695
    %v6838 = vpow.pop %v6837
    %v6839 = vsel %vm564, %v6838, 0.0
    %6840 = vadd.xlane.f32.xlu0 %v6839
    %v6841 = vpop.xlane.xlu0 %6840
    %v6842 = vrcp.pop %v6841
    %v6843 = vmul.f32 %v6838, %v6842
    %v6844 = vlaneseq
    %v6845 = vshrl.u32 %v6844, 7
    %v6846 = vsub.s32 0, %v6845
    %v6847 = vrot.slane %v6843, %v6846
    %6849 = vbcast.lane.b32.xlu0 %v6847, 256
    %v6850 = vpop.permute.xlu0 %6849
    %v6851 = vlaneseq
    %v6852 = vshrl.u32 %v6851, 7
    %v6853 = vsub.s32 1, %v6852
    %v6854 = vrot.slane %v6843, %v6853
    %6856 = vbcast.lane.b32.xlu0 %v6854, 256
    %v6857 = vpop.permute.xlu0 %6856
    %v6858 = vlaneseq
    %v6859 = vshrl.u32 %v6858, 7
    %v6860 = vsub.s32 2, %v6859
    %v6861 = vrot.slane %v6843, %v6860
    %6863 = vbcast.lane.b32.xlu0 %v6861, 256
    %v6864 = vpop.permute.xlu0 %6863
    %v6865 = vlaneseq
    %v6866 = vshrl.u32 %v6865, 7
    %v6867 = vsub.s32 3, %v6866
    %v6868 = vrot.slane %v6843, %v6867
    %6870 = vbcast.lane.b32.xlu0 %v6868, 256
    %v6871 = vpop.permute.xlu0 %6870
    %v6872 = vlaneseq
    %v6873 = vshrl.u32 %v6872, 7
    %v6874 = vsub.s32 4, %v6873
    %v6875 = vrot.slane %v6843, %v6874
    %6877 = vbcast.lane.b32.xlu0 %v6875, 256
    %v6878 = vpop.permute.xlu0 %6877
    %v6879 = vlaneseq
    %v6880 = vshrl.u32 %v6879, 7
    %v6881 = vsub.s32 5, %v6880
    %v6882 = vrot.slane %v6843, %v6881
    %6884 = vbcast.lane.b32.xlu0 %v6882, 256
    %v6885 = vpop.permute.xlu0 %6884
    %v6886 = vlaneseq
    %v6887 = vshrl.u32 %v6886, 7
    %v6888 = vsub.s32 6, %v6887
    %v6889 = vrot.slane %v6843, %v6888
    %6891 = vbcast.lane.b32.xlu0 %v6889, 256
    %v6892 = vpop.permute.xlu0 %6891
    %v6893 = vlaneseq
    %v6894 = vshrl.u32 %v6893, 7
    %v6895 = vsub.s32 7, %v6894
    %v6896 = vrot.slane %v6843, %v6895
    %6898 = vbcast.lane.b32.xlu0 %v6896, 256
    %v6899 = vpop.permute.xlu0 %6898
    %v6900 = vmul.f32 %v6850, %v3876
    %v6901 = vmul.f32 %v6857, %v3881
    %v6902 = vmul.f32 %v6864, %v3886
    %v6903 = vmul.f32 %v6871, %v3891
    %v6904 = vmul.f32 %v6878, %v3896
    %v6905 = vmul.f32 %v6885, %v3901
    %v6906 = vmul.f32 %v6892, %v3906
    %v6907 = vmul.f32 %v6899, %v3911
    %v6908 = vsel %vm564, %v6900, 0.0
    %v6909 = vrot.slane %v6908, 4
    %v6910 = vadd.f32 %v6908, %v6909
    %v6911 = vrot.slane %v6910, 2
    %v6912 = vadd.f32 %v6910, %v6911
    %v6913 = vrot.slane %v6912, 1
    %v6914 = vadd.f32 %v6912, %v6913
    %v6915 = vsel %vm564, %v6901, 0.0
    %v6916 = vrot.slane %v6915, 4
    %v6917 = vadd.f32 %v6915, %v6916
    %v6918 = vrot.slane %v6917, 2
    %v6919 = vadd.f32 %v6917, %v6918
    %v6920 = vrot.slane %v6919, 1
    %v6921 = vadd.f32 %v6919, %v6920
    %v6922 = vsel %vm564, %v6902, 0.0
    %v6923 = vrot.slane %v6922, 4
    %v6924 = vadd.f32 %v6922, %v6923
    %v6925 = vrot.slane %v6924, 2
    %v6926 = vadd.f32 %v6924, %v6925
    %v6927 = vrot.slane %v6926, 1
    %v6928 = vadd.f32 %v6926, %v6927
    %v6929 = vsel %vm564, %v6903, 0.0
    %v6930 = vrot.slane %v6929, 4
    %v6931 = vadd.f32 %v6929, %v6930
    %v6932 = vrot.slane %v6931, 2
    %v6933 = vadd.f32 %v6931, %v6932
    %v6934 = vrot.slane %v6933, 1
    %v6935 = vadd.f32 %v6933, %v6934
    %v6936 = vsel %vm564, %v6904, 0.0
    %v6937 = vrot.slane %v6936, 4
    %v6938 = vadd.f32 %v6936, %v6937
    %v6939 = vrot.slane %v6938, 2
    %v6940 = vadd.f32 %v6938, %v6939
    %v6941 = vrot.slane %v6940, 1
    %v6942 = vadd.f32 %v6940, %v6941
    %v6943 = vsel %vm564, %v6905, 0.0
    %v6944 = vrot.slane %v6943, 4
    %v6945 = vadd.f32 %v6943, %v6944
    %v6946 = vrot.slane %v6945, 2
    %v6947 = vadd.f32 %v6945, %v6946
    %v6948 = vrot.slane %v6947, 1
    %v6949 = vadd.f32 %v6947, %v6948
    %v6950 = vsel %vm564, %v6906, 0.0
    %v6951 = vrot.slane %v6950, 4
    %v6952 = vadd.f32 %v6950, %v6951
    %v6953 = vrot.slane %v6952, 2
    %v6954 = vadd.f32 %v6952, %v6953
    %v6955 = vrot.slane %v6954, 1
    %v6956 = vadd.f32 %v6954, %v6955
    %v6957 = vsel %vm564, %v6907, 0.0
    %v6958 = vrot.slane %v6957, 4
    %v6959 = vadd.f32 %v6957, %v6958
    %v6960 = vrot.slane %v6959, 2
    %v6961 = vadd.f32 %v6959, %v6960
    %v6962 = vrot.slane %v6961, 1
    %v6963 = vadd.f32 %v6961, %v6962
    %v6964 = vld [vmem:[%s3494] sm:$0x1]
    %s6966 = vtos %v6964
    %v6967 = vstv %s6966
    %v6969 = vmul.f32 %v6967, %v4005
    %v6970 = vadd.f32 %v6969, 0.0
    %v6971 = vld [vmem:[%s3494 + $0x1] sm:$0x1]
    %s6973 = vtos %v6971
    %v6974 = vstv %s6973
    %v6976 = vmul.f32 %v6974, %v4010
    %v6977 = vadd.f32 %v6970, %v6976
    %v6978 = vld [vmem:[%s3494 + $0x2] sm:$0x1]
    %s6980 = vtos %v6978
    %v6981 = vstv %s6980
    %v6983 = vmul.f32 %v6981, %v4015
    %v6984 = vadd.f32 %v6977, %v6983
    %v6985 = vld [vmem:[%s3494 + $0x3] sm:$0x1]
    %s6987 = vtos %v6985
    %v6988 = vstv %s6987
    %v6990 = vmul.f32 %v6988, %v4020
    %v6991 = vadd.f32 %v6984, %v6990
    %v6992 = vld [vmem:[%s3494 + $0x4] sm:$0x1]
    %s6994 = vtos %v6992
    %v6995 = vstv %s6994
    %v6997 = vmul.f32 %v6995, %v4025
    %v6998 = vadd.f32 %v6991, %v6997
    %v6999 = vld [vmem:[%s3494 + $0x5] sm:$0x1]
    %s7001 = vtos %v6999
    %v7002 = vstv %s7001
    %v7004 = vmul.f32 %v7002, %v4030
    %v7005 = vadd.f32 %v6998, %v7004
    %v7006 = vld [vmem:[%s3494 + $0x6] sm:$0x1]
    %s7008 = vtos %v7006
    %v7009 = vstv %s7008
    %v7011 = vmul.f32 %v7009, %v4035
    %v7012 = vadd.f32 %v7005, %v7011
    %v7013 = vld [vmem:[%s3494 + $0x7] sm:$0x1]
    %s7015 = vtos %v7013
    %v7016 = vstv %s7015
    %v7018 = vmul.f32 %v7016, %v4040
    %v7019 = vadd.f32 %v7012, %v7018
    %v7020 = vld [vmem:[%s11 + $0x3] sm:$0x1]
    %s7022 = vtos %v7020
    %v7023 = vstv %s7022
    %v7025 = vadd.f32 %v7019, %v7023
    %v7026 = vxor.u32 %v7025, 2147483648
    %v7027 = vmul.f32 %v7026, 1.442695
    %v7028 = vpow.pop %v7027
    %v7029 = vadd.f32 %v7028, 1.0
    %v7030 = vrcp.pop %v7029
    %v7031 = vmul.f32 1.0, %v7030
    %v7040 = vsel %vm780, %v6921, %v6914
    %v7041 = vsel %vm782, %v6928, %v7040
    %v7042 = vsel %vm784, %v6935, %v7041
    %v7043 = vsel %vm786, %v6942, %v7042
    %v7044 = vsel %vm788, %v6949, %v7043
    %v7045 = vsel %vm790, %v6956, %v7044
    %v7046 = vsel %vm792, %v6963, %v7045
    %v7048 = vmul.f32 %v7031, %v7046
    %7049 = vrot.lane.b32.xlu0 %v6346, 40
    %v7050 = vpop.permute.xlu0 %7049
    %v7053 = vsel %vm564, %v6843, 0
    %7055 = vmatprep.subr.mxu0 0.0
    %7056 = vmatpush1.msra.mxu0 %v7050
    %7057 = vmatprep.subr.mxu0 0.0
    %7058 = vmatpush1.msra.mxu0 0.0
    %7059 = vmatprep.subr.mxu0 0.0
    %7060 = vmatpush1.msra.mxu0 0.0
    %7061 = vmatprep.subr.mxu0 0.0
    %7062 = vmatpush1.msra.mxu0 0.0
    %7063 = vmatprep.subr.mxu0 0.0
    %7064 = vmatpush1.msra.mxu0 0.0
    %7065 = vmatprep.subr.mxu0 0.0
    %7066 = vmatpush1.msra.mxu0 0.0
    %7067 = vmatprep.subr.mxu0 0.0
    %7068 = vmatpush1.msra.mxu0 0.0
    %7069 = vmatprep.subr.mxu0 0.0
    %7070 = vmatpush1.msra.mxu0 0.0
    %7071 = vmatprep.subr.mxu0 0.0
    %7072 = vmatpush1.msra.mxu0 0.0
    %7073 = vmatprep.subr.mxu0 0.0
    %7074 = vmatpush1.msra.mxu0 0.0
    %7075 = vmatprep.subr.mxu0 0.0
    %7076 = vmatpush1.msra.mxu0 0.0
    %7077 = vmatprep.subr.mxu0 0.0
    %7078 = vmatpush1.msra.mxu0 0.0
    %7079 = vmatprep.subr.mxu0 0.0
    %7080 = vmatpush1.msra.mxu0 0.0
    %7081 = vmatprep.subr.mxu0 0.0
    %7082 = vmatpush1.msra.mxu0 0.0
    %7083 = vmatprep.subr.mxu0 0.0
    %7084 = vmatpush1.msra.mxu0 0.0
    %7085 = vmatprep.subr.mxu0 0.0
    %7086 = vmatpush1.msra.mxu0 0.0
    %7087 = vmatprep.subr.mxu0 0.0
    %7088 = vmatpush1.msra.mxu0 0.0
    %7089 = vmatprep.subr.mxu0 0.0
    %7090 = vmatpush1.msra.mxu0 0.0
    %7091 = vmatprep.subr.mxu0 0.0
    %7092 = vmatpush1.msra.mxu0 0.0
    %7093 = vmatprep.subr.mxu0 0.0
    %7094 = vmatpush1.msra.mxu0 0.0
    %7095 = vmatprep.subr.mxu0 0.0
    %7096 = vmatpush1.msra.mxu0 0.0
    %7097 = vmatprep.subr.mxu0 0.0
    %7098 = vmatpush1.msra.mxu0 0.0
    %7099 = vmatprep.subr.mxu0 0.0
    %7100 = vmatpush1.msra.mxu0 0.0
    %7101 = vmatprep.subr.mxu0 0.0
    %7102 = vmatpush1.msra.mxu0 0.0
    %7103 = vmatprep.subr.mxu0 0.0
    %7104 = vmatpush1.msra.mxu0 0.0
    %7105 = vmatprep.subr.mxu0 0.0
    %7106 = vmatpush1.msra.mxu0 0.0
    %7107 = vmatprep.subr.mxu0 0.0
    %7108 = vmatpush1.msra.mxu0 0.0
    %7109 = vmatprep.subr.mxu0 0.0
    %7110 = vmatpush1.msra.mxu0 0.0
    %7111 = vmatprep.subr.mxu0 0.0
    %7112 = vmatpush1.msra.mxu0 0.0
    %7113 = vmatprep.subr.mxu0 0.0
    %7114 = vmatpush1.msra.mxu0 0.0
    %7115 = vmatprep.subr.mxu0 0.0
    %7116 = vmatpush1.msra.mxu0 0.0
    %7117 = vmatprep.subr.mxu0 0.0
    %7118 = vmatpush1.msra.mxu0 0.0
    %7119 = vmatprep.mubr.f32.mxu0 0.0
    %7120 = vmatmul.mubr.f32.gmra.mrb[0].mxu0 %v7053
    %v7121 = vpop.f32.mrb[0].mxu0
    %v7122 = vadd.f32 %v7048, %v7121
    %v7123 = vpop.f32.mrb[0].mxu0
    %7124 = vdwg.mxu0
    %7126 = vrot.lane.b32.xlu0 %v7122, 24
    %v7127 = vpop.permute.xlu0 %7126
    %7129 = vst.msk [vmem:[#allocation3 + $0x8] sm:$0xff] %vm3660, %v7127
    %v7130 = vld [vmem:[#allocation3] sm:$0xff]
    %v7131 = vld [vmem:[#allocation3 + $0x8] sm:$0xff]
    %v7132 = vld [vmem:[%s12] sm:$0xff]
    %v7133 = vld [vmem:[%s12 + $0x8] sm:$0xff]
    %v7134 = vld [vmem:[%s12 + $0x10] sm:$0xff]
    %v7135 = vld [vmem:[%s12 + $0x18] sm:$0xff]
    %v7136 = vld [vmem:[%s13] sm:$0x1]
    %v7138 = vlaneseq
    %v7139 = vshrl.u32 %v7138, 7
    %v7140 = vsub.s32 0, %v7139
    %v7141 = vrot.slane %v7136, %v7140
    %v7144 = vsel %vm85, %v7130, 0
    %v7147 = vsel %vm85, %v7131, 0
    %7149 = vmatprep.subr.mxu0 0.0
    %7150 = vmatpush1.msra.mxu0 %v7132
    %7151 = vmatprep.subr.mxu0 0.0
    %7152 = vmatpush1.msra.mxu0 %v7133
    %7153 = vmatprep.subr.mxu0 0.0
    %7154 = vmatpush1.msra.mxu0 %v7134
    %7155 = vmatprep.subr.mxu0 0.0
    %7156 = vmatpush1.msra.mxu0 %v7135
    %7157 = vmatprep.subr.mxu0 0.0
    %7158 = vmatpush1.msra.mxu0 0.0
    %7159 = vmatprep.subr.mxu0 0.0
    %7160 = vmatpush1.msra.mxu0 0.0
    %7161 = vmatprep.subr.mxu0 0.0
    %7162 = vmatpush1.msra.mxu0 0.0
    %7163 = vmatprep.subr.mxu0 0.0
    %7164 = vmatpush1.msra.mxu0 0.0
    %7165 = vmatprep.subr.mxu0 0.0
    %7166 = vmatpush1.msra.mxu0 0.0
    %7167 = vmatprep.subr.mxu0 0.0
    %7168 = vmatpush1.msra.mxu0 0.0
    %7169 = vmatprep.subr.mxu0 0.0
    %7170 = vmatpush1.msra.mxu0 0.0
    %7171 = vmatprep.subr.mxu0 0.0
    %7172 = vmatpush1.msra.mxu0 0.0
    %7173 = vmatprep.subr.mxu0 0.0
    %7174 = vmatpush1.msra.mxu0 0.0
    %7175 = vmatprep.subr.mxu0 0.0
    %7176 = vmatpush1.msra.mxu0 0.0
    %7177 = vmatprep.subr.mxu0 0.0
    %7178 = vmatpush1.msra.mxu0 0.0
    %7179 = vmatprep.subr.mxu0 0.0
    %7180 = vmatpush1.msra.mxu0 0.0
    %7181 = vmatprep.subr.mxu0 0.0
    %7182 = vmatpush1.msra.mxu0 0.0
    %7183 = vmatprep.subr.mxu0 0.0
    %7184 = vmatpush1.msra.mxu0 0.0
    %7185 = vmatprep.subr.mxu0 0.0
    %7186 = vmatpush1.msra.mxu0 0.0
    %7187 = vmatprep.subr.mxu0 0.0
    %7188 = vmatpush1.msra.mxu0 0.0
    %7189 = vmatprep.subr.mxu0 0.0
    %7190 = vmatpush1.msra.mxu0 0.0
    %7191 = vmatprep.subr.mxu0 0.0
    %7192 = vmatpush1.msra.mxu0 0.0
    %7193 = vmatprep.subr.mxu0 0.0
    %7194 = vmatpush1.msra.mxu0 0.0
    %7195 = vmatprep.subr.mxu0 0.0
    %7196 = vmatpush1.msra.mxu0 0.0
    %7197 = vmatprep.subr.mxu0 0.0
    %7198 = vmatpush1.msra.mxu0 0.0
    %7199 = vmatprep.subr.mxu0 0.0
    %7200 = vmatpush1.msra.mxu0 0.0
    %7201 = vmatprep.subr.mxu0 0.0
    %7202 = vmatpush1.msra.mxu0 0.0
    %7203 = vmatprep.subr.mxu0 0.0
    %7204 = vmatpush1.msra.mxu0 0.0
    %7205 = vmatprep.subr.mxu0 0.0
    %7206 = vmatpush1.msra.mxu0 0.0
    %7207 = vmatprep.subr.mxu0 0.0
    %7208 = vmatpush1.msra.mxu0 0.0
    %7209 = vmatprep.subr.mxu0 0.0
    %7210 = vmatpush1.msra.mxu0 0.0
    %7211 = vmatprep.subr.mxu0 0.0
    %7212 = vmatpush1.msra.mxu0 0.0
    %7213 = vmatprep.mubr.f32.mxu0 0.0
    %7214 = vmatmul.mubr.f32.gmra.mrb[0].mxu0 %v7144
    %v7215 = vpop.f32.mrb[0].mxu0
    %v7216 = vadd.f32 %v7141, %v7215
    %v7217 = vpop.f32.mrb[0].mxu0
    %7218 = vmatprep.mubr.f32.mxu0 0.0
    %7219 = vmatmul.mubr.f32.gmra.mrb[0].mxu0 %v7147
    %v7220 = vpop.f32.mrb[0].mxu0
    %v7221 = vadd.f32 %v7141, %v7220
    %v7222 = vpop.f32.mrb[0].mxu0
    %7223 = vdwg.mxu0
    %v7224 = vadd.f32 %v7216, %v72
    %v7225 = vadd.f32 %v7221, %v73
    %v7226 = vld [vmem:[%s14] sm:$0x1]
    %v7227 = vld [vmem:[%s15] sm:$0x1]
    %v7228 = vsel %vm85, %v7224, 0.0
    %7229 = vadd.xlane.f32.xlu0 %v7228
    %v7230 = vpop.xlane.xlu0 %7229
    %v7231 = vsel %vm85, %v7225, 0.0
    %7232 = vadd.xlane.f32.xlu0 %v7231
    %v7233 = vpop.xlane.xlu0 %7232
    %v7234 = vrcp.pop 32.0
    %v7235 = vmul.f32 %v7230, %v7234
    %v7236 = vmul.f32 %v7233, %v7234
    %v7237 = vsub.f32 %v7224, %v7235
    %v7238 = vsub.f32 %v7225, %v7236
    %v7239 = vmul.f32 %v7237, %v7237
    %v7240 = vmul.f32 %v7238, %v7238
    %v7241 = vsel %vm85, %v7239, 0.0
    %7242 = vadd.xlane.f32.xlu0 %v7241
    %v7243 = vpop.xlane.xlu0 %7242
    %v7244 = vsel %vm85, %v7240, 0.0
    %7245 = vadd.xlane.f32.xlu0 %v7244
    %v7246 = vpop.xlane.xlu0 %7245
    %v7247 = vmul.f32 %v7243, %v7234
    %v7248 = vmul.f32 %v7246, %v7234
    %v7249 = vadd.f32 %v7247, 1e-12
    %v7250 = vadd.f32 %v7248, 1e-12
    %v7251 = vrsqrt.pop %v7249
    %v7252 = vrsqrt.pop %v7250
    %v7253 = vmul.f32 %v7237, %v7251
    %v7254 = vmul.f32 %v7238, %v7252
    %v7256 = vlaneseq
    %v7257 = vshrl.u32 %v7256, 7
    %v7258 = vsub.s32 0, %v7257
    %v7259 = vrot.slane %v7226, %v7258
    %v7261 = vmul.f32 %v7253, %v7259
    %v7262 = vmul.f32 %v7254, %v7259
    %v7264 = vlaneseq
    %v7265 = vshrl.u32 %v7264, 7
    %v7266 = vsub.s32 0, %v7265
    %v7267 = vrot.slane %v7227, %v7266
    %v7269 = vadd.f32 %v7261, %v7267
    %v7270 = vadd.f32 %v7262, %v7267
    %v7271 = vld [vmem:[%s16] sm:$0xff]
    %v7272 = vld [vmem:[%s16 + $0x8] sm:$0xff]
    %v7273 = vld [vmem:[%s16 + $0x10] sm:$0xff]
    %v7274 = vld [vmem:[%s16 + $0x18] sm:$0xff]
    %v7275 = vld [vmem:[%s17] sm:$0x1]
    %v7277 = vlaneseq
    %v7278 = vshrl.u32 %v7277, 7
    %v7279 = vsub.s32 0, %v7278
    %v7280 = vrot.slane %v7275, %v7279
    %v7283 = vsel %vm85, %v7269, 0
    %v7286 = vsel %vm85, %v7270, 0
    %7288 = vmatprep.subr.mxu0 0.0
    %7289 = vmatpush1.msra.mxu0 %v7271
    %7290 = vmatprep.subr.mxu0 0.0
    %7291 = vmatpush1.msra.mxu0 %v7272
    %7292 = vmatprep.subr.mxu0 0.0
    %7293 = vmatpush1.msra.mxu0 %v7273
    %7294 = vmatprep.subr.mxu0 0.0
    %7295 = vmatpush1.msra.mxu0 %v7274
    %7296 = vmatprep.subr.mxu0 0.0
    %7297 = vmatpush1.msra.mxu0 0.0
    %7298 = vmatprep.subr.mxu0 0.0
    %7299 = vmatpush1.msra.mxu0 0.0
    %7300 = vmatprep.subr.mxu0 0.0
    %7301 = vmatpush1.msra.mxu0 0.0
    %7302 = vmatprep.subr.mxu0 0.0
    %7303 = vmatpush1.msra.mxu0 0.0
    %7304 = vmatprep.subr.mxu0 0.0
    %7305 = vmatpush1.msra.mxu0 0.0
    %7306 = vmatprep.subr.mxu0 0.0
    %7307 = vmatpush1.msra.mxu0 0.0
    %7308 = vmatprep.subr.mxu0 0.0
    %7309 = vmatpush1.msra.mxu0 0.0
    %7310 = vmatprep.subr.mxu0 0.0
    %7311 = vmatpush1.msra.mxu0 0.0
    %7312 = vmatprep.subr.mxu0 0.0
    %7313 = vmatpush1.msra.mxu0 0.0
    %7314 = vmatprep.subr.mxu0 0.0
    %7315 = vmatpush1.msra.mxu0 0.0
    %7316 = vmatprep.subr.mxu0 0.0
    %7317 = vmatpush1.msra.mxu0 0.0
    %7318 = vmatprep.subr.mxu0 0.0
    %7319 = vmatpush1.msra.mxu0 0.0
    %7320 = vmatprep.subr.mxu0 0.0
    %7321 = vmatpush1.msra.mxu0 0.0
    %7322 = vmatprep.subr.mxu0 0.0
    %7323 = vmatpush1.msra.mxu0 0.0
    %7324 = vmatprep.subr.mxu0 0.0
    %7325 = vmatpush1.msra.mxu0 0.0
    %7326 = vmatprep.subr.mxu0 0.0
    %7327 = vmatpush1.msra.mxu0 0.0
    %7328 = vmatprep.subr.mxu0 0.0
    %7329 = vmatpush1.msra.mxu0 0.0
    %7330 = vmatprep.subr.mxu0 0.0
    %7331 = vmatpush1.msra.mxu0 0.0
    %7332 = vmatprep.subr.mxu0 0.0
    %7333 = vmatpush1.msra.mxu0 0.0
    %7334 = vmatprep.subr.mxu0 0.0
    %7335 = vmatpush1.msra.mxu0 0.0
    %7336 = vmatprep.subr.mxu0 0.0
    %7337 = vmatpush1.msra.mxu0 0.0
    %7338 = vmatprep.subr.mxu0 0.0
    %7339 = vmatpush1.msra.mxu0 0.0
    %7340 = vmatprep.subr.mxu0 0.0
    %7341 = vmatpush1.msra.mxu0 0.0
    %7342 = vmatprep.subr.mxu0 0.0
    %7343 = vmatpush1.msra.mxu0 0.0
    %7344 = vmatprep.subr.mxu0 0.0
    %7345 = vmatpush1.msra.mxu0 0.0
    %7346 = vmatprep.subr.mxu0 0.0
    %7347 = vmatpush1.msra.mxu0 0.0
    %7348 = vmatprep.subr.mxu0 0.0
    %7349 = vmatpush1.msra.mxu0 0.0
    %7350 = vmatprep.subr.mxu0 0.0
    %7351 = vmatpush1.msra.mxu0 0.0
    %7352 = vmatprep.mubr.f32.mxu0 0.0
    %7353 = vmatmul.mubr.f32.gmra.mrb[0].mxu0 %v7283
    %v7354 = vpop.f32.mrb[0].mxu0
    %v7355 = vadd.f32 %v7280, %v7354
    %v7356 = vpop.f32.mrb[0].mxu0
    %7357 = vmatprep.mubr.f32.mxu0 0.0
    %7358 = vmatmul.mubr.f32.gmra.mrb[0].mxu0 %v7286
    %v7359 = vpop.f32.mrb[0].mxu0
    %v7360 = vadd.f32 %v7280, %v7359
    %v7361 = vpop.f32.mrb[0].mxu0
    %7362 = vdwg.mxu0
    %v7363 = vmul.f32 %v7355, %v7355
    %v7364 = vmul.f32 %v7360, %v7360
    %v7365 = vmul.f32 %v7355, %v7363
    %v7366 = vmul.f32 %v7360, %v7364
    %v7367 = vmul.f32 %v7365, 0.044715
    %v7368 = vmul.f32 %v7366, 0.044715
    %v7369 = vadd.f32 %v7355, %v7367
    %v7370 = vadd.f32 %v7360, %v7368
    %v7371 = vmul.f32 %v7369, 0.7978846
    %v7372 = vmul.f32 %v7370, 0.7978846
    %v7373 = vtanh.pop %v7371
    %v7374 = vtanh.pop %v7372
    %v7375 = vadd.f32 %v7373, 1.0
    %v7376 = vadd.f32 %v7374, 1.0
    %v7377 = vmul.f32 %v7375, 0.5
    %v7378 = vmul.f32 %v7376, 0.5
    %v7379 = vmul.f32 %v7355, %v7377
    %v7380 = vmul.f32 %v7360, %v7378
    %v7381 = vld [vmem:[%s18] sm:$0xff]
    %v7382 = vld [vmem:[%s18 + $0x8] sm:$0xff]
    %v7383 = vld [vmem:[%s18 + $0x10] sm:$0xff]
    %v7384 = vld [vmem:[%s18 + $0x18] sm:$0xff]
    %v7385 = vld [vmem:[%s18 + $0x20] sm:$0xff]
    %v7386 = vld [vmem:[%s18 + $0x28] sm:$0xff]
    %v7387 = vld [vmem:[%s18 + $0x30] sm:$0xff]
    %v7388 = vld [vmem:[%s18 + $0x38] sm:$0xff]
    %v7389 = vld [vmem:[%s19] sm:$0x1]
    %v7391 = vlaneseq
    %v7392 = vshrl.u32 %v7391, 7
    %v7393 = vsub.s32 0, %v7392
    %v7394 = vrot.slane %v7389, %v7393
    %vm7396 = vcmask 523264
    %v7398 = vsel %vm7396, %v7379, 0
    %v7401 = vsel %vm7396, %v7380, 0
    %7403 = vmatprep.subr.mxu0 0.0
    %7404 = vmatpush1.msra.mxu0 %v7381
    %7405 = vmatprep.subr.mxu0 0.0
    %7406 = vmatpush1.msra.mxu0 %v7382
    %7407 = vmatprep.subr.mxu0 0.0
    %7408 = vmatpush1.msra.mxu0 %v7383
    %7409 = vmatprep.subr.mxu0 0.0
    %7410 = vmatpush1.msra.mxu0 %v7384
    %7411 = vmatprep.subr.mxu0 0.0
    %7412 = vmatpush1.msra.mxu0 %v7385
    %7413 = vmatprep.subr.mxu0 0.0
    %7414 = vmatpush1.msra.mxu0 %v7386
    %7415 = vmatprep.subr.mxu0 0.0
    %7416 = vmatpush1.msra.mxu0 %v7387
    %7417 = vmatprep.subr.mxu0 0.0
    %7418 = vmatpush1.msra.mxu0 %v7388
    %7419 = vmatprep.subr.mxu0 0.0
    %7420 = vmatpush1.msra.mxu0 0.0
    %7421 = vmatprep.subr.mxu0 0.0
    %7422 = vmatpush1.msra.mxu0 0.0
    %7423 = vmatprep.subr.mxu0 0.0
    %7424 = vmatpush1.msra.mxu0 0.0
    %7425 = vmatprep.subr.mxu0 0.0
    %7426 = vmatpush1.msra.mxu0 0.0
    %7427 = vmatprep.subr.mxu0 0.0
    %7428 = vmatpush1.msra.mxu0 0.0
    %7429 = vmatprep.subr.mxu0 0.0
    %7430 = vmatpush1.msra.mxu0 0.0
    %7431 = vmatprep.subr.mxu0 0.0
    %7432 = vmatpush1.msra.mxu0 0.0
    %7433 = vmatprep.subr.mxu0 0.0
    %7434 = vmatpush1.msra.mxu0 0.0
    %7435 = vmatprep.subr.mxu0 0.0
    %7436 = vmatpush1.msra.mxu0 0.0
    %7437 = vmatprep.subr.mxu0 0.0
    %7438 = vmatpush1.msra.mxu0 0.0
    %7439 = vmatprep.subr.mxu0 0.0
    %7440 = vmatpush1.msra.mxu0 0.0
    %7441 = vmatprep.subr.mxu0 0.0
    %7442 = vmatpush1.msra.mxu0 0.0
    %7443 = vmatprep.subr.mxu0 0.0
    %7444 = vmatpush1.msra.mxu0 0.0
    %7445 = vmatprep.subr.mxu0 0.0
    %7446 = vmatpush1.msra.mxu0 0.0
    %7447 = vmatprep.subr.mxu0 0.0
    %7448 = vmatpush1.msra.mxu0 0.0
    %7449 = vmatprep.subr.mxu0 0.0
    %7450 = vmatpush1.msra.mxu0 0.0
    %7451 = vmatprep.subr.mxu0 0.0
    %7452 = vmatpush1.msra.mxu0 0.0
    %7453 = vmatprep.subr.mxu0 0.0
    %7454 = vmatpush1.msra.mxu0 0.0
    %7455 = vmatprep.subr.mxu0 0.0
    %7456 = vmatpush1.msra.mxu0 0.0
    %7457 = vmatprep.subr.mxu0 0.0
    %7458 = vmatpush1.msra.mxu0 0.0
    %7459 = vmatprep.subr.mxu0 0.0
    %7460 = vmatpush1.msra.mxu0 0.0
    %7461 = vmatprep.subr.mxu0 0.0
    %7462 = vmatpush1.msra.mxu0 0.0
    %7463 = vmatprep.subr.mxu0 0.0
    %7464 = vmatpush1.msra.mxu0 0.0
    %7465 = vmatprep.subr.mxu0 0.0
    %7466 = vmatpush1.msra.mxu0 0.0
    %7467 = vmatprep.mubr.f32.mxu0 0.0
    %7468 = vmatmul.mubr.f32.gmra.mrb[0].mxu0 %v7398
    %v7469 = vpop.f32.mrb[0].mxu0
    %v7470 = vadd.f32 %v7394, %v7469
    %v7471 = vpop.f32.mrb[0].mxu0
    %7472 = vmatprep.mubr.f32.mxu0 0.0
    %7473 = vmatmul.mubr.f32.gmra.mrb[0].mxu0 %v7401
    %v7474 = vpop.f32.mrb[0].mxu0
    %v7475 = vadd.f32 %v7394, %v7474
    %v7476 = vpop.f32.mrb[0].mxu0
    %7477 = vdwg.mxu0
    %v7478 = vadd.f32 %v7470, %v7269
    %v7479 = vadd.f32 %v7475, %v7270
    %v7480 = vld [vmem:[%s20] sm:$0x1]
    %v7481 = vld [vmem:[%s21] sm:$0x1]
    %v7482 = vsel %vm85, %v7478, 0.0
    %7483 = vadd.xlane.f32.xlu0 %v7482
    %v7484 = vpop.xlane.xlu0 %7483
    %v7485 = vsel %vm85, %v7479, 0.0
    %7486 = vadd.xlane.f32.xlu0 %v7485
    %v7487 = vpop.xlane.xlu0 %7486
    %v7488 = vmul.f32 %v7484, %v7234
    %v7489 = vmul.f32 %v7487, %v7234
    %v7490 = vsub.f32 %v7478, %v7488
    %v7491 = vsub.f32 %v7479, %v7489
    %v7492 = vmul.f32 %v7490, %v7490
    %v7493 = vmul.f32 %v7491, %v7491
    %v7494 = vsel %vm85, %v7492, 0.0
    %7495 = vadd.xlane.f32.xlu0 %v7494
    %v7496 = vpop.xlane.xlu0 %7495
    %v7497 = vsel %vm85, %v7493, 0.0
    %7498 = vadd.xlane.f32.xlu0 %v7497
    %v7499 = vpop.xlane.xlu0 %7498
    %v7500 = vmul.f32 %v7496, %v7234
    %v7501 = vmul.f32 %v7499, %v7234
    %v7502 = vadd.f32 %v7500, 1e-12
    %v7503 = vadd.f32 %v7501, 1e-12
    %v7504 = vrsqrt.pop %v7502
    %v7505 = vrsqrt.pop %v7503
    %v7506 = vmul.f32 %v7490, %v7504
    %v7507 = vmul.f32 %v7491, %v7505
    %v7509 = vlaneseq
    %v7510 = vshrl.u32 %v7509, 7
    %v7511 = vsub.s32 0, %v7510
    %v7512 = vrot.slane %v7480, %v7511
    %v7514 = vmul.f32 %v7506, %v7512
    %v7515 = vmul.f32 %v7507, %v7512
    %v7517 = vlaneseq
    %v7518 = vshrl.u32 %v7517, 7
    %v7519 = vsub.s32 0, %v7518
    %v7520 = vrot.slane %v7481, %v7519
    %v7522 = vadd.f32 %v7514, %v7520
    %v7523 = vadd.f32 %v7515, %v7520
    %7524 = vst.msk [vmem:[#allocation4] sm:$0xff] %vm85, %v7522
    %7525 = vst.msk [vmem:[#allocation4 + $0x8] sm:$0xff] %vm85, %v7523
    // Predicated region
    $region90: #{bert_graph_layer.1} parent=1 // pred_check
      _
    $region91: #{bert_graph_layer.1} parent=1 // pred_check_branch
      %7527 = sbr.rel (0) target = $region93
    $region92: #{bert_graph_layer.1} parent=1 // pred_region
      %s7529 = ssub.s32 256, 256
      %7530 = vsyncadd [#allocation5], %s7529
      %s7531 = sshll.u32 [#allocation4], 4
      %s7532 = int_to_ptr.vmem [resolvable:$true] %s7531
      %7537 = dma.vmem_to_hbm [thread:$0]  %s7532, 256, %s22, [#allocation5], 128, 128, 8
    $region93: #{bert_graph_layer.1} parent=1 // pred_fallthru
      _
    // Predicated region
    $region94: #{bert_graph_layer.1} parent=1 // pred_check
      _
    $region95: #{bert_graph_layer.1} parent=1 // pred_check_branch
      %7539 = sbr.rel (0) target = $region97
    $region96: #{bert_graph_layer.1} parent=1 // pred_region
      %7540 = dma.done [#allocation5], 256
    $region97: #{bert_graph_layer.1} parent=1 // pred_fallthru
      _
    %7541 = vsyncpa [#allocation5], 1

</llo_original>
